<compile_context>
chip_gen: v7x
topology: tpu7x:2x2x1
jax: 0.10.0
libtpu: 0.0.40
codegen_flags: <defaults>
</compile_context>

<pallas_src>
import functools

import jax
import jax.numpy as jnp
from jax.experimental import pallas as pl
from jax.experimental.pallas import tpu as pltpu


_ROW_STRIP = 16  # output rows per in-kernel strip.  H is a plain leading axis in the
                 # NHWC layout, so strips need no sublane alignment; 16 keeps the two
                 # f32 accumulators + the 7 shifted bands comfortably in VMEM temps.


def repvggdw_kernel(x_ref, w_ref, b_ref, o_ref, *, row_strip, approx_recip):
    """Fused 49-tap depthwise conv + bias + SiLU for one (batch, channel-tile).

    Channels-on-lanes layout:
      x_ref : (1, H+6, W+6, TC)  VMEM  zero-padded input block (pad=3 each side)
      w_ref : (49, TC)           VMEM  BN-folded 7x7 taps (3x3 branch folded in),
                                       one lane vector per tap (compute dtype)
      b_ref : (1, TC)            VMEM  combined BN bias of both branches (f32)
      o_ref : (1, H, W, TC)      VMEM  output block
    """
    H, W, TC = o_ref.shape[1], o_ref.shape[2], o_ref.shape[3]

    # Hoist tap / bias loads out of the spatial loops; each tap is a (TC,) lane
    # vector shared by every output pixel of the strip.
    taps = w_ref[...]                        # (49, TC), compute dtype
    bias = b_ref[0, :].astype(jnp.float32)   # (TC,)

    for s0 in range(0, H, row_strip):        # static strip loop (H is static)
        rows = min(row_strip, H - s0)
        # (rows+6, W+6, TC) band; row offsets ride the leading axis (addressing).
        xs = x_ref[0, s0:s0 + rows + 6, :, :]

        # Two partial f32 accumulators break the 49-deep add dependence chain
        # and keep the 4 VALU slots fed.
        acc0 = jnp.zeros((rows, W, TC), jnp.float32)
        acc1 = jnp.zeros((rows, W, TC), jnp.float32)

        for j in range(7):
            # One W-shifted band per kernel column, shared by all 7 taps of the
            # column and by all TC lane-channels: 7 sublane shifts per strip in
            # total (vs 49+ shifts per channel in the old W-on-lanes layout).
            xj = xs[:, j:j + W, :]                       # (rows+6, W, TC)
            for i in range(7):
                # The i offset is a leading-axis slice: zero-cost addressing.
                contrib = xj[i:i + rows] * taps[i * 7 + j]
                if (i + j) % 2 == 0:
                    acc0 = acc0 + contrib
                else:
                    acc1 = acc1 + contrib

        y = acc0 + acc1 + bias
        # SiLU: exp + reciprocal ride the EUP slot (approx reciprocal only on
        # the bf16 fast path so the strict f32 tolerance is unaffected).
        sig = pl.reciprocal(1.0 + jnp.exp(-y), approx=approx_recip)
        # Lane-dense store: the channel tile is the minor axis.
        o_ref[0, s0:s0 + rows, :, :] = (y * sig).astype(o_ref.dtype)


def fold_bn(gamma, beta, mean, var, eps=1e-5):
    """Return per-channel (scale, bias) so that BN(z) = scale * z + bias."""
    scale = gamma / jnp.sqrt(var + eps)
    bias = beta - scale * mean
    return scale, bias


def _pick_channel_tile(C, Hp, Wp, itemsize, budget_bytes=8 * 2 ** 20):
    """Channel tile: a multiple of 128 dividing C (lane-dense), else full C.

    Mosaic's block rule needs the minor block dim to be a multiple of 128 or
    the full array extent.  The tile grows while the per-step input block stays
    under `budget_bytes`, so per-step VMEM is bounded (v7x: 64 MiB physical).
    """
    if C % 128 != 0:
        return C
    tc = 128
    while C % (tc * 2) == 0 and (tc * 2) * Hp * Wp * itemsize <= budget_bytes:
        tc *= 2
    return tc


def _default_compute_dtype():
    """bf16 taps/activations on chips with a packed-bf16 VALU (v6e/v7x), else f32."""
    try:
        kind = jax.devices()[0].device_kind.lower()
    except Exception:
        return jnp.float32
    if any(tag in kind for tag in ("v6", "v7", "7x")):
        return jnp.bfloat16
    return jnp.float32


def repvggdw_forward(x_nchw, params, *, compute_dtype=None):
    """RepVGGDW forward.  x_nchw: (N, C, H, W) float32 -> (N, C, H, W) float32."""
    N, C, H, W = x_nchw.shape
    if compute_dtype is None:
        compute_dtype = _default_compute_dtype()
    compute_dtype = jnp.dtype(compute_dtype)

    # --- BN folding + RepVGG reparameterization (wrapper glue, not hot path) ---
    s7, b7 = fold_bn(params["bn7_gamma"], params["bn7_beta"],
                     params["bn7_mean"], params["bn7_var"])
    s3, b3 = fold_bn(params["bn3_gamma"], params["bn3_beta"],
                     params["bn3_mean"], params["bn3_var"])
    w7 = params["w7"][:, 0, :, :] * s7[:, None, None]     # (C, 7, 7)
    w3 = params["w3"][:, 0, :, :] * s3[:, None, None]     # (C, 3, 3)
    # Fold the 3x3 branch into the centre of the 7x7 taps (exact for
    # same-stride depthwise convs) -> single 49-tap kernel.
    w = w7.at[:, 2:5, 2:5].add(w3).reshape(C, 49)
    taps = w.T.astype(compute_dtype)                       # (49, C): lane vector per tap
    bias = (b7 + b3).reshape(1, C).astype(jnp.float32)     # (1, C)

    # Channels-on-lanes: the NCHW->NHWC shuffle, halo pad and optional bf16
    # downcast fuse into a single wrapper-side HBM pass.  In a full NHWC
    # pipeline (CIB's surrounding 1x1 convs) this pass disappears entirely.
    # TODO(synk): for very large H*W, additionally tile H with haloed blocks so
    # per-step VMEM stays bounded independent of image size.
    x_pad = jnp.pad(jnp.transpose(x_nchw, (0, 2, 3, 1)),
                    ((0, 0), (3, 3), (3, 3), (0, 0))).astype(compute_dtype)
    Hp, Wp = H + 6, W + 6

    TC = _pick_channel_tile(C, Hp, Wp, compute_dtype.itemsize)
    grid = (N, C // TC)

    # Bound VMEM explicitly (v7x: 64 MiB physical / 32 MiB scoped default).
    in_block = Hp * Wp * TC * compute_dtype.itemsize
    out_block = H * W * TC * x_nchw.dtype.itemsize
    vmem_limit = int(min(40 * 2 ** 20, max(16 * 2 ** 20, 3 * (in_block + out_block))))

    kernel = functools.partial(
        repvggdw_kernel,
        row_strip=_ROW_STRIP,
        approx_recip=bool(compute_dtype == jnp.dtype(jnp.bfloat16)),
    )

    out_nhwc = pl.pallas_call(
        kernel,
        out_shape=jax.ShapeDtypeStruct((N, H, W, C), x_nchw.dtype),
        grid_spec=pltpu.PrefetchScalarGridSpec(
            num_scalar_prefetch=0,
            grid=grid,
            in_specs=[
                pl.BlockSpec((1, Hp, Wp, TC), lambda n, c: (n, 0, 0, c)),
                pl.BlockSpec((49, TC), lambda n, c: (0, c)),
                pl.BlockSpec((1, TC), lambda n, c: (0, c)),
            ],
            out_specs=pl.BlockSpec((1, H, W, TC), lambda n, c: (n, 0, 0, c)),
        ),
        compiler_params=pltpu.CompilerParams(
            dimension_semantics=("parallel", "parallel"),
            vmem_limit_bytes=vmem_limit,
        ),
    )(x_pad, taps, bias)

    # Back to the module's NCHW contract (one layout pass; drop it when the
    # surrounding network already runs NHWC).
    return jnp.transpose(out_nhwc, (0, 3, 1, 2))


def reference_forward(x_nchw, params):
    """Plain-JAX reference (lax depthwise conv) for correctness check."""
    C = x_nchw.shape[1]

    def dwconv(x, w, pad):
        return jax.lax.conv_general_dilated(
            x, w, window_strides=(1, 1), padding=[(pad, pad), (pad, pad)],
            dimension_numbers=("NCHW", "OIHW", "NCHW"),
            feature_group_count=C,
            precision=jax.lax.Precision.HIGHEST)

    s7, b7 = fold_bn(params["bn7_gamma"], params["bn7_beta"],
                     params["bn7_mean"], params["bn7_var"])
    s3, b3 = fold_bn(params["bn3_gamma"], params["bn3_beta"],
                     params["bn3_mean"], params["bn3_var"])
    y7 = dwconv(x_nchw, params["w7"], 3) * s7[None, :, None, None] + b7[None, :, None, None]
    y3 = dwconv(x_nchw, params["w3"], 1) * s3[None, :, None, None] + b3[None, :, None, None]
    y = y7 + y3
    return y * jax.nn.sigmoid(y)


def make_params(key, ed):
    keys = jax.random.split(key, 8)
    return {
        "w7": jax.random.normal(keys[0], (ed, 1, 7, 7), jnp.float32) * 0.1,
        "w3": jax.random.normal(keys[1], (ed, 1, 3, 3), jnp.float32) * 0.1,
        "bn7_gamma": 1.0 + 0.1 * jax.random.normal(keys[2], (ed,), jnp.float32),
        "bn7_beta": 0.1 * jax.random.normal(keys[3], (ed,), jnp.float32),
        "bn7_mean": 0.05 * jax.random.normal(keys[4], (ed,), jnp.float32),
        "bn7_var": jnp.abs(jax.random.normal(keys[5], (ed,), jnp.float32)) * 0.5 + 0.5,
        "bn3_gamma": 1.0 + 0.1 * jax.random.normal(keys[6], (ed,), jnp.float32),
        "bn3_beta": 0.1 * jax.random.normal(keys[7], (ed,), jnp.float32),
        "bn3_mean": jnp.zeros((ed,), jnp.float32),
        "bn3_var": jnp.ones((ed,), jnp.float32),
    }


def _check(x, params, compute_dtype, tol):
    out = jax.block_until_ready(
        repvggdw_forward(x, params, compute_dtype=compute_dtype))
    ref = reference_forward(x, params)
    assert out.shape == x.shape and out.dtype == x.dtype
    err = float(jnp.max(jnp.abs(out - ref)))
    assert jnp.allclose(out, ref, atol=tol, rtol=tol), f"max abs err {err}"


if __name__ == "__main__":
    key = jax.random.PRNGKey(0)
    k_x1, k_p1, k_x2, k_p2 = jax.random.split(key, 4)

    # Main small test shape (matches the module's toy config): strict f32 path.
    N, C, H, W = 2, 4, 16, 16
    x1 = jax.random.normal(k_x1, (N, C, H, W), jnp.float32)
    p1 = make_params(k_p1, C)
    _check(x1, p1, compute_dtype=jnp.float32, tol=5e-4)

    # Second shape: more channels, non-square map, a partial last H-strip.
    N2, C2, H2, W2 = 2, 8, 24, 20
    x2 = jax.random.normal(k_x2, (N2, C2, H2, W2), jnp.float32)
    p2 = make_params(k_p2, C2)
    _check(x2, p2, compute_dtype=jnp.float32, tol=5e-4)

    # bf16 compute path (v6e/v7x fast path; f32 accumulation, looser tolerance).
    _check(x1, p1, compute_dtype=jnp.bfloat16, tol=5e-2)

    print("KERNEL_OK")
</pallas_src>

<mosaic_0001>
module attributes {stable_mosaic.version = 11 : i64} {
  func.func @repvggdw_kernel(%arg0: i32, %arg1: i32, %arg2: memref<1x22x22x4xf32, #tpu.memory_space<vmem>>, %arg3: memref<49x4xf32, #tpu.memory_space<vmem>>, %arg4: memref<1x4xf32, #tpu.memory_space<vmem>>, %arg5: memref<1x16x16x4xf32, #tpu.memory_space<vmem>>) attributes {dimension_semantics = [#tpu.dimension_semantics<parallel>, #tpu.dimension_semantics<parallel>], iteration_bounds = array<i64: 2, 1>, scalar_prefetch = 0 : i64, scratch_operands = 0 : i64, tpu.core_type = #tpu.core_type<tc>, window_params = [{transform_indices = @transform_0, window_bounds = array<i64: 1, 22, 22, 4>}, {transform_indices = @transform_1, window_bounds = array<i64: 49, 4>}, {transform_indices = @transform_2, window_bounds = array<i64: 1, 4>}, {transform_indices = @transform_3, window_bounds = array<i64: 1, 16, 16, 4>}]} {
    %c0 = arith.constant 0 : index
    %c0_0 = arith.constant 0 : index
    %0 = vector.load %arg3[%c0, %c0_0] : memref<49x4xf32, #tpu.memory_space<vmem>>, vector<49x4xf32>
    %c0_1 = arith.constant 0 : index
    %c0_2 = arith.constant 0 : index
    %1 = vector.load %arg4[%c0_1, %c0_2] : memref<1x4xf32, #tpu.memory_space<vmem>>, vector<1x4xf32>
    %2 = vector.shape_cast %1 : vector<1x4xf32> to vector<4xf32>
    %c0_3 = arith.constant 0 : index
    %c0_4 = arith.constant 0 : index
    %c0_5 = arith.constant 0 : index
    %c0_6 = arith.constant 0 : index
    %3 = vector.load %arg2[%c0_3, %c0_4, %c0_5, %c0_6] : memref<1x22x22x4xf32, #tpu.memory_space<vmem>>, vector<1x22x22x4xf32>
    %4 = vector.shape_cast %3 : vector<1x22x22x4xf32> to vector<22x22x4xf32>
    %cst = arith.constant 0.000000e+00 : f32
    %5 = vector.broadcast %cst : f32 to vector<16x16x4xf32>
    %cst_7 = arith.constant 0.000000e+00 : f32
    %6 = vector.broadcast %cst_7 : f32 to vector<16x16x4xf32>
    %7 = vector.extract_strided_slice %4 {offsets = [0, 0, 0], sizes = [22, 16, 4], strides = [1, 1, 1]} : vector<22x22x4xf32> to vector<22x16x4xf32>
    %8 = vector.extract_strided_slice %7 {offsets = [0, 0, 0], sizes = [16, 16, 4], strides = [1, 1, 1]} : vector<22x16x4xf32> to vector<16x16x4xf32>
    %9 = vector.extract_strided_slice %0 {offsets = [0, 0], sizes = [1, 4], strides = [1, 1]} : vector<49x4xf32> to vector<1x4xf32>
    %10 = vector.shape_cast %9 : vector<1x4xf32> to vector<4xf32>
    %11 = vector.shape_cast %10 : vector<4xf32> to vector<1x1x4xf32>
    %12 = vector.broadcast %11 : vector<1x1x4xf32> to vector<16x16x4xf32>
    %13 = arith.mulf %8, %12 : vector<16x16x4xf32>
    %14 = arith.addf %5, %13 : vector<16x16x4xf32>
    %15 = vector.extract_strided_slice %7 {offsets = [1, 0, 0], sizes = [16, 16, 4], strides = [1, 1, 1]} : vector<22x16x4xf32> to vector<16x16x4xf32>
    %16 = vector.extract_strided_slice %0 {offsets = [7, 0], sizes = [1, 4], strides = [1, 1]} : vector<49x4xf32> to vector<1x4xf32>
    %17 = vector.shape_cast %16 : vector<1x4xf32> to vector<4xf32>
    %18 = vector.shape_cast %17 : vector<4xf32> to vector<1x1x4xf32>
    %19 = vector.broadcast %18 : vector<1x1x4xf32> to vector<16x16x4xf32>
    %20 = arith.mulf %15, %19 : vector<16x16x4xf32>
    %21 = arith.addf %6, %20 : vector<16x16x4xf32>
    %22 = vector.extract_strided_slice %7 {offsets = [2, 0, 0], sizes = [16, 16, 4], strides = [1, 1, 1]} : vector<22x16x4xf32> to vector<16x16x4xf32>
    %23 = vector.extract_strided_slice %0 {offsets = [14, 0], sizes = [1, 4], strides = [1, 1]} : vector<49x4xf32> to vector<1x4xf32>
    %24 = vector.shape_cast %23 : vector<1x4xf32> to vector<4xf32>
    %25 = vector.shape_cast %24 : vector<4xf32> to vector<1x1x4xf32>
    %26 = vector.broadcast %25 : vector<1x1x4xf32> to vector<16x16x4xf32>
    %27 = arith.mulf %22, %26 : vector<16x16x4xf32>
    %28 = arith.addf %14, %27 : vector<16x16x4xf32>
    %29 = vector.extract_strided_slice %7 {offsets = [3, 0, 0], sizes = [16, 16, 4], strides = [1, 1, 1]} : vector<22x16x4xf32> to vector<16x16x4xf32>
    %30 = vector.extract_strided_slice %0 {offsets = [21, 0], sizes = [1, 4], strides = [1, 1]} : vector<49x4xf32> to vector<1x4xf32>
    %31 = vector.shape_cast %30 : vector<1x4xf32> to vector<4xf32>
    %32 = vector.shape_cast %31 : vector<4xf32> to vector<1x1x4xf32>
    %33 = vector.broadcast %32 : vector<1x1x4xf32> to vector<16x16x4xf32>
    %34 = arith.mulf %29, %33 : vector<16x16x4xf32>
    %35 = arith.addf %21, %34 : vector<16x16x4xf32>
    %36 = vector.extract_strided_slice %7 {offsets = [4, 0, 0], sizes = [16, 16, 4], strides = [1, 1, 1]} : vector<22x16x4xf32> to vector<16x16x4xf32>
    %37 = vector.extract_strided_slice %0 {offsets = [28, 0], sizes = [1, 4], strides = [1, 1]} : vector<49x4xf32> to vector<1x4xf32>
    %38 = vector.shape_cast %37 : vector<1x4xf32> to vector<4xf32>
    %39 = vector.shape_cast %38 : vector<4xf32> to vector<1x1x4xf32>
    %40 = vector.broadcast %39 : vector<1x1x4xf32> to vector<16x16x4xf32>
    %41 = arith.mulf %36, %40 : vector<16x16x4xf32>
    %42 = arith.addf %28, %41 : vector<16x16x4xf32>
    %43 = vector.extract_strided_slice %7 {offsets = [5, 0, 0], sizes = [16, 16, 4], strides = [1, 1, 1]} : vector<22x16x4xf32> to vector<16x16x4xf32>
    %44 = vector.extract_strided_slice %0 {offsets = [35, 0], sizes = [1, 4], strides = [1, 1]} : vector<49x4xf32> to vector<1x4xf32>
    %45 = vector.shape_cast %44 : vector<1x4xf32> to vector<4xf32>
    %46 = vector.shape_cast %45 : vector<4xf32> to vector<1x1x4xf32>
    %47 = vector.broadcast %46 : vector<1x1x4xf32> to vector<16x16x4xf32>
    %48 = arith.mulf %43, %47 : vector<16x16x4xf32>
    %49 = arith.addf %35, %48 : vector<16x16x4xf32>
    %50 = vector.extract_strided_slice %7 {offsets = [6, 0, 0], sizes = [16, 16, 4], strides = [1, 1, 1]} : vector<22x16x4xf32> to vector<16x16x4xf32>
    %51 = vector.extract_strided_slice %0 {offsets = [42, 0], sizes = [1, 4], strides = [1, 1]} : vector<49x4xf32> to vector<1x4xf32>
    %52 = vector.shape_cast %51 : vector<1x4xf32> to vector<4xf32>
    %53 = vector.shape_cast %52 : vector<4xf32> to vector<1x1x4xf32>
    %54 = vector.broadcast %53 : vector<1x1x4xf32> to vector<16x16x4xf32>
    %55 = arith.mulf %50, %54 : vector<16x16x4xf32>
    %56 = arith.addf %42, %55 : vector<16x16x4xf32>
    %57 = vector.extract_strided_slice %4 {offsets = [0, 1, 0], sizes = [22, 16, 4], strides = [1, 1, 1]} : vector<22x22x4xf32> to vector<22x16x4xf32>
    %58 = vector.extract_strided_slice %57 {offsets = [0, 0, 0], sizes = [16, 16, 4], strides = [1, 1, 1]} : vector<22x16x4xf32> to vector<16x16x4xf32>
    %59 = vector.extract_strided_slice %0 {offsets = [1, 0], sizes = [1, 4], strides = [1, 1]} : vector<49x4xf32> to vector<1x4xf32>
    %60 = vector.shape_cast %59 : vector<1x4xf32> to vector<4xf32>
    %61 = vector.shape_cast %60 : vector<4xf32> to vector<1x1x4xf32>
    %62 = vector.broadcast %61 : vector<1x1x4xf32> to vector<16x16x4xf32>
    %63 = arith.mulf %58, %62 : vector<16x16x4xf32>
    %64 = arith.addf %49, %63 : vector<16x16x4xf32>
    %65 = vector.extract_strided_slice %57 {offsets = [1, 0, 0], sizes = [16, 16, 4], strides = [1, 1, 1]} : vector<22x16x4xf32> to vector<16x16x4xf32>
    %66 = vector.extract_strided_slice %0 {offsets = [8, 0], sizes = [1, 4], strides = [1, 1]} : vector<49x4xf32> to vector<1x4xf32>
    %67 = vector.shape_cast %66 : vector<1x4xf32> to vector<4xf32>
    %68 = vector.shape_cast %67 : vector<4xf32> to vector<1x1x4xf32>
    %69 = vector.broadcast %68 : vector<1x1x4xf32> to vector<16x16x4xf32>
    %70 = arith.mulf %65, %69 : vector<16x16x4xf32>
    %71 = arith.addf %56, %70 : vector<16x16x4xf32>
    %72 = vector.extract_strided_slice %57 {offsets = [2, 0, 0], sizes = [16, 16, 4], strides = [1, 1, 1]} : vector<22x16x4xf32> to vector<16x16x4xf32>
    %73 = vector.extract_strided_slice %0 {offsets = [15, 0], sizes = [1, 4], strides = [1, 1]} : vector<49x4xf32> to vector<1x4xf32>
    %74 = vector.shape_cast %73 : vector<1x4xf32> to vector<4xf32>
    %75 = vector.shape_cast %74 : vector<4xf32> to vector<1x1x4xf32>
    %76 = vector.broadcast %75 : vector<1x1x4xf32> to vector<16x16x4xf32>
    %77 = arith.mulf %72, %76 : vector<16x16x4xf32>
    %78 = arith.addf %64, %77 : vector<16x16x4xf32>
    %79 = vector.extract_strided_slice %57 {offsets = [3, 0, 0], sizes = [16, 16, 4], strides = [1, 1, 1]} : vector<22x16x4xf32> to vector<16x16x4xf32>
    %80 = vector.extract_strided_slice %0 {offsets = [22, 0], sizes = [1, 4], strides = [1, 1]} : vector<49x4xf32> to vector<1x4xf32>
    %81 = vector.shape_cast %80 : vector<1x4xf32> to vector<4xf32>
    %82 = vector.shape_cast %81 : vector<4xf32> to vector<1x1x4xf32>
    %83 = vector.broadcast %82 : vector<1x1x4xf32> to vector<16x16x4xf32>
    %84 = arith.mulf %79, %83 : vector<16x16x4xf32>
    %85 = arith.addf %71, %84 : vector<16x16x4xf32>
    %86 = vector.extract_strided_slice %57 {offsets = [4, 0, 0], sizes = [16, 16, 4], strides = [1, 1, 1]} : vector<22x16x4xf32> to vector<16x16x4xf32>
    %87 = vector.extract_strided_slice %0 {offsets = [29, 0], sizes = [1, 4], strides = [1, 1]} : vector<49x4xf32> to vector<1x4xf32>
    %88 = vector.shape_cast %87 : vector<1x4xf32> to vector<4xf32>
    %89 = vector.shape_cast %88 : vector<4xf32> to vector<1x1x4xf32>
    %90 = vector.broadcast %89 : vector<1x1x4xf32> to vector<16x16x4xf32>
    %91 = arith.mulf %86, %90 : vector<16x16x4xf32>
    %92 = arith.addf %78, %91 : vector<16x16x4xf32>
    %93 = vector.extract_strided_slice %57 {offsets = [5, 0, 0], sizes = [16, 16, 4], strides = [1, 1, 1]} : vector<22x16x4xf32> to vector<16x16x4xf32>
    %94 = vector.extract_strided_slice %0 {offsets = [36, 0], sizes = [1, 4], strides = [1, 1]} : vector<49x4xf32> to vector<1x4xf32>
    %95 = vector.shape_cast %94 : vector<1x4xf32> to vector<4xf32>
    %96 = vector.shape_cast %95 : vector<4xf32> to vector<1x1x4xf32>
    %97 = vector.broadcast %96 : vector<1x1x4xf32> to vector<16x16x4xf32>
    %98 = arith.mulf %93, %97 : vector<16x16x4xf32>
    %99 = arith.addf %85, %98 : vector<16x16x4xf32>
    %100 = vector.extract_strided_slice %57 {offsets = [6, 0, 0], sizes = [16, 16, 4], strides = [1, 1, 1]} : vector<22x16x4xf32> to vector<16x16x4xf32>
    %101 = vector.extract_strided_slice %0 {offsets = [43, 0], sizes = [1, 4], strides = [1, 1]} : vector<49x4xf32> to vector<1x4xf32>
    %102 = vector.shape_cast %101 : vector<1x4xf32> to vector<4xf32>
    %103 = vector.shape_cast %102 : vector<4xf32> to vector<1x1x4xf32>
    %104 = vector.broadcast %103 : vector<1x1x4xf32> to vector<16x16x4xf32>
    %105 = arith.mulf %100, %104 : vector<16x16x4xf32>
    %106 = arith.addf %92, %105 : vector<16x16x4xf32>
    %107 = vector.extract_strided_slice %4 {offsets = [0, 2, 0], sizes = [22, 16, 4], strides = [1, 1, 1]} : vector<22x22x4xf32> to vector<22x16x4xf32>
    %108 = vector.extract_strided_slice %107 {offsets = [0, 0, 0], sizes = [16, 16, 4], strides = [1, 1, 1]} : vector<22x16x4xf32> to vector<16x16x4xf32>
    %109 = vector.extract_strided_slice %0 {offsets = [2, 0], sizes = [1, 4], strides = [1, 1]} : vector<49x4xf32> to vector<1x4xf32>
    %110 = vector.shape_cast %109 : vector<1x4xf32> to vector<4xf32>
    %111 = vector.shape_cast %110 : vector<4xf32> to vector<1x1x4xf32>
    %112 = vector.broadcast %111 : vector<1x1x4xf32> to vector<16x16x4xf32>
    %113 = arith.mulf %108, %112 : vector<16x16x4xf32>
    %114 = arith.addf %99, %113 : vector<16x16x4xf32>
    %115 = vector.extract_strided_slice %107 {offsets = [1, 0, 0], sizes = [16, 16, 4], strides = [1, 1, 1]} : vector<22x16x4xf32> to vector<16x16x4xf32>
    %116 = vector.extract_strided_slice %0 {offsets = [9, 0], sizes = [1, 4], strides = [1, 1]} : vector<49x4xf32> to vector<1x4xf32>
    %117 = vector.shape_cast %116 : vector<1x4xf32> to vector<4xf32>
    %118 = vector.shape_cast %117 : vector<4xf32> to vector<1x1x4xf32>
    %119 = vector.broadcast %118 : vector<1x1x4xf32> to vector<16x16x4xf32>
    %120 = arith.mulf %115, %119 : vector<16x16x4xf32>
    %121 = arith.addf %106, %120 : vector<16x16x4xf32>
    %122 = vector.extract_strided_slice %107 {offsets = [2, 0, 0], sizes = [16, 16, 4], strides = [1, 1, 1]} : vector<22x16x4xf32> to vector<16x16x4xf32>
    %123 = vector.extract_strided_slice %0 {offsets = [16, 0], sizes = [1, 4], strides = [1, 1]} : vector<49x4xf32> to vector<1x4xf32>
    %124 = vector.shape_cast %123 : vector<1x4xf32> to vector<4xf32>
    %125 = vector.shape_cast %124 : vector<4xf32> to vector<1x1x4xf32>
    %126 = vector.broadcast %125 : vector<1x1x4xf32> to vector<16x16x4xf32>
    %127 = arith.mulf %122, %126 : vector<16x16x4xf32>
    %128 = arith.addf %114, %127 : vector<16x16x4xf32>
    %129 = vector.extract_strided_slice %107 {offsets = [3, 0, 0], sizes = [16, 16, 4], strides = [1, 1, 1]} : vector<22x16x4xf32> to vector<16x16x4xf32>
    %130 = vector.extract_strided_slice %0 {offsets = [23, 0], sizes = [1, 4], strides = [1, 1]} : vector<49x4xf32> to vector<1x4xf32>
    %131 = vector.shape_cast %130 : vector<1x4xf32> to vector<4xf32>
    %132 = vector.shape_cast %131 : vector<4xf32> to vector<1x1x4xf32>
    %133 = vector.broadcast %132 : vector<1x1x4xf32> to vector<16x16x4xf32>
    %134 = arith.mulf %129, %133 : vector<16x16x4xf32>
    %135 = arith.addf %121, %134 : vector<16x16x4xf32>
    %136 = vector.extract_strided_slice %107 {offsets = [4, 0, 0], sizes = [16, 16, 4], strides = [1, 1, 1]} : vector<22x16x4xf32> to vector<16x16x4xf32>
    %137 = vector.extract_strided_slice %0 {offsets = [30, 0], sizes = [1, 4], strides = [1, 1]} : vector<49x4xf32> to vector<1x4xf32>
    %138 = vector.shape_cast %137 : vector<1x4xf32> to vector<4xf32>
    %139 = vector.shape_cast %138 : vector<4xf32> to vector<1x1x4xf32>
    %140 = vector.broadcast %139 : vector<1x1x4xf32> to vector<16x16x4xf32>
    %141 = arith.mulf %136, %140 : vector<16x16x4xf32>
    %142 = arith.addf %128, %141 : vector<16x16x4xf32>
    %143 = vector.extract_strided_slice %107 {offsets = [5, 0, 0], sizes = [16, 16, 4], strides = [1, 1, 1]} : vector<22x16x4xf32> to vector<16x16x4xf32>
    %144 = vector.extract_strided_slice %0 {offsets = [37, 0], sizes = [1, 4], strides = [1, 1]} : vector<49x4xf32> to vector<1x4xf32>
    %145 = vector.shape_cast %144 : vector<1x4xf32> to vector<4xf32>
    %146 = vector.shape_cast %145 : vector<4xf32> to vector<1x1x4xf32>
    %147 = vector.broadcast %146 : vector<1x1x4xf32> to vector<16x16x4xf32>
    %148 = arith.mulf %143, %147 : vector<16x16x4xf32>
    %149 = arith.addf %135, %148 : vector<16x16x4xf32>
    %150 = vector.extract_strided_slice %107 {offsets = [6, 0, 0], sizes = [16, 16, 4], strides = [1, 1, 1]} : vector<22x16x4xf32> to vector<16x16x4xf32>
    %151 = vector.extract_strided_slice %0 {offsets = [44, 0], sizes = [1, 4], strides = [1, 1]} : vector<49x4xf32> to vector<1x4xf32>
    %152 = vector.shape_cast %151 : vector<1x4xf32> to vector<4xf32>
    %153 = vector.shape_cast %152 : vector<4xf32> to vector<1x1x4xf32>
    %154 = vector.broadcast %153 : vector<1x1x4xf32> to vector<16x16x4xf32>
    %155 = arith.mulf %150, %154 : vector<16x16x4xf32>
    %156 = arith.addf %142, %155 : vector<16x16x4xf32>
    %157 = vector.extract_strided_slice %4 {offsets = [0, 3, 0], sizes = [22, 16, 4], strides = [1, 1, 1]} : vector<22x22x4xf32> to vector<22x16x4xf32>
    %158 = vector.extract_strided_slice %157 {offsets = [0, 0, 0], sizes = [16, 16, 4], strides = [1, 1, 1]} : vector<22x16x4xf32> to vector<16x16x4xf32>
    %159 = vector.extract_strided_slice %0 {offsets = [3, 0], sizes = [1, 4], strides = [1, 1]} : vector<49x4xf32> to vector<1x4xf32>
    %160 = vector.shape_cast %159 : vector<1x4xf32> to vector<4xf32>
    %161 = vector.shape_cast %160 : vector<4xf32> to vector<1x1x4xf32>
    %162 = vector.broadcast %161 : vector<1x1x4xf32> to vector<16x16x4xf32>
    %163 = arith.mulf %158, %162 : vector<16x16x4xf32>
    %164 = arith.addf %149, %163 : vector<16x16x4xf32>
    %165 = vector.extract_strided_slice %157 {offsets = [1, 0, 0], sizes = [16, 16, 4], strides = [1, 1, 1]} : vector<22x16x4xf32> to vector<16x16x4xf32>
    %166 = vector.extract_strided_slice %0 {offsets = [10, 0], sizes = [1, 4], strides = [1, 1]} : vector<49x4xf32> to vector<1x4xf32>
    %167 = vector.shape_cast %166 : vector<1x4xf32> to vector<4xf32>
    %168 = vector.shape_cast %167 : vector<4xf32> to vector<1x1x4xf32>
    %169 = vector.broadcast %168 : vector<1x1x4xf32> to vector<16x16x4xf32>
    %170 = arith.mulf %165, %169 : vector<16x16x4xf32>
    %171 = arith.addf %156, %170 : vector<16x16x4xf32>
    %172 = vector.extract_strided_slice %157 {offsets = [2, 0, 0], sizes = [16, 16, 4], strides = [1, 1, 1]} : vector<22x16x4xf32> to vector<16x16x4xf32>
    %173 = vector.extract_strided_slice %0 {offsets = [17, 0], sizes = [1, 4], strides = [1, 1]} : vector<49x4xf32> to vector<1x4xf32>
    %174 = vector.shape_cast %173 : vector<1x4xf32> to vector<4xf32>
    %175 = vector.shape_cast %174 : vector<4xf32> to vector<1x1x4xf32>
    %176 = vector.broadcast %175 : vector<1x1x4xf32> to vector<16x16x4xf32>
    %177 = arith.mulf %172, %176 : vector<16x16x4xf32>
    %178 = arith.addf %164, %177 : vector<16x16x4xf32>
    %179 = vector.extract_strided_slice %157 {offsets = [3, 0, 0], sizes = [16, 16, 4], strides = [1, 1, 1]} : vector<22x16x4xf32> to vector<16x16x4xf32>
    %180 = vector.extract_strided_slice %0 {offsets = [24, 0], sizes = [1, 4], strides = [1, 1]} : vector<49x4xf32> to vector<1x4xf32>
    %181 = vector.shape_cast %180 : vector<1x4xf32> to vector<4xf32>
    %182 = vector.shape_cast %181 : vector<4xf32> to vector<1x1x4xf32>
    %183 = vector.broadcast %182 : vector<1x1x4xf32> to vector<16x16x4xf32>
    %184 = arith.mulf %179, %183 : vector<16x16x4xf32>
    %185 = arith.addf %171, %184 : vector<16x16x4xf32>
    %186 = vector.extract_strided_slice %157 {offsets = [4, 0, 0], sizes = [16, 16, 4], strides = [1, 1, 1]} : vector<22x16x4xf32> to vector<16x16x4xf32>
    %187 = vector.extract_strided_slice %0 {offsets = [31, 0], sizes = [1, 4], strides = [1, 1]} : vector<49x4xf32> to vector<1x4xf32>
    %188 = vector.shape_cast %187 : vector<1x4xf32> to vector<4xf32>
    %189 = vector.shape_cast %188 : vector<4xf32> to vector<1x1x4xf32>
    %190 = vector.broadcast %189 : vector<1x1x4xf32> to vector<16x16x4xf32>
    %191 = arith.mulf %186, %190 : vector<16x16x4xf32>
    %192 = arith.addf %178, %191 : vector<16x16x4xf32>
    %193 = vector.extract_strided_slice %157 {offsets = [5, 0, 0], sizes = [16, 16, 4], strides = [1, 1, 1]} : vector<22x16x4xf32> to vector<16x16x4xf32>
    %194 = vector.extract_strided_slice %0 {offsets = [38, 0], sizes = [1, 4], strides = [1, 1]} : vector<49x4xf32> to vector<1x4xf32>
    %195 = vector.shape_cast %194 : vector<1x4xf32> to vector<4xf32>
    %196 = vector.shape_cast %195 : vector<4xf32> to vector<1x1x4xf32>
    %197 = vector.broadcast %196 : vector<1x1x4xf32> to vector<16x16x4xf32>
    %198 = arith.mulf %193, %197 : vector<16x16x4xf32>
    %199 = arith.addf %185, %198 : vector<16x16x4xf32>
    %200 = vector.extract_strided_slice %157 {offsets = [6, 0, 0], sizes = [16, 16, 4], strides = [1, 1, 1]} : vector<22x16x4xf32> to vector<16x16x4xf32>
    %201 = vector.extract_strided_slice %0 {offsets = [45, 0], sizes = [1, 4], strides = [1, 1]} : vector<49x4xf32> to vector<1x4xf32>
    %202 = vector.shape_cast %201 : vector<1x4xf32> to vector<4xf32>
    %203 = vector.shape_cast %202 : vector<4xf32> to vector<1x1x4xf32>
    %204 = vector.broadcast %203 : vector<1x1x4xf32> to vector<16x16x4xf32>
    %205 = arith.mulf %200, %204 : vector<16x16x4xf32>
    %206 = arith.addf %192, %205 : vector<16x16x4xf32>
    %207 = vector.extract_strided_slice %4 {offsets = [0, 4, 0], sizes = [22, 16, 4], strides = [1, 1, 1]} : vector<22x22x4xf32> to vector<22x16x4xf32>
    %208 = vector.extract_strided_slice %207 {offsets = [0, 0, 0], sizes = [16, 16, 4], strides = [1, 1, 1]} : vector<22x16x4xf32> to vector<16x16x4xf32>
    %209 = vector.extract_strided_slice %0 {offsets = [4, 0], sizes = [1, 4], strides = [1, 1]} : vector<49x4xf32> to vector<1x4xf32>
    %210 = vector.shape_cast %209 : vector<1x4xf32> to vector<4xf32>
    %211 = vector.shape_cast %210 : vector<4xf32> to vector<1x1x4xf32>
    %212 = vector.broadcast %211 : vector<1x1x4xf32> to vector<16x16x4xf32>
    %213 = arith.mulf %208, %212 : vector<16x16x4xf32>
    %214 = arith.addf %199, %213 : vector<16x16x4xf32>
    %215 = vector.extract_strided_slice %207 {offsets = [1, 0, 0], sizes = [16, 16, 4], strides = [1, 1, 1]} : vector<22x16x4xf32> to vector<16x16x4xf32>
    %216 = vector.extract_strided_slice %0 {offsets = [11, 0], sizes = [1, 4], strides = [1, 1]} : vector<49x4xf32> to vector<1x4xf32>
    %217 = vector.shape_cast %216 : vector<1x4xf32> to vector<4xf32>
    %218 = vector.shape_cast %217 : vector<4xf32> to vector<1x1x4xf32>
    %219 = vector.broadcast %218 : vector<1x1x4xf32> to vector<16x16x4xf32>
    %220 = arith.mulf %215, %219 : vector<16x16x4xf32>
    %221 = arith.addf %206, %220 : vector<16x16x4xf32>
    %222 = vector.extract_strided_slice %207 {offsets = [2, 0, 0], sizes = [16, 16, 4], strides = [1, 1, 1]} : vector<22x16x4xf32> to vector<16x16x4xf32>
    %223 = vector.extract_strided_slice %0 {offsets = [18, 0], sizes = [1, 4], strides = [1, 1]} : vector<49x4xf32> to vector<1x4xf32>
    %224 = vector.shape_cast %223 : vector<1x4xf32> to vector<4xf32>
    %225 = vector.shape_cast %224 : vector<4xf32> to vector<1x1x4xf32>
    %226 = vector.broadcast %225 : vector<1x1x4xf32> to vector<16x16x4xf32>
    %227 = arith.mulf %222, %226 : vector<16x16x4xf32>
    %228 = arith.addf %214, %227 : vector<16x16x4xf32>
    %229 = vector.extract_strided_slice %207 {offsets = [3, 0, 0], sizes = [16, 16, 4], strides = [1, 1, 1]} : vector<22x16x4xf32> to vector<16x16x4xf32>
    %230 = vector.extract_strided_slice %0 {offsets = [25, 0], sizes = [1, 4], strides = [1, 1]} : vector<49x4xf32> to vector<1x4xf32>
    %231 = vector.shape_cast %230 : vector<1x4xf32> to vector<4xf32>
    %232 = vector.shape_cast %231 : vector<4xf32> to vector<1x1x4xf32>
    %233 = vector.broadcast %232 : vector<1x1x4xf32> to vector<16x16x4xf32>
    %234 = arith.mulf %229, %233 : vector<16x16x4xf32>
    %235 = arith.addf %221, %234 : vector<16x16x4xf32>
    %236 = vector.extract_strided_slice %207 {offsets = [4, 0, 0], sizes = [16, 16, 4], strides = [1, 1, 1]} : vector<22x16x4xf32> to vector<16x16x4xf32>
    %237 = vector.extract_strided_slice %0 {offsets = [32, 0], sizes = [1, 4], strides = [1, 1]} : vector<49x4xf32> to vector<1x4xf32>
    %238 = vector.shape_cast %237 : vector<1x4xf32> to vector<4xf32>
    %239 = vector.shape_cast %238 : vector<4xf32> to vector<1x1x4xf32>
    %240 = vector.broadcast %239 : vector<1x1x4xf32> to vector<16x16x4xf32>
    %241 = arith.mulf %236, %240 : vector<16x16x4xf32>
    %242 = arith.addf %228, %241 : vector<16x16x4xf32>
    %243 = vector.extract_strided_slice %207 {offsets = [5, 0, 0], sizes = [16, 16, 4], strides = [1, 1, 1]} : vector<22x16x4xf32> to vector<16x16x4xf32>
    %244 = vector.extract_strided_slice %0 {offsets = [39, 0], sizes = [1, 4], strides = [1, 1]} : vector<49x4xf32> to vector<1x4xf32>
    %245 = vector.shape_cast %244 : vector<1x4xf32> to vector<4xf32>
    %246 = vector.shape_cast %245 : vector<4xf32> to vector<1x1x4xf32>
    %247 = vector.broadcast %246 : vector<1x1x4xf32> to vector<16x16x4xf32>
    %248 = arith.mulf %243, %247 : vector<16x16x4xf32>
    %249 = arith.addf %235, %248 : vector<16x16x4xf32>
    %250 = vector.extract_strided_slice %207 {offsets = [6, 0, 0], sizes = [16, 16, 4], strides = [1, 1, 1]} : vector<22x16x4xf32> to vector<16x16x4xf32>
    %251 = vector.extract_strided_slice %0 {offsets = [46, 0], sizes = [1, 4], strides = [1, 1]} : vector<49x4xf32> to vector<1x4xf32>
    %252 = vector.shape_cast %251 : vector<1x4xf32> to vector<4xf32>
    %253 = vector.shape_cast %252 : vector<4xf32> to vector<1x1x4xf32>
    %254 = vector.broadcast %253 : vector<1x1x4xf32> to vector<16x16x4xf32>
    %255 = arith.mulf %250, %254 : vector<16x16x4xf32>
    %256 = arith.addf %242, %255 : vector<16x16x4xf32>
    %257 = vector.extract_strided_slice %4 {offsets = [0, 5, 0], sizes = [22, 16, 4], strides = [1, 1, 1]} : vector<22x22x4xf32> to vector<22x16x4xf32>
    %258 = vector.extract_strided_slice %257 {offsets = [0, 0, 0], sizes = [16, 16, 4], strides = [1, 1, 1]} : vector<22x16x4xf32> to vector<16x16x4xf32>
    %259 = vector.extract_strided_slice %0 {offsets = [5, 0], sizes = [1, 4], strides = [1, 1]} : vector<49x4xf32> to vector<1x4xf32>
    %260 = vector.shape_cast %259 : vector<1x4xf32> to vector<4xf32>
    %261 = vector.shape_cast %260 : vector<4xf32> to vector<1x1x4xf32>
    %262 = vector.broadcast %261 : vector<1x1x4xf32> to vector<16x16x4xf32>
    %263 = arith.mulf %258, %262 : vector<16x16x4xf32>
    %264 = arith.addf %249, %263 : vector<16x16x4xf32>
    %265 = vector.extract_strided_slice %257 {offsets = [1, 0, 0], sizes = [16, 16, 4], strides = [1, 1, 1]} : vector<22x16x4xf32> to vector<16x16x4xf32>
    %266 = vector.extract_strided_slice %0 {offsets = [12, 0], sizes = [1, 4], strides = [1, 1]} : vector<49x4xf32> to vector<1x4xf32>
    %267 = vector.shape_cast %266 : vector<1x4xf32> to vector<4xf32>
    %268 = vector.shape_cast %267 : vector<4xf32> to vector<1x1x4xf32>
    %269 = vector.broadcast %268 : vector<1x1x4xf32> to vector<16x16x4xf32>
    %270 = arith.mulf %265, %269 : vector<16x16x4xf32>
    %271 = arith.addf %256, %270 : vector<16x16x4xf32>
    %272 = vector.extract_strided_slice %257 {offsets = [2, 0, 0], sizes = [16, 16, 4], strides = [1, 1, 1]} : vector<22x16x4xf32> to vector<16x16x4xf32>
    %273 = vector.extract_strided_slice %0 {offsets = [19, 0], sizes = [1, 4], strides = [1, 1]} : vector<49x4xf32> to vector<1x4xf32>
    %274 = vector.shape_cast %273 : vector<1x4xf32> to vector<4xf32>
    %275 = vector.shape_cast %274 : vector<4xf32> to vector<1x1x4xf32>
    %276 = vector.broadcast %275 : vector<1x1x4xf32> to vector<16x16x4xf32>
    %277 = arith.mulf %272, %276 : vector<16x16x4xf32>
    %278 = arith.addf %264, %277 : vector<16x16x4xf32>
    %279 = vector.extract_strided_slice %257 {offsets = [3, 0, 0], sizes = [16, 16, 4], strides = [1, 1, 1]} : vector<22x16x4xf32> to vector<16x16x4xf32>
    %280 = vector.extract_strided_slice %0 {offsets = [26, 0], sizes = [1, 4], strides = [1, 1]} : vector<49x4xf32> to vector<1x4xf32>
    %281 = vector.shape_cast %280 : vector<1x4xf32> to vector<4xf32>
    %282 = vector.shape_cast %281 : vector<4xf32> to vector<1x1x4xf32>
    %283 = vector.broadcast %282 : vector<1x1x4xf32> to vector<16x16x4xf32>
    %284 = arith.mulf %279, %283 : vector<16x16x4xf32>
    %285 = arith.addf %271, %284 : vector<16x16x4xf32>
    %286 = vector.extract_strided_slice %257 {offsets = [4, 0, 0], sizes = [16, 16, 4], strides = [1, 1, 1]} : vector<22x16x4xf32> to vector<16x16x4xf32>
    %287 = vector.extract_strided_slice %0 {offsets = [33, 0], sizes = [1, 4], strides = [1, 1]} : vector<49x4xf32> to vector<1x4xf32>
    %288 = vector.shape_cast %287 : vector<1x4xf32> to vector<4xf32>
    %289 = vector.shape_cast %288 : vector<4xf32> to vector<1x1x4xf32>
    %290 = vector.broadcast %289 : vector<1x1x4xf32> to vector<16x16x4xf32>
    %291 = arith.mulf %286, %290 : vector<16x16x4xf32>
    %292 = arith.addf %278, %291 : vector<16x16x4xf32>
    %293 = vector.extract_strided_slice %257 {offsets = [5, 0, 0], sizes = [16, 16, 4], strides = [1, 1, 1]} : vector<22x16x4xf32> to vector<16x16x4xf32>
    %294 = vector.extract_strided_slice %0 {offsets = [40, 0], sizes = [1, 4], strides = [1, 1]} : vector<49x4xf32> to vector<1x4xf32>
    %295 = vector.shape_cast %294 : vector<1x4xf32> to vector<4xf32>
    %296 = vector.shape_cast %295 : vector<4xf32> to vector<1x1x4xf32>
    %297 = vector.broadcast %296 : vector<1x1x4xf32> to vector<16x16x4xf32>
    %298 = arith.mulf %293, %297 : vector<16x16x4xf32>
    %299 = arith.addf %285, %298 : vector<16x16x4xf32>
    %300 = vector.extract_strided_slice %257 {offsets = [6, 0, 0], sizes = [16, 16, 4], strides = [1, 1, 1]} : vector<22x16x4xf32> to vector<16x16x4xf32>
    %301 = vector.extract_strided_slice %0 {offsets = [47, 0], sizes = [1, 4], strides = [1, 1]} : vector<49x4xf32> to vector<1x4xf32>
    %302 = vector.shape_cast %301 : vector<1x4xf32> to vector<4xf32>
    %303 = vector.shape_cast %302 : vector<4xf32> to vector<1x1x4xf32>
    %304 = vector.broadcast %303 : vector<1x1x4xf32> to vector<16x16x4xf32>
    %305 = arith.mulf %300, %304 : vector<16x16x4xf32>
    %306 = arith.addf %292, %305 : vector<16x16x4xf32>
    %307 = vector.extract_strided_slice %4 {offsets = [0, 6, 0], sizes = [22, 16, 4], strides = [1, 1, 1]} : vector<22x22x4xf32> to vector<22x16x4xf32>
    %308 = vector.extract_strided_slice %307 {offsets = [0, 0, 0], sizes = [16, 16, 4], strides = [1, 1, 1]} : vector<22x16x4xf32> to vector<16x16x4xf32>
    %309 = vector.extract_strided_slice %0 {offsets = [6, 0], sizes = [1, 4], strides = [1, 1]} : vector<49x4xf32> to vector<1x4xf32>
    %310 = vector.shape_cast %309 : vector<1x4xf32> to vector<4xf32>
    %311 = vector.shape_cast %310 : vector<4xf32> to vector<1x1x4xf32>
    %312 = vector.broadcast %311 : vector<1x1x4xf32> to vector<16x16x4xf32>
    %313 = arith.mulf %308, %312 : vector<16x16x4xf32>
    %314 = arith.addf %299, %313 : vector<16x16x4xf32>
    %315 = vector.extract_strided_slice %307 {offsets = [1, 0, 0], sizes = [16, 16, 4], strides = [1, 1, 1]} : vector<22x16x4xf32> to vector<16x16x4xf32>
    %316 = vector.extract_strided_slice %0 {offsets = [13, 0], sizes = [1, 4], strides = [1, 1]} : vector<49x4xf32> to vector<1x4xf32>
    %317 = vector.shape_cast %316 : vector<1x4xf32> to vector<4xf32>
    %318 = vector.shape_cast %317 : vector<4xf32> to vector<1x1x4xf32>
    %319 = vector.broadcast %318 : vector<1x1x4xf32> to vector<16x16x4xf32>
    %320 = arith.mulf %315, %319 : vector<16x16x4xf32>
    %321 = arith.addf %306, %320 : vector<16x16x4xf32>
    %322 = vector.extract_strided_slice %307 {offsets = [2, 0, 0], sizes = [16, 16, 4], strides = [1, 1, 1]} : vector<22x16x4xf32> to vector<16x16x4xf32>
    %323 = vector.extract_strided_slice %0 {offsets = [20, 0], sizes = [1, 4], strides = [1, 1]} : vector<49x4xf32> to vector<1x4xf32>
    %324 = vector.shape_cast %323 : vector<1x4xf32> to vector<4xf32>
    %325 = vector.shape_cast %324 : vector<4xf32> to vector<1x1x4xf32>
    %326 = vector.broadcast %325 : vector<1x1x4xf32> to vector<16x16x4xf32>
    %327 = arith.mulf %322, %326 : vector<16x16x4xf32>
    %328 = arith.addf %314, %327 : vector<16x16x4xf32>
    %329 = vector.extract_strided_slice %307 {offsets = [3, 0, 0], sizes = [16, 16, 4], strides = [1, 1, 1]} : vector<22x16x4xf32> to vector<16x16x4xf32>
    %330 = vector.extract_strided_slice %0 {offsets = [27, 0], sizes = [1, 4], strides = [1, 1]} : vector<49x4xf32> to vector<1x4xf32>
    %331 = vector.shape_cast %330 : vector<1x4xf32> to vector<4xf32>
    %332 = vector.shape_cast %331 : vector<4xf32> to vector<1x1x4xf32>
    %333 = vector.broadcast %332 : vector<1x1x4xf32> to vector<16x16x4xf32>
    %334 = arith.mulf %329, %333 : vector<16x16x4xf32>
    %335 = arith.addf %321, %334 : vector<16x16x4xf32>
    %336 = vector.extract_strided_slice %307 {offsets = [4, 0, 0], sizes = [16, 16, 4], strides = [1, 1, 1]} : vector<22x16x4xf32> to vector<16x16x4xf32>
    %337 = vector.extract_strided_slice %0 {offsets = [34, 0], sizes = [1, 4], strides = [1, 1]} : vector<49x4xf32> to vector<1x4xf32>
    %338 = vector.shape_cast %337 : vector<1x4xf32> to vector<4xf32>
    %339 = vector.shape_cast %338 : vector<4xf32> to vector<1x1x4xf32>
    %340 = vector.broadcast %339 : vector<1x1x4xf32> to vector<16x16x4xf32>
    %341 = arith.mulf %336, %340 : vector<16x16x4xf32>
    %342 = arith.addf %328, %341 : vector<16x16x4xf32>
    %343 = vector.extract_strided_slice %307 {offsets = [5, 0, 0], sizes = [16, 16, 4], strides = [1, 1, 1]} : vector<22x16x4xf32> to vector<16x16x4xf32>
    %344 = vector.extract_strided_slice %0 {offsets = [41, 0], sizes = [1, 4], strides = [1, 1]} : vector<49x4xf32> to vector<1x4xf32>
    %345 = vector.shape_cast %344 : vector<1x4xf32> to vector<4xf32>
    %346 = vector.shape_cast %345 : vector<4xf32> to vector<1x1x4xf32>
    %347 = vector.broadcast %346 : vector<1x1x4xf32> to vector<16x16x4xf32>
    %348 = arith.mulf %343, %347 : vector<16x16x4xf32>
    %349 = arith.addf %335, %348 : vector<16x16x4xf32>
    %350 = vector.extract_strided_slice %307 {offsets = [6, 0, 0], sizes = [16, 16, 4], strides = [1, 1, 1]} : vector<22x16x4xf32> to vector<16x16x4xf32>
    %351 = vector.extract_strided_slice %0 {offsets = [48, 0], sizes = [1, 4], strides = [1, 1]} : vector<49x4xf32> to vector<1x4xf32>
    %352 = vector.shape_cast %351 : vector<1x4xf32> to vector<4xf32>
    %353 = vector.shape_cast %352 : vector<4xf32> to vector<1x1x4xf32>
    %354 = vector.broadcast %353 : vector<1x1x4xf32> to vector<16x16x4xf32>
    %355 = arith.mulf %350, %354 : vector<16x16x4xf32>
    %356 = arith.addf %342, %355 : vector<16x16x4xf32>
    %357 = arith.addf %356, %349 : vector<16x16x4xf32>
    %358 = vector.shape_cast %2 : vector<4xf32> to vector<1x1x4xf32>
    %359 = vector.broadcast %358 : vector<1x1x4xf32> to vector<16x16x4xf32>
    %360 = arith.addf %357, %359 : vector<16x16x4xf32>
    %cst_8 = arith.constant 0.000000e+00 : f32
    %361 = vector.broadcast %cst_8 : f32 to vector<16x16x4xf32>
    %362 = arith.subf %361, %360 : vector<16x16x4xf32>
    %363 = math.exp %362 : vector<16x16x4xf32>
    %cst_9 = arith.constant 1.000000e+00 : f32
    %364 = vector.broadcast %cst_9 : f32 to vector<16x16x4xf32>
    %365 = arith.addf %364, %363 : vector<16x16x4xf32>
    %366 = tpu.reciprocal %365 : vector<16x16x4xf32> -> vector<16x16x4xf32>
    %367 = arith.mulf %360, %366 : vector<16x16x4xf32>
    %c0_10 = arith.constant 0 : index
    %c0_11 = arith.constant 0 : index
    %c0_12 = arith.constant 0 : index
    %c0_13 = arith.constant 0 : index
    %368 = vector.load %arg5[%c0_10, %c0_11, %c0_12, %c0_13] : memref<1x16x16x4xf32, #tpu.memory_space<vmem>>, vector<1x16x16x4xf32>
    %369 = vector.shape_cast %368 : vector<1x16x16x4xf32> to vector<16x16x4xf32>
    %370 = vector.shape_cast %367 : vector<16x16x4xf32> to vector<1x16x16x4xf32>
    tpu.vector_store %arg5[%c0_10, %c0_11, %c0_12, %c0_13], %370 {strides = array<i32>} : memref<1x16x16x4xf32, #tpu.memory_space<vmem>>, vector<1x16x16x4xf32>,
    return
  }
  func.func @transform_0(%arg0: i32, %arg1: i32) -> (i32, i32, i32, i32) {
    %c0_i32 = arith.constant 0 : i32
    %c0_i32_0 = arith.constant 0 : i32
    %c0_i32_1 = arith.constant 0 : i32
    return %arg0, %c0_i32, %c0_i32_0, %arg1 : i32, i32, i32, i32
  }
  func.func @transform_1(%arg0: i32, %arg1: i32) -> (i32, i32) {
    %c0_i32 = arith.constant 0 : i32
    %c0_i32_0 = arith.constant 0 : i32
    return %c0_i32, %arg1 : i32, i32
  }
  func.func @transform_2(%arg0: i32, %arg1: i32) -> (i32, i32) {
    %c0_i32 = arith.constant 0 : i32
    %c0_i32_0 = arith.constant 0 : i32
    return %c0_i32, %arg1 : i32, i32
  }
  func.func @transform_3(%arg0: i32, %arg1: i32) -> (i32, i32, i32, i32) {
    %c0_i32 = arith.constant 0 : i32
    %c0_i32_0 = arith.constant 0 : i32
    %c0_i32_1 = arith.constant 0 : i32
    return %arg0, %c0_i32, %c0_i32_0, %arg1 : i32, i32, i32, i32
  }
}

</mosaic_0001>

<llo_original>
// kernel: tpu_custom_call.1
$region0: #{tpu_custom_call.1}
  #allocation0 [shape = 'u32[]', space=smem, size = 0x4, offset = 0x4, fixed_abs, tag = 'smem constant byte address 0x4 - core index']
  #allocation1 [shape = 'u32[144,128]{1,0:T(1,128)}', space=vmem, size = 0x12000, scoped, tag = 'internal scratch']
  %s0 = inlined_call_operand.vmem [shape: f32[2,22,22,4], index: 0, kind: input, shape index: {}]
  %s1 = inlined_call_operand.vmem [shape: f32[49,4], index: 1, kind: input, shape index: {}]
  %s2 = inlined_call_operand.vmem [shape: f32[1,4], index: 2, kind: input, shape index: {}]
  %s3 = inlined_call_operand.vmem [shape: f32[2,16,16,4], index: 3, kind: output, shape index: {}]
  %s4 = sld [smem:[#allocation0]]
  $region45: #{tpu_custom_call.1} parent=0
    _
  %s6 = ssub.s32 1, %s4
  %s7 = scalar_select 0, %s6, %s4
  loop: start=0, step=1, limit=4
  $region2: #{tpu_custom_call.1} parent=0 // loop_pre_header
    _
  $region3: #{tpu_custom_call.1} parent=0 // loop_header
    %s9 = sphi 0, %s13
    %p10 = scmp.ge.s32.totalorder %s9, 4
    %s16 = sphi 0, %s28
    %s17 = sphi 0, %s24
    %s18 = sphi 0, %s16
    %s19 = sphi 0, %s17
    %s20 = sphi 0, %s18
    %s21 = sphi 0, %s19
    %s33 = sphi 0, %s35
    %s36 = sphi 0, %s33
    %s37 = sphi 0, %s36
    %s53 = sphi 0, %s37
    %s59 = sphi 0, %s61
    %s62 = sphi 0, %s59
    %s63 = sphi 0, %s62
    %s79 = sphi 0, %s63
    %s85 = sphi 0, %s87
    %s88 = sphi 0, %s85
    %s89 = sphi 0, %s88
    %s105 = sphi 0, %s89
    %s113 = sphi 0, %s115
    %s116 = sphi 0, %s113
    %s117 = sphi 0, %s116
    %s133 = sphi 0, %s117
  $region4: #{tpu_custom_call.1} parent=0 // loop_header_branch
    %12 = sbr.rel (%p10) target = $region8
  $region5: #{tpu_custom_call.1} parent=0 // loop_body
    %s14 = ssub.s32 %s9, 1
    %s15 = ssub.s32 %s9, 2
    %s22 = sadd.s32 1, %s17
    %p23 = scmp.ge.s32.totalorder %s22, 1
    %s24 = scalar_select %p23, 0, %s22
    %s25 = sadd.s32 1, %s16
    %s26 = scalar_select %p23, %s25, %s16
    %p27 = scmp.ge.s32.totalorder %s26, 2
    %s28 = scalar_select %p27, 0, %s26
    %s29 = ssub.s32 %s16, %s28
    %s30 = ssub.s32 %s17, %s24
    %s31 = sor.u32 %s29, %s30
    %p32 = scmp.eq.s32.totalorder %s31, 0
    %s34 = sadd.s32 %s33, 1
    %s35 = scalar_select %p32, %s33, %s34
    %p38 = pneg %p32
    %p39 = scmp.eq.s32.totalorder %s9, 1
    %p40 = por %p38, %p39
    %p41 = scmp.ne.s32.totalorder %s33, %s36
    %p42 = scmp.eq.s32.totalorder %s9, 0
    %p43 = por %p41, %p42
    %p44 = scmp.ne.s32.totalorder %s33, %s36
    %p45 = scmp.eq.s32.totalorder %s14, 1
    %p46 = por %p44, %p45
    %p47 = scmp.ne.s32.totalorder %s36, %s37
    %p48 = scmp.eq.s32.totalorder %s14, 0
    %p49 = por %p47, %p48
    %p50 = scmp.ne.s32.totalorder %s36, %s37
    %p51 = scmp.eq.s32.totalorder %s15, 1
    %p52 = por %p50, %p51
    %p54 = scmp.ne.s32.totalorder %s37, %s53
    %p55 = scmp.eq.s32.totalorder %s15, 0
    %p56 = por %p54, %p55
    %s57 = ssub.s32 %s17, %s24
    %p58 = scmp.eq.s32.totalorder %s57, 0
    %s60 = sadd.s32 %s59, 1
    %s61 = scalar_select %p58, %s59, %s60
    %p64 = pneg %p58
    %p65 = scmp.eq.s32.totalorder %s9, 1
    %p66 = por %p64, %p65
    %p67 = scmp.ne.s32.totalorder %s59, %s62
    %p68 = scmp.eq.s32.totalorder %s9, 0
    %p69 = por %p67, %p68
    %p70 = scmp.ne.s32.totalorder %s59, %s62
    %p71 = scmp.eq.s32.totalorder %s14, 1
    %p72 = por %p70, %p71
    %p73 = scmp.ne.s32.totalorder %s62, %s63
    %p74 = scmp.eq.s32.totalorder %s14, 0
    %p75 = por %p73, %p74
    %p76 = scmp.ne.s32.totalorder %s62, %s63
    %p77 = scmp.eq.s32.totalorder %s15, 1
    %p78 = por %p76, %p77
    %p80 = scmp.ne.s32.totalorder %s63, %s79
    %p81 = scmp.eq.s32.totalorder %s15, 0
    %p82 = por %p80, %p81
    %s83 = ssub.s32 %s17, %s24
    %p84 = scmp.eq.s32.totalorder %s83, 0
    %s86 = sadd.s32 %s85, 1
    %s87 = scalar_select %p84, %s85, %s86
    %p90 = pneg %p84
    %p91 = scmp.eq.s32.totalorder %s9, 1
    %p92 = por %p90, %p91
    %p93 = scmp.ne.s32.totalorder %s85, %s88
    %p94 = scmp.eq.s32.totalorder %s9, 0
    %p95 = por %p93, %p94
    %p96 = scmp.ne.s32.totalorder %s85, %s88
    %p97 = scmp.eq.s32.totalorder %s14, 1
    %p98 = por %p96, %p97
    %p99 = scmp.ne.s32.totalorder %s88, %s89
    %p100 = scmp.eq.s32.totalorder %s14, 0
    %p101 = por %p99, %p100
    %p102 = scmp.ne.s32.totalorder %s88, %s89
    %p103 = scmp.eq.s32.totalorder %s15, 1
    %p104 = por %p102, %p103
    %p106 = scmp.ne.s32.totalorder %s89, %s105
    %p107 = scmp.eq.s32.totalorder %s15, 0
    %p108 = por %p106, %p107
    %s109 = ssub.s32 %s16, %s28
    %s110 = ssub.s32 %s17, %s24
    %s111 = sor.u32 %s109, %s110
    %p112 = scmp.eq.s32.totalorder %s111, 0
    %s114 = sadd.s32 %s113, 1
    %s115 = scalar_select %p112, %s113, %s114
    %p118 = pneg %p112
    %p119 = scmp.eq.s32.totalorder %s9, 1
    %p120 = por %p118, %p119
    %p121 = scmp.ne.s32.totalorder %s113, %s116
    %p122 = scmp.eq.s32.totalorder %s9, 0
    %p123 = por %p121, %p122
    %p124 = scmp.ne.s32.totalorder %s113, %s116
    %p125 = scmp.eq.s32.totalorder %s14, 1
    %p126 = por %p124, %p125
    %p127 = scmp.ne.s32.totalorder %s116, %s117
    %p128 = scmp.eq.s32.totalorder %s14, 0
    %p129 = por %p127, %p128
    %p130 = scmp.ne.s32.totalorder %s116, %s117
    %p131 = scmp.eq.s32.totalorder %s15, 1
    %p132 = por %p130, %p131
    %p134 = scmp.ne.s32.totalorder %s117, %s133
    %p135 = scmp.eq.s32.totalorder %s15, 0
    %p136 = por %p134, %p135
    %p137 = scmp.le.s32.totalorder 1, %s9
    %p138 = scmp.lt.s32.totalorder %s9, 3
    %p139 = pnand %p137, %p138
    %p140 = pneg %p139
    // Predicated region
    $region9: #{tpu_custom_call.1} parent=5 // pred_check
      _
    $region10: #{tpu_custom_call.1} parent=5 // pred_check_branch
      %142 = sbr.rel (%p139) target = $region12
    $region11: #{tpu_custom_call.1} parent=5 // pred_region
      %s143 = ssub.s32 %s9, 1
      // Predicated region
      $region13: #{tpu_custom_call.1} parent=11 // pred_check
        %p144 = pneg %p75
      $region14: #{tpu_custom_call.1} parent=11 // pred_check_branch
        %146 = sbr.rel (%p144) target = $region16
      $region15: #{tpu_custom_call.1} parent=11 // pred_region
        %p147 = scmp.lt.s32.totalorder %s19, 0
        %s148 = scalar_select %p147, %s19, 0
        %s149 = smul.addr %s148, 8
        %s150 = scalar_lea.vmem %s1, %s149
      $region16: #{tpu_custom_call.1} parent=11 // pred_fallthru
        _
      // Predicated region
      $region17: #{tpu_custom_call.1} parent=11 // pred_check
        %p151 = pneg %p101
      $region18: #{tpu_custom_call.1} parent=11 // pred_check_branch
        %153 = sbr.rel (%p151) target = $region20
      $region19: #{tpu_custom_call.1} parent=11 // pred_region
        %p154 = scmp.lt.s32.totalorder %s19, 0
        %s155 = scalar_select %p154, %s19, 0
        %s156 = scalar_lea.vmem %s2, %s155
      $region20: #{tpu_custom_call.1} parent=11 // pred_fallthru
        _
    $region12: #{tpu_custom_call.1} parent=5 // pred_fallthru
      _
    %p157 = scmp.lt.s32.totalorder %s9, 2
    // Predicated region
    $region21: #{tpu_custom_call.1} parent=5 // pred_check
      %p158 = pneg %p157
    $region22: #{tpu_custom_call.1} parent=5 // pred_check_branch
      %160 = sbr.rel (%p158) target = $region24
    $region23: #{tpu_custom_call.1} parent=5 // pred_region
      // Predicated region
      $region25: #{tpu_custom_call.1} parent=23 // pred_check
        %p161 = pneg %p43
      $region26: #{tpu_custom_call.1} parent=23 // pred_check_branch
        %163 = sbr.rel (%p161) target = $region28
      $region27: #{tpu_custom_call.1} parent=23 // pred_region
        %p164 = scmp.lt.s32.totalorder %s16, 1
        %s165 = scalar_select %p164, %s16, 1
        %p166 = scmp.lt.s32.totalorder %s17, 0
        %s167 = scalar_select %p166, %s17, 0
        %s168 = smul.addr %s165, 66
        %s169 = sadd.s32 %s167, %s168
        %s170 = smul.addr %s169, 8
        %s171 = scalar_lea.vmem %s0, %s170
      $region28: #{tpu_custom_call.1} parent=23 // pred_fallthru
        _
    $region24: #{tpu_custom_call.1} parent=5 // pred_fallthru
      _
    %p172 = scmp.le.s32.totalorder 1, %s9
    %p173 = scmp.lt.s32.totalorder %s9, 3
    %p174 = pnand %p172, %p173
    %p175 = pneg %p174
    // Predicated region
    $region29: #{tpu_custom_call.1} parent=5 // pred_check
      _
    $region30: #{tpu_custom_call.1} parent=5 // pred_check_branch
      %177 = sbr.rel (%p174) target = $region32
    $region31: #{tpu_custom_call.1} parent=5 // pred_region
      %s178 = ssub.s32 %s9, 1
      %p179 = scmp.lt.s32.totalorder %s18, 1
      %s180 = scalar_select %p179, %s18, 1
      %p181 = scmp.lt.s32.totalorder %s19, 0
      %s182 = scalar_select %p181, %s19, 0
      %s183 = smul.addr %s180, 66
      %s184 = sadd.s32 %s182, %s183
      %s185 = smul.addr %s184, 8
      %s186 = scalar_lea.vmem %s0, %s185
      %p187 = pneg %p49
      %p188 = pneg %p46
      %p189 = scmp.lt.s32.totalorder %s19, 0
      %s190 = scalar_select %p189, %s19, 0
      %s191 = smul.addr %s190, 8
      %s192 = scalar_lea.vmem %s1, %s191
      %p193 = pneg %p75
      %p194 = pneg %p72
      %p195 = scmp.lt.s32.totalorder %s19, 0
      %s196 = scalar_select %p195, %s19, 0
      %s197 = scalar_lea.vmem %s2, %s196
      %p198 = pneg %p101
      %p199 = pneg %p98
      %p200 = pneg %p129
      %p201 = pneg %p126
      %p202 = scmp.lt.s32.totalorder %s18, 1
      %s203 = scalar_select %p202, %s18, 1
      %p204 = scmp.lt.s32.totalorder %s19, 0
      %s205 = scalar_select %p204, %s19, 0
      %s206 = smul.addr %s203, 32
      %s207 = sadd.s32 %s205, %s206
      %s208 = smul.addr %s207, 8
      %s209 = scalar_lea.vmem %s3, %s208
      %p210 = scmp.lt.s32.totalorder %s18, 1
      %s211 = scalar_select %p210, %s18, 1
      %p212 = scmp.lt.s32.totalorder %s19, 0
      %s213 = scalar_select %p212, %s19, 0
      %s214 = smul.addr %s211, 66
      %s215 = sadd.s32 %s213, %s214
      %s216 = smul.addr %s215, 8
      %s217 = scalar_lea.vmem %s0, %s216
      %p218 = scmp.lt.s32.totalorder %s19, 0
      %s219 = scalar_select %p218, %s19, 0
      %s220 = smul.addr %s219, 8
      %s221 = scalar_lea.vmem %s1, %s220
      %p222 = scmp.lt.s32.totalorder %s19, 0
      %s223 = scalar_select %p222, %s19, 0
      %s224 = scalar_lea.vmem %s2, %s223
      %p225 = scmp.lt.s32.totalorder %s18, 1
      %s226 = scalar_select %p225, %s18, 1
      %p227 = scmp.lt.s32.totalorder %s19, 0
      %s228 = scalar_select %p227, %s19, 0
      %s229 = smul.addr %s226, 32
      %s230 = sadd.s32 %s228, %s229
      %s231 = smul.addr %s230, 8
      %s232 = scalar_lea.vmem %s3, %s231
      %v233 = vld [vmem:[%s221] sm:$0xff]
      %v234 = vld [vmem:[%s221 + $0x8] sm:$0xff]
      %v235 = vld [vmem:[%s221 + $0x10] sm:$0xff]
      %v236 = vld [vmem:[%s221 + $0x18] sm:$0xff]
      %v237 = vld [vmem:[%s221 + $0x20] sm:$0xff]
      %v238 = vld [vmem:[%s221 + $0x28] sm:$0xff]
      %v239 = vld [vmem:[%s221 + $0x30] sm:$0x1]
      %v240 = vld [vmem:[%s224] sm:$0x1]
      %v241 = vld [vmem:[%s217] sm:$0xff]
      %v242 = vld [vmem:[%s217 + $0x8] sm:$0xff]
      %v243 = vld [vmem:[%s217 + $0x10] sm:$0x3f]
      %v244 = vld [vmem:[%s217 + $0x18] sm:$0xff]
      %v245 = vld [vmem:[%s217 + $0x20] sm:$0xff]
      %v246 = vld [vmem:[%s217 + $0x28] sm:$0x3f]
      %v247 = vld [vmem:[%s217 + $0x30] sm:$0xff]
      %v248 = vld [vmem:[%s217 + $0x38] sm:$0xff]
      %v249 = vld [vmem:[%s217 + $0x40] sm:$0x3f]
      %v250 = vld [vmem:[%s217 + $0x48] sm:$0xff]
      %v251 = vld [vmem:[%s217 + $0x50] sm:$0xff]
      %v252 = vld [vmem:[%s217 + $0x58] sm:$0x3f]
      %v253 = vld [vmem:[%s217 + $0x60] sm:$0xff]
      %v254 = vld [vmem:[%s217 + $0x68] sm:$0xff]
      %v255 = vld [vmem:[%s217 + $0x70] sm:$0x3f]
      %v256 = vld [vmem:[%s217 + $0x78] sm:$0xff]
      %v257 = vld [vmem:[%s217 + $0x80] sm:$0xff]
      %v258 = vld [vmem:[%s217 + $0x88] sm:$0x3f]
      %v259 = vld [vmem:[%s217 + $0x90] sm:$0xff]
      %v260 = vld [vmem:[%s217 + $0x98] sm:$0xff]
      %v261 = vld [vmem:[%s217 + $0xa0] sm:$0x3f]
      %v262 = vld [vmem:[%s217 + $0xa8] sm:$0xff]
      %v263 = vld [vmem:[%s217 + $0xb0] sm:$0xff]
      %v264 = vld [vmem:[%s217 + $0xb8] sm:$0x3f]
      %v265 = vld [vmem:[%s217 + $0xc0] sm:$0xff]
      %v266 = vld [vmem:[%s217 + $0xc8] sm:$0xff]
      %v267 = vld [vmem:[%s217 + $0xd0] sm:$0x3f]
      %v268 = vld [vmem:[%s217 + $0xd8] sm:$0xff]
      %v269 = vld [vmem:[%s217 + $0xe0] sm:$0xff]
      %v270 = vld [vmem:[%s217 + $0xe8] sm:$0x3f]
      %v271 = vld [vmem:[%s217 + $0xf0] sm:$0xff]
      %v272 = vld [vmem:[%s217 + $0xf8] sm:$0xff]
      %v273 = vld [vmem:[%s217 + $0x100] sm:$0x3f]
      %v274 = vld [vmem:[%s217 + $0x108] sm:$0xff]
      %v275 = vld [vmem:[%s217 + $0x110] sm:$0xff]
      %v276 = vld [vmem:[%s217 + $0x118] sm:$0x3f]
      %v277 = vld [vmem:[%s217 + $0x120] sm:$0xff]
      %v278 = vld [vmem:[%s217 + $0x128] sm:$0xff]
      %v279 = vld [vmem:[%s217 + $0x130] sm:$0x3f]
      %v280 = vld [vmem:[%s217 + $0x138] sm:$0xff]
      %v281 = vld [vmem:[%s217 + $0x140] sm:$0xff]
      %v282 = vld [vmem:[%s217 + $0x148] sm:$0x3f]
      %v283 = vld [vmem:[%s217 + $0x150] sm:$0xff]
      %v284 = vld [vmem:[%s217 + $0x158] sm:$0xff]
      %v285 = vld [vmem:[%s217 + $0x160] sm:$0x3f]
      %v286 = vld [vmem:[%s217 + $0x168] sm:$0xff]
      %v287 = vld [vmem:[%s217 + $0x170] sm:$0xff]
      %v288 = vld [vmem:[%s217 + $0x178] sm:$0x3f]
      %v289 = vld [vmem:[%s217 + $0x180] sm:$0xff]
      %v290 = vld [vmem:[%s217 + $0x188] sm:$0xff]
      %v291 = vld [vmem:[%s217 + $0x190] sm:$0x3f]
      %v292 = vld [vmem:[%s217 + $0x198] sm:$0xff]
      %v293 = vld [vmem:[%s217 + $0x1a0] sm:$0xff]
      %v294 = vld [vmem:[%s217 + $0x1a8] sm:$0x3f]
      %v295 = vld [vmem:[%s217 + $0x1b0] sm:$0xff]
      %v296 = vld [vmem:[%s217 + $0x1b8] sm:$0xff]
      %v297 = vld [vmem:[%s217 + $0x1c0] sm:$0x3f]
      %v298 = vld [vmem:[%s217 + $0x1c8] sm:$0xff]
      %v299 = vld [vmem:[%s217 + $0x1d0] sm:$0xff]
      %v300 = vld [vmem:[%s217 + $0x1d8] sm:$0x3f]
      %v301 = vld [vmem:[%s217 + $0x1e0] sm:$0xff]
      %v302 = vld [vmem:[%s217 + $0x1e8] sm:$0xff]
      %v303 = vld [vmem:[%s217 + $0x1f0] sm:$0x3f]
      %v304 = vld [vmem:[%s217 + $0x1f8] sm:$0xff]
      %v305 = vld [vmem:[%s217 + $0x200] sm:$0xff]
      %v306 = vld [vmem:[%s217 + $0x208] sm:$0x3f]
      %v307 = vlaneseq
      %v308 = vshrl.u32 %v307, 7
      %v309 = vsub.s32 0, %v308
      %v310 = vrot.slane %v233, %v309
      %v311 = vmul.f32 %v241, %v310
      %v312 = vmul.f32 %v242, %v310
      %v313 = vmul.f32 %v244, %v310
      %v314 = vmul.f32 %v245, %v310
      %v315 = vmul.f32 %v247, %v310
      %v316 = vmul.f32 %v248, %v310
      %v317 = vmul.f32 %v250, %v310
      %v318 = vmul.f32 %v251, %v310
      %v319 = vmul.f32 %v253, %v310
      %v320 = vmul.f32 %v254, %v310
      %v321 = vmul.f32 %v256, %v310
      %v322 = vmul.f32 %v257, %v310
      %v323 = vmul.f32 %v259, %v310
      %v324 = vmul.f32 %v260, %v310
      %v325 = vmul.f32 %v262, %v310
      %v326 = vmul.f32 %v263, %v310
      %v327 = vmul.f32 %v265, %v310
      %v328 = vmul.f32 %v266, %v310
      %v329 = vmul.f32 %v268, %v310
      %v330 = vmul.f32 %v269, %v310
      %v331 = vmul.f32 %v271, %v310
      %v332 = vmul.f32 %v272, %v310
      %v333 = vmul.f32 %v274, %v310
      %v334 = vmul.f32 %v275, %v310
      %v335 = vmul.f32 %v277, %v310
      %v336 = vmul.f32 %v278, %v310
      %v337 = vmul.f32 %v280, %v310
      %v338 = vmul.f32 %v281, %v310
      %v339 = vmul.f32 %v283, %v310
      %v340 = vmul.f32 %v284, %v310
      %v341 = vmul.f32 %v286, %v310
      %v342 = vmul.f32 %v287, %v310
      %v343 = vadd.f32 %v311, 0.0
      %v344 = vadd.f32 %v312, 0.0
      %v345 = vadd.f32 %v313, 0.0
      %v346 = vadd.f32 %v314, 0.0
      %v347 = vadd.f32 %v315, 0.0
      %v348 = vadd.f32 %v316, 0.0
      %v349 = vadd.f32 %v317, 0.0
      %v350 = vadd.f32 %v318, 0.0
      %v351 = vadd.f32 %v319, 0.0
      %v352 = vadd.f32 %v320, 0.0
      %v353 = vadd.f32 %v321, 0.0
      %v354 = vadd.f32 %v322, 0.0
      %v355 = vadd.f32 %v323, 0.0
      %v356 = vadd.f32 %v324, 0.0
      %v357 = vadd.f32 %v325, 0.0
      %v358 = vadd.f32 %v326, 0.0
      %v359 = vadd.f32 %v327, 0.0
      %v360 = vadd.f32 %v328, 0.0
      %v361 = vadd.f32 %v329, 0.0
      %v362 = vadd.f32 %v330, 0.0
      %v363 = vadd.f32 %v331, 0.0
      %v364 = vadd.f32 %v332, 0.0
      %v365 = vadd.f32 %v333, 0.0
      %v366 = vadd.f32 %v334, 0.0
      %v367 = vadd.f32 %v335, 0.0
      %v368 = vadd.f32 %v336, 0.0
      %v369 = vadd.f32 %v337, 0.0
      %v370 = vadd.f32 %v338, 0.0
      %v371 = vadd.f32 %v339, 0.0
      %v372 = vadd.f32 %v340, 0.0
      %v373 = vadd.f32 %v341, 0.0
      %v374 = vadd.f32 %v342, 0.0
      %v375 = vlaneseq
      %v376 = vshrl.u32 %v375, 7
      %v377 = vsub.s32 7, %v376
      %v378 = vrot.slane %v233, %v377
      %v379 = vmul.f32 %v244, %v378
      %v380 = vmul.f32 %v245, %v378
      %v381 = vmul.f32 %v247, %v378
      %v382 = vmul.f32 %v248, %v378
      %v383 = vmul.f32 %v250, %v378
      %v384 = vmul.f32 %v251, %v378
      %v385 = vmul.f32 %v253, %v378
      %v386 = vmul.f32 %v254, %v378
      %v387 = vmul.f32 %v256, %v378
      %v388 = vmul.f32 %v257, %v378
      %v389 = vmul.f32 %v259, %v378
      %v390 = vmul.f32 %v260, %v378
      %v391 = vmul.f32 %v262, %v378
      %v392 = vmul.f32 %v263, %v378
      %v393 = vmul.f32 %v265, %v378
      %v394 = vmul.f32 %v266, %v378
      %v395 = vmul.f32 %v268, %v378
      %v396 = vmul.f32 %v269, %v378
      %v397 = vmul.f32 %v271, %v378
      %v398 = vmul.f32 %v272, %v378
      %v399 = vmul.f32 %v274, %v378
      %v400 = vmul.f32 %v275, %v378
      %v401 = vmul.f32 %v277, %v378
      %v402 = vmul.f32 %v278, %v378
      %v403 = vmul.f32 %v280, %v378
      %v404 = vmul.f32 %v281, %v378
      %v405 = vmul.f32 %v283, %v378
      %v406 = vmul.f32 %v284, %v378
      %v407 = vmul.f32 %v286, %v378
      %v408 = vmul.f32 %v287, %v378
      %v409 = vmul.f32 %v289, %v378
      %v410 = vmul.f32 %v290, %v378
      %v411 = vadd.f32 %v379, 0.0
      %v412 = vadd.f32 %v380, 0.0
      %v413 = vadd.f32 %v381, 0.0
      %v414 = vadd.f32 %v382, 0.0
      %v415 = vadd.f32 %v383, 0.0
      %v416 = vadd.f32 %v384, 0.0
      %v417 = vadd.f32 %v385, 0.0
      %v418 = vadd.f32 %v386, 0.0
      %v419 = vadd.f32 %v387, 0.0
      %v420 = vadd.f32 %v388, 0.0
      %v421 = vadd.f32 %v389, 0.0
      %v422 = vadd.f32 %v390, 0.0
      %v423 = vadd.f32 %v391, 0.0
      %v424 = vadd.f32 %v392, 0.0
      %v425 = vadd.f32 %v393, 0.0
      %v426 = vadd.f32 %v394, 0.0
      %v427 = vadd.f32 %v395, 0.0
      %v428 = vadd.f32 %v396, 0.0
      %v429 = vadd.f32 %v397, 0.0
      %v430 = vadd.f32 %v398, 0.0
      %v431 = vadd.f32 %v399, 0.0
      %v432 = vadd.f32 %v400, 0.0
      %v433 = vadd.f32 %v401, 0.0
      %v434 = vadd.f32 %v402, 0.0
      %v435 = vadd.f32 %v403, 0.0
      %v436 = vadd.f32 %v404, 0.0
      %v437 = vadd.f32 %v405, 0.0
      %v438 = vadd.f32 %v406, 0.0
      %v439 = vadd.f32 %v407, 0.0
      %v440 = vadd.f32 %v408, 0.0
      %v441 = vadd.f32 %v409, 0.0
      %v442 = vadd.f32 %v410, 0.0
      %v443 = vlaneseq
      %v444 = vshrl.u32 %v443, 7
      %v445 = vsub.s32 6, %v444
      %v446 = vrot.slane %v234, %v445
      %v447 = vmul.f32 %v247, %v446
      %v448 = vmul.f32 %v248, %v446
      %v449 = vmul.f32 %v250, %v446
      %v450 = vmul.f32 %v251, %v446
      %v451 = vmul.f32 %v253, %v446
      %v452 = vmul.f32 %v254, %v446
      %v453 = vmul.f32 %v256, %v446
      %v454 = vmul.f32 %v257, %v446
      %v455 = vmul.f32 %v259, %v446
      %v456 = vmul.f32 %v260, %v446
      %v457 = vmul.f32 %v262, %v446
      %v458 = vmul.f32 %v263, %v446
      %v459 = vmul.f32 %v265, %v446
      %v460 = vmul.f32 %v266, %v446
      %v461 = vmul.f32 %v268, %v446
      %v462 = vmul.f32 %v269, %v446
      %v463 = vmul.f32 %v271, %v446
      %v464 = vmul.f32 %v272, %v446
      %v465 = vmul.f32 %v274, %v446
      %v466 = vmul.f32 %v275, %v446
      %v467 = vmul.f32 %v277, %v446
      %v468 = vmul.f32 %v278, %v446
      %v469 = vmul.f32 %v280, %v446
      %v470 = vmul.f32 %v281, %v446
      %v471 = vmul.f32 %v283, %v446
      %v472 = vmul.f32 %v284, %v446
      %v473 = vmul.f32 %v286, %v446
      %v474 = vmul.f32 %v287, %v446
      %v475 = vmul.f32 %v289, %v446
      %v476 = vmul.f32 %v290, %v446
      %v477 = vmul.f32 %v292, %v446
      %v478 = vmul.f32 %v293, %v446
      %v479 = vadd.f32 %v343, %v447
      %v480 = vadd.f32 %v344, %v448
      %v481 = vadd.f32 %v345, %v449
      %v482 = vadd.f32 %v346, %v450
      %v483 = vadd.f32 %v347, %v451
      %v484 = vadd.f32 %v348, %v452
      %v485 = vadd.f32 %v349, %v453
      %v486 = vadd.f32 %v350, %v454
      %v487 = vadd.f32 %v351, %v455
      %v488 = vadd.f32 %v352, %v456
      %v489 = vadd.f32 %v353, %v457
      %v490 = vadd.f32 %v354, %v458
      %v491 = vadd.f32 %v355, %v459
      %v492 = vadd.f32 %v356, %v460
      %v493 = vadd.f32 %v357, %v461
      %v494 = vadd.f32 %v358, %v462
      %v495 = vadd.f32 %v359, %v463
      %v496 = vadd.f32 %v360, %v464
      %v497 = vadd.f32 %v361, %v465
      %v498 = vadd.f32 %v362, %v466
      %v499 = vadd.f32 %v363, %v467
      %v500 = vadd.f32 %v364, %v468
      %v501 = vadd.f32 %v365, %v469
      %v502 = vadd.f32 %v366, %v470
      %v503 = vadd.f32 %v367, %v471
      %v504 = vadd.f32 %v368, %v472
      %v505 = vadd.f32 %v369, %v473
      %v506 = vadd.f32 %v370, %v474
      %v507 = vadd.f32 %v371, %v475
      %v508 = vadd.f32 %v372, %v476
      %v509 = vadd.f32 %v373, %v477
      %v510 = vadd.f32 %v374, %v478
      %v511 = vlaneseq
      %v512 = vshrl.u32 %v511, 7
      %v513 = vsub.s32 5, %v512
      %v514 = vrot.slane %v235, %v513
      %v515 = vmul.f32 %v250, %v514
      %v516 = vmul.f32 %v251, %v514
      %v517 = vmul.f32 %v253, %v514
      %v518 = vmul.f32 %v254, %v514
      %v519 = vmul.f32 %v256, %v514
      %v520 = vmul.f32 %v257, %v514
      %v521 = vmul.f32 %v259, %v514
      %v522 = vmul.f32 %v260, %v514
      %v523 = vmul.f32 %v262, %v514
      %v524 = vmul.f32 %v263, %v514
      %v525 = vmul.f32 %v265, %v514
      %v526 = vmul.f32 %v266, %v514
      %v527 = vmul.f32 %v268, %v514
      %v528 = vmul.f32 %v269, %v514
      %v529 = vmul.f32 %v271, %v514
      %v530 = vmul.f32 %v272, %v514
      %v531 = vmul.f32 %v274, %v514
      %v532 = vmul.f32 %v275, %v514
      %v533 = vmul.f32 %v277, %v514
      %v534 = vmul.f32 %v278, %v514
      %v535 = vmul.f32 %v280, %v514
      %v536 = vmul.f32 %v281, %v514
      %v537 = vmul.f32 %v283, %v514
      %v538 = vmul.f32 %v284, %v514
      %v539 = vmul.f32 %v286, %v514
      %v540 = vmul.f32 %v287, %v514
      %v541 = vmul.f32 %v289, %v514
      %v542 = vmul.f32 %v290, %v514
      %v543 = vmul.f32 %v292, %v514
      %v544 = vmul.f32 %v293, %v514
      %v545 = vmul.f32 %v295, %v514
      %v546 = vmul.f32 %v296, %v514
      %v547 = vadd.f32 %v411, %v515
      %v548 = vadd.f32 %v412, %v516
      %v549 = vadd.f32 %v413, %v517
      %v550 = vadd.f32 %v414, %v518
      %v551 = vadd.f32 %v415, %v519
      %v552 = vadd.f32 %v416, %v520
      %v553 = vadd.f32 %v417, %v521
      %v554 = vadd.f32 %v418, %v522
      %v555 = vadd.f32 %v419, %v523
      %v556 = vadd.f32 %v420, %v524
      %v557 = vadd.f32 %v421, %v525
      %v558 = vadd.f32 %v422, %v526
      %v559 = vadd.f32 %v423, %v527
      %v560 = vadd.f32 %v424, %v528
      %v561 = vadd.f32 %v425, %v529
      %v562 = vadd.f32 %v426, %v530
      %v563 = vadd.f32 %v427, %v531
      %v564 = vadd.f32 %v428, %v532
      %v565 = vadd.f32 %v429, %v533
      %v566 = vadd.f32 %v430, %v534
      %v567 = vadd.f32 %v431, %v535
      %v568 = vadd.f32 %v432, %v536
      %v569 = vadd.f32 %v433, %v537
      %v570 = vadd.f32 %v434, %v538
      %v571 = vadd.f32 %v435, %v539
      %v572 = vadd.f32 %v436, %v540
      %v573 = vadd.f32 %v437, %v541
      %v574 = vadd.f32 %v438, %v542
      %v575 = vadd.f32 %v439, %v543
      %v576 = vadd.f32 %v440, %v544
      %v577 = vadd.f32 %v441, %v545
      %v578 = vadd.f32 %v442, %v546
      %v579 = vlaneseq
      %v580 = vshrl.u32 %v579, 7
      %v581 = vsub.s32 4, %v580
      %v582 = vrot.slane %v236, %v581
      %v583 = vmul.f32 %v253, %v582
      %v584 = vmul.f32 %v254, %v582
      %v585 = vmul.f32 %v256, %v582
      %v586 = vmul.f32 %v257, %v582
      %v587 = vmul.f32 %v259, %v582
      %v588 = vmul.f32 %v260, %v582
      %v589 = vmul.f32 %v262, %v582
      %v590 = vmul.f32 %v263, %v582
      %v591 = vmul.f32 %v265, %v582
      %v592 = vmul.f32 %v266, %v582
      %v593 = vmul.f32 %v268, %v582
      %v594 = vmul.f32 %v269, %v582
      %v595 = vmul.f32 %v271, %v582
      %v596 = vmul.f32 %v272, %v582
      %v597 = vmul.f32 %v274, %v582
      %v598 = vmul.f32 %v275, %v582
      %v599 = vmul.f32 %v277, %v582
      %v600 = vmul.f32 %v278, %v582
      %v601 = vmul.f32 %v280, %v582
      %v602 = vmul.f32 %v281, %v582
      %v603 = vmul.f32 %v283, %v582
      %v604 = vmul.f32 %v284, %v582
      %v605 = vmul.f32 %v286, %v582
      %v606 = vmul.f32 %v287, %v582
      %v607 = vmul.f32 %v289, %v582
      %v608 = vmul.f32 %v290, %v582
      %v609 = vmul.f32 %v292, %v582
      %v610 = vmul.f32 %v293, %v582
      %v611 = vmul.f32 %v295, %v582
      %v612 = vmul.f32 %v296, %v582
      %v613 = vmul.f32 %v298, %v582
      %v614 = vmul.f32 %v299, %v582
      %v615 = vadd.f32 %v479, %v583
      %v616 = vadd.f32 %v480, %v584
      %v617 = vadd.f32 %v481, %v585
      %v618 = vadd.f32 %v482, %v586
      %v619 = vadd.f32 %v483, %v587
      %v620 = vadd.f32 %v484, %v588
      %v621 = vadd.f32 %v485, %v589
      %v622 = vadd.f32 %v486, %v590
      %v623 = vadd.f32 %v487, %v591
      %v624 = vadd.f32 %v488, %v592
      %v625 = vadd.f32 %v489, %v593
      %v626 = vadd.f32 %v490, %v594
      %v627 = vadd.f32 %v491, %v595
      %v628 = vadd.f32 %v492, %v596
      %v629 = vadd.f32 %v493, %v597
      %v630 = vadd.f32 %v494, %v598
      %v631 = vadd.f32 %v495, %v599
      %v632 = vadd.f32 %v496, %v600
      %v633 = vadd.f32 %v497, %v601
      %v634 = vadd.f32 %v498, %v602
      %v635 = vadd.f32 %v499, %v603
      %v636 = vadd.f32 %v500, %v604
      %v637 = vadd.f32 %v501, %v605
      %v638 = vadd.f32 %v502, %v606
      %v639 = vadd.f32 %v503, %v607
      %v640 = vadd.f32 %v504, %v608
      %v641 = vadd.f32 %v505, %v609
      %v642 = vadd.f32 %v506, %v610
      %v643 = vadd.f32 %v507, %v611
      %v644 = vadd.f32 %v508, %v612
      %v645 = vadd.f32 %v509, %v613
      %v646 = vadd.f32 %v510, %v614
      %v647 = vlaneseq
      %v648 = vshrl.u32 %v647, 7
      %v649 = vsub.s32 3, %v648
      %v650 = vrot.slane %v237, %v649
      %v651 = vmul.f32 %v256, %v650
      %v652 = vmul.f32 %v257, %v650
      %v653 = vmul.f32 %v259, %v650
      %v654 = vmul.f32 %v260, %v650
      %v655 = vmul.f32 %v262, %v650
      %v656 = vmul.f32 %v263, %v650
      %v657 = vmul.f32 %v265, %v650
      %v658 = vmul.f32 %v266, %v650
      %v659 = vmul.f32 %v268, %v650
      %v660 = vmul.f32 %v269, %v650
      %v661 = vmul.f32 %v271, %v650
      %v662 = vmul.f32 %v272, %v650
      %v663 = vmul.f32 %v274, %v650
      %v664 = vmul.f32 %v275, %v650
      %v665 = vmul.f32 %v277, %v650
      %v666 = vmul.f32 %v278, %v650
      %v667 = vmul.f32 %v280, %v650
      %v668 = vmul.f32 %v281, %v650
      %v669 = vmul.f32 %v283, %v650
      %v670 = vmul.f32 %v284, %v650
      %v671 = vmul.f32 %v286, %v650
      %v672 = vmul.f32 %v287, %v650
      %v673 = vmul.f32 %v289, %v650
      %v674 = vmul.f32 %v290, %v650
      %v675 = vmul.f32 %v292, %v650
      %v676 = vmul.f32 %v293, %v650
      %v677 = vmul.f32 %v295, %v650
      %v678 = vmul.f32 %v296, %v650
      %v679 = vmul.f32 %v298, %v650
      %v680 = vmul.f32 %v299, %v650
      %v681 = vmul.f32 %v301, %v650
      %v682 = vmul.f32 %v302, %v650
      %v683 = vadd.f32 %v547, %v651
      %v684 = vadd.f32 %v548, %v652
      %v685 = vadd.f32 %v549, %v653
      %v686 = vadd.f32 %v550, %v654
      %v687 = vadd.f32 %v551, %v655
      %v688 = vadd.f32 %v552, %v656
      %v689 = vadd.f32 %v553, %v657
      %v690 = vadd.f32 %v554, %v658
      %v691 = vadd.f32 %v555, %v659
      %v692 = vadd.f32 %v556, %v660
      %v693 = vadd.f32 %v557, %v661
      %v694 = vadd.f32 %v558, %v662
      %v695 = vadd.f32 %v559, %v663
      %v696 = vadd.f32 %v560, %v664
      %v697 = vadd.f32 %v561, %v665
      %v698 = vadd.f32 %v562, %v666
      %v699 = vadd.f32 %v563, %v667
      %v700 = vadd.f32 %v564, %v668
      %v701 = vadd.f32 %v565, %v669
      %v702 = vadd.f32 %v566, %v670
      %v703 = vadd.f32 %v567, %v671
      %v704 = vadd.f32 %v568, %v672
      %v705 = vadd.f32 %v569, %v673
      %v706 = vadd.f32 %v570, %v674
      %v707 = vadd.f32 %v571, %v675
      %v708 = vadd.f32 %v572, %v676
      %v709 = vadd.f32 %v573, %v677
      %v710 = vadd.f32 %v574, %v678
      %v711 = vadd.f32 %v575, %v679
      %v712 = vadd.f32 %v576, %v680
      %v713 = vadd.f32 %v577, %v681
      %v714 = vadd.f32 %v578, %v682
      %v715 = vlaneseq
      %v716 = vshrl.u32 %v715, 7
      %v717 = vsub.s32 2, %v716
      %v718 = vrot.slane %v238, %v717
      %v719 = vmul.f32 %v259, %v718
      %v720 = vmul.f32 %v260, %v718
      %v721 = vmul.f32 %v262, %v718
      %v722 = vmul.f32 %v263, %v718
      %v723 = vmul.f32 %v265, %v718
      %v724 = vmul.f32 %v266, %v718
      %v725 = vmul.f32 %v268, %v718
      %v726 = vmul.f32 %v269, %v718
      %v727 = vmul.f32 %v271, %v718
      %v728 = vmul.f32 %v272, %v718
      %v729 = vmul.f32 %v274, %v718
      %v730 = vmul.f32 %v275, %v718
      %v731 = vmul.f32 %v277, %v718
      %v732 = vmul.f32 %v278, %v718
      %v733 = vmul.f32 %v280, %v718
      %v734 = vmul.f32 %v281, %v718
      %v735 = vmul.f32 %v283, %v718
      %v736 = vmul.f32 %v284, %v718
      %v737 = vmul.f32 %v286, %v718
      %v738 = vmul.f32 %v287, %v718
      %v739 = vmul.f32 %v289, %v718
      %v740 = vmul.f32 %v290, %v718
      %v741 = vmul.f32 %v292, %v718
      %v742 = vmul.f32 %v293, %v718
      %v743 = vmul.f32 %v295, %v718
      %v744 = vmul.f32 %v296, %v718
      %v745 = vmul.f32 %v298, %v718
      %v746 = vmul.f32 %v299, %v718
      %v747 = vmul.f32 %v301, %v718
      %v748 = vmul.f32 %v302, %v718
      %v749 = vmul.f32 %v304, %v718
      %v750 = vmul.f32 %v305, %v718
      %v751 = vadd.f32 %v615, %v719
      %v752 = vadd.f32 %v616, %v720
      %v753 = vadd.f32 %v617, %v721
      %v754 = vadd.f32 %v618, %v722
      %v755 = vadd.f32 %v619, %v723
      %v756 = vadd.f32 %v620, %v724
      %v757 = vadd.f32 %v621, %v725
      %v758 = vadd.f32 %v622, %v726
      %v759 = vadd.f32 %v623, %v727
      %v760 = vadd.f32 %v624, %v728
      %v761 = vadd.f32 %v625, %v729
      %v762 = vadd.f32 %v626, %v730
      %v763 = vadd.f32 %v627, %v731
      %v764 = vadd.f32 %v628, %v732
      %v765 = vadd.f32 %v629, %v733
      %v766 = vadd.f32 %v630, %v734
      %v767 = vadd.f32 %v631, %v735
      %v768 = vadd.f32 %v632, %v736
      %v769 = vadd.f32 %v633, %v737
      %v770 = vadd.f32 %v634, %v738
      %v771 = vadd.f32 %v635, %v739
      %v772 = vadd.f32 %v636, %v740
      %v773 = vadd.f32 %v637, %v741
      %v774 = vadd.f32 %v638, %v742
      %v775 = vadd.f32 %v639, %v743
      %v776 = vadd.f32 %v640, %v744
      %v777 = vadd.f32 %v641, %v745
      %v778 = vadd.f32 %v642, %v746
      %v779 = vadd.f32 %v643, %v747
      %v780 = vadd.f32 %v644, %v748
      %v781 = vadd.f32 %v645, %v749
      %v782 = vadd.f32 %v646, %v750
      %v783 = vlaneseq
      %v784 = vshrl.u32 %v783, 7
      %v785 = vsub.s32 1, %v784
      %v786 = vrot.slane %v233, %v785
      %v787 = vmul.f32 %v241, %v786
      %v788 = vmul.f32 %v242, %v786
      %v789 = vmul.f32 %v243, %v786
      %v790 = vmul.f32 %v244, %v786
      %v791 = vmul.f32 %v245, %v786
      %v792 = vmul.f32 %v246, %v786
      %v793 = vmul.f32 %v247, %v786
      %v794 = vmul.f32 %v248, %v786
      %v795 = vmul.f32 %v249, %v786
      %v796 = vmul.f32 %v250, %v786
      %v797 = vmul.f32 %v251, %v786
      %v798 = vmul.f32 %v252, %v786
      %v799 = vmul.f32 %v253, %v786
      %v800 = vmul.f32 %v254, %v786
      %v801 = vmul.f32 %v255, %v786
      %v802 = vmul.f32 %v256, %v786
      %v803 = vmul.f32 %v257, %v786
      %v804 = vmul.f32 %v258, %v786
      %v805 = vmul.f32 %v259, %v786
      %v806 = vmul.f32 %v260, %v786
      %v807 = vmul.f32 %v261, %v786
      %v808 = vmul.f32 %v262, %v786
      %v809 = vmul.f32 %v263, %v786
      %v810 = vmul.f32 %v264, %v786
      %v811 = vmul.f32 %v265, %v786
      %v812 = vmul.f32 %v266, %v786
      %v813 = vmul.f32 %v267, %v786
      %v814 = vmul.f32 %v268, %v786
      %v815 = vmul.f32 %v269, %v786
      %v816 = vmul.f32 %v270, %v786
      %v817 = vmul.f32 %v271, %v786
      %v818 = vmul.f32 %v272, %v786
      %v819 = vmul.f32 %v273, %v786
      %v820 = vmul.f32 %v274, %v786
      %v821 = vmul.f32 %v275, %v786
      %v822 = vmul.f32 %v276, %v786
      %v823 = vmul.f32 %v277, %v786
      %v824 = vmul.f32 %v278, %v786
      %v825 = vmul.f32 %v279, %v786
      %v826 = vmul.f32 %v280, %v786
      %v827 = vmul.f32 %v281, %v786
      %v828 = vmul.f32 %v282, %v786
      %v829 = vmul.f32 %v283, %v786
      %v830 = vmul.f32 %v284, %v786
      %v831 = vmul.f32 %v285, %v786
      %v832 = vmul.f32 %v286, %v786
      %v833 = vmul.f32 %v287, %v786
      %v834 = vmul.f32 %v288, %v786
      %vm883 = vcmask 1046528
      %v884 = vrot.slane %v787, 1
      %v885 = vrot.slane %v788, 1
      %v886 = vsel %vm883, %v884, %v885
      %v887 = vrot.slane %v789, 1
      %v888 = vsel %vm883, %v885, %v887
      %v889 = vrot.slane %v790, 1
      %v890 = vrot.slane %v791, 1
      %v891 = vsel %vm883, %v889, %v890
      %v892 = vrot.slane %v792, 1
      %v893 = vsel %vm883, %v890, %v892
      %v894 = vrot.slane %v793, 1
      %v895 = vrot.slane %v794, 1
      %v896 = vsel %vm883, %v894, %v895
      %v897 = vrot.slane %v795, 1
      %v898 = vsel %vm883, %v895, %v897
      %v899 = vrot.slane %v796, 1
      %v900 = vrot.slane %v797, 1
      %v901 = vsel %vm883, %v899, %v900
      %v902 = vrot.slane %v798, 1
      %v903 = vsel %vm883, %v900, %v902
      %v904 = vrot.slane %v799, 1
      %v905 = vrot.slane %v800, 1
      %v906 = vsel %vm883, %v904, %v905
      %v907 = vrot.slane %v801, 1
      %v908 = vsel %vm883, %v905, %v907
      %v909 = vrot.slane %v802, 1
      %v910 = vrot.slane %v803, 1
      %v911 = vsel %vm883, %v909, %v910
      %v912 = vrot.slane %v804, 1
      %v913 = vsel %vm883, %v910, %v912
      %v914 = vrot.slane %v805, 1
      %v915 = vrot.slane %v806, 1
      %v916 = vsel %vm883, %v914, %v915
      %v917 = vrot.slane %v807, 1
      %v918 = vsel %vm883, %v915, %v917
      %v919 = vrot.slane %v808, 1
      %v920 = vrot.slane %v809, 1
      %v921 = vsel %vm883, %v919, %v920
      %v922 = vrot.slane %v810, 1
      %v923 = vsel %vm883, %v920, %v922
      %v924 = vrot.slane %v811, 1
      %v925 = vrot.slane %v812, 1
      %v926 = vsel %vm883, %v924, %v925
      %v927 = vrot.slane %v813, 1
      %v928 = vsel %vm883, %v925, %v927
      %v929 = vrot.slane %v814, 1
      %v930 = vrot.slane %v815, 1
      %v931 = vsel %vm883, %v929, %v930
      %v932 = vrot.slane %v816, 1
      %v933 = vsel %vm883, %v930, %v932
      %v934 = vrot.slane %v817, 1
      %v935 = vrot.slane %v818, 1
      %v936 = vsel %vm883, %v934, %v935
      %v937 = vrot.slane %v819, 1
      %v938 = vsel %vm883, %v935, %v937
      %v939 = vrot.slane %v820, 1
      %v940 = vrot.slane %v821, 1
      %v941 = vsel %vm883, %v939, %v940
      %v942 = vrot.slane %v822, 1
      %v943 = vsel %vm883, %v940, %v942
      %v944 = vrot.slane %v823, 1
      %v945 = vrot.slane %v824, 1
      %v946 = vsel %vm883, %v944, %v945
      %v947 = vrot.slane %v825, 1
      %v948 = vsel %vm883, %v945, %v947
      %v949 = vrot.slane %v826, 1
      %v950 = vrot.slane %v827, 1
      %v951 = vsel %vm883, %v949, %v950
      %v952 = vrot.slane %v828, 1
      %v953 = vsel %vm883, %v950, %v952
      %v954 = vrot.slane %v829, 1
      %v955 = vrot.slane %v830, 1
      %v956 = vsel %vm883, %v954, %v955
      %v957 = vrot.slane %v831, 1
      %v958 = vsel %vm883, %v955, %v957
      %v959 = vrot.slane %v832, 1
      %v960 = vrot.slane %v833, 1
      %v961 = vsel %vm883, %v959, %v960
      %v962 = vrot.slane %v834, 1
      %v963 = vsel %vm883, %v960, %v962
      %v996 = vadd.f32 %v683, %v886
      %v997 = vadd.f32 %v684, %v888
      %v998 = vadd.f32 %v685, %v891
      %v999 = vadd.f32 %v686, %v893
      %v1000 = vadd.f32 %v687, %v896
      %v1001 = vadd.f32 %v688, %v898
      %v1002 = vadd.f32 %v689, %v901
      %v1003 = vadd.f32 %v690, %v903
      %v1004 = vadd.f32 %v691, %v906
      %v1005 = vadd.f32 %v692, %v908
      %v1006 = vadd.f32 %v693, %v911
      %v1007 = vadd.f32 %v694, %v913
      %v1008 = vadd.f32 %v695, %v916
      %v1009 = vadd.f32 %v696, %v918
      %v1010 = vadd.f32 %v697, %v921
      %v1011 = vadd.f32 %v698, %v923
      %v1012 = vadd.f32 %v699, %v926
      %v1013 = vadd.f32 %v700, %v928
      %v1014 = vadd.f32 %v701, %v931
      %v1015 = vadd.f32 %v702, %v933
      %v1016 = vadd.f32 %v703, %v936
      %v1017 = vadd.f32 %v704, %v938
      %v1018 = vadd.f32 %v705, %v941
      %v1019 = vadd.f32 %v706, %v943
      %v1020 = vadd.f32 %v707, %v946
      %v1021 = vadd.f32 %v708, %v948
      %v1022 = vadd.f32 %v709, %v951
      %v1023 = vadd.f32 %v710, %v953
      %v1024 = vadd.f32 %v711, %v956
      %v1025 = vadd.f32 %v712, %v958
      %v1026 = vadd.f32 %v713, %v961
      %v1027 = vadd.f32 %v714, %v963
      %v1028 = vlaneseq
      %v1029 = vshrl.u32 %v1028, 7
      %v1030 = vsub.s32 0, %v1029
      %v1031 = vrot.slane %v234, %v1030
      %v1032 = vmul.f32 %v244, %v1031
      %v1033 = vmul.f32 %v245, %v1031
      %v1034 = vmul.f32 %v246, %v1031
      %v1035 = vmul.f32 %v247, %v1031
      %v1036 = vmul.f32 %v248, %v1031
      %v1037 = vmul.f32 %v249, %v1031
      %v1038 = vmul.f32 %v250, %v1031
      %v1039 = vmul.f32 %v251, %v1031
      %v1040 = vmul.f32 %v252, %v1031
      %v1041 = vmul.f32 %v253, %v1031
      %v1042 = vmul.f32 %v254, %v1031
      %v1043 = vmul.f32 %v255, %v1031
      %v1044 = vmul.f32 %v256, %v1031
      %v1045 = vmul.f32 %v257, %v1031
      %v1046 = vmul.f32 %v258, %v1031
      %v1047 = vmul.f32 %v259, %v1031
      %v1048 = vmul.f32 %v260, %v1031
      %v1049 = vmul.f32 %v261, %v1031
      %v1050 = vmul.f32 %v262, %v1031
      %v1051 = vmul.f32 %v263, %v1031
      %v1052 = vmul.f32 %v264, %v1031
      %v1053 = vmul.f32 %v265, %v1031
      %v1054 = vmul.f32 %v266, %v1031
      %v1055 = vmul.f32 %v267, %v1031
      %v1056 = vmul.f32 %v268, %v1031
      %v1057 = vmul.f32 %v269, %v1031
      %v1058 = vmul.f32 %v270, %v1031
      %v1059 = vmul.f32 %v271, %v1031
      %v1060 = vmul.f32 %v272, %v1031
      %v1061 = vmul.f32 %v273, %v1031
      %v1062 = vmul.f32 %v274, %v1031
      %v1063 = vmul.f32 %v275, %v1031
      %v1064 = vmul.f32 %v276, %v1031
      %v1065 = vmul.f32 %v277, %v1031
      %v1066 = vmul.f32 %v278, %v1031
      %v1067 = vmul.f32 %v279, %v1031
      %v1068 = vmul.f32 %v280, %v1031
      %v1069 = vmul.f32 %v281, %v1031
      %v1070 = vmul.f32 %v282, %v1031
      %v1071 = vmul.f32 %v283, %v1031
      %v1072 = vmul.f32 %v284, %v1031
      %v1073 = vmul.f32 %v285, %v1031
      %v1074 = vmul.f32 %v286, %v1031
      %v1075 = vmul.f32 %v287, %v1031
      %v1076 = vmul.f32 %v288, %v1031
      %v1077 = vmul.f32 %v289, %v1031
      %v1078 = vmul.f32 %v290, %v1031
      %v1079 = vmul.f32 %v291, %v1031
      %v1128 = vrot.slane %v1032, 1
      %v1129 = vrot.slane %v1033, 1
      %v1130 = vsel %vm883, %v1128, %v1129
      %v1131 = vrot.slane %v1034, 1
      %v1132 = vsel %vm883, %v1129, %v1131
      %v1133 = vrot.slane %v1035, 1
      %v1134 = vrot.slane %v1036, 1
      %v1135 = vsel %vm883, %v1133, %v1134
      %v1136 = vrot.slane %v1037, 1
      %v1137 = vsel %vm883, %v1134, %v1136
      %v1138 = vrot.slane %v1038, 1
      %v1139 = vrot.slane %v1039, 1
      %v1140 = vsel %vm883, %v1138, %v1139
      %v1141 = vrot.slane %v1040, 1
      %v1142 = vsel %vm883, %v1139, %v1141
      %v1143 = vrot.slane %v1041, 1
      %v1144 = vrot.slane %v1042, 1
      %v1145 = vsel %vm883, %v1143, %v1144
      %v1146 = vrot.slane %v1043, 1
      %v1147 = vsel %vm883, %v1144, %v1146
      %v1148 = vrot.slane %v1044, 1
      %v1149 = vrot.slane %v1045, 1
      %v1150 = vsel %vm883, %v1148, %v1149
      %v1151 = vrot.slane %v1046, 1
      %v1152 = vsel %vm883, %v1149, %v1151
      %v1153 = vrot.slane %v1047, 1
      %v1154 = vrot.slane %v1048, 1
      %v1155 = vsel %vm883, %v1153, %v1154
      %v1156 = vrot.slane %v1049, 1
      %v1157 = vsel %vm883, %v1154, %v1156
      %v1158 = vrot.slane %v1050, 1
      %v1159 = vrot.slane %v1051, 1
      %v1160 = vsel %vm883, %v1158, %v1159
      %v1161 = vrot.slane %v1052, 1
      %v1162 = vsel %vm883, %v1159, %v1161
      %v1163 = vrot.slane %v1053, 1
      %v1164 = vrot.slane %v1054, 1
      %v1165 = vsel %vm883, %v1163, %v1164
      %v1166 = vrot.slane %v1055, 1
      %v1167 = vsel %vm883, %v1164, %v1166
      %v1168 = vrot.slane %v1056, 1
      %v1169 = vrot.slane %v1057, 1
      %v1170 = vsel %vm883, %v1168, %v1169
      %v1171 = vrot.slane %v1058, 1
      %v1172 = vsel %vm883, %v1169, %v1171
      %v1173 = vrot.slane %v1059, 1
      %v1174 = vrot.slane %v1060, 1
      %v1175 = vsel %vm883, %v1173, %v1174
      %v1176 = vrot.slane %v1061, 1
      %v1177 = vsel %vm883, %v1174, %v1176
      %v1178 = vrot.slane %v1062, 1
      %v1179 = vrot.slane %v1063, 1
      %v1180 = vsel %vm883, %v1178, %v1179
      %v1181 = vrot.slane %v1064, 1
      %v1182 = vsel %vm883, %v1179, %v1181
      %v1183 = vrot.slane %v1065, 1
      %v1184 = vrot.slane %v1066, 1
      %v1185 = vsel %vm883, %v1183, %v1184
      %v1186 = vrot.slane %v1067, 1
      %v1187 = vsel %vm883, %v1184, %v1186
      %v1188 = vrot.slane %v1068, 1
      %v1189 = vrot.slane %v1069, 1
      %v1190 = vsel %vm883, %v1188, %v1189
      %v1191 = vrot.slane %v1070, 1
      %v1192 = vsel %vm883, %v1189, %v1191
      %v1193 = vrot.slane %v1071, 1
      %v1194 = vrot.slane %v1072, 1
      %v1195 = vsel %vm883, %v1193, %v1194
      %v1196 = vrot.slane %v1073, 1
      %v1197 = vsel %vm883, %v1194, %v1196
      %v1198 = vrot.slane %v1074, 1
      %v1199 = vrot.slane %v1075, 1
      %v1200 = vsel %vm883, %v1198, %v1199
      %v1201 = vrot.slane %v1076, 1
      %v1202 = vsel %vm883, %v1199, %v1201
      %v1203 = vrot.slane %v1077, 1
      %v1204 = vrot.slane %v1078, 1
      %v1205 = vsel %vm883, %v1203, %v1204
      %v1206 = vrot.slane %v1079, 1
      %v1207 = vsel %vm883, %v1204, %v1206
      %v1240 = vadd.f32 %v751, %v1130
      %v1241 = vadd.f32 %v752, %v1132
      %v1242 = vadd.f32 %v753, %v1135
      %v1243 = vadd.f32 %v754, %v1137
      %v1244 = vadd.f32 %v755, %v1140
      %v1245 = vadd.f32 %v756, %v1142
      %v1246 = vadd.f32 %v757, %v1145
      %v1247 = vadd.f32 %v758, %v1147
      %v1248 = vadd.f32 %v759, %v1150
      %v1249 = vadd.f32 %v760, %v1152
      %v1250 = vadd.f32 %v761, %v1155
      %v1251 = vadd.f32 %v762, %v1157
      %v1252 = vadd.f32 %v763, %v1160
      %v1253 = vadd.f32 %v764, %v1162
      %v1254 = vadd.f32 %v765, %v1165
      %v1255 = vadd.f32 %v766, %v1167
      %v1256 = vadd.f32 %v767, %v1170
      %v1257 = vadd.f32 %v768, %v1172
      %v1258 = vadd.f32 %v769, %v1175
      %v1259 = vadd.f32 %v770, %v1177
      %v1260 = vadd.f32 %v771, %v1180
      %v1261 = vadd.f32 %v772, %v1182
      %v1262 = vadd.f32 %v773, %v1185
      %v1263 = vadd.f32 %v774, %v1187
      %v1264 = vadd.f32 %v775, %v1190
      %v1265 = vadd.f32 %v776, %v1192
      %v1266 = vadd.f32 %v777, %v1195
      %v1267 = vadd.f32 %v778, %v1197
      %v1268 = vadd.f32 %v779, %v1200
      %v1269 = vadd.f32 %v780, %v1202
      %v1270 = vadd.f32 %v781, %v1205
      %v1271 = vadd.f32 %v782, %v1207
      %v1272 = vlaneseq
      %v1273 = vshrl.u32 %v1272, 7
      %v1274 = vsub.s32 7, %v1273
      %v1275 = vrot.slane %v234, %v1274
      %v1276 = vmul.f32 %v247, %v1275
      %v1277 = vmul.f32 %v248, %v1275
      %v1278 = vmul.f32 %v249, %v1275
      %v1279 = vmul.f32 %v250, %v1275
      %v1280 = vmul.f32 %v251, %v1275
      %v1281 = vmul.f32 %v252, %v1275
      %v1282 = vmul.f32 %v253, %v1275
      %v1283 = vmul.f32 %v254, %v1275
      %v1284 = vmul.f32 %v255, %v1275
      %v1285 = vmul.f32 %v256, %v1275
      %v1286 = vmul.f32 %v257, %v1275
      %v1287 = vmul.f32 %v258, %v1275
      %v1288 = vmul.f32 %v259, %v1275
      %v1289 = vmul.f32 %v260, %v1275
      %v1290 = vmul.f32 %v261, %v1275
      %v1291 = vmul.f32 %v262, %v1275
      %v1292 = vmul.f32 %v263, %v1275
      %v1293 = vmul.f32 %v264, %v1275
      %v1294 = vmul.f32 %v265, %v1275
      %v1295 = vmul.f32 %v266, %v1275
      %v1296 = vmul.f32 %v267, %v1275
      %v1297 = vmul.f32 %v268, %v1275
      %v1298 = vmul.f32 %v269, %v1275
      %v1299 = vmul.f32 %v270, %v1275
      %v1300 = vmul.f32 %v271, %v1275
      %v1301 = vmul.f32 %v272, %v1275
      %v1302 = vmul.f32 %v273, %v1275
      %v1303 = vmul.f32 %v274, %v1275
      %v1304 = vmul.f32 %v275, %v1275
      %v1305 = vmul.f32 %v276, %v1275
      %v1306 = vmul.f32 %v277, %v1275
      %v1307 = vmul.f32 %v278, %v1275
      %v1308 = vmul.f32 %v279, %v1275
      %v1309 = vmul.f32 %v280, %v1275
      %v1310 = vmul.f32 %v281, %v1275
      %v1311 = vmul.f32 %v282, %v1275
      %v1312 = vmul.f32 %v283, %v1275
      %v1313 = vmul.f32 %v284, %v1275
      %v1314 = vmul.f32 %v285, %v1275
      %v1315 = vmul.f32 %v286, %v1275
      %v1316 = vmul.f32 %v287, %v1275
      %v1317 = vmul.f32 %v288, %v1275
      %v1318 = vmul.f32 %v289, %v1275
      %v1319 = vmul.f32 %v290, %v1275
      %v1320 = vmul.f32 %v291, %v1275
      %v1321 = vmul.f32 %v292, %v1275
      %v1322 = vmul.f32 %v293, %v1275
      %v1323 = vmul.f32 %v294, %v1275
      %v1372 = vrot.slane %v1276, 1
      %v1373 = vrot.slane %v1277, 1
      %v1374 = vsel %vm883, %v1372, %v1373
      %v1375 = vrot.slane %v1278, 1
      %v1376 = vsel %vm883, %v1373, %v1375
      %v1377 = vrot.slane %v1279, 1
      %v1378 = vrot.slane %v1280, 1
      %v1379 = vsel %vm883, %v1377, %v1378
      %v1380 = vrot.slane %v1281, 1
      %v1381 = vsel %vm883, %v1378, %v1380
      %v1382 = vrot.slane %v1282, 1
      %v1383 = vrot.slane %v1283, 1
      %v1384 = vsel %vm883, %v1382, %v1383
      %v1385 = vrot.slane %v1284, 1
      %v1386 = vsel %vm883, %v1383, %v1385
      %v1387 = vrot.slane %v1285, 1
      %v1388 = vrot.slane %v1286, 1
      %v1389 = vsel %vm883, %v1387, %v1388
      %v1390 = vrot.slane %v1287, 1
      %v1391 = vsel %vm883, %v1388, %v1390
      %v1392 = vrot.slane %v1288, 1
      %v1393 = vrot.slane %v1289, 1
      %v1394 = vsel %vm883, %v1392, %v1393
      %v1395 = vrot.slane %v1290, 1
      %v1396 = vsel %vm883, %v1393, %v1395
      %v1397 = vrot.slane %v1291, 1
      %v1398 = vrot.slane %v1292, 1
      %v1399 = vsel %vm883, %v1397, %v1398
      %v1400 = vrot.slane %v1293, 1
      %v1401 = vsel %vm883, %v1398, %v1400
      %v1402 = vrot.slane %v1294, 1
      %v1403 = vrot.slane %v1295, 1
      %v1404 = vsel %vm883, %v1402, %v1403
      %v1405 = vrot.slane %v1296, 1
      %v1406 = vsel %vm883, %v1403, %v1405
      %v1407 = vrot.slane %v1297, 1
      %v1408 = vrot.slane %v1298, 1
      %v1409 = vsel %vm883, %v1407, %v1408
      %v1410 = vrot.slane %v1299, 1
      %v1411 = vsel %vm883, %v1408, %v1410
      %v1412 = vrot.slane %v1300, 1
      %v1413 = vrot.slane %v1301, 1
      %v1414 = vsel %vm883, %v1412, %v1413
      %v1415 = vrot.slane %v1302, 1
      %v1416 = vsel %vm883, %v1413, %v1415
      %v1417 = vrot.slane %v1303, 1
      %v1418 = vrot.slane %v1304, 1
      %v1419 = vsel %vm883, %v1417, %v1418
      %v1420 = vrot.slane %v1305, 1
      %v1421 = vsel %vm883, %v1418, %v1420
      %v1422 = vrot.slane %v1306, 1
      %v1423 = vrot.slane %v1307, 1
      %v1424 = vsel %vm883, %v1422, %v1423
      %v1425 = vrot.slane %v1308, 1
      %v1426 = vsel %vm883, %v1423, %v1425
      %v1427 = vrot.slane %v1309, 1
      %v1428 = vrot.slane %v1310, 1
      %v1429 = vsel %vm883, %v1427, %v1428
      %v1430 = vrot.slane %v1311, 1
      %v1431 = vsel %vm883, %v1428, %v1430
      %v1432 = vrot.slane %v1312, 1
      %v1433 = vrot.slane %v1313, 1
      %v1434 = vsel %vm883, %v1432, %v1433
      %v1435 = vrot.slane %v1314, 1
      %v1436 = vsel %vm883, %v1433, %v1435
      %v1437 = vrot.slane %v1315, 1
      %v1438 = vrot.slane %v1316, 1
      %v1439 = vsel %vm883, %v1437, %v1438
      %v1440 = vrot.slane %v1317, 1
      %v1441 = vsel %vm883, %v1438, %v1440
      %v1442 = vrot.slane %v1318, 1
      %v1443 = vrot.slane %v1319, 1
      %v1444 = vsel %vm883, %v1442, %v1443
      %v1445 = vrot.slane %v1320, 1
      %v1446 = vsel %vm883, %v1443, %v1445
      %v1447 = vrot.slane %v1321, 1
      %v1448 = vrot.slane %v1322, 1
      %v1449 = vsel %vm883, %v1447, %v1448
      %v1450 = vrot.slane %v1323, 1
      %v1451 = vsel %vm883, %v1448, %v1450
      %v1484 = vadd.f32 %v996, %v1374
      %v1485 = vadd.f32 %v997, %v1376
      %v1486 = vadd.f32 %v998, %v1379
      %v1487 = vadd.f32 %v999, %v1381
      %v1488 = vadd.f32 %v1000, %v1384
      %v1489 = vadd.f32 %v1001, %v1386
      %v1490 = vadd.f32 %v1002, %v1389
      %v1491 = vadd.f32 %v1003, %v1391
      %v1492 = vadd.f32 %v1004, %v1394
      %v1493 = vadd.f32 %v1005, %v1396
      %v1494 = vadd.f32 %v1006, %v1399
      %v1495 = vadd.f32 %v1007, %v1401
      %v1496 = vadd.f32 %v1008, %v1404
      %v1497 = vadd.f32 %v1009, %v1406
      %v1498 = vadd.f32 %v1010, %v1409
      %v1499 = vadd.f32 %v1011, %v1411
      %v1500 = vadd.f32 %v1012, %v1414
      %v1501 = vadd.f32 %v1013, %v1416
      %v1502 = vadd.f32 %v1014, %v1419
      %v1503 = vadd.f32 %v1015, %v1421
      %v1504 = vadd.f32 %v1016, %v1424
      %v1505 = vadd.f32 %v1017, %v1426
      %v1506 = vadd.f32 %v1018, %v1429
      %v1507 = vadd.f32 %v1019, %v1431
      %v1508 = vadd.f32 %v1020, %v1434
      %v1509 = vadd.f32 %v1021, %v1436
      %v1510 = vadd.f32 %v1022, %v1439
      %v1511 = vadd.f32 %v1023, %v1441
      %v1512 = vadd.f32 %v1024, %v1444
      %v1513 = vadd.f32 %v1025, %v1446
      %v1514 = vadd.f32 %v1026, %v1449
      %v1515 = vadd.f32 %v1027, %v1451
      %v1516 = vlaneseq
      %v1517 = vshrl.u32 %v1516, 7
      %v1518 = vsub.s32 6, %v1517
      %v1519 = vrot.slane %v235, %v1518
      %v1520 = vmul.f32 %v250, %v1519
      %v1521 = vmul.f32 %v251, %v1519
      %v1522 = vmul.f32 %v252, %v1519
      %v1523 = vmul.f32 %v253, %v1519
      %v1524 = vmul.f32 %v254, %v1519
      %v1525 = vmul.f32 %v255, %v1519
      %v1526 = vmul.f32 %v256, %v1519
      %v1527 = vmul.f32 %v257, %v1519
      %v1528 = vmul.f32 %v258, %v1519
      %v1529 = vmul.f32 %v259, %v1519
      %v1530 = vmul.f32 %v260, %v1519
      %v1531 = vmul.f32 %v261, %v1519
      %v1532 = vmul.f32 %v262, %v1519
      %v1533 = vmul.f32 %v263, %v1519
      %v1534 = vmul.f32 %v264, %v1519
      %v1535 = vmul.f32 %v265, %v1519
      %v1536 = vmul.f32 %v266, %v1519
      %v1537 = vmul.f32 %v267, %v1519
      %v1538 = vmul.f32 %v268, %v1519
      %v1539 = vmul.f32 %v269, %v1519
      %v1540 = vmul.f32 %v270, %v1519
      %v1541 = vmul.f32 %v271, %v1519
      %v1542 = vmul.f32 %v272, %v1519
      %v1543 = vmul.f32 %v273, %v1519
      %v1544 = vmul.f32 %v274, %v1519
      %v1545 = vmul.f32 %v275, %v1519
      %v1546 = vmul.f32 %v276, %v1519
      %v1547 = vmul.f32 %v277, %v1519
      %v1548 = vmul.f32 %v278, %v1519
      %v1549 = vmul.f32 %v279, %v1519
      %v1550 = vmul.f32 %v280, %v1519
      %v1551 = vmul.f32 %v281, %v1519
      %v1552 = vmul.f32 %v282, %v1519
      %v1553 = vmul.f32 %v283, %v1519
      %v1554 = vmul.f32 %v284, %v1519
      %v1555 = vmul.f32 %v285, %v1519
      %v1556 = vmul.f32 %v286, %v1519
      %v1557 = vmul.f32 %v287, %v1519
      %v1558 = vmul.f32 %v288, %v1519
      %v1559 = vmul.f32 %v289, %v1519
      %v1560 = vmul.f32 %v290, %v1519
      %v1561 = vmul.f32 %v291, %v1519
      %v1562 = vmul.f32 %v292, %v1519
      %v1563 = vmul.f32 %v293, %v1519
      %v1564 = vmul.f32 %v294, %v1519
      %v1565 = vmul.f32 %v295, %v1519
      %v1566 = vmul.f32 %v296, %v1519
      %v1567 = vmul.f32 %v297, %v1519
      %v1616 = vrot.slane %v1520, 1
      %v1617 = vrot.slane %v1521, 1
      %v1618 = vsel %vm883, %v1616, %v1617
      %v1619 = vrot.slane %v1522, 1
      %v1620 = vsel %vm883, %v1617, %v1619
      %v1621 = vrot.slane %v1523, 1
      %v1622 = vrot.slane %v1524, 1
      %v1623 = vsel %vm883, %v1621, %v1622
      %v1624 = vrot.slane %v1525, 1
      %v1625 = vsel %vm883, %v1622, %v1624
      %v1626 = vrot.slane %v1526, 1
      %v1627 = vrot.slane %v1527, 1
      %v1628 = vsel %vm883, %v1626, %v1627
      %v1629 = vrot.slane %v1528, 1
      %v1630 = vsel %vm883, %v1627, %v1629
      %v1631 = vrot.slane %v1529, 1
      %v1632 = vrot.slane %v1530, 1
      %v1633 = vsel %vm883, %v1631, %v1632
      %v1634 = vrot.slane %v1531, 1
      %v1635 = vsel %vm883, %v1632, %v1634
      %v1636 = vrot.slane %v1532, 1
      %v1637 = vrot.slane %v1533, 1
      %v1638 = vsel %vm883, %v1636, %v1637
      %v1639 = vrot.slane %v1534, 1
      %v1640 = vsel %vm883, %v1637, %v1639
      %v1641 = vrot.slane %v1535, 1
      %v1642 = vrot.slane %v1536, 1
      %v1643 = vsel %vm883, %v1641, %v1642
      %v1644 = vrot.slane %v1537, 1
      %v1645 = vsel %vm883, %v1642, %v1644
      %v1646 = vrot.slane %v1538, 1
      %v1647 = vrot.slane %v1539, 1
      %v1648 = vsel %vm883, %v1646, %v1647
      %v1649 = vrot.slane %v1540, 1
      %v1650 = vsel %vm883, %v1647, %v1649
      %v1651 = vrot.slane %v1541, 1
      %v1652 = vrot.slane %v1542, 1
      %v1653 = vsel %vm883, %v1651, %v1652
      %v1654 = vrot.slane %v1543, 1
      %v1655 = vsel %vm883, %v1652, %v1654
      %v1656 = vrot.slane %v1544, 1
      %v1657 = vrot.slane %v1545, 1
      %v1658 = vsel %vm883, %v1656, %v1657
      %v1659 = vrot.slane %v1546, 1
      %v1660 = vsel %vm883, %v1657, %v1659
      %v1661 = vrot.slane %v1547, 1
      %v1662 = vrot.slane %v1548, 1
      %v1663 = vsel %vm883, %v1661, %v1662
      %v1664 = vrot.slane %v1549, 1
      %v1665 = vsel %vm883, %v1662, %v1664
      %v1666 = vrot.slane %v1550, 1
      %v1667 = vrot.slane %v1551, 1
      %v1668 = vsel %vm883, %v1666, %v1667
      %v1669 = vrot.slane %v1552, 1
      %v1670 = vsel %vm883, %v1667, %v1669
      %v1671 = vrot.slane %v1553, 1
      %v1672 = vrot.slane %v1554, 1
      %v1673 = vsel %vm883, %v1671, %v1672
      %v1674 = vrot.slane %v1555, 1
      %v1675 = vsel %vm883, %v1672, %v1674
      %v1676 = vrot.slane %v1556, 1
      %v1677 = vrot.slane %v1557, 1
      %v1678 = vsel %vm883, %v1676, %v1677
      %v1679 = vrot.slane %v1558, 1
      %v1680 = vsel %vm883, %v1677, %v1679
      %v1681 = vrot.slane %v1559, 1
      %v1682 = vrot.slane %v1560, 1
      %v1683 = vsel %vm883, %v1681, %v1682
      %v1684 = vrot.slane %v1561, 1
      %v1685 = vsel %vm883, %v1682, %v1684
      %v1686 = vrot.slane %v1562, 1
      %v1687 = vrot.slane %v1563, 1
      %v1688 = vsel %vm883, %v1686, %v1687
      %v1689 = vrot.slane %v1564, 1
      %v1690 = vsel %vm883, %v1687, %v1689
      %v1691 = vrot.slane %v1565, 1
      %v1692 = vrot.slane %v1566, 1
      %v1693 = vsel %vm883, %v1691, %v1692
      %v1694 = vrot.slane %v1567, 1
      %v1695 = vsel %vm883, %v1692, %v1694
      %v1728 = vadd.f32 %v1240, %v1618
      %v1729 = vadd.f32 %v1241, %v1620
      %v1730 = vadd.f32 %v1242, %v1623
      %v1731 = vadd.f32 %v1243, %v1625
      %v1732 = vadd.f32 %v1244, %v1628
      %v1733 = vadd.f32 %v1245, %v1630
      %v1734 = vadd.f32 %v1246, %v1633
      %v1735 = vadd.f32 %v1247, %v1635
      %v1736 = vadd.f32 %v1248, %v1638
      %v1737 = vadd.f32 %v1249, %v1640
      %v1738 = vadd.f32 %v1250, %v1643
      %v1739 = vadd.f32 %v1251, %v1645
      %v1740 = vadd.f32 %v1252, %v1648
      %v1741 = vadd.f32 %v1253, %v1650
      %v1742 = vadd.f32 %v1254, %v1653
      %v1743 = vadd.f32 %v1255, %v1655
      %v1744 = vadd.f32 %v1256, %v1658
      %v1745 = vadd.f32 %v1257, %v1660
      %v1746 = vadd.f32 %v1258, %v1663
      %v1747 = vadd.f32 %v1259, %v1665
      %v1748 = vadd.f32 %v1260, %v1668
      %v1749 = vadd.f32 %v1261, %v1670
      %v1750 = vadd.f32 %v1262, %v1673
      %v1751 = vadd.f32 %v1263, %v1675
      %v1752 = vadd.f32 %v1264, %v1678
      %v1753 = vadd.f32 %v1265, %v1680
      %v1754 = vadd.f32 %v1266, %v1683
      %v1755 = vadd.f32 %v1267, %v1685
      %v1756 = vadd.f32 %v1268, %v1688
      %v1757 = vadd.f32 %v1269, %v1690
      %v1758 = vadd.f32 %v1270, %v1693
      %v1759 = vadd.f32 %v1271, %v1695
      %v1760 = vlaneseq
      %v1761 = vshrl.u32 %v1760, 7
      %v1762 = vsub.s32 5, %v1761
      %v1763 = vrot.slane %v236, %v1762
      %v1764 = vmul.f32 %v253, %v1763
      %v1765 = vmul.f32 %v254, %v1763
      %v1766 = vmul.f32 %v255, %v1763
      %v1767 = vmul.f32 %v256, %v1763
      %v1768 = vmul.f32 %v257, %v1763
      %v1769 = vmul.f32 %v258, %v1763
      %v1770 = vmul.f32 %v259, %v1763
      %v1771 = vmul.f32 %v260, %v1763
      %v1772 = vmul.f32 %v261, %v1763
      %v1773 = vmul.f32 %v262, %v1763
      %v1774 = vmul.f32 %v263, %v1763
      %v1775 = vmul.f32 %v264, %v1763
      %v1776 = vmul.f32 %v265, %v1763
      %v1777 = vmul.f32 %v266, %v1763
      %v1778 = vmul.f32 %v267, %v1763
      %v1779 = vmul.f32 %v268, %v1763
      %v1780 = vmul.f32 %v269, %v1763
      %v1781 = vmul.f32 %v270, %v1763
      %v1782 = vmul.f32 %v271, %v1763
      %v1783 = vmul.f32 %v272, %v1763
      %v1784 = vmul.f32 %v273, %v1763
      %v1785 = vmul.f32 %v274, %v1763
      %v1786 = vmul.f32 %v275, %v1763
      %v1787 = vmul.f32 %v276, %v1763
      %v1788 = vmul.f32 %v277, %v1763
      %v1789 = vmul.f32 %v278, %v1763
      %v1790 = vmul.f32 %v279, %v1763
      %v1791 = vmul.f32 %v280, %v1763
      %v1792 = vmul.f32 %v281, %v1763
      %v1793 = vmul.f32 %v282, %v1763
      %v1794 = vmul.f32 %v283, %v1763
      %v1795 = vmul.f32 %v284, %v1763
      %v1796 = vmul.f32 %v285, %v1763
      %v1797 = vmul.f32 %v286, %v1763
      %v1798 = vmul.f32 %v287, %v1763
      %v1799 = vmul.f32 %v288, %v1763
      %v1800 = vmul.f32 %v289, %v1763
      %v1801 = vmul.f32 %v290, %v1763
      %v1802 = vmul.f32 %v291, %v1763
      %v1803 = vmul.f32 %v292, %v1763
      %v1804 = vmul.f32 %v293, %v1763
      %v1805 = vmul.f32 %v294, %v1763
      %v1806 = vmul.f32 %v295, %v1763
      %v1807 = vmul.f32 %v296, %v1763
      %v1808 = vmul.f32 %v297, %v1763
      %v1809 = vmul.f32 %v298, %v1763
      %v1810 = vmul.f32 %v299, %v1763
      %v1811 = vmul.f32 %v300, %v1763
      %v1860 = vrot.slane %v1764, 1
      %v1861 = vrot.slane %v1765, 1
      %v1862 = vsel %vm883, %v1860, %v1861
      %v1863 = vrot.slane %v1766, 1
      %v1864 = vsel %vm883, %v1861, %v1863
      %v1865 = vrot.slane %v1767, 1
      %v1866 = vrot.slane %v1768, 1
      %v1867 = vsel %vm883, %v1865, %v1866
      %v1868 = vrot.slane %v1769, 1
      %v1869 = vsel %vm883, %v1866, %v1868
      %v1870 = vrot.slane %v1770, 1
      %v1871 = vrot.slane %v1771, 1
      %v1872 = vsel %vm883, %v1870, %v1871
      %v1873 = vrot.slane %v1772, 1
      %v1874 = vsel %vm883, %v1871, %v1873
      %v1875 = vrot.slane %v1773, 1
      %v1876 = vrot.slane %v1774, 1
      %v1877 = vsel %vm883, %v1875, %v1876
      %v1878 = vrot.slane %v1775, 1
      %v1879 = vsel %vm883, %v1876, %v1878
      %v1880 = vrot.slane %v1776, 1
      %v1881 = vrot.slane %v1777, 1
      %v1882 = vsel %vm883, %v1880, %v1881
      %v1883 = vrot.slane %v1778, 1
      %v1884 = vsel %vm883, %v1881, %v1883
      %v1885 = vrot.slane %v1779, 1
      %v1886 = vrot.slane %v1780, 1
      %v1887 = vsel %vm883, %v1885, %v1886
      %v1888 = vrot.slane %v1781, 1
      %v1889 = vsel %vm883, %v1886, %v1888
      %v1890 = vrot.slane %v1782, 1
      %v1891 = vrot.slane %v1783, 1
      %v1892 = vsel %vm883, %v1890, %v1891
      %v1893 = vrot.slane %v1784, 1
      %v1894 = vsel %vm883, %v1891, %v1893
      %v1895 = vrot.slane %v1785, 1
      %v1896 = vrot.slane %v1786, 1
      %v1897 = vsel %vm883, %v1895, %v1896
      %v1898 = vrot.slane %v1787, 1
      %v1899 = vsel %vm883, %v1896, %v1898
      %v1900 = vrot.slane %v1788, 1
      %v1901 = vrot.slane %v1789, 1
      %v1902 = vsel %vm883, %v1900, %v1901
      %v1903 = vrot.slane %v1790, 1
      %v1904 = vsel %vm883, %v1901, %v1903
      %v1905 = vrot.slane %v1791, 1
      %v1906 = vrot.slane %v1792, 1
      %v1907 = vsel %vm883, %v1905, %v1906
      %v1908 = vrot.slane %v1793, 1
      %v1909 = vsel %vm883, %v1906, %v1908
      %v1910 = vrot.slane %v1794, 1
      %v1911 = vrot.slane %v1795, 1
      %v1912 = vsel %vm883, %v1910, %v1911
      %v1913 = vrot.slane %v1796, 1
      %v1914 = vsel %vm883, %v1911, %v1913
      %v1915 = vrot.slane %v1797, 1
      %v1916 = vrot.slane %v1798, 1
      %v1917 = vsel %vm883, %v1915, %v1916
      %v1918 = vrot.slane %v1799, 1
      %v1919 = vsel %vm883, %v1916, %v1918
      %v1920 = vrot.slane %v1800, 1
      %v1921 = vrot.slane %v1801, 1
      %v1922 = vsel %vm883, %v1920, %v1921
      %v1923 = vrot.slane %v1802, 1
      %v1924 = vsel %vm883, %v1921, %v1923
      %v1925 = vrot.slane %v1803, 1
      %v1926 = vrot.slane %v1804, 1
      %v1927 = vsel %vm883, %v1925, %v1926
      %v1928 = vrot.slane %v1805, 1
      %v1929 = vsel %vm883, %v1926, %v1928
      %v1930 = vrot.slane %v1806, 1
      %v1931 = vrot.slane %v1807, 1
      %v1932 = vsel %vm883, %v1930, %v1931
      %v1933 = vrot.slane %v1808, 1
      %v1934 = vsel %vm883, %v1931, %v1933
      %v1935 = vrot.slane %v1809, 1
      %v1936 = vrot.slane %v1810, 1
      %v1937 = vsel %vm883, %v1935, %v1936
      %v1938 = vrot.slane %v1811, 1
      %v1939 = vsel %vm883, %v1936, %v1938
      %v1972 = vadd.f32 %v1484, %v1862
      %v1973 = vadd.f32 %v1485, %v1864
      %v1974 = vadd.f32 %v1486, %v1867
      %v1975 = vadd.f32 %v1487, %v1869
      %v1976 = vadd.f32 %v1488, %v1872
      %v1977 = vadd.f32 %v1489, %v1874
      %v1978 = vadd.f32 %v1490, %v1877
      %v1979 = vadd.f32 %v1491, %v1879
      %v1980 = vadd.f32 %v1492, %v1882
      %v1981 = vadd.f32 %v1493, %v1884
      %v1982 = vadd.f32 %v1494, %v1887
      %v1983 = vadd.f32 %v1495, %v1889
      %v1984 = vadd.f32 %v1496, %v1892
      %v1985 = vadd.f32 %v1497, %v1894
      %v1986 = vadd.f32 %v1498, %v1897
      %v1987 = vadd.f32 %v1499, %v1899
      %v1988 = vadd.f32 %v1500, %v1902
      %v1989 = vadd.f32 %v1501, %v1904
      %v1990 = vadd.f32 %v1502, %v1907
      %v1991 = vadd.f32 %v1503, %v1909
      %v1992 = vadd.f32 %v1504, %v1912
      %v1993 = vadd.f32 %v1505, %v1914
      %v1994 = vadd.f32 %v1506, %v1917
      %v1995 = vadd.f32 %v1507, %v1919
      %v1996 = vadd.f32 %v1508, %v1922
      %v1997 = vadd.f32 %v1509, %v1924
      %v1998 = vadd.f32 %v1510, %v1927
      %v1999 = vadd.f32 %v1511, %v1929
      %v2000 = vadd.f32 %v1512, %v1932
      %v2001 = vadd.f32 %v1513, %v1934
      %v2002 = vadd.f32 %v1514, %v1937
      %v2003 = vadd.f32 %v1515, %v1939
      %v2004 = vlaneseq
      %v2005 = vshrl.u32 %v2004, 7
      %v2006 = vsub.s32 4, %v2005
      %v2007 = vrot.slane %v237, %v2006
      %v2008 = vmul.f32 %v256, %v2007
      %v2009 = vmul.f32 %v257, %v2007
      %v2010 = vmul.f32 %v258, %v2007
      %v2011 = vmul.f32 %v259, %v2007
      %v2012 = vmul.f32 %v260, %v2007
      %v2013 = vmul.f32 %v261, %v2007
      %v2014 = vmul.f32 %v262, %v2007
      %v2015 = vmul.f32 %v263, %v2007
      %v2016 = vmul.f32 %v264, %v2007
      %v2017 = vmul.f32 %v265, %v2007
      %v2018 = vmul.f32 %v266, %v2007
      %v2019 = vmul.f32 %v267, %v2007
      %v2020 = vmul.f32 %v268, %v2007
      %v2021 = vmul.f32 %v269, %v2007
      %v2022 = vmul.f32 %v270, %v2007
      %v2023 = vmul.f32 %v271, %v2007
      %v2024 = vmul.f32 %v272, %v2007
      %v2025 = vmul.f32 %v273, %v2007
      %v2026 = vmul.f32 %v274, %v2007
      %v2027 = vmul.f32 %v275, %v2007
      %v2028 = vmul.f32 %v276, %v2007
      %v2029 = vmul.f32 %v277, %v2007
      %v2030 = vmul.f32 %v278, %v2007
      %v2031 = vmul.f32 %v279, %v2007
      %v2032 = vmul.f32 %v280, %v2007
      %v2033 = vmul.f32 %v281, %v2007
      %v2034 = vmul.f32 %v282, %v2007
      %v2035 = vmul.f32 %v283, %v2007
      %v2036 = vmul.f32 %v284, %v2007
      %v2037 = vmul.f32 %v285, %v2007
      %v2038 = vmul.f32 %v286, %v2007
      %v2039 = vmul.f32 %v287, %v2007
      %v2040 = vmul.f32 %v288, %v2007
      %v2041 = vmul.f32 %v289, %v2007
      %v2042 = vmul.f32 %v290, %v2007
      %v2043 = vmul.f32 %v291, %v2007
      %v2044 = vmul.f32 %v292, %v2007
      %v2045 = vmul.f32 %v293, %v2007
      %v2046 = vmul.f32 %v294, %v2007
      %v2047 = vmul.f32 %v295, %v2007
      %v2048 = vmul.f32 %v296, %v2007
      %v2049 = vmul.f32 %v297, %v2007
      %v2050 = vmul.f32 %v298, %v2007
      %v2051 = vmul.f32 %v299, %v2007
      %v2052 = vmul.f32 %v300, %v2007
      %v2053 = vmul.f32 %v301, %v2007
      %v2054 = vmul.f32 %v302, %v2007
      %v2055 = vmul.f32 %v303, %v2007
      %v2104 = vrot.slane %v2008, 1
      %v2105 = vrot.slane %v2009, 1
      %v2106 = vsel %vm883, %v2104, %v2105
      %v2107 = vrot.slane %v2010, 1
      %v2108 = vsel %vm883, %v2105, %v2107
      %v2109 = vrot.slane %v2011, 1
      %v2110 = vrot.slane %v2012, 1
      %v2111 = vsel %vm883, %v2109, %v2110
      %v2112 = vrot.slane %v2013, 1
      %v2113 = vsel %vm883, %v2110, %v2112
      %v2114 = vrot.slane %v2014, 1
      %v2115 = vrot.slane %v2015, 1
      %v2116 = vsel %vm883, %v2114, %v2115
      %v2117 = vrot.slane %v2016, 1
      %v2118 = vsel %vm883, %v2115, %v2117
      %v2119 = vrot.slane %v2017, 1
      %v2120 = vrot.slane %v2018, 1
      %v2121 = vsel %vm883, %v2119, %v2120
      %v2122 = vrot.slane %v2019, 1
      %v2123 = vsel %vm883, %v2120, %v2122
      %v2124 = vrot.slane %v2020, 1
      %v2125 = vrot.slane %v2021, 1
      %v2126 = vsel %vm883, %v2124, %v2125
      %v2127 = vrot.slane %v2022, 1
      %v2128 = vsel %vm883, %v2125, %v2127
      %v2129 = vrot.slane %v2023, 1
      %v2130 = vrot.slane %v2024, 1
      %v2131 = vsel %vm883, %v2129, %v2130
      %v2132 = vrot.slane %v2025, 1
      %v2133 = vsel %vm883, %v2130, %v2132
      %v2134 = vrot.slane %v2026, 1
      %v2135 = vrot.slane %v2027, 1
      %v2136 = vsel %vm883, %v2134, %v2135
      %v2137 = vrot.slane %v2028, 1
      %v2138 = vsel %vm883, %v2135, %v2137
      %v2139 = vrot.slane %v2029, 1
      %v2140 = vrot.slane %v2030, 1
      %v2141 = vsel %vm883, %v2139, %v2140
      %v2142 = vrot.slane %v2031, 1
      %v2143 = vsel %vm883, %v2140, %v2142
      %v2144 = vrot.slane %v2032, 1
      %v2145 = vrot.slane %v2033, 1
      %v2146 = vsel %vm883, %v2144, %v2145
      %v2147 = vrot.slane %v2034, 1
      %v2148 = vsel %vm883, %v2145, %v2147
      %v2149 = vrot.slane %v2035, 1
      %v2150 = vrot.slane %v2036, 1
      %v2151 = vsel %vm883, %v2149, %v2150
      %v2152 = vrot.slane %v2037, 1
      %v2153 = vsel %vm883, %v2150, %v2152
      %v2154 = vrot.slane %v2038, 1
      %v2155 = vrot.slane %v2039, 1
      %v2156 = vsel %vm883, %v2154, %v2155
      %v2157 = vrot.slane %v2040, 1
      %v2158 = vsel %vm883, %v2155, %v2157
      %v2159 = vrot.slane %v2041, 1
      %v2160 = vrot.slane %v2042, 1
      %v2161 = vsel %vm883, %v2159, %v2160
      %v2162 = vrot.slane %v2043, 1
      %v2163 = vsel %vm883, %v2160, %v2162
      %v2164 = vrot.slane %v2044, 1
      %v2165 = vrot.slane %v2045, 1
      %v2166 = vsel %vm883, %v2164, %v2165
      %v2167 = vrot.slane %v2046, 1
      %v2168 = vsel %vm883, %v2165, %v2167
      %v2169 = vrot.slane %v2047, 1
      %v2170 = vrot.slane %v2048, 1
      %v2171 = vsel %vm883, %v2169, %v2170
      %v2172 = vrot.slane %v2049, 1
      %v2173 = vsel %vm883, %v2170, %v2172
      %v2174 = vrot.slane %v2050, 1
      %v2175 = vrot.slane %v2051, 1
      %v2176 = vsel %vm883, %v2174, %v2175
      %v2177 = vrot.slane %v2052, 1
      %v2178 = vsel %vm883, %v2175, %v2177
      %v2179 = vrot.slane %v2053, 1
      %v2180 = vrot.slane %v2054, 1
      %v2181 = vsel %vm883, %v2179, %v2180
      %v2182 = vrot.slane %v2055, 1
      %v2183 = vsel %vm883, %v2180, %v2182
      %v2216 = vadd.f32 %v1728, %v2106
      %v2217 = vadd.f32 %v1729, %v2108
      %v2218 = vadd.f32 %v1730, %v2111
      %v2219 = vadd.f32 %v1731, %v2113
      %v2220 = vadd.f32 %v1732, %v2116
      %v2221 = vadd.f32 %v1733, %v2118
      %v2222 = vadd.f32 %v1734, %v2121
      %v2223 = vadd.f32 %v1735, %v2123
      %v2224 = vadd.f32 %v1736, %v2126
      %v2225 = vadd.f32 %v1737, %v2128
      %v2226 = vadd.f32 %v1738, %v2131
      %v2227 = vadd.f32 %v1739, %v2133
      %v2228 = vadd.f32 %v1740, %v2136
      %v2229 = vadd.f32 %v1741, %v2138
      %v2230 = vadd.f32 %v1742, %v2141
      %v2231 = vadd.f32 %v1743, %v2143
      %v2232 = vadd.f32 %v1744, %v2146
      %v2233 = vadd.f32 %v1745, %v2148
      %v2234 = vadd.f32 %v1746, %v2151
      %v2235 = vadd.f32 %v1747, %v2153
      %v2236 = vadd.f32 %v1748, %v2156
      %v2237 = vadd.f32 %v1749, %v2158
      %v2238 = vadd.f32 %v1750, %v2161
      %v2239 = vadd.f32 %v1751, %v2163
      %v2240 = vadd.f32 %v1752, %v2166
      %v2241 = vadd.f32 %v1753, %v2168
      %v2242 = vadd.f32 %v1754, %v2171
      %v2243 = vadd.f32 %v1755, %v2173
      %v2244 = vadd.f32 %v1756, %v2176
      %v2245 = vadd.f32 %v1757, %v2178
      %v2246 = vadd.f32 %v1758, %v2181
      %v2247 = vadd.f32 %v1759, %v2183
      %v2248 = vlaneseq
      %v2249 = vshrl.u32 %v2248, 7
      %v2250 = vsub.s32 3, %v2249
      %v2251 = vrot.slane %v238, %v2250
      %v2252 = vmul.f32 %v259, %v2251
      %v2253 = vmul.f32 %v260, %v2251
      %v2254 = vmul.f32 %v261, %v2251
      %v2255 = vmul.f32 %v262, %v2251
      %v2256 = vmul.f32 %v263, %v2251
      %v2257 = vmul.f32 %v264, %v2251
      %v2258 = vmul.f32 %v265, %v2251
      %v2259 = vmul.f32 %v266, %v2251
      %v2260 = vmul.f32 %v267, %v2251
      %v2261 = vmul.f32 %v268, %v2251
      %v2262 = vmul.f32 %v269, %v2251
      %v2263 = vmul.f32 %v270, %v2251
      %v2264 = vmul.f32 %v271, %v2251
      %v2265 = vmul.f32 %v272, %v2251
      %v2266 = vmul.f32 %v273, %v2251
      %v2267 = vmul.f32 %v274, %v2251
      %v2268 = vmul.f32 %v275, %v2251
      %v2269 = vmul.f32 %v276, %v2251
      %v2270 = vmul.f32 %v277, %v2251
      %v2271 = vmul.f32 %v278, %v2251
      %v2272 = vmul.f32 %v279, %v2251
      %v2273 = vmul.f32 %v280, %v2251
      %v2274 = vmul.f32 %v281, %v2251
      %v2275 = vmul.f32 %v282, %v2251
      %v2276 = vmul.f32 %v283, %v2251
      %v2277 = vmul.f32 %v284, %v2251
      %v2278 = vmul.f32 %v285, %v2251
      %v2279 = vmul.f32 %v286, %v2251
      %v2280 = vmul.f32 %v287, %v2251
      %v2281 = vmul.f32 %v288, %v2251
      %v2282 = vmul.f32 %v289, %v2251
      %v2283 = vmul.f32 %v290, %v2251
      %v2284 = vmul.f32 %v291, %v2251
      %v2285 = vmul.f32 %v292, %v2251
      %v2286 = vmul.f32 %v293, %v2251
      %v2287 = vmul.f32 %v294, %v2251
      %v2288 = vmul.f32 %v295, %v2251
      %v2289 = vmul.f32 %v296, %v2251
      %v2290 = vmul.f32 %v297, %v2251
      %v2291 = vmul.f32 %v298, %v2251
      %v2292 = vmul.f32 %v299, %v2251
      %v2293 = vmul.f32 %v300, %v2251
      %v2294 = vmul.f32 %v301, %v2251
      %v2295 = vmul.f32 %v302, %v2251
      %v2296 = vmul.f32 %v303, %v2251
      %v2297 = vmul.f32 %v304, %v2251
      %v2298 = vmul.f32 %v305, %v2251
      %v2299 = vmul.f32 %v306, %v2251
      %v2348 = vrot.slane %v2252, 1
      %v2349 = vrot.slane %v2253, 1
      %v2350 = vsel %vm883, %v2348, %v2349
      %v2351 = vrot.slane %v2254, 1
      %v2352 = vsel %vm883, %v2349, %v2351
      %v2353 = vrot.slane %v2255, 1
      %v2354 = vrot.slane %v2256, 1
      %v2355 = vsel %vm883, %v2353, %v2354
      %v2356 = vrot.slane %v2257, 1
      %v2357 = vsel %vm883, %v2354, %v2356
      %v2358 = vrot.slane %v2258, 1
      %v2359 = vrot.slane %v2259, 1
      %v2360 = vsel %vm883, %v2358, %v2359
      %v2361 = vrot.slane %v2260, 1
      %v2362 = vsel %vm883, %v2359, %v2361
      %v2363 = vrot.slane %v2261, 1
      %v2364 = vrot.slane %v2262, 1
      %v2365 = vsel %vm883, %v2363, %v2364
      %v2366 = vrot.slane %v2263, 1
      %v2367 = vsel %vm883, %v2364, %v2366
      %v2368 = vrot.slane %v2264, 1
      %v2369 = vrot.slane %v2265, 1
      %v2370 = vsel %vm883, %v2368, %v2369
      %v2371 = vrot.slane %v2266, 1
      %v2372 = vsel %vm883, %v2369, %v2371
      %v2373 = vrot.slane %v2267, 1
      %v2374 = vrot.slane %v2268, 1
      %v2375 = vsel %vm883, %v2373, %v2374
      %v2376 = vrot.slane %v2269, 1
      %v2377 = vsel %vm883, %v2374, %v2376
      %v2378 = vrot.slane %v2270, 1
      %v2379 = vrot.slane %v2271, 1
      %v2380 = vsel %vm883, %v2378, %v2379
      %v2381 = vrot.slane %v2272, 1
      %v2382 = vsel %vm883, %v2379, %v2381
      %v2383 = vrot.slane %v2273, 1
      %v2384 = vrot.slane %v2274, 1
      %v2385 = vsel %vm883, %v2383, %v2384
      %v2386 = vrot.slane %v2275, 1
      %v2387 = vsel %vm883, %v2384, %v2386
      %v2388 = vrot.slane %v2276, 1
      %v2389 = vrot.slane %v2277, 1
      %v2390 = vsel %vm883, %v2388, %v2389
      %v2391 = vrot.slane %v2278, 1
      %v2392 = vsel %vm883, %v2389, %v2391
      %v2393 = vrot.slane %v2279, 1
      %v2394 = vrot.slane %v2280, 1
      %v2395 = vsel %vm883, %v2393, %v2394
      %v2396 = vrot.slane %v2281, 1
      %v2397 = vsel %vm883, %v2394, %v2396
      %v2398 = vrot.slane %v2282, 1
      %v2399 = vrot.slane %v2283, 1
      %v2400 = vsel %vm883, %v2398, %v2399
      %v2401 = vrot.slane %v2284, 1
      %v2402 = vsel %vm883, %v2399, %v2401
      %v2403 = vrot.slane %v2285, 1
      %v2404 = vrot.slane %v2286, 1
      %v2405 = vsel %vm883, %v2403, %v2404
      %v2406 = vrot.slane %v2287, 1
      %v2407 = vsel %vm883, %v2404, %v2406
      %v2408 = vrot.slane %v2288, 1
      %v2409 = vrot.slane %v2289, 1
      %v2410 = vsel %vm883, %v2408, %v2409
      %v2411 = vrot.slane %v2290, 1
      %v2412 = vsel %vm883, %v2409, %v2411
      %v2413 = vrot.slane %v2291, 1
      %v2414 = vrot.slane %v2292, 1
      %v2415 = vsel %vm883, %v2413, %v2414
      %v2416 = vrot.slane %v2293, 1
      %v2417 = vsel %vm883, %v2414, %v2416
      %v2418 = vrot.slane %v2294, 1
      %v2419 = vrot.slane %v2295, 1
      %v2420 = vsel %vm883, %v2418, %v2419
      %v2421 = vrot.slane %v2296, 1
      %v2422 = vsel %vm883, %v2419, %v2421
      %v2423 = vrot.slane %v2297, 1
      %v2424 = vrot.slane %v2298, 1
      %v2425 = vsel %vm883, %v2423, %v2424
      %v2426 = vrot.slane %v2299, 1
      %v2427 = vsel %vm883, %v2424, %v2426
      %v2460 = vadd.f32 %v1972, %v2350
      %v2461 = vadd.f32 %v1973, %v2352
      %v2462 = vadd.f32 %v1974, %v2355
      %v2463 = vadd.f32 %v1975, %v2357
      %v2464 = vadd.f32 %v1976, %v2360
      %v2465 = vadd.f32 %v1977, %v2362
      %v2466 = vadd.f32 %v1978, %v2365
      %v2467 = vadd.f32 %v1979, %v2367
      %v2468 = vadd.f32 %v1980, %v2370
      %v2469 = vadd.f32 %v1981, %v2372
      %v2470 = vadd.f32 %v1982, %v2375
      %v2471 = vadd.f32 %v1983, %v2377
      %v2472 = vadd.f32 %v1984, %v2380
      %v2473 = vadd.f32 %v1985, %v2382
      %v2474 = vadd.f32 %v1986, %v2385
      %v2475 = vadd.f32 %v1987, %v2387
      %v2476 = vadd.f32 %v1988, %v2390
      %v2477 = vadd.f32 %v1989, %v2392
      %v2478 = vadd.f32 %v1990, %v2395
      %v2479 = vadd.f32 %v1991, %v2397
      %v2480 = vadd.f32 %v1992, %v2400
      %v2481 = vadd.f32 %v1993, %v2402
      %v2482 = vadd.f32 %v1994, %v2405
      %v2483 = vadd.f32 %v1995, %v2407
      %v2484 = vadd.f32 %v1996, %v2410
      %v2485 = vadd.f32 %v1997, %v2412
      %v2486 = vadd.f32 %v1998, %v2415
      %v2487 = vadd.f32 %v1999, %v2417
      %v2488 = vadd.f32 %v2000, %v2420
      %v2489 = vadd.f32 %v2001, %v2422
      %v2490 = vadd.f32 %v2002, %v2425
      %v2491 = vadd.f32 %v2003, %v2427
      %v2492 = vlaneseq
      %v2493 = vshrl.u32 %v2492, 7
      %v2494 = vsub.s32 2, %v2493
      %v2495 = vrot.slane %v233, %v2494
      %v2496 = vmul.f32 %v241, %v2495
      %v2497 = vmul.f32 %v242, %v2495
      %v2498 = vmul.f32 %v243, %v2495
      %v2499 = vmul.f32 %v244, %v2495
      %v2500 = vmul.f32 %v245, %v2495
      %v2501 = vmul.f32 %v246, %v2495
      %v2502 = vmul.f32 %v247, %v2495
      %v2503 = vmul.f32 %v248, %v2495
      %v2504 = vmul.f32 %v249, %v2495
      %v2505 = vmul.f32 %v250, %v2495
      %v2506 = vmul.f32 %v251, %v2495
      %v2507 = vmul.f32 %v252, %v2495
      %v2508 = vmul.f32 %v253, %v2495
      %v2509 = vmul.f32 %v254, %v2495
      %v2510 = vmul.f32 %v255, %v2495
      %v2511 = vmul.f32 %v256, %v2495
      %v2512 = vmul.f32 %v257, %v2495
      %v2513 = vmul.f32 %v258, %v2495
      %v2514 = vmul.f32 %v259, %v2495
      %v2515 = vmul.f32 %v260, %v2495
      %v2516 = vmul.f32 %v261, %v2495
      %v2517 = vmul.f32 %v262, %v2495
      %v2518 = vmul.f32 %v263, %v2495
      %v2519 = vmul.f32 %v264, %v2495
      %v2520 = vmul.f32 %v265, %v2495
      %v2521 = vmul.f32 %v266, %v2495
      %v2522 = vmul.f32 %v267, %v2495
      %v2523 = vmul.f32 %v268, %v2495
      %v2524 = vmul.f32 %v269, %v2495
      %v2525 = vmul.f32 %v270, %v2495
      %v2526 = vmul.f32 %v271, %v2495
      %v2527 = vmul.f32 %v272, %v2495
      %v2528 = vmul.f32 %v273, %v2495
      %v2529 = vmul.f32 %v274, %v2495
      %v2530 = vmul.f32 %v275, %v2495
      %v2531 = vmul.f32 %v276, %v2495
      %v2532 = vmul.f32 %v277, %v2495
      %v2533 = vmul.f32 %v278, %v2495
      %v2534 = vmul.f32 %v279, %v2495
      %v2535 = vmul.f32 %v280, %v2495
      %v2536 = vmul.f32 %v281, %v2495
      %v2537 = vmul.f32 %v282, %v2495
      %v2538 = vmul.f32 %v283, %v2495
      %v2539 = vmul.f32 %v284, %v2495
      %v2540 = vmul.f32 %v285, %v2495
      %v2541 = vmul.f32 %v286, %v2495
      %v2542 = vmul.f32 %v287, %v2495
      %v2543 = vmul.f32 %v288, %v2495
      %vm2592 = vcmask 1045504
      %v2593 = vrot.slane %v2496, 2
      %v2594 = vrot.slane %v2497, 2
      %v2595 = vsel %vm2592, %v2593, %v2594
      %v2596 = vrot.slane %v2498, 2
      %v2597 = vsel %vm2592, %v2594, %v2596
      %v2598 = vrot.slane %v2499, 2
      %v2599 = vrot.slane %v2500, 2
      %v2600 = vsel %vm2592, %v2598, %v2599
      %v2601 = vrot.slane %v2501, 2
      %v2602 = vsel %vm2592, %v2599, %v2601
      %v2603 = vrot.slane %v2502, 2
      %v2604 = vrot.slane %v2503, 2
      %v2605 = vsel %vm2592, %v2603, %v2604
      %v2606 = vrot.slane %v2504, 2
      %v2607 = vsel %vm2592, %v2604, %v2606
      %v2608 = vrot.slane %v2505, 2
      %v2609 = vrot.slane %v2506, 2
      %v2610 = vsel %vm2592, %v2608, %v2609
      %v2611 = vrot.slane %v2507, 2
      %v2612 = vsel %vm2592, %v2609, %v2611
      %v2613 = vrot.slane %v2508, 2
      %v2614 = vrot.slane %v2509, 2
      %v2615 = vsel %vm2592, %v2613, %v2614
      %v2616 = vrot.slane %v2510, 2
      %v2617 = vsel %vm2592, %v2614, %v2616
      %v2618 = vrot.slane %v2511, 2
      %v2619 = vrot.slane %v2512, 2
      %v2620 = vsel %vm2592, %v2618, %v2619
      %v2621 = vrot.slane %v2513, 2
      %v2622 = vsel %vm2592, %v2619, %v2621
      %v2623 = vrot.slane %v2514, 2
      %v2624 = vrot.slane %v2515, 2
      %v2625 = vsel %vm2592, %v2623, %v2624
      %v2626 = vrot.slane %v2516, 2
      %v2627 = vsel %vm2592, %v2624, %v2626
      %v2628 = vrot.slane %v2517, 2
      %v2629 = vrot.slane %v2518, 2
      %v2630 = vsel %vm2592, %v2628, %v2629
      %v2631 = vrot.slane %v2519, 2
      %v2632 = vsel %vm2592, %v2629, %v2631
      %v2633 = vrot.slane %v2520, 2
      %v2634 = vrot.slane %v2521, 2
      %v2635 = vsel %vm2592, %v2633, %v2634
      %v2636 = vrot.slane %v2522, 2
      %v2637 = vsel %vm2592, %v2634, %v2636
      %v2638 = vrot.slane %v2523, 2
      %v2639 = vrot.slane %v2524, 2
      %v2640 = vsel %vm2592, %v2638, %v2639
      %v2641 = vrot.slane %v2525, 2
      %v2642 = vsel %vm2592, %v2639, %v2641
      %v2643 = vrot.slane %v2526, 2
      %v2644 = vrot.slane %v2527, 2
      %v2645 = vsel %vm2592, %v2643, %v2644
      %v2646 = vrot.slane %v2528, 2
      %v2647 = vsel %vm2592, %v2644, %v2646
      %v2648 = vrot.slane %v2529, 2
      %v2649 = vrot.slane %v2530, 2
      %v2650 = vsel %vm2592, %v2648, %v2649
      %v2651 = vrot.slane %v2531, 2
      %v2652 = vsel %vm2592, %v2649, %v2651
      %v2653 = vrot.slane %v2532, 2
      %v2654 = vrot.slane %v2533, 2
      %v2655 = vsel %vm2592, %v2653, %v2654
      %v2656 = vrot.slane %v2534, 2
      %v2657 = vsel %vm2592, %v2654, %v2656
      %v2658 = vrot.slane %v2535, 2
      %v2659 = vrot.slane %v2536, 2
      %v2660 = vsel %vm2592, %v2658, %v2659
      %v2661 = vrot.slane %v2537, 2
      %v2662 = vsel %vm2592, %v2659, %v2661
      %v2663 = vrot.slane %v2538, 2
      %v2664 = vrot.slane %v2539, 2
      %v2665 = vsel %vm2592, %v2663, %v2664
      %v2666 = vrot.slane %v2540, 2
      %v2667 = vsel %vm2592, %v2664, %v2666
      %v2668 = vrot.slane %v2541, 2
      %v2669 = vrot.slane %v2542, 2
      %v2670 = vsel %vm2592, %v2668, %v2669
      %v2671 = vrot.slane %v2543, 2
      %v2672 = vsel %vm2592, %v2669, %v2671
      %v2705 = vadd.f32 %v2216, %v2595
      %v2706 = vadd.f32 %v2217, %v2597
      %v2707 = vadd.f32 %v2218, %v2600
      %v2708 = vadd.f32 %v2219, %v2602
      %v2709 = vadd.f32 %v2220, %v2605
      %v2710 = vadd.f32 %v2221, %v2607
      %v2711 = vadd.f32 %v2222, %v2610
      %v2712 = vadd.f32 %v2223, %v2612
      %v2713 = vadd.f32 %v2224, %v2615
      %v2714 = vadd.f32 %v2225, %v2617
      %v2715 = vadd.f32 %v2226, %v2620
      %v2716 = vadd.f32 %v2227, %v2622
      %v2717 = vadd.f32 %v2228, %v2625
      %v2718 = vadd.f32 %v2229, %v2627
      %v2719 = vadd.f32 %v2230, %v2630
      %v2720 = vadd.f32 %v2231, %v2632
      %v2721 = vadd.f32 %v2232, %v2635
      %v2722 = vadd.f32 %v2233, %v2637
      %v2723 = vadd.f32 %v2234, %v2640
      %v2724 = vadd.f32 %v2235, %v2642
      %v2725 = vadd.f32 %v2236, %v2645
      %v2726 = vadd.f32 %v2237, %v2647
      %v2727 = vadd.f32 %v2238, %v2650
      %v2728 = vadd.f32 %v2239, %v2652
      %v2729 = vadd.f32 %v2240, %v2655
      %v2730 = vadd.f32 %v2241, %v2657
      %v2731 = vadd.f32 %v2242, %v2660
      %v2732 = vadd.f32 %v2243, %v2662
      %v2733 = vadd.f32 %v2244, %v2665
      %v2734 = vadd.f32 %v2245, %v2667
      %v2735 = vadd.f32 %v2246, %v2670
      %v2736 = vadd.f32 %v2247, %v2672
      %v2737 = vlaneseq
      %v2738 = vshrl.u32 %v2737, 7
      %v2739 = vsub.s32 1, %v2738
      %v2740 = vrot.slane %v234, %v2739
      %v2741 = vmul.f32 %v244, %v2740
      %v2742 = vmul.f32 %v245, %v2740
      %v2743 = vmul.f32 %v246, %v2740
      %v2744 = vmul.f32 %v247, %v2740
      %v2745 = vmul.f32 %v248, %v2740
      %v2746 = vmul.f32 %v249, %v2740
      %v2747 = vmul.f32 %v250, %v2740
      %v2748 = vmul.f32 %v251, %v2740
      %v2749 = vmul.f32 %v252, %v2740
      %v2750 = vmul.f32 %v253, %v2740
      %v2751 = vmul.f32 %v254, %v2740
      %v2752 = vmul.f32 %v255, %v2740
      %v2753 = vmul.f32 %v256, %v2740
      %v2754 = vmul.f32 %v257, %v2740
      %v2755 = vmul.f32 %v258, %v2740
      %v2756 = vmul.f32 %v259, %v2740
      %v2757 = vmul.f32 %v260, %v2740
      %v2758 = vmul.f32 %v261, %v2740
      %v2759 = vmul.f32 %v262, %v2740
      %v2760 = vmul.f32 %v263, %v2740
      %v2761 = vmul.f32 %v264, %v2740
      %v2762 = vmul.f32 %v265, %v2740
      %v2763 = vmul.f32 %v266, %v2740
      %v2764 = vmul.f32 %v267, %v2740
      %v2765 = vmul.f32 %v268, %v2740
      %v2766 = vmul.f32 %v269, %v2740
      %v2767 = vmul.f32 %v270, %v2740
      %v2768 = vmul.f32 %v271, %v2740
      %v2769 = vmul.f32 %v272, %v2740
      %v2770 = vmul.f32 %v273, %v2740
      %v2771 = vmul.f32 %v274, %v2740
      %v2772 = vmul.f32 %v275, %v2740
      %v2773 = vmul.f32 %v276, %v2740
      %v2774 = vmul.f32 %v277, %v2740
      %v2775 = vmul.f32 %v278, %v2740
      %v2776 = vmul.f32 %v279, %v2740
      %v2777 = vmul.f32 %v280, %v2740
      %v2778 = vmul.f32 %v281, %v2740
      %v2779 = vmul.f32 %v282, %v2740
      %v2780 = vmul.f32 %v283, %v2740
      %v2781 = vmul.f32 %v284, %v2740
      %v2782 = vmul.f32 %v285, %v2740
      %v2783 = vmul.f32 %v286, %v2740
      %v2784 = vmul.f32 %v287, %v2740
      %v2785 = vmul.f32 %v288, %v2740
      %v2786 = vmul.f32 %v289, %v2740
      %v2787 = vmul.f32 %v290, %v2740
      %v2788 = vmul.f32 %v291, %v2740
      %v2837 = vrot.slane %v2741, 2
      %v2838 = vrot.slane %v2742, 2
      %v2839 = vsel %vm2592, %v2837, %v2838
      %v2840 = vrot.slane %v2743, 2
      %v2841 = vsel %vm2592, %v2838, %v2840
      %v2842 = vrot.slane %v2744, 2
      %v2843 = vrot.slane %v2745, 2
      %v2844 = vsel %vm2592, %v2842, %v2843
      %v2845 = vrot.slane %v2746, 2
      %v2846 = vsel %vm2592, %v2843, %v2845
      %v2847 = vrot.slane %v2747, 2
      %v2848 = vrot.slane %v2748, 2
      %v2849 = vsel %vm2592, %v2847, %v2848
      %v2850 = vrot.slane %v2749, 2
      %v2851 = vsel %vm2592, %v2848, %v2850
      %v2852 = vrot.slane %v2750, 2
      %v2853 = vrot.slane %v2751, 2
      %v2854 = vsel %vm2592, %v2852, %v2853
      %v2855 = vrot.slane %v2752, 2
      %v2856 = vsel %vm2592, %v2853, %v2855
      %v2857 = vrot.slane %v2753, 2
      %v2858 = vrot.slane %v2754, 2
      %v2859 = vsel %vm2592, %v2857, %v2858
      %v2860 = vrot.slane %v2755, 2
      %v2861 = vsel %vm2592, %v2858, %v2860
      %v2862 = vrot.slane %v2756, 2
      %v2863 = vrot.slane %v2757, 2
      %v2864 = vsel %vm2592, %v2862, %v2863
      %v2865 = vrot.slane %v2758, 2
      %v2866 = vsel %vm2592, %v2863, %v2865
      %v2867 = vrot.slane %v2759, 2
      %v2868 = vrot.slane %v2760, 2
      %v2869 = vsel %vm2592, %v2867, %v2868
      %v2870 = vrot.slane %v2761, 2
      %v2871 = vsel %vm2592, %v2868, %v2870
      %v2872 = vrot.slane %v2762, 2
      %v2873 = vrot.slane %v2763, 2
      %v2874 = vsel %vm2592, %v2872, %v2873
      %v2875 = vrot.slane %v2764, 2
      %v2876 = vsel %vm2592, %v2873, %v2875
      %v2877 = vrot.slane %v2765, 2
      %v2878 = vrot.slane %v2766, 2
      %v2879 = vsel %vm2592, %v2877, %v2878
      %v2880 = vrot.slane %v2767, 2
      %v2881 = vsel %vm2592, %v2878, %v2880
      %v2882 = vrot.slane %v2768, 2
      %v2883 = vrot.slane %v2769, 2
      %v2884 = vsel %vm2592, %v2882, %v2883
      %v2885 = vrot.slane %v2770, 2
      %v2886 = vsel %vm2592, %v2883, %v2885
      %v2887 = vrot.slane %v2771, 2
      %v2888 = vrot.slane %v2772, 2
      %v2889 = vsel %vm2592, %v2887, %v2888
      %v2890 = vrot.slane %v2773, 2
      %v2891 = vsel %vm2592, %v2888, %v2890
      %v2892 = vrot.slane %v2774, 2
      %v2893 = vrot.slane %v2775, 2
      %v2894 = vsel %vm2592, %v2892, %v2893
      %v2895 = vrot.slane %v2776, 2
      %v2896 = vsel %vm2592, %v2893, %v2895
      %v2897 = vrot.slane %v2777, 2
      %v2898 = vrot.slane %v2778, 2
      %v2899 = vsel %vm2592, %v2897, %v2898
      %v2900 = vrot.slane %v2779, 2
      %v2901 = vsel %vm2592, %v2898, %v2900
      %v2902 = vrot.slane %v2780, 2
      %v2903 = vrot.slane %v2781, 2
      %v2904 = vsel %vm2592, %v2902, %v2903
      %v2905 = vrot.slane %v2782, 2
      %v2906 = vsel %vm2592, %v2903, %v2905
      %v2907 = vrot.slane %v2783, 2
      %v2908 = vrot.slane %v2784, 2
      %v2909 = vsel %vm2592, %v2907, %v2908
      %v2910 = vrot.slane %v2785, 2
      %v2911 = vsel %vm2592, %v2908, %v2910
      %v2912 = vrot.slane %v2786, 2
      %v2913 = vrot.slane %v2787, 2
      %v2914 = vsel %vm2592, %v2912, %v2913
      %v2915 = vrot.slane %v2788, 2
      %v2916 = vsel %vm2592, %v2913, %v2915
      %v2949 = vadd.f32 %v2460, %v2839
      %v2950 = vadd.f32 %v2461, %v2841
      %v2951 = vadd.f32 %v2462, %v2844
      %v2952 = vadd.f32 %v2463, %v2846
      %v2953 = vadd.f32 %v2464, %v2849
      %v2954 = vadd.f32 %v2465, %v2851
      %v2955 = vadd.f32 %v2466, %v2854
      %v2956 = vadd.f32 %v2467, %v2856
      %v2957 = vadd.f32 %v2468, %v2859
      %v2958 = vadd.f32 %v2469, %v2861
      %v2959 = vadd.f32 %v2470, %v2864
      %v2960 = vadd.f32 %v2471, %v2866
      %v2961 = vadd.f32 %v2472, %v2869
      %v2962 = vadd.f32 %v2473, %v2871
      %v2963 = vadd.f32 %v2474, %v2874
      %v2964 = vadd.f32 %v2475, %v2876
      %v2965 = vadd.f32 %v2476, %v2879
      %v2966 = vadd.f32 %v2477, %v2881
      %v2967 = vadd.f32 %v2478, %v2884
      %v2968 = vadd.f32 %v2479, %v2886
      %v2969 = vadd.f32 %v2480, %v2889
      %v2970 = vadd.f32 %v2481, %v2891
      %v2971 = vadd.f32 %v2482, %v2894
      %v2972 = vadd.f32 %v2483, %v2896
      %v2973 = vadd.f32 %v2484, %v2899
      %v2974 = vadd.f32 %v2485, %v2901
      %v2975 = vadd.f32 %v2486, %v2904
      %v2976 = vadd.f32 %v2487, %v2906
      %v2977 = vadd.f32 %v2488, %v2909
      %v2978 = vadd.f32 %v2489, %v2911
      %v2979 = vadd.f32 %v2490, %v2914
      %v2980 = vadd.f32 %v2491, %v2916
      %v2981 = vlaneseq
      %v2982 = vshrl.u32 %v2981, 7
      %v2983 = vsub.s32 0, %v2982
      %v2984 = vrot.slane %v235, %v2983
      %v2985 = vmul.f32 %v247, %v2984
      %v2986 = vmul.f32 %v248, %v2984
      %v2987 = vmul.f32 %v249, %v2984
      %v2988 = vmul.f32 %v250, %v2984
      %v2989 = vmul.f32 %v251, %v2984
      %v2990 = vmul.f32 %v252, %v2984
      %v2991 = vmul.f32 %v253, %v2984
      %v2992 = vmul.f32 %v254, %v2984
      %v2993 = vmul.f32 %v255, %v2984
      %v2994 = vmul.f32 %v256, %v2984
      %v2995 = vmul.f32 %v257, %v2984
      %v2996 = vmul.f32 %v258, %v2984
      %v2997 = vmul.f32 %v259, %v2984
      %v2998 = vmul.f32 %v260, %v2984
      %v2999 = vmul.f32 %v261, %v2984
      %v3000 = vmul.f32 %v262, %v2984
      %v3001 = vmul.f32 %v263, %v2984
      %v3002 = vmul.f32 %v264, %v2984
      %v3003 = vmul.f32 %v265, %v2984
      %v3004 = vmul.f32 %v266, %v2984
      %v3005 = vmul.f32 %v267, %v2984
      %v3006 = vmul.f32 %v268, %v2984
      %v3007 = vmul.f32 %v269, %v2984
      %v3008 = vmul.f32 %v270, %v2984
      %v3009 = vmul.f32 %v271, %v2984
      %v3010 = vmul.f32 %v272, %v2984
      %v3011 = vmul.f32 %v273, %v2984
      %v3012 = vmul.f32 %v274, %v2984
      %v3013 = vmul.f32 %v275, %v2984
      %v3014 = vmul.f32 %v276, %v2984
      %v3015 = vmul.f32 %v277, %v2984
      %v3016 = vmul.f32 %v278, %v2984
      %v3017 = vmul.f32 %v279, %v2984
      %v3018 = vmul.f32 %v280, %v2984
      %v3019 = vmul.f32 %v281, %v2984
      %v3020 = vmul.f32 %v282, %v2984
      %v3021 = vmul.f32 %v283, %v2984
      %v3022 = vmul.f32 %v284, %v2984
      %v3023 = vmul.f32 %v285, %v2984
      %v3024 = vmul.f32 %v286, %v2984
      %v3025 = vmul.f32 %v287, %v2984
      %v3026 = vmul.f32 %v288, %v2984
      %v3027 = vmul.f32 %v289, %v2984
      %v3028 = vmul.f32 %v290, %v2984
      %v3029 = vmul.f32 %v291, %v2984
      %v3030 = vmul.f32 %v292, %v2984
      %v3031 = vmul.f32 %v293, %v2984
      %v3032 = vmul.f32 %v294, %v2984
      %v3081 = vrot.slane %v2985, 2
      %v3082 = vrot.slane %v2986, 2
      %v3083 = vsel %vm2592, %v3081, %v3082
      %v3084 = vrot.slane %v2987, 2
      %v3085 = vsel %vm2592, %v3082, %v3084
      %v3086 = vrot.slane %v2988, 2
      %v3087 = vrot.slane %v2989, 2
      %v3088 = vsel %vm2592, %v3086, %v3087
      %v3089 = vrot.slane %v2990, 2
      %v3090 = vsel %vm2592, %v3087, %v3089
      %v3091 = vrot.slane %v2991, 2
      %v3092 = vrot.slane %v2992, 2
      %v3093 = vsel %vm2592, %v3091, %v3092
      %v3094 = vrot.slane %v2993, 2
      %v3095 = vsel %vm2592, %v3092, %v3094
      %v3096 = vrot.slane %v2994, 2
      %v3097 = vrot.slane %v2995, 2
      %v3098 = vsel %vm2592, %v3096, %v3097
      %v3099 = vrot.slane %v2996, 2
      %v3100 = vsel %vm2592, %v3097, %v3099
      %v3101 = vrot.slane %v2997, 2
      %v3102 = vrot.slane %v2998, 2
      %v3103 = vsel %vm2592, %v3101, %v3102
      %v3104 = vrot.slane %v2999, 2
      %v3105 = vsel %vm2592, %v3102, %v3104
      %v3106 = vrot.slane %v3000, 2
      %v3107 = vrot.slane %v3001, 2
      %v3108 = vsel %vm2592, %v3106, %v3107
      %v3109 = vrot.slane %v3002, 2
      %v3110 = vsel %vm2592, %v3107, %v3109
      %v3111 = vrot.slane %v3003, 2
      %v3112 = vrot.slane %v3004, 2
      %v3113 = vsel %vm2592, %v3111, %v3112
      %v3114 = vrot.slane %v3005, 2
      %v3115 = vsel %vm2592, %v3112, %v3114
      %v3116 = vrot.slane %v3006, 2
      %v3117 = vrot.slane %v3007, 2
      %v3118 = vsel %vm2592, %v3116, %v3117
      %v3119 = vrot.slane %v3008, 2
      %v3120 = vsel %vm2592, %v3117, %v3119
      %v3121 = vrot.slane %v3009, 2
      %v3122 = vrot.slane %v3010, 2
      %v3123 = vsel %vm2592, %v3121, %v3122
      %v3124 = vrot.slane %v3011, 2
      %v3125 = vsel %vm2592, %v3122, %v3124
      %v3126 = vrot.slane %v3012, 2
      %v3127 = vrot.slane %v3013, 2
      %v3128 = vsel %vm2592, %v3126, %v3127
      %v3129 = vrot.slane %v3014, 2
      %v3130 = vsel %vm2592, %v3127, %v3129
      %v3131 = vrot.slane %v3015, 2
      %v3132 = vrot.slane %v3016, 2
      %v3133 = vsel %vm2592, %v3131, %v3132
      %v3134 = vrot.slane %v3017, 2
      %v3135 = vsel %vm2592, %v3132, %v3134
      %v3136 = vrot.slane %v3018, 2
      %v3137 = vrot.slane %v3019, 2
      %v3138 = vsel %vm2592, %v3136, %v3137
      %v3139 = vrot.slane %v3020, 2
      %v3140 = vsel %vm2592, %v3137, %v3139
      %v3141 = vrot.slane %v3021, 2
      %v3142 = vrot.slane %v3022, 2
      %v3143 = vsel %vm2592, %v3141, %v3142
      %v3144 = vrot.slane %v3023, 2
      %v3145 = vsel %vm2592, %v3142, %v3144
      %v3146 = vrot.slane %v3024, 2
      %v3147 = vrot.slane %v3025, 2
      %v3148 = vsel %vm2592, %v3146, %v3147
      %v3149 = vrot.slane %v3026, 2
      %v3150 = vsel %vm2592, %v3147, %v3149
      %v3151 = vrot.slane %v3027, 2
      %v3152 = vrot.slane %v3028, 2
      %v3153 = vsel %vm2592, %v3151, %v3152
      %v3154 = vrot.slane %v3029, 2
      %v3155 = vsel %vm2592, %v3152, %v3154
      %v3156 = vrot.slane %v3030, 2
      %v3157 = vrot.slane %v3031, 2
      %v3158 = vsel %vm2592, %v3156, %v3157
      %v3159 = vrot.slane %v3032, 2
      %v3160 = vsel %vm2592, %v3157, %v3159
      %v3193 = vadd.f32 %v2705, %v3083
      %v3194 = vadd.f32 %v2706, %v3085
      %v3195 = vadd.f32 %v2707, %v3088
      %v3196 = vadd.f32 %v2708, %v3090
      %v3197 = vadd.f32 %v2709, %v3093
      %v3198 = vadd.f32 %v2710, %v3095
      %v3199 = vadd.f32 %v2711, %v3098
      %v3200 = vadd.f32 %v2712, %v3100
      %v3201 = vadd.f32 %v2713, %v3103
      %v3202 = vadd.f32 %v2714, %v3105
      %v3203 = vadd.f32 %v2715, %v3108
      %v3204 = vadd.f32 %v2716, %v3110
      %v3205 = vadd.f32 %v2717, %v3113
      %v3206 = vadd.f32 %v2718, %v3115
      %v3207 = vadd.f32 %v2719, %v3118
      %v3208 = vadd.f32 %v2720, %v3120
      %v3209 = vadd.f32 %v2721, %v3123
      %v3210 = vadd.f32 %v2722, %v3125
      %v3211 = vadd.f32 %v2723, %v3128
      %v3212 = vadd.f32 %v2724, %v3130
      %v3213 = vadd.f32 %v2725, %v3133
      %v3214 = vadd.f32 %v2726, %v3135
      %v3215 = vadd.f32 %v2727, %v3138
      %v3216 = vadd.f32 %v2728, %v3140
      %v3217 = vadd.f32 %v2729, %v3143
      %v3218 = vadd.f32 %v2730, %v3145
      %v3219 = vadd.f32 %v2731, %v3148
      %v3220 = vadd.f32 %v2732, %v3150
      %v3221 = vadd.f32 %v2733, %v3153
      %v3222 = vadd.f32 %v2734, %v3155
      %v3223 = vadd.f32 %v2735, %v3158
      %v3224 = vadd.f32 %v2736, %v3160
      %v3225 = vlaneseq
      %v3226 = vshrl.u32 %v3225, 7
      %v3227 = vsub.s32 7, %v3226
      %v3228 = vrot.slane %v235, %v3227
      %v3229 = vmul.f32 %v250, %v3228
      %v3230 = vmul.f32 %v251, %v3228
      %v3231 = vmul.f32 %v252, %v3228
      %v3232 = vmul.f32 %v253, %v3228
      %v3233 = vmul.f32 %v254, %v3228
      %v3234 = vmul.f32 %v255, %v3228
      %v3235 = vmul.f32 %v256, %v3228
      %v3236 = vmul.f32 %v257, %v3228
      %v3237 = vmul.f32 %v258, %v3228
      %v3238 = vmul.f32 %v259, %v3228
      %v3239 = vmul.f32 %v260, %v3228
      %v3240 = vmul.f32 %v261, %v3228
      %v3241 = vmul.f32 %v262, %v3228
      %v3242 = vmul.f32 %v263, %v3228
      %v3243 = vmul.f32 %v264, %v3228
      %v3244 = vmul.f32 %v265, %v3228
      %v3245 = vmul.f32 %v266, %v3228
      %v3246 = vmul.f32 %v267, %v3228
      %v3247 = vmul.f32 %v268, %v3228
      %v3248 = vmul.f32 %v269, %v3228
      %v3249 = vmul.f32 %v270, %v3228
      %v3250 = vmul.f32 %v271, %v3228
      %v3251 = vmul.f32 %v272, %v3228
      %v3252 = vmul.f32 %v273, %v3228
      %v3253 = vmul.f32 %v274, %v3228
      %v3254 = vmul.f32 %v275, %v3228
      %v3255 = vmul.f32 %v276, %v3228
      %v3256 = vmul.f32 %v277, %v3228
      %v3257 = vmul.f32 %v278, %v3228
      %v3258 = vmul.f32 %v279, %v3228
      %v3259 = vmul.f32 %v280, %v3228
      %v3260 = vmul.f32 %v281, %v3228
      %v3261 = vmul.f32 %v282, %v3228
      %v3262 = vmul.f32 %v283, %v3228
      %v3263 = vmul.f32 %v284, %v3228
      %v3264 = vmul.f32 %v285, %v3228
      %v3265 = vmul.f32 %v286, %v3228
      %v3266 = vmul.f32 %v287, %v3228
      %v3267 = vmul.f32 %v288, %v3228
      %v3268 = vmul.f32 %v289, %v3228
      %v3269 = vmul.f32 %v290, %v3228
      %v3270 = vmul.f32 %v291, %v3228
      %v3271 = vmul.f32 %v292, %v3228
      %v3272 = vmul.f32 %v293, %v3228
      %v3273 = vmul.f32 %v294, %v3228
      %v3274 = vmul.f32 %v295, %v3228
      %v3275 = vmul.f32 %v296, %v3228
      %v3276 = vmul.f32 %v297, %v3228
      %v3325 = vrot.slane %v3229, 2
      %v3326 = vrot.slane %v3230, 2
      %v3327 = vsel %vm2592, %v3325, %v3326
      %v3328 = vrot.slane %v3231, 2
      %v3329 = vsel %vm2592, %v3326, %v3328
      %v3330 = vrot.slane %v3232, 2
      %v3331 = vrot.slane %v3233, 2
      %v3332 = vsel %vm2592, %v3330, %v3331
      %v3333 = vrot.slane %v3234, 2
      %v3334 = vsel %vm2592, %v3331, %v3333
      %v3335 = vrot.slane %v3235, 2
      %v3336 = vrot.slane %v3236, 2
      %v3337 = vsel %vm2592, %v3335, %v3336
      %v3338 = vrot.slane %v3237, 2
      %v3339 = vsel %vm2592, %v3336, %v3338
      %v3340 = vrot.slane %v3238, 2
      %v3341 = vrot.slane %v3239, 2
      %v3342 = vsel %vm2592, %v3340, %v3341
      %v3343 = vrot.slane %v3240, 2
      %v3344 = vsel %vm2592, %v3341, %v3343
      %v3345 = vrot.slane %v3241, 2
      %v3346 = vrot.slane %v3242, 2
      %v3347 = vsel %vm2592, %v3345, %v3346
      %v3348 = vrot.slane %v3243, 2
      %v3349 = vsel %vm2592, %v3346, %v3348
      %v3350 = vrot.slane %v3244, 2
      %v3351 = vrot.slane %v3245, 2
      %v3352 = vsel %vm2592, %v3350, %v3351
      %v3353 = vrot.slane %v3246, 2
      %v3354 = vsel %vm2592, %v3351, %v3353
      %v3355 = vrot.slane %v3247, 2
      %v3356 = vrot.slane %v3248, 2
      %v3357 = vsel %vm2592, %v3355, %v3356
      %v3358 = vrot.slane %v3249, 2
      %v3359 = vsel %vm2592, %v3356, %v3358
      %v3360 = vrot.slane %v3250, 2
      %v3361 = vrot.slane %v3251, 2
      %v3362 = vsel %vm2592, %v3360, %v3361
      %v3363 = vrot.slane %v3252, 2
      %v3364 = vsel %vm2592, %v3361, %v3363
      %v3365 = vrot.slane %v3253, 2
      %v3366 = vrot.slane %v3254, 2
      %v3367 = vsel %vm2592, %v3365, %v3366
      %v3368 = vrot.slane %v3255, 2
      %v3369 = vsel %vm2592, %v3366, %v3368
      %v3370 = vrot.slane %v3256, 2
      %v3371 = vrot.slane %v3257, 2
      %v3372 = vsel %vm2592, %v3370, %v3371
      %v3373 = vrot.slane %v3258, 2
      %v3374 = vsel %vm2592, %v3371, %v3373
      %v3375 = vrot.slane %v3259, 2
      %v3376 = vrot.slane %v3260, 2
      %v3377 = vsel %vm2592, %v3375, %v3376
      %v3378 = vrot.slane %v3261, 2
      %v3379 = vsel %vm2592, %v3376, %v3378
      %v3380 = vrot.slane %v3262, 2
      %v3381 = vrot.slane %v3263, 2
      %v3382 = vsel %vm2592, %v3380, %v3381
      %v3383 = vrot.slane %v3264, 2
      %v3384 = vsel %vm2592, %v3381, %v3383
      %v3385 = vrot.slane %v3265, 2
      %v3386 = vrot.slane %v3266, 2
      %v3387 = vsel %vm2592, %v3385, %v3386
      %v3388 = vrot.slane %v3267, 2
      %v3389 = vsel %vm2592, %v3386, %v3388
      %v3390 = vrot.slane %v3268, 2
      %v3391 = vrot.slane %v3269, 2
      %v3392 = vsel %vm2592, %v3390, %v3391
      %v3393 = vrot.slane %v3270, 2
      %v3394 = vsel %vm2592, %v3391, %v3393
      %v3395 = vrot.slane %v3271, 2
      %v3396 = vrot.slane %v3272, 2
      %v3397 = vsel %vm2592, %v3395, %v3396
      %v3398 = vrot.slane %v3273, 2
      %v3399 = vsel %vm2592, %v3396, %v3398
      %v3400 = vrot.slane %v3274, 2
      %v3401 = vrot.slane %v3275, 2
      %v3402 = vsel %vm2592, %v3400, %v3401
      %v3403 = vrot.slane %v3276, 2
      %v3404 = vsel %vm2592, %v3401, %v3403
      %v3437 = vadd.f32 %v2949, %v3327
      %v3438 = vadd.f32 %v2950, %v3329
      %v3439 = vadd.f32 %v2951, %v3332
      %v3440 = vadd.f32 %v2952, %v3334
      %v3441 = vadd.f32 %v2953, %v3337
      %v3442 = vadd.f32 %v2954, %v3339
      %v3443 = vadd.f32 %v2955, %v3342
      %v3444 = vadd.f32 %v2956, %v3344
      %v3445 = vadd.f32 %v2957, %v3347
      %v3446 = vadd.f32 %v2958, %v3349
      %v3447 = vadd.f32 %v2959, %v3352
      %v3448 = vadd.f32 %v2960, %v3354
      %v3449 = vadd.f32 %v2961, %v3357
      %v3450 = vadd.f32 %v2962, %v3359
      %v3451 = vadd.f32 %v2963, %v3362
      %v3452 = vadd.f32 %v2964, %v3364
      %v3453 = vadd.f32 %v2965, %v3367
      %v3454 = vadd.f32 %v2966, %v3369
      %v3455 = vadd.f32 %v2967, %v3372
      %v3456 = vadd.f32 %v2968, %v3374
      %v3457 = vadd.f32 %v2969, %v3377
      %v3458 = vadd.f32 %v2970, %v3379
      %v3459 = vadd.f32 %v2971, %v3382
      %v3460 = vadd.f32 %v2972, %v3384
      %v3461 = vadd.f32 %v2973, %v3387
      %v3462 = vadd.f32 %v2974, %v3389
      %v3463 = vadd.f32 %v2975, %v3392
      %v3464 = vadd.f32 %v2976, %v3394
      %v3465 = vadd.f32 %v2977, %v3397
      %v3466 = vadd.f32 %v2978, %v3399
      %v3467 = vadd.f32 %v2979, %v3402
      %v3468 = vadd.f32 %v2980, %v3404
      %v3469 = vlaneseq
      %v3470 = vshrl.u32 %v3469, 7
      %v3471 = vsub.s32 6, %v3470
      %v3472 = vrot.slane %v236, %v3471
      %v3473 = vmul.f32 %v253, %v3472
      %v3474 = vmul.f32 %v254, %v3472
      %v3475 = vmul.f32 %v255, %v3472
      %v3476 = vmul.f32 %v256, %v3472
      %v3477 = vmul.f32 %v257, %v3472
      %v3478 = vmul.f32 %v258, %v3472
      %v3479 = vmul.f32 %v259, %v3472
      %v3480 = vmul.f32 %v260, %v3472
      %v3481 = vmul.f32 %v261, %v3472
      %v3482 = vmul.f32 %v262, %v3472
      %v3483 = vmul.f32 %v263, %v3472
      %v3484 = vmul.f32 %v264, %v3472
      %v3485 = vmul.f32 %v265, %v3472
      %v3486 = vmul.f32 %v266, %v3472
      %v3487 = vmul.f32 %v267, %v3472
      %v3488 = vmul.f32 %v268, %v3472
      %v3489 = vmul.f32 %v269, %v3472
      %v3490 = vmul.f32 %v270, %v3472
      %v3491 = vmul.f32 %v271, %v3472
      %v3492 = vmul.f32 %v272, %v3472
      %v3493 = vmul.f32 %v273, %v3472
      %v3494 = vmul.f32 %v274, %v3472
      %v3495 = vmul.f32 %v275, %v3472
      %v3496 = vmul.f32 %v276, %v3472
      %v3497 = vmul.f32 %v277, %v3472
      %v3498 = vmul.f32 %v278, %v3472
      %v3499 = vmul.f32 %v279, %v3472
      %v3500 = vmul.f32 %v280, %v3472
      %v3501 = vmul.f32 %v281, %v3472
      %v3502 = vmul.f32 %v282, %v3472
      %v3503 = vmul.f32 %v283, %v3472
      %v3504 = vmul.f32 %v284, %v3472
      %v3505 = vmul.f32 %v285, %v3472
      %v3506 = vmul.f32 %v286, %v3472
      %v3507 = vmul.f32 %v287, %v3472
      %v3508 = vmul.f32 %v288, %v3472
      %v3509 = vmul.f32 %v289, %v3472
      %v3510 = vmul.f32 %v290, %v3472
      %v3511 = vmul.f32 %v291, %v3472
      %v3512 = vmul.f32 %v292, %v3472
      %v3513 = vmul.f32 %v293, %v3472
      %v3514 = vmul.f32 %v294, %v3472
      %v3515 = vmul.f32 %v295, %v3472
      %v3516 = vmul.f32 %v296, %v3472
      %v3517 = vmul.f32 %v297, %v3472
      %v3518 = vmul.f32 %v298, %v3472
      %v3519 = vmul.f32 %v299, %v3472
      %v3520 = vmul.f32 %v300, %v3472
      %v3569 = vrot.slane %v3473, 2
      %v3570 = vrot.slane %v3474, 2
      %v3571 = vsel %vm2592, %v3569, %v3570
      %v3572 = vrot.slane %v3475, 2
      %v3573 = vsel %vm2592, %v3570, %v3572
      %v3574 = vrot.slane %v3476, 2
      %v3575 = vrot.slane %v3477, 2
      %v3576 = vsel %vm2592, %v3574, %v3575
      %v3577 = vrot.slane %v3478, 2
      %v3578 = vsel %vm2592, %v3575, %v3577
      %v3579 = vrot.slane %v3479, 2
      %v3580 = vrot.slane %v3480, 2
      %v3581 = vsel %vm2592, %v3579, %v3580
      %v3582 = vrot.slane %v3481, 2
      %v3583 = vsel %vm2592, %v3580, %v3582
      %v3584 = vrot.slane %v3482, 2
      %v3585 = vrot.slane %v3483, 2
      %v3586 = vsel %vm2592, %v3584, %v3585
      %v3587 = vrot.slane %v3484, 2
      %v3588 = vsel %vm2592, %v3585, %v3587
      %v3589 = vrot.slane %v3485, 2
      %v3590 = vrot.slane %v3486, 2
      %v3591 = vsel %vm2592, %v3589, %v3590
      %v3592 = vrot.slane %v3487, 2
      %v3593 = vsel %vm2592, %v3590, %v3592
      %v3594 = vrot.slane %v3488, 2
      %v3595 = vrot.slane %v3489, 2
      %v3596 = vsel %vm2592, %v3594, %v3595
      %v3597 = vrot.slane %v3490, 2
      %v3598 = vsel %vm2592, %v3595, %v3597
      %v3599 = vrot.slane %v3491, 2
      %v3600 = vrot.slane %v3492, 2
      %v3601 = vsel %vm2592, %v3599, %v3600
      %v3602 = vrot.slane %v3493, 2
      %v3603 = vsel %vm2592, %v3600, %v3602
      %v3604 = vrot.slane %v3494, 2
      %v3605 = vrot.slane %v3495, 2
      %v3606 = vsel %vm2592, %v3604, %v3605
      %v3607 = vrot.slane %v3496, 2
      %v3608 = vsel %vm2592, %v3605, %v3607
      %v3609 = vrot.slane %v3497, 2
      %v3610 = vrot.slane %v3498, 2
      %v3611 = vsel %vm2592, %v3609, %v3610
      %v3612 = vrot.slane %v3499, 2
      %v3613 = vsel %vm2592, %v3610, %v3612
      %v3614 = vrot.slane %v3500, 2
      %v3615 = vrot.slane %v3501, 2
      %v3616 = vsel %vm2592, %v3614, %v3615
      %v3617 = vrot.slane %v3502, 2
      %v3618 = vsel %vm2592, %v3615, %v3617
      %v3619 = vrot.slane %v3503, 2
      %v3620 = vrot.slane %v3504, 2
      %v3621 = vsel %vm2592, %v3619, %v3620
      %v3622 = vrot.slane %v3505, 2
      %v3623 = vsel %vm2592, %v3620, %v3622
      %v3624 = vrot.slane %v3506, 2
      %v3625 = vrot.slane %v3507, 2
      %v3626 = vsel %vm2592, %v3624, %v3625
      %v3627 = vrot.slane %v3508, 2
      %v3628 = vsel %vm2592, %v3625, %v3627
      %v3629 = vrot.slane %v3509, 2
      %v3630 = vrot.slane %v3510, 2
      %v3631 = vsel %vm2592, %v3629, %v3630
      %v3632 = vrot.slane %v3511, 2
      %v3633 = vsel %vm2592, %v3630, %v3632
      %v3634 = vrot.slane %v3512, 2
      %v3635 = vrot.slane %v3513, 2
      %v3636 = vsel %vm2592, %v3634, %v3635
      %v3637 = vrot.slane %v3514, 2
      %v3638 = vsel %vm2592, %v3635, %v3637
      %v3639 = vrot.slane %v3515, 2
      %v3640 = vrot.slane %v3516, 2
      %v3641 = vsel %vm2592, %v3639, %v3640
      %v3642 = vrot.slane %v3517, 2
      %v3643 = vsel %vm2592, %v3640, %v3642
      %v3644 = vrot.slane %v3518, 2
      %v3645 = vrot.slane %v3519, 2
      %v3646 = vsel %vm2592, %v3644, %v3645
      %v3647 = vrot.slane %v3520, 2
      %v3648 = vsel %vm2592, %v3645, %v3647
      %v3681 = vadd.f32 %v3193, %v3571
      %v3682 = vadd.f32 %v3194, %v3573
      %v3683 = vadd.f32 %v3195, %v3576
      %v3684 = vadd.f32 %v3196, %v3578
      %v3685 = vadd.f32 %v3197, %v3581
      %v3686 = vadd.f32 %v3198, %v3583
      %v3687 = vadd.f32 %v3199, %v3586
      %v3688 = vadd.f32 %v3200, %v3588
      %v3689 = vadd.f32 %v3201, %v3591
      %v3690 = vadd.f32 %v3202, %v3593
      %v3691 = vadd.f32 %v3203, %v3596
      %v3692 = vadd.f32 %v3204, %v3598
      %v3693 = vadd.f32 %v3205, %v3601
      %v3694 = vadd.f32 %v3206, %v3603
      %v3695 = vadd.f32 %v3207, %v3606
      %v3696 = vadd.f32 %v3208, %v3608
      %v3697 = vadd.f32 %v3209, %v3611
      %v3698 = vadd.f32 %v3210, %v3613
      %v3699 = vadd.f32 %v3211, %v3616
      %v3700 = vadd.f32 %v3212, %v3618
      %v3701 = vadd.f32 %v3213, %v3621
      %v3702 = vadd.f32 %v3214, %v3623
      %v3703 = vadd.f32 %v3215, %v3626
      %v3704 = vadd.f32 %v3216, %v3628
      %v3705 = vadd.f32 %v3217, %v3631
      %v3706 = vadd.f32 %v3218, %v3633
      %v3707 = vadd.f32 %v3219, %v3636
      %v3708 = vadd.f32 %v3220, %v3638
      %v3709 = vadd.f32 %v3221, %v3641
      %v3710 = vadd.f32 %v3222, %v3643
      %v3711 = vadd.f32 %v3223, %v3646
      %v3712 = vadd.f32 %v3224, %v3648
      %v3713 = vlaneseq
      %v3714 = vshrl.u32 %v3713, 7
      %v3715 = vsub.s32 5, %v3714
      %v3716 = vrot.slane %v237, %v3715
      %v3717 = vmul.f32 %v256, %v3716
      %v3718 = vmul.f32 %v257, %v3716
      %v3719 = vmul.f32 %v258, %v3716
      %v3720 = vmul.f32 %v259, %v3716
      %v3721 = vmul.f32 %v260, %v3716
      %v3722 = vmul.f32 %v261, %v3716
      %v3723 = vmul.f32 %v262, %v3716
      %v3724 = vmul.f32 %v263, %v3716
      %v3725 = vmul.f32 %v264, %v3716
      %v3726 = vmul.f32 %v265, %v3716
      %v3727 = vmul.f32 %v266, %v3716
      %v3728 = vmul.f32 %v267, %v3716
      %v3729 = vmul.f32 %v268, %v3716
      %v3730 = vmul.f32 %v269, %v3716
      %v3731 = vmul.f32 %v270, %v3716
      %v3732 = vmul.f32 %v271, %v3716
      %v3733 = vmul.f32 %v272, %v3716
      %v3734 = vmul.f32 %v273, %v3716
      %v3735 = vmul.f32 %v274, %v3716
      %v3736 = vmul.f32 %v275, %v3716
      %v3737 = vmul.f32 %v276, %v3716
      %v3738 = vmul.f32 %v277, %v3716
      %v3739 = vmul.f32 %v278, %v3716
      %v3740 = vmul.f32 %v279, %v3716
      %v3741 = vmul.f32 %v280, %v3716
      %v3742 = vmul.f32 %v281, %v3716
      %v3743 = vmul.f32 %v282, %v3716
      %v3744 = vmul.f32 %v283, %v3716
      %v3745 = vmul.f32 %v284, %v3716
      %v3746 = vmul.f32 %v285, %v3716
      %v3747 = vmul.f32 %v286, %v3716
      %v3748 = vmul.f32 %v287, %v3716
      %v3749 = vmul.f32 %v288, %v3716
      %v3750 = vmul.f32 %v289, %v3716
      %v3751 = vmul.f32 %v290, %v3716
      %v3752 = vmul.f32 %v291, %v3716
      %v3753 = vmul.f32 %v292, %v3716
      %v3754 = vmul.f32 %v293, %v3716
      %v3755 = vmul.f32 %v294, %v3716
      %v3756 = vmul.f32 %v295, %v3716
      %v3757 = vmul.f32 %v296, %v3716
      %v3758 = vmul.f32 %v297, %v3716
      %v3759 = vmul.f32 %v298, %v3716
      %v3760 = vmul.f32 %v299, %v3716
      %v3761 = vmul.f32 %v300, %v3716
      %v3762 = vmul.f32 %v301, %v3716
      %v3763 = vmul.f32 %v302, %v3716
      %v3764 = vmul.f32 %v303, %v3716
      %v3813 = vrot.slane %v3717, 2
      %v3814 = vrot.slane %v3718, 2
      %v3815 = vsel %vm2592, %v3813, %v3814
      %v3816 = vrot.slane %v3719, 2
      %v3817 = vsel %vm2592, %v3814, %v3816
      %v3818 = vrot.slane %v3720, 2
      %v3819 = vrot.slane %v3721, 2
      %v3820 = vsel %vm2592, %v3818, %v3819
      %v3821 = vrot.slane %v3722, 2
      %v3822 = vsel %vm2592, %v3819, %v3821
      %v3823 = vrot.slane %v3723, 2
      %v3824 = vrot.slane %v3724, 2
      %v3825 = vsel %vm2592, %v3823, %v3824
      %v3826 = vrot.slane %v3725, 2
      %v3827 = vsel %vm2592, %v3824, %v3826
      %v3828 = vrot.slane %v3726, 2
      %v3829 = vrot.slane %v3727, 2
      %v3830 = vsel %vm2592, %v3828, %v3829
      %v3831 = vrot.slane %v3728, 2
      %v3832 = vsel %vm2592, %v3829, %v3831
      %v3833 = vrot.slane %v3729, 2
      %v3834 = vrot.slane %v3730, 2
      %v3835 = vsel %vm2592, %v3833, %v3834
      %v3836 = vrot.slane %v3731, 2
      %v3837 = vsel %vm2592, %v3834, %v3836
      %v3838 = vrot.slane %v3732, 2
      %v3839 = vrot.slane %v3733, 2
      %v3840 = vsel %vm2592, %v3838, %v3839
      %v3841 = vrot.slane %v3734, 2
      %v3842 = vsel %vm2592, %v3839, %v3841
      %v3843 = vrot.slane %v3735, 2
      %v3844 = vrot.slane %v3736, 2
      %v3845 = vsel %vm2592, %v3843, %v3844
      %v3846 = vrot.slane %v3737, 2
      %v3847 = vsel %vm2592, %v3844, %v3846
      %v3848 = vrot.slane %v3738, 2
      %v3849 = vrot.slane %v3739, 2
      %v3850 = vsel %vm2592, %v3848, %v3849
      %v3851 = vrot.slane %v3740, 2
      %v3852 = vsel %vm2592, %v3849, %v3851
      %v3853 = vrot.slane %v3741, 2
      %v3854 = vrot.slane %v3742, 2
      %v3855 = vsel %vm2592, %v3853, %v3854
      %v3856 = vrot.slane %v3743, 2
      %v3857 = vsel %vm2592, %v3854, %v3856
      %v3858 = vrot.slane %v3744, 2
      %v3859 = vrot.slane %v3745, 2
      %v3860 = vsel %vm2592, %v3858, %v3859
      %v3861 = vrot.slane %v3746, 2
      %v3862 = vsel %vm2592, %v3859, %v3861
      %v3863 = vrot.slane %v3747, 2
      %v3864 = vrot.slane %v3748, 2
      %v3865 = vsel %vm2592, %v3863, %v3864
      %v3866 = vrot.slane %v3749, 2
      %v3867 = vsel %vm2592, %v3864, %v3866
      %v3868 = vrot.slane %v3750, 2
      %v3869 = vrot.slane %v3751, 2
      %v3870 = vsel %vm2592, %v3868, %v3869
      %v3871 = vrot.slane %v3752, 2
      %v3872 = vsel %vm2592, %v3869, %v3871
      %v3873 = vrot.slane %v3753, 2
      %v3874 = vrot.slane %v3754, 2
      %v3875 = vsel %vm2592, %v3873, %v3874
      %v3876 = vrot.slane %v3755, 2
      %v3877 = vsel %vm2592, %v3874, %v3876
      %v3878 = vrot.slane %v3756, 2
      %v3879 = vrot.slane %v3757, 2
      %v3880 = vsel %vm2592, %v3878, %v3879
      %v3881 = vrot.slane %v3758, 2
      %v3882 = vsel %vm2592, %v3879, %v3881
      %v3883 = vrot.slane %v3759, 2
      %v3884 = vrot.slane %v3760, 2
      %v3885 = vsel %vm2592, %v3883, %v3884
      %v3886 = vrot.slane %v3761, 2
      %v3887 = vsel %vm2592, %v3884, %v3886
      %v3888 = vrot.slane %v3762, 2
      %v3889 = vrot.slane %v3763, 2
      %v3890 = vsel %vm2592, %v3888, %v3889
      %v3891 = vrot.slane %v3764, 2
      %v3892 = vsel %vm2592, %v3889, %v3891
      %v3925 = vadd.f32 %v3437, %v3815
      %v3926 = vadd.f32 %v3438, %v3817
      %v3927 = vadd.f32 %v3439, %v3820
      %v3928 = vadd.f32 %v3440, %v3822
      %v3929 = vadd.f32 %v3441, %v3825
      %v3930 = vadd.f32 %v3442, %v3827
      %v3931 = vadd.f32 %v3443, %v3830
      %v3932 = vadd.f32 %v3444, %v3832
      %v3933 = vadd.f32 %v3445, %v3835
      %v3934 = vadd.f32 %v3446, %v3837
      %v3935 = vadd.f32 %v3447, %v3840
      %v3936 = vadd.f32 %v3448, %v3842
      %v3937 = vadd.f32 %v3449, %v3845
      %v3938 = vadd.f32 %v3450, %v3847
      %v3939 = vadd.f32 %v3451, %v3850
      %v3940 = vadd.f32 %v3452, %v3852
      %v3941 = vadd.f32 %v3453, %v3855
      %v3942 = vadd.f32 %v3454, %v3857
      %v3943 = vadd.f32 %v3455, %v3860
      %v3944 = vadd.f32 %v3456, %v3862
      %v3945 = vadd.f32 %v3457, %v3865
      %v3946 = vadd.f32 %v3458, %v3867
      %v3947 = vadd.f32 %v3459, %v3870
      %v3948 = vadd.f32 %v3460, %v3872
      %v3949 = vadd.f32 %v3461, %v3875
      %v3950 = vadd.f32 %v3462, %v3877
      %v3951 = vadd.f32 %v3463, %v3880
      %v3952 = vadd.f32 %v3464, %v3882
      %v3953 = vadd.f32 %v3465, %v3885
      %v3954 = vadd.f32 %v3466, %v3887
      %v3955 = vadd.f32 %v3467, %v3890
      %v3956 = vadd.f32 %v3468, %v3892
      %v3957 = vlaneseq
      %v3958 = vshrl.u32 %v3957, 7
      %v3959 = vsub.s32 4, %v3958
      %v3960 = vrot.slane %v238, %v3959
      %v3961 = vmul.f32 %v259, %v3960
      %v3962 = vmul.f32 %v260, %v3960
      %v3963 = vmul.f32 %v261, %v3960
      %v3964 = vmul.f32 %v262, %v3960
      %v3965 = vmul.f32 %v263, %v3960
      %v3966 = vmul.f32 %v264, %v3960
      %v3967 = vmul.f32 %v265, %v3960
      %v3968 = vmul.f32 %v266, %v3960
      %v3969 = vmul.f32 %v267, %v3960
      %v3970 = vmul.f32 %v268, %v3960
      %v3971 = vmul.f32 %v269, %v3960
      %v3972 = vmul.f32 %v270, %v3960
      %v3973 = vmul.f32 %v271, %v3960
      %v3974 = vmul.f32 %v272, %v3960
      %v3975 = vmul.f32 %v273, %v3960
      %v3976 = vmul.f32 %v274, %v3960
      %v3977 = vmul.f32 %v275, %v3960
      %v3978 = vmul.f32 %v276, %v3960
      %v3979 = vmul.f32 %v277, %v3960
      %v3980 = vmul.f32 %v278, %v3960
      %v3981 = vmul.f32 %v279, %v3960
      %v3982 = vmul.f32 %v280, %v3960
      %v3983 = vmul.f32 %v281, %v3960
      %v3984 = vmul.f32 %v282, %v3960
      %v3985 = vmul.f32 %v283, %v3960
      %v3986 = vmul.f32 %v284, %v3960
      %v3987 = vmul.f32 %v285, %v3960
      %v3988 = vmul.f32 %v286, %v3960
      %v3989 = vmul.f32 %v287, %v3960
      %v3990 = vmul.f32 %v288, %v3960
      %v3991 = vmul.f32 %v289, %v3960
      %v3992 = vmul.f32 %v290, %v3960
      %v3993 = vmul.f32 %v291, %v3960
      %v3994 = vmul.f32 %v292, %v3960
      %v3995 = vmul.f32 %v293, %v3960
      %v3996 = vmul.f32 %v294, %v3960
      %v3997 = vmul.f32 %v295, %v3960
      %v3998 = vmul.f32 %v296, %v3960
      %v3999 = vmul.f32 %v297, %v3960
      %v4000 = vmul.f32 %v298, %v3960
      %v4001 = vmul.f32 %v299, %v3960
      %v4002 = vmul.f32 %v300, %v3960
      %v4003 = vmul.f32 %v301, %v3960
      %v4004 = vmul.f32 %v302, %v3960
      %v4005 = vmul.f32 %v303, %v3960
      %v4006 = vmul.f32 %v304, %v3960
      %v4007 = vmul.f32 %v305, %v3960
      %v4008 = vmul.f32 %v306, %v3960
      %v4057 = vrot.slane %v3961, 2
      %v4058 = vrot.slane %v3962, 2
      %v4059 = vsel %vm2592, %v4057, %v4058
      %v4060 = vrot.slane %v3963, 2
      %v4061 = vsel %vm2592, %v4058, %v4060
      %v4062 = vrot.slane %v3964, 2
      %v4063 = vrot.slane %v3965, 2
      %v4064 = vsel %vm2592, %v4062, %v4063
      %v4065 = vrot.slane %v3966, 2
      %v4066 = vsel %vm2592, %v4063, %v4065
      %v4067 = vrot.slane %v3967, 2
      %v4068 = vrot.slane %v3968, 2
      %v4069 = vsel %vm2592, %v4067, %v4068
      %v4070 = vrot.slane %v3969, 2
      %v4071 = vsel %vm2592, %v4068, %v4070
      %v4072 = vrot.slane %v3970, 2
      %v4073 = vrot.slane %v3971, 2
      %v4074 = vsel %vm2592, %v4072, %v4073
      %v4075 = vrot.slane %v3972, 2
      %v4076 = vsel %vm2592, %v4073, %v4075
      %v4077 = vrot.slane %v3973, 2
      %v4078 = vrot.slane %v3974, 2
      %v4079 = vsel %vm2592, %v4077, %v4078
      %v4080 = vrot.slane %v3975, 2
      %v4081 = vsel %vm2592, %v4078, %v4080
      %v4082 = vrot.slane %v3976, 2
      %v4083 = vrot.slane %v3977, 2
      %v4084 = vsel %vm2592, %v4082, %v4083
      %v4085 = vrot.slane %v3978, 2
      %v4086 = vsel %vm2592, %v4083, %v4085
      %v4087 = vrot.slane %v3979, 2
      %v4088 = vrot.slane %v3980, 2
      %v4089 = vsel %vm2592, %v4087, %v4088
      %v4090 = vrot.slane %v3981, 2
      %v4091 = vsel %vm2592, %v4088, %v4090
      %v4092 = vrot.slane %v3982, 2
      %v4093 = vrot.slane %v3983, 2
      %v4094 = vsel %vm2592, %v4092, %v4093
      %v4095 = vrot.slane %v3984, 2
      %v4096 = vsel %vm2592, %v4093, %v4095
      %v4097 = vrot.slane %v3985, 2
      %v4098 = vrot.slane %v3986, 2
      %v4099 = vsel %vm2592, %v4097, %v4098
      %v4100 = vrot.slane %v3987, 2
      %v4101 = vsel %vm2592, %v4098, %v4100
      %v4102 = vrot.slane %v3988, 2
      %v4103 = vrot.slane %v3989, 2
      %v4104 = vsel %vm2592, %v4102, %v4103
      %v4105 = vrot.slane %v3990, 2
      %v4106 = vsel %vm2592, %v4103, %v4105
      %v4107 = vrot.slane %v3991, 2
      %v4108 = vrot.slane %v3992, 2
      %v4109 = vsel %vm2592, %v4107, %v4108
      %v4110 = vrot.slane %v3993, 2
      %v4111 = vsel %vm2592, %v4108, %v4110
      %v4112 = vrot.slane %v3994, 2
      %v4113 = vrot.slane %v3995, 2
      %v4114 = vsel %vm2592, %v4112, %v4113
      %v4115 = vrot.slane %v3996, 2
      %v4116 = vsel %vm2592, %v4113, %v4115
      %v4117 = vrot.slane %v3997, 2
      %v4118 = vrot.slane %v3998, 2
      %v4119 = vsel %vm2592, %v4117, %v4118
      %v4120 = vrot.slane %v3999, 2
      %v4121 = vsel %vm2592, %v4118, %v4120
      %v4122 = vrot.slane %v4000, 2
      %v4123 = vrot.slane %v4001, 2
      %v4124 = vsel %vm2592, %v4122, %v4123
      %v4125 = vrot.slane %v4002, 2
      %v4126 = vsel %vm2592, %v4123, %v4125
      %v4127 = vrot.slane %v4003, 2
      %v4128 = vrot.slane %v4004, 2
      %v4129 = vsel %vm2592, %v4127, %v4128
      %v4130 = vrot.slane %v4005, 2
      %v4131 = vsel %vm2592, %v4128, %v4130
      %v4132 = vrot.slane %v4006, 2
      %v4133 = vrot.slane %v4007, 2
      %v4134 = vsel %vm2592, %v4132, %v4133
      %v4135 = vrot.slane %v4008, 2
      %v4136 = vsel %vm2592, %v4133, %v4135
      %v4169 = vadd.f32 %v3681, %v4059
      %v4170 = vadd.f32 %v3682, %v4061
      %v4171 = vadd.f32 %v3683, %v4064
      %v4172 = vadd.f32 %v3684, %v4066
      %v4173 = vadd.f32 %v3685, %v4069
      %v4174 = vadd.f32 %v3686, %v4071
      %v4175 = vadd.f32 %v3687, %v4074
      %v4176 = vadd.f32 %v3688, %v4076
      %v4177 = vadd.f32 %v3689, %v4079
      %v4178 = vadd.f32 %v3690, %v4081
      %v4179 = vadd.f32 %v3691, %v4084
      %v4180 = vadd.f32 %v3692, %v4086
      %v4181 = vadd.f32 %v3693, %v4089
      %v4182 = vadd.f32 %v3694, %v4091
      %v4183 = vadd.f32 %v3695, %v4094
      %v4184 = vadd.f32 %v3696, %v4096
      %v4185 = vadd.f32 %v3697, %v4099
      %v4186 = vadd.f32 %v3698, %v4101
      %v4187 = vadd.f32 %v3699, %v4104
      %v4188 = vadd.f32 %v3700, %v4106
      %v4189 = vadd.f32 %v3701, %v4109
      %v4190 = vadd.f32 %v3702, %v4111
      %v4191 = vadd.f32 %v3703, %v4114
      %v4192 = vadd.f32 %v3704, %v4116
      %v4193 = vadd.f32 %v3705, %v4119
      %v4194 = vadd.f32 %v3706, %v4121
      %v4195 = vadd.f32 %v3707, %v4124
      %v4196 = vadd.f32 %v3708, %v4126
      %v4197 = vadd.f32 %v3709, %v4129
      %v4198 = vadd.f32 %v3710, %v4131
      %v4199 = vadd.f32 %v3711, %v4134
      %v4200 = vadd.f32 %v3712, %v4136
      %v4201 = vlaneseq
      %v4202 = vshrl.u32 %v4201, 7
      %v4203 = vsub.s32 3, %v4202
      %v4204 = vrot.slane %v233, %v4203
      %v4205 = vmul.f32 %v241, %v4204
      %v4206 = vmul.f32 %v242, %v4204
      %v4207 = vmul.f32 %v243, %v4204
      %v4208 = vmul.f32 %v244, %v4204
      %v4209 = vmul.f32 %v245, %v4204
      %v4210 = vmul.f32 %v246, %v4204
      %v4211 = vmul.f32 %v247, %v4204
      %v4212 = vmul.f32 %v248, %v4204
      %v4213 = vmul.f32 %v249, %v4204
      %v4214 = vmul.f32 %v250, %v4204
      %v4215 = vmul.f32 %v251, %v4204
      %v4216 = vmul.f32 %v252, %v4204
      %v4217 = vmul.f32 %v253, %v4204
      %v4218 = vmul.f32 %v254, %v4204
      %v4219 = vmul.f32 %v255, %v4204
      %v4220 = vmul.f32 %v256, %v4204
      %v4221 = vmul.f32 %v257, %v4204
      %v4222 = vmul.f32 %v258, %v4204
      %v4223 = vmul.f32 %v259, %v4204
      %v4224 = vmul.f32 %v260, %v4204
      %v4225 = vmul.f32 %v261, %v4204
      %v4226 = vmul.f32 %v262, %v4204
      %v4227 = vmul.f32 %v263, %v4204
      %v4228 = vmul.f32 %v264, %v4204
      %v4229 = vmul.f32 %v265, %v4204
      %v4230 = vmul.f32 %v266, %v4204
      %v4231 = vmul.f32 %v267, %v4204
      %v4232 = vmul.f32 %v268, %v4204
      %v4233 = vmul.f32 %v269, %v4204
      %v4234 = vmul.f32 %v270, %v4204
      %v4235 = vmul.f32 %v271, %v4204
      %v4236 = vmul.f32 %v272, %v4204
      %v4237 = vmul.f32 %v273, %v4204
      %v4238 = vmul.f32 %v274, %v4204
      %v4239 = vmul.f32 %v275, %v4204
      %v4240 = vmul.f32 %v276, %v4204
      %v4241 = vmul.f32 %v277, %v4204
      %v4242 = vmul.f32 %v278, %v4204
      %v4243 = vmul.f32 %v279, %v4204
      %v4244 = vmul.f32 %v280, %v4204
      %v4245 = vmul.f32 %v281, %v4204
      %v4246 = vmul.f32 %v282, %v4204
      %v4247 = vmul.f32 %v283, %v4204
      %v4248 = vmul.f32 %v284, %v4204
      %v4249 = vmul.f32 %v285, %v4204
      %v4250 = vmul.f32 %v286, %v4204
      %v4251 = vmul.f32 %v287, %v4204
      %v4252 = vmul.f32 %v288, %v4204
      %vm4301 = vcmask 1044480
      %v4302 = vrot.slane %v4205, 3
      %v4303 = vrot.slane %v4206, 3
      %v4304 = vsel %vm4301, %v4302, %v4303
      %v4305 = vrot.slane %v4207, 3
      %v4306 = vsel %vm4301, %v4303, %v4305
      %v4307 = vrot.slane %v4208, 3
      %v4308 = vrot.slane %v4209, 3
      %v4309 = vsel %vm4301, %v4307, %v4308
      %v4310 = vrot.slane %v4210, 3
      %v4311 = vsel %vm4301, %v4308, %v4310
      %v4312 = vrot.slane %v4211, 3
      %v4313 = vrot.slane %v4212, 3
      %v4314 = vsel %vm4301, %v4312, %v4313
      %v4315 = vrot.slane %v4213, 3
      %v4316 = vsel %vm4301, %v4313, %v4315
      %v4317 = vrot.slane %v4214, 3
      %v4318 = vrot.slane %v4215, 3
      %v4319 = vsel %vm4301, %v4317, %v4318
      %v4320 = vrot.slane %v4216, 3
      %v4321 = vsel %vm4301, %v4318, %v4320
      %v4322 = vrot.slane %v4217, 3
      %v4323 = vrot.slane %v4218, 3
      %v4324 = vsel %vm4301, %v4322, %v4323
      %v4325 = vrot.slane %v4219, 3
      %v4326 = vsel %vm4301, %v4323, %v4325
      %v4327 = vrot.slane %v4220, 3
      %v4328 = vrot.slane %v4221, 3
      %v4329 = vsel %vm4301, %v4327, %v4328
      %v4330 = vrot.slane %v4222, 3
      %v4331 = vsel %vm4301, %v4328, %v4330
      %v4332 = vrot.slane %v4223, 3
      %v4333 = vrot.slane %v4224, 3
      %v4334 = vsel %vm4301, %v4332, %v4333
      %v4335 = vrot.slane %v4225, 3
      %v4336 = vsel %vm4301, %v4333, %v4335
      %v4337 = vrot.slane %v4226, 3
      %v4338 = vrot.slane %v4227, 3
      %v4339 = vsel %vm4301, %v4337, %v4338
      %v4340 = vrot.slane %v4228, 3
      %v4341 = vsel %vm4301, %v4338, %v4340
      %v4342 = vrot.slane %v4229, 3
      %v4343 = vrot.slane %v4230, 3
      %v4344 = vsel %vm4301, %v4342, %v4343
      %v4345 = vrot.slane %v4231, 3
      %v4346 = vsel %vm4301, %v4343, %v4345
      %v4347 = vrot.slane %v4232, 3
      %v4348 = vrot.slane %v4233, 3
      %v4349 = vsel %vm4301, %v4347, %v4348
      %v4350 = vrot.slane %v4234, 3
      %v4351 = vsel %vm4301, %v4348, %v4350
      %v4352 = vrot.slane %v4235, 3
      %v4353 = vrot.slane %v4236, 3
      %v4354 = vsel %vm4301, %v4352, %v4353
      %v4355 = vrot.slane %v4237, 3
      %v4356 = vsel %vm4301, %v4353, %v4355
      %v4357 = vrot.slane %v4238, 3
      %v4358 = vrot.slane %v4239, 3
      %v4359 = vsel %vm4301, %v4357, %v4358
      %v4360 = vrot.slane %v4240, 3
      %v4361 = vsel %vm4301, %v4358, %v4360
      %v4362 = vrot.slane %v4241, 3
      %v4363 = vrot.slane %v4242, 3
      %v4364 = vsel %vm4301, %v4362, %v4363
      %v4365 = vrot.slane %v4243, 3
      %v4366 = vsel %vm4301, %v4363, %v4365
      %v4367 = vrot.slane %v4244, 3
      %v4368 = vrot.slane %v4245, 3
      %v4369 = vsel %vm4301, %v4367, %v4368
      %v4370 = vrot.slane %v4246, 3
      %v4371 = vsel %vm4301, %v4368, %v4370
      %v4372 = vrot.slane %v4247, 3
      %v4373 = vrot.slane %v4248, 3
      %v4374 = vsel %vm4301, %v4372, %v4373
      %v4375 = vrot.slane %v4249, 3
      %v4376 = vsel %vm4301, %v4373, %v4375
      %v4377 = vrot.slane %v4250, 3
      %v4378 = vrot.slane %v4251, 3
      %v4379 = vsel %vm4301, %v4377, %v4378
      %v4380 = vrot.slane %v4252, 3
      %v4381 = vsel %vm4301, %v4378, %v4380
      %v4414 = vadd.f32 %v3925, %v4304
      %v4415 = vadd.f32 %v3926, %v4306
      %v4416 = vadd.f32 %v3927, %v4309
      %v4417 = vadd.f32 %v3928, %v4311
      %v4418 = vadd.f32 %v3929, %v4314
      %v4419 = vadd.f32 %v3930, %v4316
      %v4420 = vadd.f32 %v3931, %v4319
      %v4421 = vadd.f32 %v3932, %v4321
      %v4422 = vadd.f32 %v3933, %v4324
      %v4423 = vadd.f32 %v3934, %v4326
      %v4424 = vadd.f32 %v3935, %v4329
      %v4425 = vadd.f32 %v3936, %v4331
      %v4426 = vadd.f32 %v3937, %v4334
      %v4427 = vadd.f32 %v3938, %v4336
      %v4428 = vadd.f32 %v3939, %v4339
      %v4429 = vadd.f32 %v3940, %v4341
      %v4430 = vadd.f32 %v3941, %v4344
      %v4431 = vadd.f32 %v3942, %v4346
      %v4432 = vadd.f32 %v3943, %v4349
      %v4433 = vadd.f32 %v3944, %v4351
      %v4434 = vadd.f32 %v3945, %v4354
      %v4435 = vadd.f32 %v3946, %v4356
      %v4436 = vadd.f32 %v3947, %v4359
      %v4437 = vadd.f32 %v3948, %v4361
      %v4438 = vadd.f32 %v3949, %v4364
      %v4439 = vadd.f32 %v3950, %v4366
      %v4440 = vadd.f32 %v3951, %v4369
      %v4441 = vadd.f32 %v3952, %v4371
      %v4442 = vadd.f32 %v3953, %v4374
      %v4443 = vadd.f32 %v3954, %v4376
      %v4444 = vadd.f32 %v3955, %v4379
      %v4445 = vadd.f32 %v3956, %v4381
      %v4446 = vlaneseq
      %v4447 = vshrl.u32 %v4446, 7
      %v4448 = vsub.s32 2, %v4447
      %v4449 = vrot.slane %v234, %v4448
      %v4450 = vmul.f32 %v244, %v4449
      %v4451 = vmul.f32 %v245, %v4449
      %v4452 = vmul.f32 %v246, %v4449
      %v4453 = vmul.f32 %v247, %v4449
      %v4454 = vmul.f32 %v248, %v4449
      %v4455 = vmul.f32 %v249, %v4449
      %v4456 = vmul.f32 %v250, %v4449
      %v4457 = vmul.f32 %v251, %v4449
      %v4458 = vmul.f32 %v252, %v4449
      %v4459 = vmul.f32 %v253, %v4449
      %v4460 = vmul.f32 %v254, %v4449
      %v4461 = vmul.f32 %v255, %v4449
      %v4462 = vmul.f32 %v256, %v4449
      %v4463 = vmul.f32 %v257, %v4449
      %v4464 = vmul.f32 %v258, %v4449
      %v4465 = vmul.f32 %v259, %v4449
      %v4466 = vmul.f32 %v260, %v4449
      %v4467 = vmul.f32 %v261, %v4449
      %v4468 = vmul.f32 %v262, %v4449
      %v4469 = vmul.f32 %v263, %v4449
      %v4470 = vmul.f32 %v264, %v4449
      %v4471 = vmul.f32 %v265, %v4449
      %v4472 = vmul.f32 %v266, %v4449
      %v4473 = vmul.f32 %v267, %v4449
      %v4474 = vmul.f32 %v268, %v4449
      %v4475 = vmul.f32 %v269, %v4449
      %v4476 = vmul.f32 %v270, %v4449
      %v4477 = vmul.f32 %v271, %v4449
      %v4478 = vmul.f32 %v272, %v4449
      %v4479 = vmul.f32 %v273, %v4449
      %v4480 = vmul.f32 %v274, %v4449
      %v4481 = vmul.f32 %v275, %v4449
      %v4482 = vmul.f32 %v276, %v4449
      %v4483 = vmul.f32 %v277, %v4449
      %v4484 = vmul.f32 %v278, %v4449
      %v4485 = vmul.f32 %v279, %v4449
      %v4486 = vmul.f32 %v280, %v4449
      %v4487 = vmul.f32 %v281, %v4449
      %v4488 = vmul.f32 %v282, %v4449
      %v4489 = vmul.f32 %v283, %v4449
      %v4490 = vmul.f32 %v284, %v4449
      %v4491 = vmul.f32 %v285, %v4449
      %v4492 = vmul.f32 %v286, %v4449
      %v4493 = vmul.f32 %v287, %v4449
      %v4494 = vmul.f32 %v288, %v4449
      %v4495 = vmul.f32 %v289, %v4449
      %v4496 = vmul.f32 %v290, %v4449
      %v4497 = vmul.f32 %v291, %v4449
      %v4546 = vrot.slane %v4450, 3
      %v4547 = vrot.slane %v4451, 3
      %v4548 = vsel %vm4301, %v4546, %v4547
      %v4549 = vrot.slane %v4452, 3
      %v4550 = vsel %vm4301, %v4547, %v4549
      %v4551 = vrot.slane %v4453, 3
      %v4552 = vrot.slane %v4454, 3
      %v4553 = vsel %vm4301, %v4551, %v4552
      %v4554 = vrot.slane %v4455, 3
      %v4555 = vsel %vm4301, %v4552, %v4554
      %v4556 = vrot.slane %v4456, 3
      %v4557 = vrot.slane %v4457, 3
      %v4558 = vsel %vm4301, %v4556, %v4557
      %v4559 = vrot.slane %v4458, 3
      %v4560 = vsel %vm4301, %v4557, %v4559
      %v4561 = vrot.slane %v4459, 3
      %v4562 = vrot.slane %v4460, 3
      %v4563 = vsel %vm4301, %v4561, %v4562
      %v4564 = vrot.slane %v4461, 3
      %v4565 = vsel %vm4301, %v4562, %v4564
      %v4566 = vrot.slane %v4462, 3
      %v4567 = vrot.slane %v4463, 3
      %v4568 = vsel %vm4301, %v4566, %v4567
      %v4569 = vrot.slane %v4464, 3
      %v4570 = vsel %vm4301, %v4567, %v4569
      %v4571 = vrot.slane %v4465, 3
      %v4572 = vrot.slane %v4466, 3
      %v4573 = vsel %vm4301, %v4571, %v4572
      %v4574 = vrot.slane %v4467, 3
      %v4575 = vsel %vm4301, %v4572, %v4574
      %v4576 = vrot.slane %v4468, 3
      %v4577 = vrot.slane %v4469, 3
      %v4578 = vsel %vm4301, %v4576, %v4577
      %v4579 = vrot.slane %v4470, 3
      %v4580 = vsel %vm4301, %v4577, %v4579
      %v4581 = vrot.slane %v4471, 3
      %v4582 = vrot.slane %v4472, 3
      %v4583 = vsel %vm4301, %v4581, %v4582
      %v4584 = vrot.slane %v4473, 3
      %v4585 = vsel %vm4301, %v4582, %v4584
      %v4586 = vrot.slane %v4474, 3
      %v4587 = vrot.slane %v4475, 3
      %v4588 = vsel %vm4301, %v4586, %v4587
      %v4589 = vrot.slane %v4476, 3
      %v4590 = vsel %vm4301, %v4587, %v4589
      %v4591 = vrot.slane %v4477, 3
      %v4592 = vrot.slane %v4478, 3
      %v4593 = vsel %vm4301, %v4591, %v4592
      %v4594 = vrot.slane %v4479, 3
      %v4595 = vsel %vm4301, %v4592, %v4594
      %v4596 = vrot.slane %v4480, 3
      %v4597 = vrot.slane %v4481, 3
      %v4598 = vsel %vm4301, %v4596, %v4597
      %v4599 = vrot.slane %v4482, 3
      %v4600 = vsel %vm4301, %v4597, %v4599
      %v4601 = vrot.slane %v4483, 3
      %v4602 = vrot.slane %v4484, 3
      %v4603 = vsel %vm4301, %v4601, %v4602
      %v4604 = vrot.slane %v4485, 3
      %v4605 = vsel %vm4301, %v4602, %v4604
      %v4606 = vrot.slane %v4486, 3
      %v4607 = vrot.slane %v4487, 3
      %v4608 = vsel %vm4301, %v4606, %v4607
      %v4609 = vrot.slane %v4488, 3
      %v4610 = vsel %vm4301, %v4607, %v4609
      %v4611 = vrot.slane %v4489, 3
      %v4612 = vrot.slane %v4490, 3
      %v4613 = vsel %vm4301, %v4611, %v4612
      %v4614 = vrot.slane %v4491, 3
      %v4615 = vsel %vm4301, %v4612, %v4614
      %v4616 = vrot.slane %v4492, 3
      %v4617 = vrot.slane %v4493, 3
      %v4618 = vsel %vm4301, %v4616, %v4617
      %v4619 = vrot.slane %v4494, 3
      %v4620 = vsel %vm4301, %v4617, %v4619
      %v4621 = vrot.slane %v4495, 3
      %v4622 = vrot.slane %v4496, 3
      %v4623 = vsel %vm4301, %v4621, %v4622
      %v4624 = vrot.slane %v4497, 3
      %v4625 = vsel %vm4301, %v4622, %v4624
      %v4658 = vadd.f32 %v4169, %v4548
      %v4659 = vadd.f32 %v4170, %v4550
      %v4660 = vadd.f32 %v4171, %v4553
      %v4661 = vadd.f32 %v4172, %v4555
      %v4662 = vadd.f32 %v4173, %v4558
      %v4663 = vadd.f32 %v4174, %v4560
      %v4664 = vadd.f32 %v4175, %v4563
      %v4665 = vadd.f32 %v4176, %v4565
      %v4666 = vadd.f32 %v4177, %v4568
      %v4667 = vadd.f32 %v4178, %v4570
      %v4668 = vadd.f32 %v4179, %v4573
      %v4669 = vadd.f32 %v4180, %v4575
      %v4670 = vadd.f32 %v4181, %v4578
      %v4671 = vadd.f32 %v4182, %v4580
      %v4672 = vadd.f32 %v4183, %v4583
      %v4673 = vadd.f32 %v4184, %v4585
      %v4674 = vadd.f32 %v4185, %v4588
      %v4675 = vadd.f32 %v4186, %v4590
      %v4676 = vadd.f32 %v4187, %v4593
      %v4677 = vadd.f32 %v4188, %v4595
      %v4678 = vadd.f32 %v4189, %v4598
      %v4679 = vadd.f32 %v4190, %v4600
      %v4680 = vadd.f32 %v4191, %v4603
      %v4681 = vadd.f32 %v4192, %v4605
      %v4682 = vadd.f32 %v4193, %v4608
      %v4683 = vadd.f32 %v4194, %v4610
      %v4684 = vadd.f32 %v4195, %v4613
      %v4685 = vadd.f32 %v4196, %v4615
      %v4686 = vadd.f32 %v4197, %v4618
      %v4687 = vadd.f32 %v4198, %v4620
      %v4688 = vadd.f32 %v4199, %v4623
      %v4689 = vadd.f32 %v4200, %v4625
      %v4690 = vlaneseq
      %v4691 = vshrl.u32 %v4690, 7
      %v4692 = vsub.s32 1, %v4691
      %v4693 = vrot.slane %v235, %v4692
      %v4694 = vmul.f32 %v247, %v4693
      %v4695 = vmul.f32 %v248, %v4693
      %v4696 = vmul.f32 %v249, %v4693
      %v4697 = vmul.f32 %v250, %v4693
      %v4698 = vmul.f32 %v251, %v4693
      %v4699 = vmul.f32 %v252, %v4693
      %v4700 = vmul.f32 %v253, %v4693
      %v4701 = vmul.f32 %v254, %v4693
      %v4702 = vmul.f32 %v255, %v4693
      %v4703 = vmul.f32 %v256, %v4693
      %v4704 = vmul.f32 %v257, %v4693
      %v4705 = vmul.f32 %v258, %v4693
      %v4706 = vmul.f32 %v259, %v4693
      %v4707 = vmul.f32 %v260, %v4693
      %v4708 = vmul.f32 %v261, %v4693
      %v4709 = vmul.f32 %v262, %v4693
      %v4710 = vmul.f32 %v263, %v4693
      %v4711 = vmul.f32 %v264, %v4693
      %v4712 = vmul.f32 %v265, %v4693
      %v4713 = vmul.f32 %v266, %v4693
      %v4714 = vmul.f32 %v267, %v4693
      %v4715 = vmul.f32 %v268, %v4693
      %v4716 = vmul.f32 %v269, %v4693
      %v4717 = vmul.f32 %v270, %v4693
      %v4718 = vmul.f32 %v271, %v4693
      %v4719 = vmul.f32 %v272, %v4693
      %v4720 = vmul.f32 %v273, %v4693
      %v4721 = vmul.f32 %v274, %v4693
      %v4722 = vmul.f32 %v275, %v4693
      %v4723 = vmul.f32 %v276, %v4693
      %v4724 = vmul.f32 %v277, %v4693
      %v4725 = vmul.f32 %v278, %v4693
      %v4726 = vmul.f32 %v279, %v4693
      %v4727 = vmul.f32 %v280, %v4693
      %v4728 = vmul.f32 %v281, %v4693
      %v4729 = vmul.f32 %v282, %v4693
      %v4730 = vmul.f32 %v283, %v4693
      %v4731 = vmul.f32 %v284, %v4693
      %v4732 = vmul.f32 %v285, %v4693
      %v4733 = vmul.f32 %v286, %v4693
      %v4734 = vmul.f32 %v287, %v4693
      %v4735 = vmul.f32 %v288, %v4693
      %v4736 = vmul.f32 %v289, %v4693
      %v4737 = vmul.f32 %v290, %v4693
      %v4738 = vmul.f32 %v291, %v4693
      %v4739 = vmul.f32 %v292, %v4693
      %v4740 = vmul.f32 %v293, %v4693
      %v4741 = vmul.f32 %v294, %v4693
      %v4790 = vrot.slane %v4694, 3
      %v4791 = vrot.slane %v4695, 3
      %v4792 = vsel %vm4301, %v4790, %v4791
      %v4793 = vrot.slane %v4696, 3
      %v4794 = vsel %vm4301, %v4791, %v4793
      %v4795 = vrot.slane %v4697, 3
      %v4796 = vrot.slane %v4698, 3
      %v4797 = vsel %vm4301, %v4795, %v4796
      %v4798 = vrot.slane %v4699, 3
      %v4799 = vsel %vm4301, %v4796, %v4798
      %v4800 = vrot.slane %v4700, 3
      %v4801 = vrot.slane %v4701, 3
      %v4802 = vsel %vm4301, %v4800, %v4801
      %v4803 = vrot.slane %v4702, 3
      %v4804 = vsel %vm4301, %v4801, %v4803
      %v4805 = vrot.slane %v4703, 3
      %v4806 = vrot.slane %v4704, 3
      %v4807 = vsel %vm4301, %v4805, %v4806
      %v4808 = vrot.slane %v4705, 3
      %v4809 = vsel %vm4301, %v4806, %v4808
      %v4810 = vrot.slane %v4706, 3
      %v4811 = vrot.slane %v4707, 3
      %v4812 = vsel %vm4301, %v4810, %v4811
      %v4813 = vrot.slane %v4708, 3
      %v4814 = vsel %vm4301, %v4811, %v4813
      %v4815 = vrot.slane %v4709, 3
      %v4816 = vrot.slane %v4710, 3
      %v4817 = vsel %vm4301, %v4815, %v4816
      %v4818 = vrot.slane %v4711, 3
      %v4819 = vsel %vm4301, %v4816, %v4818
      %v4820 = vrot.slane %v4712, 3
      %v4821 = vrot.slane %v4713, 3
      %v4822 = vsel %vm4301, %v4820, %v4821
      %v4823 = vrot.slane %v4714, 3
      %v4824 = vsel %vm4301, %v4821, %v4823
      %v4825 = vrot.slane %v4715, 3
      %v4826 = vrot.slane %v4716, 3
      %v4827 = vsel %vm4301, %v4825, %v4826
      %v4828 = vrot.slane %v4717, 3
      %v4829 = vsel %vm4301, %v4826, %v4828
      %v4830 = vrot.slane %v4718, 3
      %v4831 = vrot.slane %v4719, 3
      %v4832 = vsel %vm4301, %v4830, %v4831
      %v4833 = vrot.slane %v4720, 3
      %v4834 = vsel %vm4301, %v4831, %v4833
      %v4835 = vrot.slane %v4721, 3
      %v4836 = vrot.slane %v4722, 3
      %v4837 = vsel %vm4301, %v4835, %v4836
      %v4838 = vrot.slane %v4723, 3
      %v4839 = vsel %vm4301, %v4836, %v4838
      %v4840 = vrot.slane %v4724, 3
      %v4841 = vrot.slane %v4725, 3
      %v4842 = vsel %vm4301, %v4840, %v4841
      %v4843 = vrot.slane %v4726, 3
      %v4844 = vsel %vm4301, %v4841, %v4843
      %v4845 = vrot.slane %v4727, 3
      %v4846 = vrot.slane %v4728, 3
      %v4847 = vsel %vm4301, %v4845, %v4846
      %v4848 = vrot.slane %v4729, 3
      %v4849 = vsel %vm4301, %v4846, %v4848
      %v4850 = vrot.slane %v4730, 3
      %v4851 = vrot.slane %v4731, 3
      %v4852 = vsel %vm4301, %v4850, %v4851
      %v4853 = vrot.slane %v4732, 3
      %v4854 = vsel %vm4301, %v4851, %v4853
      %v4855 = vrot.slane %v4733, 3
      %v4856 = vrot.slane %v4734, 3
      %v4857 = vsel %vm4301, %v4855, %v4856
      %v4858 = vrot.slane %v4735, 3
      %v4859 = vsel %vm4301, %v4856, %v4858
      %v4860 = vrot.slane %v4736, 3
      %v4861 = vrot.slane %v4737, 3
      %v4862 = vsel %vm4301, %v4860, %v4861
      %v4863 = vrot.slane %v4738, 3
      %v4864 = vsel %vm4301, %v4861, %v4863
      %v4865 = vrot.slane %v4739, 3
      %v4866 = vrot.slane %v4740, 3
      %v4867 = vsel %vm4301, %v4865, %v4866
      %v4868 = vrot.slane %v4741, 3
      %v4869 = vsel %vm4301, %v4866, %v4868
      %v4902 = vadd.f32 %v4414, %v4792
      %v4903 = vadd.f32 %v4415, %v4794
      %v4904 = vadd.f32 %v4416, %v4797
      %v4905 = vadd.f32 %v4417, %v4799
      %v4906 = vadd.f32 %v4418, %v4802
      %v4907 = vadd.f32 %v4419, %v4804
      %v4908 = vadd.f32 %v4420, %v4807
      %v4909 = vadd.f32 %v4421, %v4809
      %v4910 = vadd.f32 %v4422, %v4812
      %v4911 = vadd.f32 %v4423, %v4814
      %v4912 = vadd.f32 %v4424, %v4817
      %v4913 = vadd.f32 %v4425, %v4819
      %v4914 = vadd.f32 %v4426, %v4822
      %v4915 = vadd.f32 %v4427, %v4824
      %v4916 = vadd.f32 %v4428, %v4827
      %v4917 = vadd.f32 %v4429, %v4829
      %v4918 = vadd.f32 %v4430, %v4832
      %v4919 = vadd.f32 %v4431, %v4834
      %v4920 = vadd.f32 %v4432, %v4837
      %v4921 = vadd.f32 %v4433, %v4839
      %v4922 = vadd.f32 %v4434, %v4842
      %v4923 = vadd.f32 %v4435, %v4844
      %v4924 = vadd.f32 %v4436, %v4847
      %v4925 = vadd.f32 %v4437, %v4849
      %v4926 = vadd.f32 %v4438, %v4852
      %v4927 = vadd.f32 %v4439, %v4854
      %v4928 = vadd.f32 %v4440, %v4857
      %v4929 = vadd.f32 %v4441, %v4859
      %v4930 = vadd.f32 %v4442, %v4862
      %v4931 = vadd.f32 %v4443, %v4864
      %v4932 = vadd.f32 %v4444, %v4867
      %v4933 = vadd.f32 %v4445, %v4869
      %v4934 = vlaneseq
      %v4935 = vshrl.u32 %v4934, 7
      %v4936 = vsub.s32 0, %v4935
      %v4937 = vrot.slane %v236, %v4936
      %v4938 = vmul.f32 %v250, %v4937
      %v4939 = vmul.f32 %v251, %v4937
      %v4940 = vmul.f32 %v252, %v4937
      %v4941 = vmul.f32 %v253, %v4937
      %v4942 = vmul.f32 %v254, %v4937
      %v4943 = vmul.f32 %v255, %v4937
      %v4944 = vmul.f32 %v256, %v4937
      %v4945 = vmul.f32 %v257, %v4937
      %v4946 = vmul.f32 %v258, %v4937
      %v4947 = vmul.f32 %v259, %v4937
      %v4948 = vmul.f32 %v260, %v4937
      %v4949 = vmul.f32 %v261, %v4937
      %v4950 = vmul.f32 %v262, %v4937
      %v4951 = vmul.f32 %v263, %v4937
      %v4952 = vmul.f32 %v264, %v4937
      %v4953 = vmul.f32 %v265, %v4937
      %v4954 = vmul.f32 %v266, %v4937
      %v4955 = vmul.f32 %v267, %v4937
      %v4956 = vmul.f32 %v268, %v4937
      %v4957 = vmul.f32 %v269, %v4937
      %v4958 = vmul.f32 %v270, %v4937
      %v4959 = vmul.f32 %v271, %v4937
      %v4960 = vmul.f32 %v272, %v4937
      %v4961 = vmul.f32 %v273, %v4937
      %v4962 = vmul.f32 %v274, %v4937
      %v4963 = vmul.f32 %v275, %v4937
      %v4964 = vmul.f32 %v276, %v4937
      %v4965 = vmul.f32 %v277, %v4937
      %v4966 = vmul.f32 %v278, %v4937
      %v4967 = vmul.f32 %v279, %v4937
      %v4968 = vmul.f32 %v280, %v4937
      %v4969 = vmul.f32 %v281, %v4937
      %v4970 = vmul.f32 %v282, %v4937
      %v4971 = vmul.f32 %v283, %v4937
      %v4972 = vmul.f32 %v284, %v4937
      %v4973 = vmul.f32 %v285, %v4937
      %v4974 = vmul.f32 %v286, %v4937
      %v4975 = vmul.f32 %v287, %v4937
      %v4976 = vmul.f32 %v288, %v4937
      %v4977 = vmul.f32 %v289, %v4937
      %v4978 = vmul.f32 %v290, %v4937
      %v4979 = vmul.f32 %v291, %v4937
      %v4980 = vmul.f32 %v292, %v4937
      %v4981 = vmul.f32 %v293, %v4937
      %v4982 = vmul.f32 %v294, %v4937
      %v4983 = vmul.f32 %v295, %v4937
      %v4984 = vmul.f32 %v296, %v4937
      %v4985 = vmul.f32 %v297, %v4937
      %v5034 = vrot.slane %v4938, 3
      %v5035 = vrot.slane %v4939, 3
      %v5036 = vsel %vm4301, %v5034, %v5035
      %v5037 = vrot.slane %v4940, 3
      %v5038 = vsel %vm4301, %v5035, %v5037
      %v5039 = vrot.slane %v4941, 3
      %v5040 = vrot.slane %v4942, 3
      %v5041 = vsel %vm4301, %v5039, %v5040
      %v5042 = vrot.slane %v4943, 3
      %v5043 = vsel %vm4301, %v5040, %v5042
      %v5044 = vrot.slane %v4944, 3
      %v5045 = vrot.slane %v4945, 3
      %v5046 = vsel %vm4301, %v5044, %v5045
      %v5047 = vrot.slane %v4946, 3
      %v5048 = vsel %vm4301, %v5045, %v5047
      %v5049 = vrot.slane %v4947, 3
      %v5050 = vrot.slane %v4948, 3
      %v5051 = vsel %vm4301, %v5049, %v5050
      %v5052 = vrot.slane %v4949, 3
      %v5053 = vsel %vm4301, %v5050, %v5052
      %v5054 = vrot.slane %v4950, 3
      %v5055 = vrot.slane %v4951, 3
      %v5056 = vsel %vm4301, %v5054, %v5055
      %v5057 = vrot.slane %v4952, 3
      %v5058 = vsel %vm4301, %v5055, %v5057
      %v5059 = vrot.slane %v4953, 3
      %v5060 = vrot.slane %v4954, 3
      %v5061 = vsel %vm4301, %v5059, %v5060
      %v5062 = vrot.slane %v4955, 3
      %v5063 = vsel %vm4301, %v5060, %v5062
      %v5064 = vrot.slane %v4956, 3
      %v5065 = vrot.slane %v4957, 3
      %v5066 = vsel %vm4301, %v5064, %v5065
      %v5067 = vrot.slane %v4958, 3
      %v5068 = vsel %vm4301, %v5065, %v5067
      %v5069 = vrot.slane %v4959, 3
      %v5070 = vrot.slane %v4960, 3
      %v5071 = vsel %vm4301, %v5069, %v5070
      %v5072 = vrot.slane %v4961, 3
      %v5073 = vsel %vm4301, %v5070, %v5072
      %v5074 = vrot.slane %v4962, 3
      %v5075 = vrot.slane %v4963, 3
      %v5076 = vsel %vm4301, %v5074, %v5075
      %v5077 = vrot.slane %v4964, 3
      %v5078 = vsel %vm4301, %v5075, %v5077
      %v5079 = vrot.slane %v4965, 3
      %v5080 = vrot.slane %v4966, 3
      %v5081 = vsel %vm4301, %v5079, %v5080
      %v5082 = vrot.slane %v4967, 3
      %v5083 = vsel %vm4301, %v5080, %v5082
      %v5084 = vrot.slane %v4968, 3
      %v5085 = vrot.slane %v4969, 3
      %v5086 = vsel %vm4301, %v5084, %v5085
      %v5087 = vrot.slane %v4970, 3
      %v5088 = vsel %vm4301, %v5085, %v5087
      %v5089 = vrot.slane %v4971, 3
      %v5090 = vrot.slane %v4972, 3
      %v5091 = vsel %vm4301, %v5089, %v5090
      %v5092 = vrot.slane %v4973, 3
      %v5093 = vsel %vm4301, %v5090, %v5092
      %v5094 = vrot.slane %v4974, 3
      %v5095 = vrot.slane %v4975, 3
      %v5096 = vsel %vm4301, %v5094, %v5095
      %v5097 = vrot.slane %v4976, 3
      %v5098 = vsel %vm4301, %v5095, %v5097
      %v5099 = vrot.slane %v4977, 3
      %v5100 = vrot.slane %v4978, 3
      %v5101 = vsel %vm4301, %v5099, %v5100
      %v5102 = vrot.slane %v4979, 3
      %v5103 = vsel %vm4301, %v5100, %v5102
      %v5104 = vrot.slane %v4980, 3
      %v5105 = vrot.slane %v4981, 3
      %v5106 = vsel %vm4301, %v5104, %v5105
      %v5107 = vrot.slane %v4982, 3
      %v5108 = vsel %vm4301, %v5105, %v5107
      %v5109 = vrot.slane %v4983, 3
      %v5110 = vrot.slane %v4984, 3
      %v5111 = vsel %vm4301, %v5109, %v5110
      %v5112 = vrot.slane %v4985, 3
      %v5113 = vsel %vm4301, %v5110, %v5112
      %v5146 = vadd.f32 %v4658, %v5036
      %v5147 = vadd.f32 %v4659, %v5038
      %v5148 = vadd.f32 %v4660, %v5041
      %v5149 = vadd.f32 %v4661, %v5043
      %v5150 = vadd.f32 %v4662, %v5046
      %v5151 = vadd.f32 %v4663, %v5048
      %v5152 = vadd.f32 %v4664, %v5051
      %v5153 = vadd.f32 %v4665, %v5053
      %v5154 = vadd.f32 %v4666, %v5056
      %v5155 = vadd.f32 %v4667, %v5058
      %v5156 = vadd.f32 %v4668, %v5061
      %v5157 = vadd.f32 %v4669, %v5063
      %v5158 = vadd.f32 %v4670, %v5066
      %v5159 = vadd.f32 %v4671, %v5068
      %v5160 = vadd.f32 %v4672, %v5071
      %v5161 = vadd.f32 %v4673, %v5073
      %v5162 = vadd.f32 %v4674, %v5076
      %v5163 = vadd.f32 %v4675, %v5078
      %v5164 = vadd.f32 %v4676, %v5081
      %v5165 = vadd.f32 %v4677, %v5083
      %v5166 = vadd.f32 %v4678, %v5086
      %v5167 = vadd.f32 %v4679, %v5088
      %v5168 = vadd.f32 %v4680, %v5091
      %v5169 = vadd.f32 %v4681, %v5093
      %v5170 = vadd.f32 %v4682, %v5096
      %v5171 = vadd.f32 %v4683, %v5098
      %v5172 = vadd.f32 %v4684, %v5101
      %v5173 = vadd.f32 %v4685, %v5103
      %v5174 = vadd.f32 %v4686, %v5106
      %v5175 = vadd.f32 %v4687, %v5108
      %v5176 = vadd.f32 %v4688, %v5111
      %v5177 = vadd.f32 %v4689, %v5113
      %v5178 = vlaneseq
      %v5179 = vshrl.u32 %v5178, 7
      %v5180 = vsub.s32 7, %v5179
      %v5181 = vrot.slane %v236, %v5180
      %v5182 = vmul.f32 %v253, %v5181
      %v5183 = vmul.f32 %v254, %v5181
      %v5184 = vmul.f32 %v255, %v5181
      %v5185 = vmul.f32 %v256, %v5181
      %v5186 = vmul.f32 %v257, %v5181
      %v5187 = vmul.f32 %v258, %v5181
      %v5188 = vmul.f32 %v259, %v5181
      %v5189 = vmul.f32 %v260, %v5181
      %v5190 = vmul.f32 %v261, %v5181
      %v5191 = vmul.f32 %v262, %v5181
      %v5192 = vmul.f32 %v263, %v5181
      %v5193 = vmul.f32 %v264, %v5181
      %v5194 = vmul.f32 %v265, %v5181
      %v5195 = vmul.f32 %v266, %v5181
      %v5196 = vmul.f32 %v267, %v5181
      %v5197 = vmul.f32 %v268, %v5181
      %v5198 = vmul.f32 %v269, %v5181
      %v5199 = vmul.f32 %v270, %v5181
      %v5200 = vmul.f32 %v271, %v5181
      %v5201 = vmul.f32 %v272, %v5181
      %v5202 = vmul.f32 %v273, %v5181
      %v5203 = vmul.f32 %v274, %v5181
      %v5204 = vmul.f32 %v275, %v5181
      %v5205 = vmul.f32 %v276, %v5181
      %v5206 = vmul.f32 %v277, %v5181
      %v5207 = vmul.f32 %v278, %v5181
      %v5208 = vmul.f32 %v279, %v5181
      %v5209 = vmul.f32 %v280, %v5181
      %v5210 = vmul.f32 %v281, %v5181
      %v5211 = vmul.f32 %v282, %v5181
      %v5212 = vmul.f32 %v283, %v5181
      %v5213 = vmul.f32 %v284, %v5181
      %v5214 = vmul.f32 %v285, %v5181
      %v5215 = vmul.f32 %v286, %v5181
      %v5216 = vmul.f32 %v287, %v5181
      %v5217 = vmul.f32 %v288, %v5181
      %v5218 = vmul.f32 %v289, %v5181
      %v5219 = vmul.f32 %v290, %v5181
      %v5220 = vmul.f32 %v291, %v5181
      %v5221 = vmul.f32 %v292, %v5181
      %v5222 = vmul.f32 %v293, %v5181
      %v5223 = vmul.f32 %v294, %v5181
      %v5224 = vmul.f32 %v295, %v5181
      %v5225 = vmul.f32 %v296, %v5181
      %v5226 = vmul.f32 %v297, %v5181
      %v5227 = vmul.f32 %v298, %v5181
      %v5228 = vmul.f32 %v299, %v5181
      %v5229 = vmul.f32 %v300, %v5181
      %v5278 = vrot.slane %v5182, 3
      %v5279 = vrot.slane %v5183, 3
      %v5280 = vsel %vm4301, %v5278, %v5279
      %v5281 = vrot.slane %v5184, 3
      %v5282 = vsel %vm4301, %v5279, %v5281
      %v5283 = vrot.slane %v5185, 3
      %v5284 = vrot.slane %v5186, 3
      %v5285 = vsel %vm4301, %v5283, %v5284
      %v5286 = vrot.slane %v5187, 3
      %v5287 = vsel %vm4301, %v5284, %v5286
      %v5288 = vrot.slane %v5188, 3
      %v5289 = vrot.slane %v5189, 3
      %v5290 = vsel %vm4301, %v5288, %v5289
      %v5291 = vrot.slane %v5190, 3
      %v5292 = vsel %vm4301, %v5289, %v5291
      %v5293 = vrot.slane %v5191, 3
      %v5294 = vrot.slane %v5192, 3
      %v5295 = vsel %vm4301, %v5293, %v5294
      %v5296 = vrot.slane %v5193, 3
      %v5297 = vsel %vm4301, %v5294, %v5296
      %v5298 = vrot.slane %v5194, 3
      %v5299 = vrot.slane %v5195, 3
      %v5300 = vsel %vm4301, %v5298, %v5299
      %v5301 = vrot.slane %v5196, 3
      %v5302 = vsel %vm4301, %v5299, %v5301
      %v5303 = vrot.slane %v5197, 3
      %v5304 = vrot.slane %v5198, 3
      %v5305 = vsel %vm4301, %v5303, %v5304
      %v5306 = vrot.slane %v5199, 3
      %v5307 = vsel %vm4301, %v5304, %v5306
      %v5308 = vrot.slane %v5200, 3
      %v5309 = vrot.slane %v5201, 3
      %v5310 = vsel %vm4301, %v5308, %v5309
      %v5311 = vrot.slane %v5202, 3
      %v5312 = vsel %vm4301, %v5309, %v5311
      %v5313 = vrot.slane %v5203, 3
      %v5314 = vrot.slane %v5204, 3
      %v5315 = vsel %vm4301, %v5313, %v5314
      %v5316 = vrot.slane %v5205, 3
      %v5317 = vsel %vm4301, %v5314, %v5316
      %v5318 = vrot.slane %v5206, 3
      %v5319 = vrot.slane %v5207, 3
      %v5320 = vsel %vm4301, %v5318, %v5319
      %v5321 = vrot.slane %v5208, 3
      %v5322 = vsel %vm4301, %v5319, %v5321
      %v5323 = vrot.slane %v5209, 3
      %v5324 = vrot.slane %v5210, 3
      %v5325 = vsel %vm4301, %v5323, %v5324
      %v5326 = vrot.slane %v5211, 3
      %v5327 = vsel %vm4301, %v5324, %v5326
      %v5328 = vrot.slane %v5212, 3
      %v5329 = vrot.slane %v5213, 3
      %v5330 = vsel %vm4301, %v5328, %v5329
      %v5331 = vrot.slane %v5214, 3
      %v5332 = vsel %vm4301, %v5329, %v5331
      %v5333 = vrot.slane %v5215, 3
      %v5334 = vrot.slane %v5216, 3
      %v5335 = vsel %vm4301, %v5333, %v5334
      %v5336 = vrot.slane %v5217, 3
      %v5337 = vsel %vm4301, %v5334, %v5336
      %v5338 = vrot.slane %v5218, 3
      %v5339 = vrot.slane %v5219, 3
      %v5340 = vsel %vm4301, %v5338, %v5339
      %v5341 = vrot.slane %v5220, 3
      %v5342 = vsel %vm4301, %v5339, %v5341
      %v5343 = vrot.slane %v5221, 3
      %v5344 = vrot.slane %v5222, 3
      %v5345 = vsel %vm4301, %v5343, %v5344
      %v5346 = vrot.slane %v5223, 3
      %v5347 = vsel %vm4301, %v5344, %v5346
      %v5348 = vrot.slane %v5224, 3
      %v5349 = vrot.slane %v5225, 3
      %v5350 = vsel %vm4301, %v5348, %v5349
      %v5351 = vrot.slane %v5226, 3
      %v5352 = vsel %vm4301, %v5349, %v5351
      %v5353 = vrot.slane %v5227, 3
      %v5354 = vrot.slane %v5228, 3
      %v5355 = vsel %vm4301, %v5353, %v5354
      %v5356 = vrot.slane %v5229, 3
      %v5357 = vsel %vm4301, %v5354, %v5356
      %v5390 = vadd.f32 %v4902, %v5280
      %v5391 = vadd.f32 %v4903, %v5282
      %v5392 = vadd.f32 %v4904, %v5285
      %v5393 = vadd.f32 %v4905, %v5287
      %v5394 = vadd.f32 %v4906, %v5290
      %v5395 = vadd.f32 %v4907, %v5292
      %v5396 = vadd.f32 %v4908, %v5295
      %v5397 = vadd.f32 %v4909, %v5297
      %v5398 = vadd.f32 %v4910, %v5300
      %v5399 = vadd.f32 %v4911, %v5302
      %v5400 = vadd.f32 %v4912, %v5305
      %v5401 = vadd.f32 %v4913, %v5307
      %v5402 = vadd.f32 %v4914, %v5310
      %v5403 = vadd.f32 %v4915, %v5312
      %v5404 = vadd.f32 %v4916, %v5315
      %v5405 = vadd.f32 %v4917, %v5317
      %v5406 = vadd.f32 %v4918, %v5320
      %v5407 = vadd.f32 %v4919, %v5322
      %v5408 = vadd.f32 %v4920, %v5325
      %v5409 = vadd.f32 %v4921, %v5327
      %v5410 = vadd.f32 %v4922, %v5330
      %v5411 = vadd.f32 %v4923, %v5332
      %v5412 = vadd.f32 %v4924, %v5335
      %v5413 = vadd.f32 %v4925, %v5337
      %v5414 = vadd.f32 %v4926, %v5340
      %v5415 = vadd.f32 %v4927, %v5342
      %v5416 = vadd.f32 %v4928, %v5345
      %v5417 = vadd.f32 %v4929, %v5347
      %v5418 = vadd.f32 %v4930, %v5350
      %v5419 = vadd.f32 %v4931, %v5352
      %v5420 = vadd.f32 %v4932, %v5355
      %v5421 = vadd.f32 %v4933, %v5357
      %v5422 = vlaneseq
      %v5423 = vshrl.u32 %v5422, 7
      %v5424 = vsub.s32 6, %v5423
      %v5425 = vrot.slane %v237, %v5424
      %v5426 = vmul.f32 %v256, %v5425
      %v5427 = vmul.f32 %v257, %v5425
      %v5428 = vmul.f32 %v258, %v5425
      %v5429 = vmul.f32 %v259, %v5425
      %v5430 = vmul.f32 %v260, %v5425
      %v5431 = vmul.f32 %v261, %v5425
      %v5432 = vmul.f32 %v262, %v5425
      %v5433 = vmul.f32 %v263, %v5425
      %v5434 = vmul.f32 %v264, %v5425
      %v5435 = vmul.f32 %v265, %v5425
      %v5436 = vmul.f32 %v266, %v5425
      %v5437 = vmul.f32 %v267, %v5425
      %v5438 = vmul.f32 %v268, %v5425
      %v5439 = vmul.f32 %v269, %v5425
      %v5440 = vmul.f32 %v270, %v5425
      %v5441 = vmul.f32 %v271, %v5425
      %v5442 = vmul.f32 %v272, %v5425
      %v5443 = vmul.f32 %v273, %v5425
      %v5444 = vmul.f32 %v274, %v5425
      %v5445 = vmul.f32 %v275, %v5425
      %v5446 = vmul.f32 %v276, %v5425
      %v5447 = vmul.f32 %v277, %v5425
      %v5448 = vmul.f32 %v278, %v5425
      %v5449 = vmul.f32 %v279, %v5425
      %v5450 = vmul.f32 %v280, %v5425
      %v5451 = vmul.f32 %v281, %v5425
      %v5452 = vmul.f32 %v282, %v5425
      %v5453 = vmul.f32 %v283, %v5425
      %v5454 = vmul.f32 %v284, %v5425
      %v5455 = vmul.f32 %v285, %v5425
      %v5456 = vmul.f32 %v286, %v5425
      %v5457 = vmul.f32 %v287, %v5425
      %v5458 = vmul.f32 %v288, %v5425
      %v5459 = vmul.f32 %v289, %v5425
      %v5460 = vmul.f32 %v290, %v5425
      %v5461 = vmul.f32 %v291, %v5425
      %v5462 = vmul.f32 %v292, %v5425
      %v5463 = vmul.f32 %v293, %v5425
      %v5464 = vmul.f32 %v294, %v5425
      %v5465 = vmul.f32 %v295, %v5425
      %v5466 = vmul.f32 %v296, %v5425
      %v5467 = vmul.f32 %v297, %v5425
      %v5468 = vmul.f32 %v298, %v5425
      %v5469 = vmul.f32 %v299, %v5425
      %v5470 = vmul.f32 %v300, %v5425
      %v5471 = vmul.f32 %v301, %v5425
      %v5472 = vmul.f32 %v302, %v5425
      %v5473 = vmul.f32 %v303, %v5425
      %v5522 = vrot.slane %v5426, 3
      %v5523 = vrot.slane %v5427, 3
      %v5524 = vsel %vm4301, %v5522, %v5523
      %v5525 = vrot.slane %v5428, 3
      %v5526 = vsel %vm4301, %v5523, %v5525
      %v5527 = vrot.slane %v5429, 3
      %v5528 = vrot.slane %v5430, 3
      %v5529 = vsel %vm4301, %v5527, %v5528
      %v5530 = vrot.slane %v5431, 3
      %v5531 = vsel %vm4301, %v5528, %v5530
      %v5532 = vrot.slane %v5432, 3
      %v5533 = vrot.slane %v5433, 3
      %v5534 = vsel %vm4301, %v5532, %v5533
      %v5535 = vrot.slane %v5434, 3
      %v5536 = vsel %vm4301, %v5533, %v5535
      %v5537 = vrot.slane %v5435, 3
      %v5538 = vrot.slane %v5436, 3
      %v5539 = vsel %vm4301, %v5537, %v5538
      %v5540 = vrot.slane %v5437, 3
      %v5541 = vsel %vm4301, %v5538, %v5540
      %v5542 = vrot.slane %v5438, 3
      %v5543 = vrot.slane %v5439, 3
      %v5544 = vsel %vm4301, %v5542, %v5543
      %v5545 = vrot.slane %v5440, 3
      %v5546 = vsel %vm4301, %v5543, %v5545
      %v5547 = vrot.slane %v5441, 3
      %v5548 = vrot.slane %v5442, 3
      %v5549 = vsel %vm4301, %v5547, %v5548
      %v5550 = vrot.slane %v5443, 3
      %v5551 = vsel %vm4301, %v5548, %v5550
      %v5552 = vrot.slane %v5444, 3
      %v5553 = vrot.slane %v5445, 3
      %v5554 = vsel %vm4301, %v5552, %v5553
      %v5555 = vrot.slane %v5446, 3
      %v5556 = vsel %vm4301, %v5553, %v5555
      %v5557 = vrot.slane %v5447, 3
      %v5558 = vrot.slane %v5448, 3
      %v5559 = vsel %vm4301, %v5557, %v5558
      %v5560 = vrot.slane %v5449, 3
      %v5561 = vsel %vm4301, %v5558, %v5560
      %v5562 = vrot.slane %v5450, 3
      %v5563 = vrot.slane %v5451, 3
      %v5564 = vsel %vm4301, %v5562, %v5563
      %v5565 = vrot.slane %v5452, 3
      %v5566 = vsel %vm4301, %v5563, %v5565
      %v5567 = vrot.slane %v5453, 3
      %v5568 = vrot.slane %v5454, 3
      %v5569 = vsel %vm4301, %v5567, %v5568
      %v5570 = vrot.slane %v5455, 3
      %v5571 = vsel %vm4301, %v5568, %v5570
      %v5572 = vrot.slane %v5456, 3
      %v5573 = vrot.slane %v5457, 3
      %v5574 = vsel %vm4301, %v5572, %v5573
      %v5575 = vrot.slane %v5458, 3
      %v5576 = vsel %vm4301, %v5573, %v5575
      %v5577 = vrot.slane %v5459, 3
      %v5578 = vrot.slane %v5460, 3
      %v5579 = vsel %vm4301, %v5577, %v5578
      %v5580 = vrot.slane %v5461, 3
      %v5581 = vsel %vm4301, %v5578, %v5580
      %v5582 = vrot.slane %v5462, 3
      %v5583 = vrot.slane %v5463, 3
      %v5584 = vsel %vm4301, %v5582, %v5583
      %v5585 = vrot.slane %v5464, 3
      %v5586 = vsel %vm4301, %v5583, %v5585
      %v5587 = vrot.slane %v5465, 3
      %v5588 = vrot.slane %v5466, 3
      %v5589 = vsel %vm4301, %v5587, %v5588
      %v5590 = vrot.slane %v5467, 3
      %v5591 = vsel %vm4301, %v5588, %v5590
      %v5592 = vrot.slane %v5468, 3
      %v5593 = vrot.slane %v5469, 3
      %v5594 = vsel %vm4301, %v5592, %v5593
      %v5595 = vrot.slane %v5470, 3
      %v5596 = vsel %vm4301, %v5593, %v5595
      %v5597 = vrot.slane %v5471, 3
      %v5598 = vrot.slane %v5472, 3
      %v5599 = vsel %vm4301, %v5597, %v5598
      %v5600 = vrot.slane %v5473, 3
      %v5601 = vsel %vm4301, %v5598, %v5600
      %v5634 = vadd.f32 %v5146, %v5524
      %v5635 = vadd.f32 %v5147, %v5526
      %v5636 = vadd.f32 %v5148, %v5529
      %v5637 = vadd.f32 %v5149, %v5531
      %v5638 = vadd.f32 %v5150, %v5534
      %v5639 = vadd.f32 %v5151, %v5536
      %v5640 = vadd.f32 %v5152, %v5539
      %v5641 = vadd.f32 %v5153, %v5541
      %v5642 = vadd.f32 %v5154, %v5544
      %v5643 = vadd.f32 %v5155, %v5546
      %v5644 = vadd.f32 %v5156, %v5549
      %v5645 = vadd.f32 %v5157, %v5551
      %v5646 = vadd.f32 %v5158, %v5554
      %v5647 = vadd.f32 %v5159, %v5556
      %v5648 = vadd.f32 %v5160, %v5559
      %v5649 = vadd.f32 %v5161, %v5561
      %v5650 = vadd.f32 %v5162, %v5564
      %v5651 = vadd.f32 %v5163, %v5566
      %v5652 = vadd.f32 %v5164, %v5569
      %v5653 = vadd.f32 %v5165, %v5571
      %v5654 = vadd.f32 %v5166, %v5574
      %v5655 = vadd.f32 %v5167, %v5576
      %v5656 = vadd.f32 %v5168, %v5579
      %v5657 = vadd.f32 %v5169, %v5581
      %v5658 = vadd.f32 %v5170, %v5584
      %v5659 = vadd.f32 %v5171, %v5586
      %v5660 = vadd.f32 %v5172, %v5589
      %v5661 = vadd.f32 %v5173, %v5591
      %v5662 = vadd.f32 %v5174, %v5594
      %v5663 = vadd.f32 %v5175, %v5596
      %v5664 = vadd.f32 %v5176, %v5599
      %v5665 = vadd.f32 %v5177, %v5601
      %v5666 = vlaneseq
      %v5667 = vshrl.u32 %v5666, 7
      %v5668 = vsub.s32 5, %v5667
      %v5669 = vrot.slane %v238, %v5668
      %v5670 = vmul.f32 %v259, %v5669
      %v5671 = vmul.f32 %v260, %v5669
      %v5672 = vmul.f32 %v261, %v5669
      %v5673 = vmul.f32 %v262, %v5669
      %v5674 = vmul.f32 %v263, %v5669
      %v5675 = vmul.f32 %v264, %v5669
      %v5676 = vmul.f32 %v265, %v5669
      %v5677 = vmul.f32 %v266, %v5669
      %v5678 = vmul.f32 %v267, %v5669
      %v5679 = vmul.f32 %v268, %v5669
      %v5680 = vmul.f32 %v269, %v5669
      %v5681 = vmul.f32 %v270, %v5669
      %v5682 = vmul.f32 %v271, %v5669
      %v5683 = vmul.f32 %v272, %v5669
      %v5684 = vmul.f32 %v273, %v5669
      %v5685 = vmul.f32 %v274, %v5669
      %v5686 = vmul.f32 %v275, %v5669
      %v5687 = vmul.f32 %v276, %v5669
      %v5688 = vmul.f32 %v277, %v5669
      %v5689 = vmul.f32 %v278, %v5669
      %v5690 = vmul.f32 %v279, %v5669
      %v5691 = vmul.f32 %v280, %v5669
      %v5692 = vmul.f32 %v281, %v5669
      %v5693 = vmul.f32 %v282, %v5669
      %v5694 = vmul.f32 %v283, %v5669
      %v5695 = vmul.f32 %v284, %v5669
      %v5696 = vmul.f32 %v285, %v5669
      %v5697 = vmul.f32 %v286, %v5669
      %v5698 = vmul.f32 %v287, %v5669
      %v5699 = vmul.f32 %v288, %v5669
      %v5700 = vmul.f32 %v289, %v5669
      %v5701 = vmul.f32 %v290, %v5669
      %v5702 = vmul.f32 %v291, %v5669
      %v5703 = vmul.f32 %v292, %v5669
      %v5704 = vmul.f32 %v293, %v5669
      %v5705 = vmul.f32 %v294, %v5669
      %v5706 = vmul.f32 %v295, %v5669
      %v5707 = vmul.f32 %v296, %v5669
      %v5708 = vmul.f32 %v297, %v5669
      %v5709 = vmul.f32 %v298, %v5669
      %v5710 = vmul.f32 %v299, %v5669
      %v5711 = vmul.f32 %v300, %v5669
      %v5712 = vmul.f32 %v301, %v5669
      %v5713 = vmul.f32 %v302, %v5669
      %v5714 = vmul.f32 %v303, %v5669
      %v5715 = vmul.f32 %v304, %v5669
      %v5716 = vmul.f32 %v305, %v5669
      %v5717 = vmul.f32 %v306, %v5669
      %v5766 = vrot.slane %v5670, 3
      %v5767 = vrot.slane %v5671, 3
      %v5768 = vsel %vm4301, %v5766, %v5767
      %v5769 = vrot.slane %v5672, 3
      %v5770 = vsel %vm4301, %v5767, %v5769
      %v5771 = vrot.slane %v5673, 3
      %v5772 = vrot.slane %v5674, 3
      %v5773 = vsel %vm4301, %v5771, %v5772
      %v5774 = vrot.slane %v5675, 3
      %v5775 = vsel %vm4301, %v5772, %v5774
      %v5776 = vrot.slane %v5676, 3
      %v5777 = vrot.slane %v5677, 3
      %v5778 = vsel %vm4301, %v5776, %v5777
      %v5779 = vrot.slane %v5678, 3
      %v5780 = vsel %vm4301, %v5777, %v5779
      %v5781 = vrot.slane %v5679, 3
      %v5782 = vrot.slane %v5680, 3
      %v5783 = vsel %vm4301, %v5781, %v5782
      %v5784 = vrot.slane %v5681, 3
      %v5785 = vsel %vm4301, %v5782, %v5784
      %v5786 = vrot.slane %v5682, 3
      %v5787 = vrot.slane %v5683, 3
      %v5788 = vsel %vm4301, %v5786, %v5787
      %v5789 = vrot.slane %v5684, 3
      %v5790 = vsel %vm4301, %v5787, %v5789
      %v5791 = vrot.slane %v5685, 3
      %v5792 = vrot.slane %v5686, 3
      %v5793 = vsel %vm4301, %v5791, %v5792
      %v5794 = vrot.slane %v5687, 3
      %v5795 = vsel %vm4301, %v5792, %v5794
      %v5796 = vrot.slane %v5688, 3
      %v5797 = vrot.slane %v5689, 3
      %v5798 = vsel %vm4301, %v5796, %v5797
      %v5799 = vrot.slane %v5690, 3
      %v5800 = vsel %vm4301, %v5797, %v5799
      %v5801 = vrot.slane %v5691, 3
      %v5802 = vrot.slane %v5692, 3
      %v5803 = vsel %vm4301, %v5801, %v5802
      %v5804 = vrot.slane %v5693, 3
      %v5805 = vsel %vm4301, %v5802, %v5804
      %v5806 = vrot.slane %v5694, 3
      %v5807 = vrot.slane %v5695, 3
      %v5808 = vsel %vm4301, %v5806, %v5807
      %v5809 = vrot.slane %v5696, 3
      %v5810 = vsel %vm4301, %v5807, %v5809
      %v5811 = vrot.slane %v5697, 3
      %v5812 = vrot.slane %v5698, 3
      %v5813 = vsel %vm4301, %v5811, %v5812
      %v5814 = vrot.slane %v5699, 3
      %v5815 = vsel %vm4301, %v5812, %v5814
      %v5816 = vrot.slane %v5700, 3
      %v5817 = vrot.slane %v5701, 3
      %v5818 = vsel %vm4301, %v5816, %v5817
      %v5819 = vrot.slane %v5702, 3
      %v5820 = vsel %vm4301, %v5817, %v5819
      %v5821 = vrot.slane %v5703, 3
      %v5822 = vrot.slane %v5704, 3
      %v5823 = vsel %vm4301, %v5821, %v5822
      %v5824 = vrot.slane %v5705, 3
      %v5825 = vsel %vm4301, %v5822, %v5824
      %v5826 = vrot.slane %v5706, 3
      %v5827 = vrot.slane %v5707, 3
      %v5828 = vsel %vm4301, %v5826, %v5827
      %v5829 = vrot.slane %v5708, 3
      %v5830 = vsel %vm4301, %v5827, %v5829
      %v5831 = vrot.slane %v5709, 3
      %v5832 = vrot.slane %v5710, 3
      %v5833 = vsel %vm4301, %v5831, %v5832
      %v5834 = vrot.slane %v5711, 3
      %v5835 = vsel %vm4301, %v5832, %v5834
      %v5836 = vrot.slane %v5712, 3
      %v5837 = vrot.slane %v5713, 3
      %v5838 = vsel %vm4301, %v5836, %v5837
      %v5839 = vrot.slane %v5714, 3
      %v5840 = vsel %vm4301, %v5837, %v5839
      %v5841 = vrot.slane %v5715, 3
      %v5842 = vrot.slane %v5716, 3
      %v5843 = vsel %vm4301, %v5841, %v5842
      %v5844 = vrot.slane %v5717, 3
      %v5845 = vsel %vm4301, %v5842, %v5844
      %v5878 = vadd.f32 %v5390, %v5768
      %v5879 = vadd.f32 %v5391, %v5770
      %v5880 = vadd.f32 %v5392, %v5773
      %v5881 = vadd.f32 %v5393, %v5775
      %v5882 = vadd.f32 %v5394, %v5778
      %v5883 = vadd.f32 %v5395, %v5780
      %v5884 = vadd.f32 %v5396, %v5783
      %v5885 = vadd.f32 %v5397, %v5785
      %v5886 = vadd.f32 %v5398, %v5788
      %v5887 = vadd.f32 %v5399, %v5790
      %v5888 = vadd.f32 %v5400, %v5793
      %v5889 = vadd.f32 %v5401, %v5795
      %v5890 = vadd.f32 %v5402, %v5798
      %v5891 = vadd.f32 %v5403, %v5800
      %v5892 = vadd.f32 %v5404, %v5803
      %v5893 = vadd.f32 %v5405, %v5805
      %v5894 = vadd.f32 %v5406, %v5808
      %v5895 = vadd.f32 %v5407, %v5810
      %v5896 = vadd.f32 %v5408, %v5813
      %v5897 = vadd.f32 %v5409, %v5815
      %v5898 = vadd.f32 %v5410, %v5818
      %v5899 = vadd.f32 %v5411, %v5820
      %v5900 = vadd.f32 %v5412, %v5823
      %v5901 = vadd.f32 %v5413, %v5825
      %v5902 = vadd.f32 %v5414, %v5828
      %v5903 = vadd.f32 %v5415, %v5830
      %v5904 = vadd.f32 %v5416, %v5833
      %v5905 = vadd.f32 %v5417, %v5835
      %v5906 = vadd.f32 %v5418, %v5838
      %v5907 = vadd.f32 %v5419, %v5840
      %v5908 = vadd.f32 %v5420, %v5843
      %v5909 = vadd.f32 %v5421, %v5845
      %v5910 = vlaneseq
      %v5911 = vshrl.u32 %v5910, 7
      %v5912 = vsub.s32 4, %v5911
      %v5913 = vrot.slane %v233, %v5912
      %v5914 = vmul.f32 %v241, %v5913
      %v5915 = vmul.f32 %v242, %v5913
      %v5916 = vmul.f32 %v243, %v5913
      %v5917 = vmul.f32 %v244, %v5913
      %v5918 = vmul.f32 %v245, %v5913
      %v5919 = vmul.f32 %v246, %v5913
      %v5920 = vmul.f32 %v247, %v5913
      %v5921 = vmul.f32 %v248, %v5913
      %v5922 = vmul.f32 %v249, %v5913
      %v5923 = vmul.f32 %v250, %v5913
      %v5924 = vmul.f32 %v251, %v5913
      %v5925 = vmul.f32 %v252, %v5913
      %v5926 = vmul.f32 %v253, %v5913
      %v5927 = vmul.f32 %v254, %v5913
      %v5928 = vmul.f32 %v255, %v5913
      %v5929 = vmul.f32 %v256, %v5913
      %v5930 = vmul.f32 %v257, %v5913
      %v5931 = vmul.f32 %v258, %v5913
      %v5932 = vmul.f32 %v259, %v5913
      %v5933 = vmul.f32 %v260, %v5913
      %v5934 = vmul.f32 %v261, %v5913
      %v5935 = vmul.f32 %v262, %v5913
      %v5936 = vmul.f32 %v263, %v5913
      %v5937 = vmul.f32 %v264, %v5913
      %v5938 = vmul.f32 %v265, %v5913
      %v5939 = vmul.f32 %v266, %v5913
      %v5940 = vmul.f32 %v267, %v5913
      %v5941 = vmul.f32 %v268, %v5913
      %v5942 = vmul.f32 %v269, %v5913
      %v5943 = vmul.f32 %v270, %v5913
      %v5944 = vmul.f32 %v271, %v5913
      %v5945 = vmul.f32 %v272, %v5913
      %v5946 = vmul.f32 %v273, %v5913
      %v5947 = vmul.f32 %v274, %v5913
      %v5948 = vmul.f32 %v275, %v5913
      %v5949 = vmul.f32 %v276, %v5913
      %v5950 = vmul.f32 %v277, %v5913
      %v5951 = vmul.f32 %v278, %v5913
      %v5952 = vmul.f32 %v279, %v5913
      %v5953 = vmul.f32 %v280, %v5913
      %v5954 = vmul.f32 %v281, %v5913
      %v5955 = vmul.f32 %v282, %v5913
      %v5956 = vmul.f32 %v283, %v5913
      %v5957 = vmul.f32 %v284, %v5913
      %v5958 = vmul.f32 %v285, %v5913
      %v5959 = vmul.f32 %v286, %v5913
      %v5960 = vmul.f32 %v287, %v5913
      %v5961 = vmul.f32 %v288, %v5913
      %vm6010 = vcmask 1043456
      %v6011 = vrot.slane %v5914, 4
      %v6012 = vrot.slane %v5915, 4
      %v6013 = vsel %vm6010, %v6011, %v6012
      %v6014 = vrot.slane %v5916, 4
      %v6015 = vsel %vm6010, %v6012, %v6014
      %v6016 = vrot.slane %v5917, 4
      %v6017 = vrot.slane %v5918, 4
      %v6018 = vsel %vm6010, %v6016, %v6017
      %v6019 = vrot.slane %v5919, 4
      %v6020 = vsel %vm6010, %v6017, %v6019
      %v6021 = vrot.slane %v5920, 4
      %v6022 = vrot.slane %v5921, 4
      %v6023 = vsel %vm6010, %v6021, %v6022
      %v6024 = vrot.slane %v5922, 4
      %v6025 = vsel %vm6010, %v6022, %v6024
      %v6026 = vrot.slane %v5923, 4
      %v6027 = vrot.slane %v5924, 4
      %v6028 = vsel %vm6010, %v6026, %v6027
      %v6029 = vrot.slane %v5925, 4
      %v6030 = vsel %vm6010, %v6027, %v6029
      %v6031 = vrot.slane %v5926, 4
      %v6032 = vrot.slane %v5927, 4
      %v6033 = vsel %vm6010, %v6031, %v6032
      %v6034 = vrot.slane %v5928, 4
      %v6035 = vsel %vm6010, %v6032, %v6034
      %v6036 = vrot.slane %v5929, 4
      %v6037 = vrot.slane %v5930, 4
      %v6038 = vsel %vm6010, %v6036, %v6037
      %v6039 = vrot.slane %v5931, 4
      %v6040 = vsel %vm6010, %v6037, %v6039
      %v6041 = vrot.slane %v5932, 4
      %v6042 = vrot.slane %v5933, 4
      %v6043 = vsel %vm6010, %v6041, %v6042
      %v6044 = vrot.slane %v5934, 4
      %v6045 = vsel %vm6010, %v6042, %v6044
      %v6046 = vrot.slane %v5935, 4
      %v6047 = vrot.slane %v5936, 4
      %v6048 = vsel %vm6010, %v6046, %v6047
      %v6049 = vrot.slane %v5937, 4
      %v6050 = vsel %vm6010, %v6047, %v6049
      %v6051 = vrot.slane %v5938, 4
      %v6052 = vrot.slane %v5939, 4
      %v6053 = vsel %vm6010, %v6051, %v6052
      %v6054 = vrot.slane %v5940, 4
      %v6055 = vsel %vm6010, %v6052, %v6054
      %v6056 = vrot.slane %v5941, 4
      %v6057 = vrot.slane %v5942, 4
      %v6058 = vsel %vm6010, %v6056, %v6057
      %v6059 = vrot.slane %v5943, 4
      %v6060 = vsel %vm6010, %v6057, %v6059
      %v6061 = vrot.slane %v5944, 4
      %v6062 = vrot.slane %v5945, 4
      %v6063 = vsel %vm6010, %v6061, %v6062
      %v6064 = vrot.slane %v5946, 4
      %v6065 = vsel %vm6010, %v6062, %v6064
      %v6066 = vrot.slane %v5947, 4
      %v6067 = vrot.slane %v5948, 4
      %v6068 = vsel %vm6010, %v6066, %v6067
      %v6069 = vrot.slane %v5949, 4
      %v6070 = vsel %vm6010, %v6067, %v6069
      %v6071 = vrot.slane %v5950, 4
      %v6072 = vrot.slane %v5951, 4
      %v6073 = vsel %vm6010, %v6071, %v6072
      %v6074 = vrot.slane %v5952, 4
      %v6075 = vsel %vm6010, %v6072, %v6074
      %v6076 = vrot.slane %v5953, 4
      %v6077 = vrot.slane %v5954, 4
      %v6078 = vsel %vm6010, %v6076, %v6077
      %v6079 = vrot.slane %v5955, 4
      %v6080 = vsel %vm6010, %v6077, %v6079
      %v6081 = vrot.slane %v5956, 4
      %v6082 = vrot.slane %v5957, 4
      %v6083 = vsel %vm6010, %v6081, %v6082
      %v6084 = vrot.slane %v5958, 4
      %v6085 = vsel %vm6010, %v6082, %v6084
      %v6086 = vrot.slane %v5959, 4
      %v6087 = vrot.slane %v5960, 4
      %v6088 = vsel %vm6010, %v6086, %v6087
      %v6089 = vrot.slane %v5961, 4
      %v6090 = vsel %vm6010, %v6087, %v6089
      %v6123 = vadd.f32 %v5634, %v6013
      %v6124 = vadd.f32 %v5635, %v6015
      %v6125 = vadd.f32 %v5636, %v6018
      %v6126 = vadd.f32 %v5637, %v6020
      %v6127 = vadd.f32 %v5638, %v6023
      %v6128 = vadd.f32 %v5639, %v6025
      %v6129 = vadd.f32 %v5640, %v6028
      %v6130 = vadd.f32 %v5641, %v6030
      %v6131 = vadd.f32 %v5642, %v6033
      %v6132 = vadd.f32 %v5643, %v6035
      %v6133 = vadd.f32 %v5644, %v6038
      %v6134 = vadd.f32 %v5645, %v6040
      %v6135 = vadd.f32 %v5646, %v6043
      %v6136 = vadd.f32 %v5647, %v6045
      %v6137 = vadd.f32 %v5648, %v6048
      %v6138 = vadd.f32 %v5649, %v6050
      %v6139 = vadd.f32 %v5650, %v6053
      %v6140 = vadd.f32 %v5651, %v6055
      %v6141 = vadd.f32 %v5652, %v6058
      %v6142 = vadd.f32 %v5653, %v6060
      %v6143 = vadd.f32 %v5654, %v6063
      %v6144 = vadd.f32 %v5655, %v6065
      %v6145 = vadd.f32 %v5656, %v6068
      %v6146 = vadd.f32 %v5657, %v6070
      %v6147 = vadd.f32 %v5658, %v6073
      %v6148 = vadd.f32 %v5659, %v6075
      %v6149 = vadd.f32 %v5660, %v6078
      %v6150 = vadd.f32 %v5661, %v6080
      %v6151 = vadd.f32 %v5662, %v6083
      %v6152 = vadd.f32 %v5663, %v6085
      %v6153 = vadd.f32 %v5664, %v6088
      %v6154 = vadd.f32 %v5665, %v6090
      %v6155 = vlaneseq
      %v6156 = vshrl.u32 %v6155, 7
      %v6157 = vsub.s32 3, %v6156
      %v6158 = vrot.slane %v234, %v6157
      %v6159 = vmul.f32 %v244, %v6158
      %v6160 = vmul.f32 %v245, %v6158
      %v6161 = vmul.f32 %v246, %v6158
      %v6162 = vmul.f32 %v247, %v6158
      %v6163 = vmul.f32 %v248, %v6158
      %v6164 = vmul.f32 %v249, %v6158
      %v6165 = vmul.f32 %v250, %v6158
      %v6166 = vmul.f32 %v251, %v6158
      %v6167 = vmul.f32 %v252, %v6158
      %v6168 = vmul.f32 %v253, %v6158
      %v6169 = vmul.f32 %v254, %v6158
      %v6170 = vmul.f32 %v255, %v6158
      %v6171 = vmul.f32 %v256, %v6158
      %v6172 = vmul.f32 %v257, %v6158
      %v6173 = vmul.f32 %v258, %v6158
      %v6174 = vmul.f32 %v259, %v6158
      %v6175 = vmul.f32 %v260, %v6158
      %v6176 = vmul.f32 %v261, %v6158
      %v6177 = vmul.f32 %v262, %v6158
      %v6178 = vmul.f32 %v263, %v6158
      %v6179 = vmul.f32 %v264, %v6158
      %v6180 = vmul.f32 %v265, %v6158
      %v6181 = vmul.f32 %v266, %v6158
      %v6182 = vmul.f32 %v267, %v6158
      %v6183 = vmul.f32 %v268, %v6158
      %v6184 = vmul.f32 %v269, %v6158
      %v6185 = vmul.f32 %v270, %v6158
      %v6186 = vmul.f32 %v271, %v6158
      %v6187 = vmul.f32 %v272, %v6158
      %v6188 = vmul.f32 %v273, %v6158
      %v6189 = vmul.f32 %v274, %v6158
      %v6190 = vmul.f32 %v275, %v6158
      %v6191 = vmul.f32 %v276, %v6158
      %v6192 = vmul.f32 %v277, %v6158
      %v6193 = vmul.f32 %v278, %v6158
      %v6194 = vmul.f32 %v279, %v6158
      %v6195 = vmul.f32 %v280, %v6158
      %v6196 = vmul.f32 %v281, %v6158
      %v6197 = vmul.f32 %v282, %v6158
      %v6198 = vmul.f32 %v283, %v6158
      %v6199 = vmul.f32 %v284, %v6158
      %v6200 = vmul.f32 %v285, %v6158
      %v6201 = vmul.f32 %v286, %v6158
      %v6202 = vmul.f32 %v287, %v6158
      %v6203 = vmul.f32 %v288, %v6158
      %v6204 = vmul.f32 %v289, %v6158
      %v6205 = vmul.f32 %v290, %v6158
      %v6206 = vmul.f32 %v291, %v6158
      %v6255 = vrot.slane %v6159, 4
      %v6256 = vrot.slane %v6160, 4
      %v6257 = vsel %vm6010, %v6255, %v6256
      %v6258 = vrot.slane %v6161, 4
      %v6259 = vsel %vm6010, %v6256, %v6258
      %v6260 = vrot.slane %v6162, 4
      %v6261 = vrot.slane %v6163, 4
      %v6262 = vsel %vm6010, %v6260, %v6261
      %v6263 = vrot.slane %v6164, 4
      %v6264 = vsel %vm6010, %v6261, %v6263
      %v6265 = vrot.slane %v6165, 4
      %v6266 = vrot.slane %v6166, 4
      %v6267 = vsel %vm6010, %v6265, %v6266
      %v6268 = vrot.slane %v6167, 4
      %v6269 = vsel %vm6010, %v6266, %v6268
      %v6270 = vrot.slane %v6168, 4
      %v6271 = vrot.slane %v6169, 4
      %v6272 = vsel %vm6010, %v6270, %v6271
      %v6273 = vrot.slane %v6170, 4
      %v6274 = vsel %vm6010, %v6271, %v6273
      %v6275 = vrot.slane %v6171, 4
      %v6276 = vrot.slane %v6172, 4
      %v6277 = vsel %vm6010, %v6275, %v6276
      %v6278 = vrot.slane %v6173, 4
      %v6279 = vsel %vm6010, %v6276, %v6278
      %v6280 = vrot.slane %v6174, 4
      %v6281 = vrot.slane %v6175, 4
      %v6282 = vsel %vm6010, %v6280, %v6281
      %v6283 = vrot.slane %v6176, 4
      %v6284 = vsel %vm6010, %v6281, %v6283
      %v6285 = vrot.slane %v6177, 4
      %v6286 = vrot.slane %v6178, 4
      %v6287 = vsel %vm6010, %v6285, %v6286
      %v6288 = vrot.slane %v6179, 4
      %v6289 = vsel %vm6010, %v6286, %v6288
      %v6290 = vrot.slane %v6180, 4
      %v6291 = vrot.slane %v6181, 4
      %v6292 = vsel %vm6010, %v6290, %v6291
      %v6293 = vrot.slane %v6182, 4
      %v6294 = vsel %vm6010, %v6291, %v6293
      %v6295 = vrot.slane %v6183, 4
      %v6296 = vrot.slane %v6184, 4
      %v6297 = vsel %vm6010, %v6295, %v6296
      %v6298 = vrot.slane %v6185, 4
      %v6299 = vsel %vm6010, %v6296, %v6298
      %v6300 = vrot.slane %v6186, 4
      %v6301 = vrot.slane %v6187, 4
      %v6302 = vsel %vm6010, %v6300, %v6301
      %v6303 = vrot.slane %v6188, 4
      %v6304 = vsel %vm6010, %v6301, %v6303
      %v6305 = vrot.slane %v6189, 4
      %v6306 = vrot.slane %v6190, 4
      %v6307 = vsel %vm6010, %v6305, %v6306
      %v6308 = vrot.slane %v6191, 4
      %v6309 = vsel %vm6010, %v6306, %v6308
      %v6310 = vrot.slane %v6192, 4
      %v6311 = vrot.slane %v6193, 4
      %v6312 = vsel %vm6010, %v6310, %v6311
      %v6313 = vrot.slane %v6194, 4
      %v6314 = vsel %vm6010, %v6311, %v6313
      %v6315 = vrot.slane %v6195, 4
      %v6316 = vrot.slane %v6196, 4
      %v6317 = vsel %vm6010, %v6315, %v6316
      %v6318 = vrot.slane %v6197, 4
      %v6319 = vsel %vm6010, %v6316, %v6318
      %v6320 = vrot.slane %v6198, 4
      %v6321 = vrot.slane %v6199, 4
      %v6322 = vsel %vm6010, %v6320, %v6321
      %v6323 = vrot.slane %v6200, 4
      %v6324 = vsel %vm6010, %v6321, %v6323
      %v6325 = vrot.slane %v6201, 4
      %v6326 = vrot.slane %v6202, 4
      %v6327 = vsel %vm6010, %v6325, %v6326
      %v6328 = vrot.slane %v6203, 4
      %v6329 = vsel %vm6010, %v6326, %v6328
      %v6330 = vrot.slane %v6204, 4
      %v6331 = vrot.slane %v6205, 4
      %v6332 = vsel %vm6010, %v6330, %v6331
      %v6333 = vrot.slane %v6206, 4
      %v6334 = vsel %vm6010, %v6331, %v6333
      %v6367 = vadd.f32 %v5878, %v6257
      %v6368 = vadd.f32 %v5879, %v6259
      %v6369 = vadd.f32 %v5880, %v6262
      %v6370 = vadd.f32 %v5881, %v6264
      %v6371 = vadd.f32 %v5882, %v6267
      %v6372 = vadd.f32 %v5883, %v6269
      %v6373 = vadd.f32 %v5884, %v6272
      %v6374 = vadd.f32 %v5885, %v6274
      %v6375 = vadd.f32 %v5886, %v6277
      %v6376 = vadd.f32 %v5887, %v6279
      %v6377 = vadd.f32 %v5888, %v6282
      %v6378 = vadd.f32 %v5889, %v6284
      %v6379 = vadd.f32 %v5890, %v6287
      %v6380 = vadd.f32 %v5891, %v6289
      %v6381 = vadd.f32 %v5892, %v6292
      %v6382 = vadd.f32 %v5893, %v6294
      %v6383 = vadd.f32 %v5894, %v6297
      %v6384 = vadd.f32 %v5895, %v6299
      %v6385 = vadd.f32 %v5896, %v6302
      %v6386 = vadd.f32 %v5897, %v6304
      %v6387 = vadd.f32 %v5898, %v6307
      %v6388 = vadd.f32 %v5899, %v6309
      %v6389 = vadd.f32 %v5900, %v6312
      %v6390 = vadd.f32 %v5901, %v6314
      %v6391 = vadd.f32 %v5902, %v6317
      %v6392 = vadd.f32 %v5903, %v6319
      %v6393 = vadd.f32 %v5904, %v6322
      %v6394 = vadd.f32 %v5905, %v6324
      %v6395 = vadd.f32 %v5906, %v6327
      %v6396 = vadd.f32 %v5907, %v6329
      %v6397 = vadd.f32 %v5908, %v6332
      %v6398 = vadd.f32 %v5909, %v6334
      %v6399 = vlaneseq
      %v6400 = vshrl.u32 %v6399, 7
      %v6401 = vsub.s32 2, %v6400
      %v6402 = vrot.slane %v235, %v6401
      %v6403 = vmul.f32 %v247, %v6402
      %v6404 = vmul.f32 %v248, %v6402
      %v6405 = vmul.f32 %v249, %v6402
      %v6406 = vmul.f32 %v250, %v6402
      %v6407 = vmul.f32 %v251, %v6402
      %v6408 = vmul.f32 %v252, %v6402
      %v6409 = vmul.f32 %v253, %v6402
      %v6410 = vmul.f32 %v254, %v6402
      %v6411 = vmul.f32 %v255, %v6402
      %v6412 = vmul.f32 %v256, %v6402
      %v6413 = vmul.f32 %v257, %v6402
      %v6414 = vmul.f32 %v258, %v6402
      %v6415 = vmul.f32 %v259, %v6402
      %v6416 = vmul.f32 %v260, %v6402
      %v6417 = vmul.f32 %v261, %v6402
      %v6418 = vmul.f32 %v262, %v6402
      %v6419 = vmul.f32 %v263, %v6402
      %v6420 = vmul.f32 %v264, %v6402
      %v6421 = vmul.f32 %v265, %v6402
      %v6422 = vmul.f32 %v266, %v6402
      %v6423 = vmul.f32 %v267, %v6402
      %v6424 = vmul.f32 %v268, %v6402
      %v6425 = vmul.f32 %v269, %v6402
      %v6426 = vmul.f32 %v270, %v6402
      %v6427 = vmul.f32 %v271, %v6402
      %v6428 = vmul.f32 %v272, %v6402
      %v6429 = vmul.f32 %v273, %v6402
      %v6430 = vmul.f32 %v274, %v6402
      %v6431 = vmul.f32 %v275, %v6402
      %v6432 = vmul.f32 %v276, %v6402
      %v6433 = vmul.f32 %v277, %v6402
      %v6434 = vmul.f32 %v278, %v6402
      %v6435 = vmul.f32 %v279, %v6402
      %v6436 = vmul.f32 %v280, %v6402
      %v6437 = vmul.f32 %v281, %v6402
      %v6438 = vmul.f32 %v282, %v6402
      %v6439 = vmul.f32 %v283, %v6402
      %v6440 = vmul.f32 %v284, %v6402
      %v6441 = vmul.f32 %v285, %v6402
      %v6442 = vmul.f32 %v286, %v6402
      %v6443 = vmul.f32 %v287, %v6402
      %v6444 = vmul.f32 %v288, %v6402
      %v6445 = vmul.f32 %v289, %v6402
      %v6446 = vmul.f32 %v290, %v6402
      %v6447 = vmul.f32 %v291, %v6402
      %v6448 = vmul.f32 %v292, %v6402
      %v6449 = vmul.f32 %v293, %v6402
      %v6450 = vmul.f32 %v294, %v6402
      %v6499 = vrot.slane %v6403, 4
      %v6500 = vrot.slane %v6404, 4
      %v6501 = vsel %vm6010, %v6499, %v6500
      %v6502 = vrot.slane %v6405, 4
      %v6503 = vsel %vm6010, %v6500, %v6502
      %v6504 = vrot.slane %v6406, 4
      %v6505 = vrot.slane %v6407, 4
      %v6506 = vsel %vm6010, %v6504, %v6505
      %v6507 = vrot.slane %v6408, 4
      %v6508 = vsel %vm6010, %v6505, %v6507
      %v6509 = vrot.slane %v6409, 4
      %v6510 = vrot.slane %v6410, 4
      %v6511 = vsel %vm6010, %v6509, %v6510
      %v6512 = vrot.slane %v6411, 4
      %v6513 = vsel %vm6010, %v6510, %v6512
      %v6514 = vrot.slane %v6412, 4
      %v6515 = vrot.slane %v6413, 4
      %v6516 = vsel %vm6010, %v6514, %v6515
      %v6517 = vrot.slane %v6414, 4
      %v6518 = vsel %vm6010, %v6515, %v6517
      %v6519 = vrot.slane %v6415, 4
      %v6520 = vrot.slane %v6416, 4
      %v6521 = vsel %vm6010, %v6519, %v6520
      %v6522 = vrot.slane %v6417, 4
      %v6523 = vsel %vm6010, %v6520, %v6522
      %v6524 = vrot.slane %v6418, 4
      %v6525 = vrot.slane %v6419, 4
      %v6526 = vsel %vm6010, %v6524, %v6525
      %v6527 = vrot.slane %v6420, 4
      %v6528 = vsel %vm6010, %v6525, %v6527
      %v6529 = vrot.slane %v6421, 4
      %v6530 = vrot.slane %v6422, 4
      %v6531 = vsel %vm6010, %v6529, %v6530
      %v6532 = vrot.slane %v6423, 4
      %v6533 = vsel %vm6010, %v6530, %v6532
      %v6534 = vrot.slane %v6424, 4
      %v6535 = vrot.slane %v6425, 4
      %v6536 = vsel %vm6010, %v6534, %v6535
      %v6537 = vrot.slane %v6426, 4
      %v6538 = vsel %vm6010, %v6535, %v6537
      %v6539 = vrot.slane %v6427, 4
      %v6540 = vrot.slane %v6428, 4
      %v6541 = vsel %vm6010, %v6539, %v6540
      %v6542 = vrot.slane %v6429, 4
      %v6543 = vsel %vm6010, %v6540, %v6542
      %v6544 = vrot.slane %v6430, 4
      %v6545 = vrot.slane %v6431, 4
      %v6546 = vsel %vm6010, %v6544, %v6545
      %v6547 = vrot.slane %v6432, 4
      %v6548 = vsel %vm6010, %v6545, %v6547
      %v6549 = vrot.slane %v6433, 4
      %v6550 = vrot.slane %v6434, 4
      %v6551 = vsel %vm6010, %v6549, %v6550
      %v6552 = vrot.slane %v6435, 4
      %v6553 = vsel %vm6010, %v6550, %v6552
      %v6554 = vrot.slane %v6436, 4
      %v6555 = vrot.slane %v6437, 4
      %v6556 = vsel %vm6010, %v6554, %v6555
      %v6557 = vrot.slane %v6438, 4
      %v6558 = vsel %vm6010, %v6555, %v6557
      %v6559 = vrot.slane %v6439, 4
      %v6560 = vrot.slane %v6440, 4
      %v6561 = vsel %vm6010, %v6559, %v6560
      %v6562 = vrot.slane %v6441, 4
      %v6563 = vsel %vm6010, %v6560, %v6562
      %v6564 = vrot.slane %v6442, 4
      %v6565 = vrot.slane %v6443, 4
      %v6566 = vsel %vm6010, %v6564, %v6565
      %v6567 = vrot.slane %v6444, 4
      %v6568 = vsel %vm6010, %v6565, %v6567
      %v6569 = vrot.slane %v6445, 4
      %v6570 = vrot.slane %v6446, 4
      %v6571 = vsel %vm6010, %v6569, %v6570
      %v6572 = vrot.slane %v6447, 4
      %v6573 = vsel %vm6010, %v6570, %v6572
      %v6574 = vrot.slane %v6448, 4
      %v6575 = vrot.slane %v6449, 4
      %v6576 = vsel %vm6010, %v6574, %v6575
      %v6577 = vrot.slane %v6450, 4
      %v6578 = vsel %vm6010, %v6575, %v6577
      %v6611 = vadd.f32 %v6123, %v6501
      %v6612 = vadd.f32 %v6124, %v6503
      %v6613 = vadd.f32 %v6125, %v6506
      %v6614 = vadd.f32 %v6126, %v6508
      %v6615 = vadd.f32 %v6127, %v6511
      %v6616 = vadd.f32 %v6128, %v6513
      %v6617 = vadd.f32 %v6129, %v6516
      %v6618 = vadd.f32 %v6130, %v6518
      %v6619 = vadd.f32 %v6131, %v6521
      %v6620 = vadd.f32 %v6132, %v6523
      %v6621 = vadd.f32 %v6133, %v6526
      %v6622 = vadd.f32 %v6134, %v6528
      %v6623 = vadd.f32 %v6135, %v6531
      %v6624 = vadd.f32 %v6136, %v6533
      %v6625 = vadd.f32 %v6137, %v6536
      %v6626 = vadd.f32 %v6138, %v6538
      %v6627 = vadd.f32 %v6139, %v6541
      %v6628 = vadd.f32 %v6140, %v6543
      %v6629 = vadd.f32 %v6141, %v6546
      %v6630 = vadd.f32 %v6142, %v6548
      %v6631 = vadd.f32 %v6143, %v6551
      %v6632 = vadd.f32 %v6144, %v6553
      %v6633 = vadd.f32 %v6145, %v6556
      %v6634 = vadd.f32 %v6146, %v6558
      %v6635 = vadd.f32 %v6147, %v6561
      %v6636 = vadd.f32 %v6148, %v6563
      %v6637 = vadd.f32 %v6149, %v6566
      %v6638 = vadd.f32 %v6150, %v6568
      %v6639 = vadd.f32 %v6151, %v6571
      %v6640 = vadd.f32 %v6152, %v6573
      %v6641 = vadd.f32 %v6153, %v6576
      %v6642 = vadd.f32 %v6154, %v6578
      %v6643 = vlaneseq
      %v6644 = vshrl.u32 %v6643, 7
      %v6645 = vsub.s32 1, %v6644
      %v6646 = vrot.slane %v236, %v6645
      %v6647 = vmul.f32 %v250, %v6646
      %v6648 = vmul.f32 %v251, %v6646
      %v6649 = vmul.f32 %v252, %v6646
      %v6650 = vmul.f32 %v253, %v6646
      %v6651 = vmul.f32 %v254, %v6646
      %v6652 = vmul.f32 %v255, %v6646
      %v6653 = vmul.f32 %v256, %v6646
      %v6654 = vmul.f32 %v257, %v6646
      %v6655 = vmul.f32 %v258, %v6646
      %v6656 = vmul.f32 %v259, %v6646
      %v6657 = vmul.f32 %v260, %v6646
      %v6658 = vmul.f32 %v261, %v6646
      %v6659 = vmul.f32 %v262, %v6646
      %v6660 = vmul.f32 %v263, %v6646
      %v6661 = vmul.f32 %v264, %v6646
      %v6662 = vmul.f32 %v265, %v6646
      %v6663 = vmul.f32 %v266, %v6646
      %v6664 = vmul.f32 %v267, %v6646
      %v6665 = vmul.f32 %v268, %v6646
      %v6666 = vmul.f32 %v269, %v6646
      %v6667 = vmul.f32 %v270, %v6646
      %v6668 = vmul.f32 %v271, %v6646
      %v6669 = vmul.f32 %v272, %v6646
      %v6670 = vmul.f32 %v273, %v6646
      %v6671 = vmul.f32 %v274, %v6646
      %v6672 = vmul.f32 %v275, %v6646
      %v6673 = vmul.f32 %v276, %v6646
      %v6674 = vmul.f32 %v277, %v6646
      %v6675 = vmul.f32 %v278, %v6646
      %v6676 = vmul.f32 %v279, %v6646
      %v6677 = vmul.f32 %v280, %v6646
      %v6678 = vmul.f32 %v281, %v6646
      %v6679 = vmul.f32 %v282, %v6646
      %v6680 = vmul.f32 %v283, %v6646
      %v6681 = vmul.f32 %v284, %v6646
      %v6682 = vmul.f32 %v285, %v6646
      %v6683 = vmul.f32 %v286, %v6646
      %v6684 = vmul.f32 %v287, %v6646
      %v6685 = vmul.f32 %v288, %v6646
      %v6686 = vmul.f32 %v289, %v6646
      %v6687 = vmul.f32 %v290, %v6646
      %v6688 = vmul.f32 %v291, %v6646
      %v6689 = vmul.f32 %v292, %v6646
      %v6690 = vmul.f32 %v293, %v6646
      %v6691 = vmul.f32 %v294, %v6646
      %v6692 = vmul.f32 %v295, %v6646
      %v6693 = vmul.f32 %v296, %v6646
      %v6694 = vmul.f32 %v297, %v6646
      %v6743 = vrot.slane %v6647, 4
      %v6744 = vrot.slane %v6648, 4
      %v6745 = vsel %vm6010, %v6743, %v6744
      %v6746 = vrot.slane %v6649, 4
      %v6747 = vsel %vm6010, %v6744, %v6746
      %v6748 = vrot.slane %v6650, 4
      %v6749 = vrot.slane %v6651, 4
      %v6750 = vsel %vm6010, %v6748, %v6749
      %v6751 = vrot.slane %v6652, 4
      %v6752 = vsel %vm6010, %v6749, %v6751
      %v6753 = vrot.slane %v6653, 4
      %v6754 = vrot.slane %v6654, 4
      %v6755 = vsel %vm6010, %v6753, %v6754
      %v6756 = vrot.slane %v6655, 4
      %v6757 = vsel %vm6010, %v6754, %v6756
      %v6758 = vrot.slane %v6656, 4
      %v6759 = vrot.slane %v6657, 4
      %v6760 = vsel %vm6010, %v6758, %v6759
      %v6761 = vrot.slane %v6658, 4
      %v6762 = vsel %vm6010, %v6759, %v6761
      %v6763 = vrot.slane %v6659, 4
      %v6764 = vrot.slane %v6660, 4
      %v6765 = vsel %vm6010, %v6763, %v6764
      %v6766 = vrot.slane %v6661, 4
      %v6767 = vsel %vm6010, %v6764, %v6766
      %v6768 = vrot.slane %v6662, 4
      %v6769 = vrot.slane %v6663, 4
      %v6770 = vsel %vm6010, %v6768, %v6769
      %v6771 = vrot.slane %v6664, 4
      %v6772 = vsel %vm6010, %v6769, %v6771
      %v6773 = vrot.slane %v6665, 4
      %v6774 = vrot.slane %v6666, 4
      %v6775 = vsel %vm6010, %v6773, %v6774
      %v6776 = vrot.slane %v6667, 4
      %v6777 = vsel %vm6010, %v6774, %v6776
      %v6778 = vrot.slane %v6668, 4
      %v6779 = vrot.slane %v6669, 4
      %v6780 = vsel %vm6010, %v6778, %v6779
      %v6781 = vrot.slane %v6670, 4
      %v6782 = vsel %vm6010, %v6779, %v6781
      %v6783 = vrot.slane %v6671, 4
      %v6784 = vrot.slane %v6672, 4
      %v6785 = vsel %vm6010, %v6783, %v6784
      %v6786 = vrot.slane %v6673, 4
      %v6787 = vsel %vm6010, %v6784, %v6786
      %v6788 = vrot.slane %v6674, 4
      %v6789 = vrot.slane %v6675, 4
      %v6790 = vsel %vm6010, %v6788, %v6789
      %v6791 = vrot.slane %v6676, 4
      %v6792 = vsel %vm6010, %v6789, %v6791
      %v6793 = vrot.slane %v6677, 4
      %v6794 = vrot.slane %v6678, 4
      %v6795 = vsel %vm6010, %v6793, %v6794
      %v6796 = vrot.slane %v6679, 4
      %v6797 = vsel %vm6010, %v6794, %v6796
      %v6798 = vrot.slane %v6680, 4
      %v6799 = vrot.slane %v6681, 4
      %v6800 = vsel %vm6010, %v6798, %v6799
      %v6801 = vrot.slane %v6682, 4
      %v6802 = vsel %vm6010, %v6799, %v6801
      %v6803 = vrot.slane %v6683, 4
      %v6804 = vrot.slane %v6684, 4
      %v6805 = vsel %vm6010, %v6803, %v6804
      %v6806 = vrot.slane %v6685, 4
      %v6807 = vsel %vm6010, %v6804, %v6806
      %v6808 = vrot.slane %v6686, 4
      %v6809 = vrot.slane %v6687, 4
      %v6810 = vsel %vm6010, %v6808, %v6809
      %v6811 = vrot.slane %v6688, 4
      %v6812 = vsel %vm6010, %v6809, %v6811
      %v6813 = vrot.slane %v6689, 4
      %v6814 = vrot.slane %v6690, 4
      %v6815 = vsel %vm6010, %v6813, %v6814
      %v6816 = vrot.slane %v6691, 4
      %v6817 = vsel %vm6010, %v6814, %v6816
      %v6818 = vrot.slane %v6692, 4
      %v6819 = vrot.slane %v6693, 4
      %v6820 = vsel %vm6010, %v6818, %v6819
      %v6821 = vrot.slane %v6694, 4
      %v6822 = vsel %vm6010, %v6819, %v6821
      %v6855 = vadd.f32 %v6367, %v6745
      %v6856 = vadd.f32 %v6368, %v6747
      %v6857 = vadd.f32 %v6369, %v6750
      %v6858 = vadd.f32 %v6370, %v6752
      %v6859 = vadd.f32 %v6371, %v6755
      %v6860 = vadd.f32 %v6372, %v6757
      %v6861 = vadd.f32 %v6373, %v6760
      %v6862 = vadd.f32 %v6374, %v6762
      %v6863 = vadd.f32 %v6375, %v6765
      %v6864 = vadd.f32 %v6376, %v6767
      %v6865 = vadd.f32 %v6377, %v6770
      %v6866 = vadd.f32 %v6378, %v6772
      %v6867 = vadd.f32 %v6379, %v6775
      %v6868 = vadd.f32 %v6380, %v6777
      %v6869 = vadd.f32 %v6381, %v6780
      %v6870 = vadd.f32 %v6382, %v6782
      %v6871 = vadd.f32 %v6383, %v6785
      %v6872 = vadd.f32 %v6384, %v6787
      %v6873 = vadd.f32 %v6385, %v6790
      %v6874 = vadd.f32 %v6386, %v6792
      %v6875 = vadd.f32 %v6387, %v6795
      %v6876 = vadd.f32 %v6388, %v6797
      %v6877 = vadd.f32 %v6389, %v6800
      %v6878 = vadd.f32 %v6390, %v6802
      %v6879 = vadd.f32 %v6391, %v6805
      %v6880 = vadd.f32 %v6392, %v6807
      %v6881 = vadd.f32 %v6393, %v6810
      %v6882 = vadd.f32 %v6394, %v6812
      %v6883 = vadd.f32 %v6395, %v6815
      %v6884 = vadd.f32 %v6396, %v6817
      %v6885 = vadd.f32 %v6397, %v6820
      %v6886 = vadd.f32 %v6398, %v6822
      %v6887 = vlaneseq
      %v6888 = vshrl.u32 %v6887, 7
      %v6889 = vsub.s32 0, %v6888
      %v6890 = vrot.slane %v237, %v6889
      %v6891 = vmul.f32 %v253, %v6890
      %v6892 = vmul.f32 %v254, %v6890
      %v6893 = vmul.f32 %v255, %v6890
      %v6894 = vmul.f32 %v256, %v6890
      %v6895 = vmul.f32 %v257, %v6890
      %v6896 = vmul.f32 %v258, %v6890
      %v6897 = vmul.f32 %v259, %v6890
      %v6898 = vmul.f32 %v260, %v6890
      %v6899 = vmul.f32 %v261, %v6890
      %v6900 = vmul.f32 %v262, %v6890
      %v6901 = vmul.f32 %v263, %v6890
      %v6902 = vmul.f32 %v264, %v6890
      %v6903 = vmul.f32 %v265, %v6890
      %v6904 = vmul.f32 %v266, %v6890
      %v6905 = vmul.f32 %v267, %v6890
      %v6906 = vmul.f32 %v268, %v6890
      %v6907 = vmul.f32 %v269, %v6890
      %v6908 = vmul.f32 %v270, %v6890
      %v6909 = vmul.f32 %v271, %v6890
      %v6910 = vmul.f32 %v272, %v6890
      %v6911 = vmul.f32 %v273, %v6890
      %v6912 = vmul.f32 %v274, %v6890
      %v6913 = vmul.f32 %v275, %v6890
      %v6914 = vmul.f32 %v276, %v6890
      %v6915 = vmul.f32 %v277, %v6890
      %v6916 = vmul.f32 %v278, %v6890
      %v6917 = vmul.f32 %v279, %v6890
      %v6918 = vmul.f32 %v280, %v6890
      %v6919 = vmul.f32 %v281, %v6890
      %v6920 = vmul.f32 %v282, %v6890
      %v6921 = vmul.f32 %v283, %v6890
      %v6922 = vmul.f32 %v284, %v6890
      %v6923 = vmul.f32 %v285, %v6890
      %v6924 = vmul.f32 %v286, %v6890
      %v6925 = vmul.f32 %v287, %v6890
      %v6926 = vmul.f32 %v288, %v6890
      %v6927 = vmul.f32 %v289, %v6890
      %v6928 = vmul.f32 %v290, %v6890
      %v6929 = vmul.f32 %v291, %v6890
      %v6930 = vmul.f32 %v292, %v6890
      %v6931 = vmul.f32 %v293, %v6890
      %v6932 = vmul.f32 %v294, %v6890
      %v6933 = vmul.f32 %v295, %v6890
      %v6934 = vmul.f32 %v296, %v6890
      %v6935 = vmul.f32 %v297, %v6890
      %v6936 = vmul.f32 %v298, %v6890
      %v6937 = vmul.f32 %v299, %v6890
      %v6938 = vmul.f32 %v300, %v6890
      %v6987 = vrot.slane %v6891, 4
      %v6988 = vrot.slane %v6892, 4
      %v6989 = vsel %vm6010, %v6987, %v6988
      %v6990 = vrot.slane %v6893, 4
      %v6991 = vsel %vm6010, %v6988, %v6990
      %v6992 = vrot.slane %v6894, 4
      %v6993 = vrot.slane %v6895, 4
      %v6994 = vsel %vm6010, %v6992, %v6993
      %v6995 = vrot.slane %v6896, 4
      %v6996 = vsel %vm6010, %v6993, %v6995
      %v6997 = vrot.slane %v6897, 4
      %v6998 = vrot.slane %v6898, 4
      %v6999 = vsel %vm6010, %v6997, %v6998
      %v7000 = vrot.slane %v6899, 4
      %v7001 = vsel %vm6010, %v6998, %v7000
      %v7002 = vrot.slane %v6900, 4
      %v7003 = vrot.slane %v6901, 4
      %v7004 = vsel %vm6010, %v7002, %v7003
      %v7005 = vrot.slane %v6902, 4
      %v7006 = vsel %vm6010, %v7003, %v7005
      %v7007 = vrot.slane %v6903, 4
      %v7008 = vrot.slane %v6904, 4
      %v7009 = vsel %vm6010, %v7007, %v7008
      %v7010 = vrot.slane %v6905, 4
      %v7011 = vsel %vm6010, %v7008, %v7010
      %v7012 = vrot.slane %v6906, 4
      %v7013 = vrot.slane %v6907, 4
      %v7014 = vsel %vm6010, %v7012, %v7013
      %v7015 = vrot.slane %v6908, 4
      %v7016 = vsel %vm6010, %v7013, %v7015
      %v7017 = vrot.slane %v6909, 4
      %v7018 = vrot.slane %v6910, 4
      %v7019 = vsel %vm6010, %v7017, %v7018
      %v7020 = vrot.slane %v6911, 4
      %v7021 = vsel %vm6010, %v7018, %v7020
      %v7022 = vrot.slane %v6912, 4
      %v7023 = vrot.slane %v6913, 4
      %v7024 = vsel %vm6010, %v7022, %v7023
      %v7025 = vrot.slane %v6914, 4
      %v7026 = vsel %vm6010, %v7023, %v7025
      %v7027 = vrot.slane %v6915, 4
      %v7028 = vrot.slane %v6916, 4
      %v7029 = vsel %vm6010, %v7027, %v7028
      %v7030 = vrot.slane %v6917, 4
      %v7031 = vsel %vm6010, %v7028, %v7030
      %v7032 = vrot.slane %v6918, 4
      %v7033 = vrot.slane %v6919, 4
      %v7034 = vsel %vm6010, %v7032, %v7033
      %v7035 = vrot.slane %v6920, 4
      %v7036 = vsel %vm6010, %v7033, %v7035
      %v7037 = vrot.slane %v6921, 4
      %v7038 = vrot.slane %v6922, 4
      %v7039 = vsel %vm6010, %v7037, %v7038
      %v7040 = vrot.slane %v6923, 4
      %v7041 = vsel %vm6010, %v7038, %v7040
      %v7042 = vrot.slane %v6924, 4
      %v7043 = vrot.slane %v6925, 4
      %v7044 = vsel %vm6010, %v7042, %v7043
      %v7045 = vrot.slane %v6926, 4
      %v7046 = vsel %vm6010, %v7043, %v7045
      %v7047 = vrot.slane %v6927, 4
      %v7048 = vrot.slane %v6928, 4
      %v7049 = vsel %vm6010, %v7047, %v7048
      %v7050 = vrot.slane %v6929, 4
      %v7051 = vsel %vm6010, %v7048, %v7050
      %v7052 = vrot.slane %v6930, 4
      %v7053 = vrot.slane %v6931, 4
      %v7054 = vsel %vm6010, %v7052, %v7053
      %v7055 = vrot.slane %v6932, 4
      %v7056 = vsel %vm6010, %v7053, %v7055
      %v7057 = vrot.slane %v6933, 4
      %v7058 = vrot.slane %v6934, 4
      %v7059 = vsel %vm6010, %v7057, %v7058
      %v7060 = vrot.slane %v6935, 4
      %v7061 = vsel %vm6010, %v7058, %v7060
      %v7062 = vrot.slane %v6936, 4
      %v7063 = vrot.slane %v6937, 4
      %v7064 = vsel %vm6010, %v7062, %v7063
      %v7065 = vrot.slane %v6938, 4
      %v7066 = vsel %vm6010, %v7063, %v7065
      %v7099 = vadd.f32 %v6611, %v6989
      %v7100 = vadd.f32 %v6612, %v6991
      %v7101 = vadd.f32 %v6613, %v6994
      %v7102 = vadd.f32 %v6614, %v6996
      %v7103 = vadd.f32 %v6615, %v6999
      %v7104 = vadd.f32 %v6616, %v7001
      %v7105 = vadd.f32 %v6617, %v7004
      %v7106 = vadd.f32 %v6618, %v7006
      %v7107 = vadd.f32 %v6619, %v7009
      %v7108 = vadd.f32 %v6620, %v7011
      %v7109 = vadd.f32 %v6621, %v7014
      %v7110 = vadd.f32 %v6622, %v7016
      %v7111 = vadd.f32 %v6623, %v7019
      %v7112 = vadd.f32 %v6624, %v7021
      %v7113 = vadd.f32 %v6625, %v7024
      %v7114 = vadd.f32 %v6626, %v7026
      %v7115 = vadd.f32 %v6627, %v7029
      %v7116 = vadd.f32 %v6628, %v7031
      %v7117 = vadd.f32 %v6629, %v7034
      %v7118 = vadd.f32 %v6630, %v7036
      %v7119 = vadd.f32 %v6631, %v7039
      %v7120 = vadd.f32 %v6632, %v7041
      %v7121 = vadd.f32 %v6633, %v7044
      %v7122 = vadd.f32 %v6634, %v7046
      %v7123 = vadd.f32 %v6635, %v7049
      %v7124 = vadd.f32 %v6636, %v7051
      %v7125 = vadd.f32 %v6637, %v7054
      %v7126 = vadd.f32 %v6638, %v7056
      %v7127 = vadd.f32 %v6639, %v7059
      %v7128 = vadd.f32 %v6640, %v7061
      %v7129 = vadd.f32 %v6641, %v7064
      %v7130 = vadd.f32 %v6642, %v7066
      %v7131 = vlaneseq
      %v7132 = vshrl.u32 %v7131, 7
      %v7133 = vsub.s32 7, %v7132
      %v7134 = vrot.slane %v237, %v7133
      %v7135 = vmul.f32 %v256, %v7134
      %v7136 = vmul.f32 %v257, %v7134
      %v7137 = vmul.f32 %v258, %v7134
      %v7138 = vmul.f32 %v259, %v7134
      %v7139 = vmul.f32 %v260, %v7134
      %v7140 = vmul.f32 %v261, %v7134
      %v7141 = vmul.f32 %v262, %v7134
      %v7142 = vmul.f32 %v263, %v7134
      %v7143 = vmul.f32 %v264, %v7134
      %v7144 = vmul.f32 %v265, %v7134
      %v7145 = vmul.f32 %v266, %v7134
      %v7146 = vmul.f32 %v267, %v7134
      %v7147 = vmul.f32 %v268, %v7134
      %v7148 = vmul.f32 %v269, %v7134
      %v7149 = vmul.f32 %v270, %v7134
      %v7150 = vmul.f32 %v271, %v7134
      %v7151 = vmul.f32 %v272, %v7134
      %v7152 = vmul.f32 %v273, %v7134
      %v7153 = vmul.f32 %v274, %v7134
      %v7154 = vmul.f32 %v275, %v7134
      %v7155 = vmul.f32 %v276, %v7134
      %v7156 = vmul.f32 %v277, %v7134
      %v7157 = vmul.f32 %v278, %v7134
      %v7158 = vmul.f32 %v279, %v7134
      %v7159 = vmul.f32 %v280, %v7134
      %v7160 = vmul.f32 %v281, %v7134
      %v7161 = vmul.f32 %v282, %v7134
      %v7162 = vmul.f32 %v283, %v7134
      %v7163 = vmul.f32 %v284, %v7134
      %v7164 = vmul.f32 %v285, %v7134
      %v7165 = vmul.f32 %v286, %v7134
      %v7166 = vmul.f32 %v287, %v7134
      %v7167 = vmul.f32 %v288, %v7134
      %v7168 = vmul.f32 %v289, %v7134
      %v7169 = vmul.f32 %v290, %v7134
      %v7170 = vmul.f32 %v291, %v7134
      %v7171 = vmul.f32 %v292, %v7134
      %v7172 = vmul.f32 %v293, %v7134
      %v7173 = vmul.f32 %v294, %v7134
      %v7174 = vmul.f32 %v295, %v7134
      %v7175 = vmul.f32 %v296, %v7134
      %v7176 = vmul.f32 %v297, %v7134
      %v7177 = vmul.f32 %v298, %v7134
      %v7178 = vmul.f32 %v299, %v7134
      %v7179 = vmul.f32 %v300, %v7134
      %v7180 = vmul.f32 %v301, %v7134
      %v7181 = vmul.f32 %v302, %v7134
      %v7182 = vmul.f32 %v303, %v7134
      %v7231 = vrot.slane %v7135, 4
      %v7232 = vrot.slane %v7136, 4
      %v7233 = vsel %vm6010, %v7231, %v7232
      %v7234 = vrot.slane %v7137, 4
      %v7235 = vsel %vm6010, %v7232, %v7234
      %v7236 = vrot.slane %v7138, 4
      %v7237 = vrot.slane %v7139, 4
      %v7238 = vsel %vm6010, %v7236, %v7237
      %v7239 = vrot.slane %v7140, 4
      %v7240 = vsel %vm6010, %v7237, %v7239
      %v7241 = vrot.slane %v7141, 4
      %v7242 = vrot.slane %v7142, 4
      %v7243 = vsel %vm6010, %v7241, %v7242
      %v7244 = vrot.slane %v7143, 4
      %v7245 = vsel %vm6010, %v7242, %v7244
      %v7246 = vrot.slane %v7144, 4
      %v7247 = vrot.slane %v7145, 4
      %v7248 = vsel %vm6010, %v7246, %v7247
      %v7249 = vrot.slane %v7146, 4
      %v7250 = vsel %vm6010, %v7247, %v7249
      %v7251 = vrot.slane %v7147, 4
      %v7252 = vrot.slane %v7148, 4
      %v7253 = vsel %vm6010, %v7251, %v7252
      %v7254 = vrot.slane %v7149, 4
      %v7255 = vsel %vm6010, %v7252, %v7254
      %v7256 = vrot.slane %v7150, 4
      %v7257 = vrot.slane %v7151, 4
      %v7258 = vsel %vm6010, %v7256, %v7257
      %v7259 = vrot.slane %v7152, 4
      %v7260 = vsel %vm6010, %v7257, %v7259
      %v7261 = vrot.slane %v7153, 4
      %v7262 = vrot.slane %v7154, 4
      %v7263 = vsel %vm6010, %v7261, %v7262
      %v7264 = vrot.slane %v7155, 4
      %v7265 = vsel %vm6010, %v7262, %v7264
      %v7266 = vrot.slane %v7156, 4
      %v7267 = vrot.slane %v7157, 4
      %v7268 = vsel %vm6010, %v7266, %v7267
      %v7269 = vrot.slane %v7158, 4
      %v7270 = vsel %vm6010, %v7267, %v7269
      %v7271 = vrot.slane %v7159, 4
      %v7272 = vrot.slane %v7160, 4
      %v7273 = vsel %vm6010, %v7271, %v7272
      %v7274 = vrot.slane %v7161, 4
      %v7275 = vsel %vm6010, %v7272, %v7274
      %v7276 = vrot.slane %v7162, 4
      %v7277 = vrot.slane %v7163, 4
      %v7278 = vsel %vm6010, %v7276, %v7277
      %v7279 = vrot.slane %v7164, 4
      %v7280 = vsel %vm6010, %v7277, %v7279
      %v7281 = vrot.slane %v7165, 4
      %v7282 = vrot.slane %v7166, 4
      %v7283 = vsel %vm6010, %v7281, %v7282
      %v7284 = vrot.slane %v7167, 4
      %v7285 = vsel %vm6010, %v7282, %v7284
      %v7286 = vrot.slane %v7168, 4
      %v7287 = vrot.slane %v7169, 4
      %v7288 = vsel %vm6010, %v7286, %v7287
      %v7289 = vrot.slane %v7170, 4
      %v7290 = vsel %vm6010, %v7287, %v7289
      %v7291 = vrot.slane %v7171, 4
      %v7292 = vrot.slane %v7172, 4
      %v7293 = vsel %vm6010, %v7291, %v7292
      %v7294 = vrot.slane %v7173, 4
      %v7295 = vsel %vm6010, %v7292, %v7294
      %v7296 = vrot.slane %v7174, 4
      %v7297 = vrot.slane %v7175, 4
      %v7298 = vsel %vm6010, %v7296, %v7297
      %v7299 = vrot.slane %v7176, 4
      %v7300 = vsel %vm6010, %v7297, %v7299
      %v7301 = vrot.slane %v7177, 4
      %v7302 = vrot.slane %v7178, 4
      %v7303 = vsel %vm6010, %v7301, %v7302
      %v7304 = vrot.slane %v7179, 4
      %v7305 = vsel %vm6010, %v7302, %v7304
      %v7306 = vrot.slane %v7180, 4
      %v7307 = vrot.slane %v7181, 4
      %v7308 = vsel %vm6010, %v7306, %v7307
      %v7309 = vrot.slane %v7182, 4
      %v7310 = vsel %vm6010, %v7307, %v7309
      %v7343 = vadd.f32 %v6855, %v7233
      %v7344 = vadd.f32 %v6856, %v7235
      %v7345 = vadd.f32 %v6857, %v7238
      %v7346 = vadd.f32 %v6858, %v7240
      %v7347 = vadd.f32 %v6859, %v7243
      %v7348 = vadd.f32 %v6860, %v7245
      %v7349 = vadd.f32 %v6861, %v7248
      %v7350 = vadd.f32 %v6862, %v7250
      %v7351 = vadd.f32 %v6863, %v7253
      %v7352 = vadd.f32 %v6864, %v7255
      %v7353 = vadd.f32 %v6865, %v7258
      %v7354 = vadd.f32 %v6866, %v7260
      %v7355 = vadd.f32 %v6867, %v7263
      %v7356 = vadd.f32 %v6868, %v7265
      %v7357 = vadd.f32 %v6869, %v7268
      %v7358 = vadd.f32 %v6870, %v7270
      %v7359 = vadd.f32 %v6871, %v7273
      %v7360 = vadd.f32 %v6872, %v7275
      %v7361 = vadd.f32 %v6873, %v7278
      %v7362 = vadd.f32 %v6874, %v7280
      %v7363 = vadd.f32 %v6875, %v7283
      %v7364 = vadd.f32 %v6876, %v7285
      %v7365 = vadd.f32 %v6877, %v7288
      %v7366 = vadd.f32 %v6878, %v7290
      %v7367 = vadd.f32 %v6879, %v7293
      %v7368 = vadd.f32 %v6880, %v7295
      %v7369 = vadd.f32 %v6881, %v7298
      %v7370 = vadd.f32 %v6882, %v7300
      %v7371 = vadd.f32 %v6883, %v7303
      %v7372 = vadd.f32 %v6884, %v7305
      %v7373 = vadd.f32 %v6885, %v7308
      %v7374 = vadd.f32 %v6886, %v7310
      %v7375 = vlaneseq
      %v7376 = vshrl.u32 %v7375, 7
      %v7377 = vsub.s32 6, %v7376
      %v7378 = vrot.slane %v238, %v7377
      %v7379 = vmul.f32 %v259, %v7378
      %v7380 = vmul.f32 %v260, %v7378
      %v7381 = vmul.f32 %v261, %v7378
      %v7382 = vmul.f32 %v262, %v7378
      %v7383 = vmul.f32 %v263, %v7378
      %v7384 = vmul.f32 %v264, %v7378
      %v7385 = vmul.f32 %v265, %v7378
      %v7386 = vmul.f32 %v266, %v7378
      %v7387 = vmul.f32 %v267, %v7378
      %v7388 = vmul.f32 %v268, %v7378
      %v7389 = vmul.f32 %v269, %v7378
      %v7390 = vmul.f32 %v270, %v7378
      %v7391 = vmul.f32 %v271, %v7378
      %v7392 = vmul.f32 %v272, %v7378
      %v7393 = vmul.f32 %v273, %v7378
      %v7394 = vmul.f32 %v274, %v7378
      %v7395 = vmul.f32 %v275, %v7378
      %v7396 = vmul.f32 %v276, %v7378
      %v7397 = vmul.f32 %v277, %v7378
      %v7398 = vmul.f32 %v278, %v7378
      %v7399 = vmul.f32 %v279, %v7378
      %v7400 = vmul.f32 %v280, %v7378
      %v7401 = vmul.f32 %v281, %v7378
      %v7402 = vmul.f32 %v282, %v7378
      %v7403 = vmul.f32 %v283, %v7378
      %v7404 = vmul.f32 %v284, %v7378
      %v7405 = vmul.f32 %v285, %v7378
      %v7406 = vmul.f32 %v286, %v7378
      %v7407 = vmul.f32 %v287, %v7378
      %v7408 = vmul.f32 %v288, %v7378
      %v7409 = vmul.f32 %v289, %v7378
      %v7410 = vmul.f32 %v290, %v7378
      %v7411 = vmul.f32 %v291, %v7378
      %v7412 = vmul.f32 %v292, %v7378
      %v7413 = vmul.f32 %v293, %v7378
      %v7414 = vmul.f32 %v294, %v7378
      %v7415 = vmul.f32 %v295, %v7378
      %v7416 = vmul.f32 %v296, %v7378
      %v7417 = vmul.f32 %v297, %v7378
      %v7418 = vmul.f32 %v298, %v7378
      %v7419 = vmul.f32 %v299, %v7378
      %v7420 = vmul.f32 %v300, %v7378
      %v7421 = vmul.f32 %v301, %v7378
      %v7422 = vmul.f32 %v302, %v7378
      %v7423 = vmul.f32 %v303, %v7378
      %v7424 = vmul.f32 %v304, %v7378
      %v7425 = vmul.f32 %v305, %v7378
      %v7426 = vmul.f32 %v306, %v7378
      %v7475 = vrot.slane %v7379, 4
      %v7476 = vrot.slane %v7380, 4
      %v7477 = vsel %vm6010, %v7475, %v7476
      %v7478 = vrot.slane %v7381, 4
      %v7479 = vsel %vm6010, %v7476, %v7478
      %v7480 = vrot.slane %v7382, 4
      %v7481 = vrot.slane %v7383, 4
      %v7482 = vsel %vm6010, %v7480, %v7481
      %v7483 = vrot.slane %v7384, 4
      %v7484 = vsel %vm6010, %v7481, %v7483
      %v7485 = vrot.slane %v7385, 4
      %v7486 = vrot.slane %v7386, 4
      %v7487 = vsel %vm6010, %v7485, %v7486
      %v7488 = vrot.slane %v7387, 4
      %v7489 = vsel %vm6010, %v7486, %v7488
      %v7490 = vrot.slane %v7388, 4
      %v7491 = vrot.slane %v7389, 4
      %v7492 = vsel %vm6010, %v7490, %v7491
      %v7493 = vrot.slane %v7390, 4
      %v7494 = vsel %vm6010, %v7491, %v7493
      %v7495 = vrot.slane %v7391, 4
      %v7496 = vrot.slane %v7392, 4
      %v7497 = vsel %vm6010, %v7495, %v7496
      %v7498 = vrot.slane %v7393, 4
      %v7499 = vsel %vm6010, %v7496, %v7498
      %v7500 = vrot.slane %v7394, 4
      %v7501 = vrot.slane %v7395, 4
      %v7502 = vsel %vm6010, %v7500, %v7501
      %v7503 = vrot.slane %v7396, 4
      %v7504 = vsel %vm6010, %v7501, %v7503
      %v7505 = vrot.slane %v7397, 4
      %v7506 = vrot.slane %v7398, 4
      %v7507 = vsel %vm6010, %v7505, %v7506
      %v7508 = vrot.slane %v7399, 4
      %v7509 = vsel %vm6010, %v7506, %v7508
      %v7510 = vrot.slane %v7400, 4
      %v7511 = vrot.slane %v7401, 4
      %v7512 = vsel %vm6010, %v7510, %v7511
      %v7513 = vrot.slane %v7402, 4
      %v7514 = vsel %vm6010, %v7511, %v7513
      %v7515 = vrot.slane %v7403, 4
      %v7516 = vrot.slane %v7404, 4
      %v7517 = vsel %vm6010, %v7515, %v7516
      %v7518 = vrot.slane %v7405, 4
      %v7519 = vsel %vm6010, %v7516, %v7518
      %v7520 = vrot.slane %v7406, 4
      %v7521 = vrot.slane %v7407, 4
      %v7522 = vsel %vm6010, %v7520, %v7521
      %v7523 = vrot.slane %v7408, 4
      %v7524 = vsel %vm6010, %v7521, %v7523
      %v7525 = vrot.slane %v7409, 4
      %v7526 = vrot.slane %v7410, 4
      %v7527 = vsel %vm6010, %v7525, %v7526
      %v7528 = vrot.slane %v7411, 4
      %v7529 = vsel %vm6010, %v7526, %v7528
      %v7530 = vrot.slane %v7412, 4
      %v7531 = vrot.slane %v7413, 4
      %v7532 = vsel %vm6010, %v7530, %v7531
      %v7533 = vrot.slane %v7414, 4
      %v7534 = vsel %vm6010, %v7531, %v7533
      %v7535 = vrot.slane %v7415, 4
      %v7536 = vrot.slane %v7416, 4
      %v7537 = vsel %vm6010, %v7535, %v7536
      %v7538 = vrot.slane %v7417, 4
      %v7539 = vsel %vm6010, %v7536, %v7538
      %v7540 = vrot.slane %v7418, 4
      %v7541 = vrot.slane %v7419, 4
      %v7542 = vsel %vm6010, %v7540, %v7541
      %v7543 = vrot.slane %v7420, 4
      %v7544 = vsel %vm6010, %v7541, %v7543
      %v7545 = vrot.slane %v7421, 4
      %v7546 = vrot.slane %v7422, 4
      %v7547 = vsel %vm6010, %v7545, %v7546
      %v7548 = vrot.slane %v7423, 4
      %v7549 = vsel %vm6010, %v7546, %v7548
      %v7550 = vrot.slane %v7424, 4
      %v7551 = vrot.slane %v7425, 4
      %v7552 = vsel %vm6010, %v7550, %v7551
      %v7553 = vrot.slane %v7426, 4
      %v7554 = vsel %vm6010, %v7551, %v7553
      %v7587 = vadd.f32 %v7099, %v7477
      %v7588 = vadd.f32 %v7100, %v7479
      %v7589 = vadd.f32 %v7101, %v7482
      %v7590 = vadd.f32 %v7102, %v7484
      %v7591 = vadd.f32 %v7103, %v7487
      %v7592 = vadd.f32 %v7104, %v7489
      %v7593 = vadd.f32 %v7105, %v7492
      %v7594 = vadd.f32 %v7106, %v7494
      %v7595 = vadd.f32 %v7107, %v7497
      %v7596 = vadd.f32 %v7108, %v7499
      %v7597 = vadd.f32 %v7109, %v7502
      %v7598 = vadd.f32 %v7110, %v7504
      %v7599 = vadd.f32 %v7111, %v7507
      %v7600 = vadd.f32 %v7112, %v7509
      %v7601 = vadd.f32 %v7113, %v7512
      %v7602 = vadd.f32 %v7114, %v7514
      %v7603 = vadd.f32 %v7115, %v7517
      %v7604 = vadd.f32 %v7116, %v7519
      %v7605 = vadd.f32 %v7117, %v7522
      %v7606 = vadd.f32 %v7118, %v7524
      %v7607 = vadd.f32 %v7119, %v7527
      %v7608 = vadd.f32 %v7120, %v7529
      %v7609 = vadd.f32 %v7121, %v7532
      %v7610 = vadd.f32 %v7122, %v7534
      %v7611 = vadd.f32 %v7123, %v7537
      %v7612 = vadd.f32 %v7124, %v7539
      %v7613 = vadd.f32 %v7125, %v7542
      %v7614 = vadd.f32 %v7126, %v7544
      %v7615 = vadd.f32 %v7127, %v7547
      %v7616 = vadd.f32 %v7128, %v7549
      %v7617 = vadd.f32 %v7129, %v7552
      %v7618 = vadd.f32 %v7130, %v7554
      %v7619 = vlaneseq
      %v7620 = vshrl.u32 %v7619, 7
      %v7621 = vsub.s32 5, %v7620
      %v7622 = vrot.slane %v233, %v7621
      %v7623 = vmul.f32 %v241, %v7622
      %v7624 = vmul.f32 %v242, %v7622
      %v7625 = vmul.f32 %v243, %v7622
      %v7626 = vmul.f32 %v244, %v7622
      %v7627 = vmul.f32 %v245, %v7622
      %v7628 = vmul.f32 %v246, %v7622
      %v7629 = vmul.f32 %v247, %v7622
      %v7630 = vmul.f32 %v248, %v7622
      %v7631 = vmul.f32 %v249, %v7622
      %v7632 = vmul.f32 %v250, %v7622
      %v7633 = vmul.f32 %v251, %v7622
      %v7634 = vmul.f32 %v252, %v7622
      %v7635 = vmul.f32 %v253, %v7622
      %v7636 = vmul.f32 %v254, %v7622
      %v7637 = vmul.f32 %v255, %v7622
      %v7638 = vmul.f32 %v256, %v7622
      %v7639 = vmul.f32 %v257, %v7622
      %v7640 = vmul.f32 %v258, %v7622
      %v7641 = vmul.f32 %v259, %v7622
      %v7642 = vmul.f32 %v260, %v7622
      %v7643 = vmul.f32 %v261, %v7622
      %v7644 = vmul.f32 %v262, %v7622
      %v7645 = vmul.f32 %v263, %v7622
      %v7646 = vmul.f32 %v264, %v7622
      %v7647 = vmul.f32 %v265, %v7622
      %v7648 = vmul.f32 %v266, %v7622
      %v7649 = vmul.f32 %v267, %v7622
      %v7650 = vmul.f32 %v268, %v7622
      %v7651 = vmul.f32 %v269, %v7622
      %v7652 = vmul.f32 %v270, %v7622
      %v7653 = vmul.f32 %v271, %v7622
      %v7654 = vmul.f32 %v272, %v7622
      %v7655 = vmul.f32 %v273, %v7622
      %v7656 = vmul.f32 %v274, %v7622
      %v7657 = vmul.f32 %v275, %v7622
      %v7658 = vmul.f32 %v276, %v7622
      %v7659 = vmul.f32 %v277, %v7622
      %v7660 = vmul.f32 %v278, %v7622
      %v7661 = vmul.f32 %v279, %v7622
      %v7662 = vmul.f32 %v280, %v7622
      %v7663 = vmul.f32 %v281, %v7622
      %v7664 = vmul.f32 %v282, %v7622
      %v7665 = vmul.f32 %v283, %v7622
      %v7666 = vmul.f32 %v284, %v7622
      %v7667 = vmul.f32 %v285, %v7622
      %v7668 = vmul.f32 %v286, %v7622
      %v7669 = vmul.f32 %v287, %v7622
      %v7670 = vmul.f32 %v288, %v7622
      %vm7719 = vcmask 1042432
      %v7720 = vrot.slane %v7623, 5
      %v7721 = vrot.slane %v7624, 5
      %v7722 = vsel %vm7719, %v7720, %v7721
      %v7723 = vrot.slane %v7625, 5
      %v7724 = vsel %vm7719, %v7721, %v7723
      %v7725 = vrot.slane %v7626, 5
      %v7726 = vrot.slane %v7627, 5
      %v7727 = vsel %vm7719, %v7725, %v7726
      %v7728 = vrot.slane %v7628, 5
      %v7729 = vsel %vm7719, %v7726, %v7728
      %v7730 = vrot.slane %v7629, 5
      %v7731 = vrot.slane %v7630, 5
      %v7732 = vsel %vm7719, %v7730, %v7731
      %v7733 = vrot.slane %v7631, 5
      %v7734 = vsel %vm7719, %v7731, %v7733
      %v7735 = vrot.slane %v7632, 5
      %v7736 = vrot.slane %v7633, 5
      %v7737 = vsel %vm7719, %v7735, %v7736
      %v7738 = vrot.slane %v7634, 5
      %v7739 = vsel %vm7719, %v7736, %v7738
      %v7740 = vrot.slane %v7635, 5
      %v7741 = vrot.slane %v7636, 5
      %v7742 = vsel %vm7719, %v7740, %v7741
      %v7743 = vrot.slane %v7637, 5
      %v7744 = vsel %vm7719, %v7741, %v7743
      %v7745 = vrot.slane %v7638, 5
      %v7746 = vrot.slane %v7639, 5
      %v7747 = vsel %vm7719, %v7745, %v7746
      %v7748 = vrot.slane %v7640, 5
      %v7749 = vsel %vm7719, %v7746, %v7748
      %v7750 = vrot.slane %v7641, 5
      %v7751 = vrot.slane %v7642, 5
      %v7752 = vsel %vm7719, %v7750, %v7751
      %v7753 = vrot.slane %v7643, 5
      %v7754 = vsel %vm7719, %v7751, %v7753
      %v7755 = vrot.slane %v7644, 5
      %v7756 = vrot.slane %v7645, 5
      %v7757 = vsel %vm7719, %v7755, %v7756
      %v7758 = vrot.slane %v7646, 5
      %v7759 = vsel %vm7719, %v7756, %v7758
      %v7760 = vrot.slane %v7647, 5
      %v7761 = vrot.slane %v7648, 5
      %v7762 = vsel %vm7719, %v7760, %v7761
      %v7763 = vrot.slane %v7649, 5
      %v7764 = vsel %vm7719, %v7761, %v7763
      %v7765 = vrot.slane %v7650, 5
      %v7766 = vrot.slane %v7651, 5
      %v7767 = vsel %vm7719, %v7765, %v7766
      %v7768 = vrot.slane %v7652, 5
      %v7769 = vsel %vm7719, %v7766, %v7768
      %v7770 = vrot.slane %v7653, 5
      %v7771 = vrot.slane %v7654, 5
      %v7772 = vsel %vm7719, %v7770, %v7771
      %v7773 = vrot.slane %v7655, 5
      %v7774 = vsel %vm7719, %v7771, %v7773
      %v7775 = vrot.slane %v7656, 5
      %v7776 = vrot.slane %v7657, 5
      %v7777 = vsel %vm7719, %v7775, %v7776
      %v7778 = vrot.slane %v7658, 5
      %v7779 = vsel %vm7719, %v7776, %v7778
      %v7780 = vrot.slane %v7659, 5
      %v7781 = vrot.slane %v7660, 5
      %v7782 = vsel %vm7719, %v7780, %v7781
      %v7783 = vrot.slane %v7661, 5
      %v7784 = vsel %vm7719, %v7781, %v7783
      %v7785 = vrot.slane %v7662, 5
      %v7786 = vrot.slane %v7663, 5
      %v7787 = vsel %vm7719, %v7785, %v7786
      %v7788 = vrot.slane %v7664, 5
      %v7789 = vsel %vm7719, %v7786, %v7788
      %v7790 = vrot.slane %v7665, 5
      %v7791 = vrot.slane %v7666, 5
      %v7792 = vsel %vm7719, %v7790, %v7791
      %v7793 = vrot.slane %v7667, 5
      %v7794 = vsel %vm7719, %v7791, %v7793
      %v7795 = vrot.slane %v7668, 5
      %v7796 = vrot.slane %v7669, 5
      %v7797 = vsel %vm7719, %v7795, %v7796
      %v7798 = vrot.slane %v7670, 5
      %v7799 = vsel %vm7719, %v7796, %v7798
      %v7832 = vadd.f32 %v7343, %v7722
      %v7833 = vadd.f32 %v7344, %v7724
      %v7834 = vadd.f32 %v7345, %v7727
      %v7835 = vadd.f32 %v7346, %v7729
      %v7836 = vadd.f32 %v7347, %v7732
      %v7837 = vadd.f32 %v7348, %v7734
      %v7838 = vadd.f32 %v7349, %v7737
      %v7839 = vadd.f32 %v7350, %v7739
      %v7840 = vadd.f32 %v7351, %v7742
      %v7841 = vadd.f32 %v7352, %v7744
      %v7842 = vadd.f32 %v7353, %v7747
      %v7843 = vadd.f32 %v7354, %v7749
      %v7844 = vadd.f32 %v7355, %v7752
      %v7845 = vadd.f32 %v7356, %v7754
      %v7846 = vadd.f32 %v7357, %v7757
      %v7847 = vadd.f32 %v7358, %v7759
      %v7848 = vadd.f32 %v7359, %v7762
      %v7849 = vadd.f32 %v7360, %v7764
      %v7850 = vadd.f32 %v7361, %v7767
      %v7851 = vadd.f32 %v7362, %v7769
      %v7852 = vadd.f32 %v7363, %v7772
      %v7853 = vadd.f32 %v7364, %v7774
      %v7854 = vadd.f32 %v7365, %v7777
      %v7855 = vadd.f32 %v7366, %v7779
      %v7856 = vadd.f32 %v7367, %v7782
      %v7857 = vadd.f32 %v7368, %v7784
      %v7858 = vadd.f32 %v7369, %v7787
      %v7859 = vadd.f32 %v7370, %v7789
      %v7860 = vadd.f32 %v7371, %v7792
      %v7861 = vadd.f32 %v7372, %v7794
      %v7862 = vadd.f32 %v7373, %v7797
      %v7863 = vadd.f32 %v7374, %v7799
      %v7864 = vlaneseq
      %v7865 = vshrl.u32 %v7864, 7
      %v7866 = vsub.s32 4, %v7865
      %v7867 = vrot.slane %v234, %v7866
      %v7868 = vmul.f32 %v244, %v7867
      %v7869 = vmul.f32 %v245, %v7867
      %v7870 = vmul.f32 %v246, %v7867
      %v7871 = vmul.f32 %v247, %v7867
      %v7872 = vmul.f32 %v248, %v7867
      %v7873 = vmul.f32 %v249, %v7867
      %v7874 = vmul.f32 %v250, %v7867
      %v7875 = vmul.f32 %v251, %v7867
      %v7876 = vmul.f32 %v252, %v7867
      %v7877 = vmul.f32 %v253, %v7867
      %v7878 = vmul.f32 %v254, %v7867
      %v7879 = vmul.f32 %v255, %v7867
      %v7880 = vmul.f32 %v256, %v7867
      %v7881 = vmul.f32 %v257, %v7867
      %v7882 = vmul.f32 %v258, %v7867
      %v7883 = vmul.f32 %v259, %v7867
      %v7884 = vmul.f32 %v260, %v7867
      %v7885 = vmul.f32 %v261, %v7867
      %v7886 = vmul.f32 %v262, %v7867
      %v7887 = vmul.f32 %v263, %v7867
      %v7888 = vmul.f32 %v264, %v7867
      %v7889 = vmul.f32 %v265, %v7867
      %v7890 = vmul.f32 %v266, %v7867
      %v7891 = vmul.f32 %v267, %v7867
      %v7892 = vmul.f32 %v268, %v7867
      %v7893 = vmul.f32 %v269, %v7867
      %v7894 = vmul.f32 %v270, %v7867
      %v7895 = vmul.f32 %v271, %v7867
      %v7896 = vmul.f32 %v272, %v7867
      %v7897 = vmul.f32 %v273, %v7867
      %v7898 = vmul.f32 %v274, %v7867
      %v7899 = vmul.f32 %v275, %v7867
      %v7900 = vmul.f32 %v276, %v7867
      %v7901 = vmul.f32 %v277, %v7867
      %v7902 = vmul.f32 %v278, %v7867
      %v7903 = vmul.f32 %v279, %v7867
      %v7904 = vmul.f32 %v280, %v7867
      %v7905 = vmul.f32 %v281, %v7867
      %v7906 = vmul.f32 %v282, %v7867
      %v7907 = vmul.f32 %v283, %v7867
      %v7908 = vmul.f32 %v284, %v7867
      %v7909 = vmul.f32 %v285, %v7867
      %v7910 = vmul.f32 %v286, %v7867
      %v7911 = vmul.f32 %v287, %v7867
      %v7912 = vmul.f32 %v288, %v7867
      %v7913 = vmul.f32 %v289, %v7867
      %v7914 = vmul.f32 %v290, %v7867
      %v7915 = vmul.f32 %v291, %v7867
      %v7964 = vrot.slane %v7868, 5
      %v7965 = vrot.slane %v7869, 5
      %v7966 = vsel %vm7719, %v7964, %v7965
      %v7967 = vrot.slane %v7870, 5
      %v7968 = vsel %vm7719, %v7965, %v7967
      %v7969 = vrot.slane %v7871, 5
      %v7970 = vrot.slane %v7872, 5
      %v7971 = vsel %vm7719, %v7969, %v7970
      %v7972 = vrot.slane %v7873, 5
      %v7973 = vsel %vm7719, %v7970, %v7972
      %v7974 = vrot.slane %v7874, 5
      %v7975 = vrot.slane %v7875, 5
      %v7976 = vsel %vm7719, %v7974, %v7975
      %v7977 = vrot.slane %v7876, 5
      %v7978 = vsel %vm7719, %v7975, %v7977
      %v7979 = vrot.slane %v7877, 5
      %v7980 = vrot.slane %v7878, 5
      %v7981 = vsel %vm7719, %v7979, %v7980
      %v7982 = vrot.slane %v7879, 5
      %v7983 = vsel %vm7719, %v7980, %v7982
      %v7984 = vrot.slane %v7880, 5
      %v7985 = vrot.slane %v7881, 5
      %v7986 = vsel %vm7719, %v7984, %v7985
      %v7987 = vrot.slane %v7882, 5
      %v7988 = vsel %vm7719, %v7985, %v7987
      %v7989 = vrot.slane %v7883, 5
      %v7990 = vrot.slane %v7884, 5
      %v7991 = vsel %vm7719, %v7989, %v7990
      %v7992 = vrot.slane %v7885, 5
      %v7993 = vsel %vm7719, %v7990, %v7992
      %v7994 = vrot.slane %v7886, 5
      %v7995 = vrot.slane %v7887, 5
      %v7996 = vsel %vm7719, %v7994, %v7995
      %v7997 = vrot.slane %v7888, 5
      %v7998 = vsel %vm7719, %v7995, %v7997
      %v7999 = vrot.slane %v7889, 5
      %v8000 = vrot.slane %v7890, 5
      %v8001 = vsel %vm7719, %v7999, %v8000
      %v8002 = vrot.slane %v7891, 5
      %v8003 = vsel %vm7719, %v8000, %v8002
      %v8004 = vrot.slane %v7892, 5
      %v8005 = vrot.slane %v7893, 5
      %v8006 = vsel %vm7719, %v8004, %v8005
      %v8007 = vrot.slane %v7894, 5
      %v8008 = vsel %vm7719, %v8005, %v8007
      %v8009 = vrot.slane %v7895, 5
      %v8010 = vrot.slane %v7896, 5
      %v8011 = vsel %vm7719, %v8009, %v8010
      %v8012 = vrot.slane %v7897, 5
      %v8013 = vsel %vm7719, %v8010, %v8012
      %v8014 = vrot.slane %v7898, 5
      %v8015 = vrot.slane %v7899, 5
      %v8016 = vsel %vm7719, %v8014, %v8015
      %v8017 = vrot.slane %v7900, 5
      %v8018 = vsel %vm7719, %v8015, %v8017
      %v8019 = vrot.slane %v7901, 5
      %v8020 = vrot.slane %v7902, 5
      %v8021 = vsel %vm7719, %v8019, %v8020
      %v8022 = vrot.slane %v7903, 5
      %v8023 = vsel %vm7719, %v8020, %v8022
      %v8024 = vrot.slane %v7904, 5
      %v8025 = vrot.slane %v7905, 5
      %v8026 = vsel %vm7719, %v8024, %v8025
      %v8027 = vrot.slane %v7906, 5
      %v8028 = vsel %vm7719, %v8025, %v8027
      %v8029 = vrot.slane %v7907, 5
      %v8030 = vrot.slane %v7908, 5
      %v8031 = vsel %vm7719, %v8029, %v8030
      %v8032 = vrot.slane %v7909, 5
      %v8033 = vsel %vm7719, %v8030, %v8032
      %v8034 = vrot.slane %v7910, 5
      %v8035 = vrot.slane %v7911, 5
      %v8036 = vsel %vm7719, %v8034, %v8035
      %v8037 = vrot.slane %v7912, 5
      %v8038 = vsel %vm7719, %v8035, %v8037
      %v8039 = vrot.slane %v7913, 5
      %v8040 = vrot.slane %v7914, 5
      %v8041 = vsel %vm7719, %v8039, %v8040
      %v8042 = vrot.slane %v7915, 5
      %v8043 = vsel %vm7719, %v8040, %v8042
      %v8076 = vadd.f32 %v7587, %v7966
      %v8077 = vadd.f32 %v7588, %v7968
      %v8078 = vadd.f32 %v7589, %v7971
      %v8079 = vadd.f32 %v7590, %v7973
      %v8080 = vadd.f32 %v7591, %v7976
      %v8081 = vadd.f32 %v7592, %v7978
      %v8082 = vadd.f32 %v7593, %v7981
      %v8083 = vadd.f32 %v7594, %v7983
      %v8084 = vadd.f32 %v7595, %v7986
      %v8085 = vadd.f32 %v7596, %v7988
      %v8086 = vadd.f32 %v7597, %v7991
      %v8087 = vadd.f32 %v7598, %v7993
      %v8088 = vadd.f32 %v7599, %v7996
      %v8089 = vadd.f32 %v7600, %v7998
      %v8090 = vadd.f32 %v7601, %v8001
      %v8091 = vadd.f32 %v7602, %v8003
      %v8092 = vadd.f32 %v7603, %v8006
      %v8093 = vadd.f32 %v7604, %v8008
      %v8094 = vadd.f32 %v7605, %v8011
      %v8095 = vadd.f32 %v7606, %v8013
      %v8096 = vadd.f32 %v7607, %v8016
      %v8097 = vadd.f32 %v7608, %v8018
      %v8098 = vadd.f32 %v7609, %v8021
      %v8099 = vadd.f32 %v7610, %v8023
      %v8100 = vadd.f32 %v7611, %v8026
      %v8101 = vadd.f32 %v7612, %v8028
      %v8102 = vadd.f32 %v7613, %v8031
      %v8103 = vadd.f32 %v7614, %v8033
      %v8104 = vadd.f32 %v7615, %v8036
      %v8105 = vadd.f32 %v7616, %v8038
      %v8106 = vadd.f32 %v7617, %v8041
      %v8107 = vadd.f32 %v7618, %v8043
      %v8108 = vlaneseq
      %v8109 = vshrl.u32 %v8108, 7
      %v8110 = vsub.s32 3, %v8109
      %v8111 = vrot.slane %v235, %v8110
      %v8112 = vmul.f32 %v247, %v8111
      %v8113 = vmul.f32 %v248, %v8111
      %v8114 = vmul.f32 %v249, %v8111
      %v8115 = vmul.f32 %v250, %v8111
      %v8116 = vmul.f32 %v251, %v8111
      %v8117 = vmul.f32 %v252, %v8111
      %v8118 = vmul.f32 %v253, %v8111
      %v8119 = vmul.f32 %v254, %v8111
      %v8120 = vmul.f32 %v255, %v8111
      %v8121 = vmul.f32 %v256, %v8111
      %v8122 = vmul.f32 %v257, %v8111
      %v8123 = vmul.f32 %v258, %v8111
      %v8124 = vmul.f32 %v259, %v8111
      %v8125 = vmul.f32 %v260, %v8111
      %v8126 = vmul.f32 %v261, %v8111
      %v8127 = vmul.f32 %v262, %v8111
      %v8128 = vmul.f32 %v263, %v8111
      %v8129 = vmul.f32 %v264, %v8111
      %v8130 = vmul.f32 %v265, %v8111
      %v8131 = vmul.f32 %v266, %v8111
      %v8132 = vmul.f32 %v267, %v8111
      %v8133 = vmul.f32 %v268, %v8111
      %v8134 = vmul.f32 %v269, %v8111
      %v8135 = vmul.f32 %v270, %v8111
      %v8136 = vmul.f32 %v271, %v8111
      %v8137 = vmul.f32 %v272, %v8111
      %v8138 = vmul.f32 %v273, %v8111
      %v8139 = vmul.f32 %v274, %v8111
      %v8140 = vmul.f32 %v275, %v8111
      %v8141 = vmul.f32 %v276, %v8111
      %v8142 = vmul.f32 %v277, %v8111
      %v8143 = vmul.f32 %v278, %v8111
      %v8144 = vmul.f32 %v279, %v8111
      %v8145 = vmul.f32 %v280, %v8111
      %v8146 = vmul.f32 %v281, %v8111
      %v8147 = vmul.f32 %v282, %v8111
      %v8148 = vmul.f32 %v283, %v8111
      %v8149 = vmul.f32 %v284, %v8111
      %v8150 = vmul.f32 %v285, %v8111
      %v8151 = vmul.f32 %v286, %v8111
      %v8152 = vmul.f32 %v287, %v8111
      %v8153 = vmul.f32 %v288, %v8111
      %v8154 = vmul.f32 %v289, %v8111
      %v8155 = vmul.f32 %v290, %v8111
      %v8156 = vmul.f32 %v291, %v8111
      %v8157 = vmul.f32 %v292, %v8111
      %v8158 = vmul.f32 %v293, %v8111
      %v8159 = vmul.f32 %v294, %v8111
      %v8208 = vrot.slane %v8112, 5
      %v8209 = vrot.slane %v8113, 5
      %v8210 = vsel %vm7719, %v8208, %v8209
      %v8211 = vrot.slane %v8114, 5
      %v8212 = vsel %vm7719, %v8209, %v8211
      %v8213 = vrot.slane %v8115, 5
      %v8214 = vrot.slane %v8116, 5
      %v8215 = vsel %vm7719, %v8213, %v8214
      %v8216 = vrot.slane %v8117, 5
      %v8217 = vsel %vm7719, %v8214, %v8216
      %v8218 = vrot.slane %v8118, 5
      %v8219 = vrot.slane %v8119, 5
      %v8220 = vsel %vm7719, %v8218, %v8219
      %v8221 = vrot.slane %v8120, 5
      %v8222 = vsel %vm7719, %v8219, %v8221
      %v8223 = vrot.slane %v8121, 5
      %v8224 = vrot.slane %v8122, 5
      %v8225 = vsel %vm7719, %v8223, %v8224
      %v8226 = vrot.slane %v8123, 5
      %v8227 = vsel %vm7719, %v8224, %v8226
      %v8228 = vrot.slane %v8124, 5
      %v8229 = vrot.slane %v8125, 5
      %v8230 = vsel %vm7719, %v8228, %v8229
      %v8231 = vrot.slane %v8126, 5
      %v8232 = vsel %vm7719, %v8229, %v8231
      %v8233 = vrot.slane %v8127, 5
      %v8234 = vrot.slane %v8128, 5
      %v8235 = vsel %vm7719, %v8233, %v8234
      %v8236 = vrot.slane %v8129, 5
      %v8237 = vsel %vm7719, %v8234, %v8236
      %v8238 = vrot.slane %v8130, 5
      %v8239 = vrot.slane %v8131, 5
      %v8240 = vsel %vm7719, %v8238, %v8239
      %v8241 = vrot.slane %v8132, 5
      %v8242 = vsel %vm7719, %v8239, %v8241
      %v8243 = vrot.slane %v8133, 5
      %v8244 = vrot.slane %v8134, 5
      %v8245 = vsel %vm7719, %v8243, %v8244
      %v8246 = vrot.slane %v8135, 5
      %v8247 = vsel %vm7719, %v8244, %v8246
      %v8248 = vrot.slane %v8136, 5
      %v8249 = vrot.slane %v8137, 5
      %v8250 = vsel %vm7719, %v8248, %v8249
      %v8251 = vrot.slane %v8138, 5
      %v8252 = vsel %vm7719, %v8249, %v8251
      %v8253 = vrot.slane %v8139, 5
      %v8254 = vrot.slane %v8140, 5
      %v8255 = vsel %vm7719, %v8253, %v8254
      %v8256 = vrot.slane %v8141, 5
      %v8257 = vsel %vm7719, %v8254, %v8256
      %v8258 = vrot.slane %v8142, 5
      %v8259 = vrot.slane %v8143, 5
      %v8260 = vsel %vm7719, %v8258, %v8259
      %v8261 = vrot.slane %v8144, 5
      %v8262 = vsel %vm7719, %v8259, %v8261
      %v8263 = vrot.slane %v8145, 5
      %v8264 = vrot.slane %v8146, 5
      %v8265 = vsel %vm7719, %v8263, %v8264
      %v8266 = vrot.slane %v8147, 5
      %v8267 = vsel %vm7719, %v8264, %v8266
      %v8268 = vrot.slane %v8148, 5
      %v8269 = vrot.slane %v8149, 5
      %v8270 = vsel %vm7719, %v8268, %v8269
      %v8271 = vrot.slane %v8150, 5
      %v8272 = vsel %vm7719, %v8269, %v8271
      %v8273 = vrot.slane %v8151, 5
      %v8274 = vrot.slane %v8152, 5
      %v8275 = vsel %vm7719, %v8273, %v8274
      %v8276 = vrot.slane %v8153, 5
      %v8277 = vsel %vm7719, %v8274, %v8276
      %v8278 = vrot.slane %v8154, 5
      %v8279 = vrot.slane %v8155, 5
      %v8280 = vsel %vm7719, %v8278, %v8279
      %v8281 = vrot.slane %v8156, 5
      %v8282 = vsel %vm7719, %v8279, %v8281
      %v8283 = vrot.slane %v8157, 5
      %v8284 = vrot.slane %v8158, 5
      %v8285 = vsel %vm7719, %v8283, %v8284
      %v8286 = vrot.slane %v8159, 5
      %v8287 = vsel %vm7719, %v8284, %v8286
      %v8320 = vadd.f32 %v7832, %v8210
      %v8321 = vadd.f32 %v7833, %v8212
      %v8322 = vadd.f32 %v7834, %v8215
      %v8323 = vadd.f32 %v7835, %v8217
      %v8324 = vadd.f32 %v7836, %v8220
      %v8325 = vadd.f32 %v7837, %v8222
      %v8326 = vadd.f32 %v7838, %v8225
      %v8327 = vadd.f32 %v7839, %v8227
      %v8328 = vadd.f32 %v7840, %v8230
      %v8329 = vadd.f32 %v7841, %v8232
      %v8330 = vadd.f32 %v7842, %v8235
      %v8331 = vadd.f32 %v7843, %v8237
      %v8332 = vadd.f32 %v7844, %v8240
      %v8333 = vadd.f32 %v7845, %v8242
      %v8334 = vadd.f32 %v7846, %v8245
      %v8335 = vadd.f32 %v7847, %v8247
      %v8336 = vadd.f32 %v7848, %v8250
      %v8337 = vadd.f32 %v7849, %v8252
      %v8338 = vadd.f32 %v7850, %v8255
      %v8339 = vadd.f32 %v7851, %v8257
      %v8340 = vadd.f32 %v7852, %v8260
      %v8341 = vadd.f32 %v7853, %v8262
      %v8342 = vadd.f32 %v7854, %v8265
      %v8343 = vadd.f32 %v7855, %v8267
      %v8344 = vadd.f32 %v7856, %v8270
      %v8345 = vadd.f32 %v7857, %v8272
      %v8346 = vadd.f32 %v7858, %v8275
      %v8347 = vadd.f32 %v7859, %v8277
      %v8348 = vadd.f32 %v7860, %v8280
      %v8349 = vadd.f32 %v7861, %v8282
      %v8350 = vadd.f32 %v7862, %v8285
      %v8351 = vadd.f32 %v7863, %v8287
      %v8352 = vlaneseq
      %v8353 = vshrl.u32 %v8352, 7
      %v8354 = vsub.s32 2, %v8353
      %v8355 = vrot.slane %v236, %v8354
      %v8356 = vmul.f32 %v250, %v8355
      %v8357 = vmul.f32 %v251, %v8355
      %v8358 = vmul.f32 %v252, %v8355
      %v8359 = vmul.f32 %v253, %v8355
      %v8360 = vmul.f32 %v254, %v8355
      %v8361 = vmul.f32 %v255, %v8355
      %v8362 = vmul.f32 %v256, %v8355
      %v8363 = vmul.f32 %v257, %v8355
      %v8364 = vmul.f32 %v258, %v8355
      %v8365 = vmul.f32 %v259, %v8355
      %v8366 = vmul.f32 %v260, %v8355
      %v8367 = vmul.f32 %v261, %v8355
      %v8368 = vmul.f32 %v262, %v8355
      %v8369 = vmul.f32 %v263, %v8355
      %v8370 = vmul.f32 %v264, %v8355
      %v8371 = vmul.f32 %v265, %v8355
      %v8372 = vmul.f32 %v266, %v8355
      %v8373 = vmul.f32 %v267, %v8355
      %v8374 = vmul.f32 %v268, %v8355
      %v8375 = vmul.f32 %v269, %v8355
      %v8376 = vmul.f32 %v270, %v8355
      %v8377 = vmul.f32 %v271, %v8355
      %v8378 = vmul.f32 %v272, %v8355
      %v8379 = vmul.f32 %v273, %v8355
      %v8380 = vmul.f32 %v274, %v8355
      %v8381 = vmul.f32 %v275, %v8355
      %v8382 = vmul.f32 %v276, %v8355
      %v8383 = vmul.f32 %v277, %v8355
      %v8384 = vmul.f32 %v278, %v8355
      %v8385 = vmul.f32 %v279, %v8355
      %v8386 = vmul.f32 %v280, %v8355
      %v8387 = vmul.f32 %v281, %v8355
      %v8388 = vmul.f32 %v282, %v8355
      %v8389 = vmul.f32 %v283, %v8355
      %v8390 = vmul.f32 %v284, %v8355
      %v8391 = vmul.f32 %v285, %v8355
      %v8392 = vmul.f32 %v286, %v8355
      %v8393 = vmul.f32 %v287, %v8355
      %v8394 = vmul.f32 %v288, %v8355
      %v8395 = vmul.f32 %v289, %v8355
      %v8396 = vmul.f32 %v290, %v8355
      %v8397 = vmul.f32 %v291, %v8355
      %v8398 = vmul.f32 %v292, %v8355
      %v8399 = vmul.f32 %v293, %v8355
      %v8400 = vmul.f32 %v294, %v8355
      %v8401 = vmul.f32 %v295, %v8355
      %v8402 = vmul.f32 %v296, %v8355
      %v8403 = vmul.f32 %v297, %v8355
      %v8452 = vrot.slane %v8356, 5
      %v8453 = vrot.slane %v8357, 5
      %v8454 = vsel %vm7719, %v8452, %v8453
      %v8455 = vrot.slane %v8358, 5
      %v8456 = vsel %vm7719, %v8453, %v8455
      %v8457 = vrot.slane %v8359, 5
      %v8458 = vrot.slane %v8360, 5
      %v8459 = vsel %vm7719, %v8457, %v8458
      %v8460 = vrot.slane %v8361, 5
      %v8461 = vsel %vm7719, %v8458, %v8460
      %v8462 = vrot.slane %v8362, 5
      %v8463 = vrot.slane %v8363, 5
      %v8464 = vsel %vm7719, %v8462, %v8463
      %v8465 = vrot.slane %v8364, 5
      %v8466 = vsel %vm7719, %v8463, %v8465
      %v8467 = vrot.slane %v8365, 5
      %v8468 = vrot.slane %v8366, 5
      %v8469 = vsel %vm7719, %v8467, %v8468
      %v8470 = vrot.slane %v8367, 5
      %v8471 = vsel %vm7719, %v8468, %v8470
      %v8472 = vrot.slane %v8368, 5
      %v8473 = vrot.slane %v8369, 5
      %v8474 = vsel %vm7719, %v8472, %v8473
      %v8475 = vrot.slane %v8370, 5
      %v8476 = vsel %vm7719, %v8473, %v8475
      %v8477 = vrot.slane %v8371, 5
      %v8478 = vrot.slane %v8372, 5
      %v8479 = vsel %vm7719, %v8477, %v8478
      %v8480 = vrot.slane %v8373, 5
      %v8481 = vsel %vm7719, %v8478, %v8480
      %v8482 = vrot.slane %v8374, 5
      %v8483 = vrot.slane %v8375, 5
      %v8484 = vsel %vm7719, %v8482, %v8483
      %v8485 = vrot.slane %v8376, 5
      %v8486 = vsel %vm7719, %v8483, %v8485
      %v8487 = vrot.slane %v8377, 5
      %v8488 = vrot.slane %v8378, 5
      %v8489 = vsel %vm7719, %v8487, %v8488
      %v8490 = vrot.slane %v8379, 5
      %v8491 = vsel %vm7719, %v8488, %v8490
      %v8492 = vrot.slane %v8380, 5
      %v8493 = vrot.slane %v8381, 5
      %v8494 = vsel %vm7719, %v8492, %v8493
      %v8495 = vrot.slane %v8382, 5
      %v8496 = vsel %vm7719, %v8493, %v8495
      %v8497 = vrot.slane %v8383, 5
      %v8498 = vrot.slane %v8384, 5
      %v8499 = vsel %vm7719, %v8497, %v8498
      %v8500 = vrot.slane %v8385, 5
      %v8501 = vsel %vm7719, %v8498, %v8500
      %v8502 = vrot.slane %v8386, 5
      %v8503 = vrot.slane %v8387, 5
      %v8504 = vsel %vm7719, %v8502, %v8503
      %v8505 = vrot.slane %v8388, 5
      %v8506 = vsel %vm7719, %v8503, %v8505
      %v8507 = vrot.slane %v8389, 5
      %v8508 = vrot.slane %v8390, 5
      %v8509 = vsel %vm7719, %v8507, %v8508
      %v8510 = vrot.slane %v8391, 5
      %v8511 = vsel %vm7719, %v8508, %v8510
      %v8512 = vrot.slane %v8392, 5
      %v8513 = vrot.slane %v8393, 5
      %v8514 = vsel %vm7719, %v8512, %v8513
      %v8515 = vrot.slane %v8394, 5
      %v8516 = vsel %vm7719, %v8513, %v8515
      %v8517 = vrot.slane %v8395, 5
      %v8518 = vrot.slane %v8396, 5
      %v8519 = vsel %vm7719, %v8517, %v8518
      %v8520 = vrot.slane %v8397, 5
      %v8521 = vsel %vm7719, %v8518, %v8520
      %v8522 = vrot.slane %v8398, 5
      %v8523 = vrot.slane %v8399, 5
      %v8524 = vsel %vm7719, %v8522, %v8523
      %v8525 = vrot.slane %v8400, 5
      %v8526 = vsel %vm7719, %v8523, %v8525
      %v8527 = vrot.slane %v8401, 5
      %v8528 = vrot.slane %v8402, 5
      %v8529 = vsel %vm7719, %v8527, %v8528
      %v8530 = vrot.slane %v8403, 5
      %v8531 = vsel %vm7719, %v8528, %v8530
      %v8564 = vadd.f32 %v8076, %v8454
      %v8565 = vadd.f32 %v8077, %v8456
      %v8566 = vadd.f32 %v8078, %v8459
      %v8567 = vadd.f32 %v8079, %v8461
      %v8568 = vadd.f32 %v8080, %v8464
      %v8569 = vadd.f32 %v8081, %v8466
      %v8570 = vadd.f32 %v8082, %v8469
      %v8571 = vadd.f32 %v8083, %v8471
      %v8572 = vadd.f32 %v8084, %v8474
      %v8573 = vadd.f32 %v8085, %v8476
      %v8574 = vadd.f32 %v8086, %v8479
      %v8575 = vadd.f32 %v8087, %v8481
      %v8576 = vadd.f32 %v8088, %v8484
      %v8577 = vadd.f32 %v8089, %v8486
      %v8578 = vadd.f32 %v8090, %v8489
      %v8579 = vadd.f32 %v8091, %v8491
      %v8580 = vadd.f32 %v8092, %v8494
      %v8581 = vadd.f32 %v8093, %v8496
      %v8582 = vadd.f32 %v8094, %v8499
      %v8583 = vadd.f32 %v8095, %v8501
      %v8584 = vadd.f32 %v8096, %v8504
      %v8585 = vadd.f32 %v8097, %v8506
      %v8586 = vadd.f32 %v8098, %v8509
      %v8587 = vadd.f32 %v8099, %v8511
      %v8588 = vadd.f32 %v8100, %v8514
      %v8589 = vadd.f32 %v8101, %v8516
      %v8590 = vadd.f32 %v8102, %v8519
      %v8591 = vadd.f32 %v8103, %v8521
      %v8592 = vadd.f32 %v8104, %v8524
      %v8593 = vadd.f32 %v8105, %v8526
      %v8594 = vadd.f32 %v8106, %v8529
      %v8595 = vadd.f32 %v8107, %v8531
      %v8596 = vlaneseq
      %v8597 = vshrl.u32 %v8596, 7
      %v8598 = vsub.s32 1, %v8597
      %v8599 = vrot.slane %v237, %v8598
      %v8600 = vmul.f32 %v253, %v8599
      %v8601 = vmul.f32 %v254, %v8599
      %v8602 = vmul.f32 %v255, %v8599
      %v8603 = vmul.f32 %v256, %v8599
      %v8604 = vmul.f32 %v257, %v8599
      %v8605 = vmul.f32 %v258, %v8599
      %v8606 = vmul.f32 %v259, %v8599
      %v8607 = vmul.f32 %v260, %v8599
      %v8608 = vmul.f32 %v261, %v8599
      %v8609 = vmul.f32 %v262, %v8599
      %v8610 = vmul.f32 %v263, %v8599
      %v8611 = vmul.f32 %v264, %v8599
      %v8612 = vmul.f32 %v265, %v8599
      %v8613 = vmul.f32 %v266, %v8599
      %v8614 = vmul.f32 %v267, %v8599
      %v8615 = vmul.f32 %v268, %v8599
      %v8616 = vmul.f32 %v269, %v8599
      %v8617 = vmul.f32 %v270, %v8599
      %v8618 = vmul.f32 %v271, %v8599
      %v8619 = vmul.f32 %v272, %v8599
      %v8620 = vmul.f32 %v273, %v8599
      %v8621 = vmul.f32 %v274, %v8599
      %v8622 = vmul.f32 %v275, %v8599
      %v8623 = vmul.f32 %v276, %v8599
      %v8624 = vmul.f32 %v277, %v8599
      %v8625 = vmul.f32 %v278, %v8599
      %v8626 = vmul.f32 %v279, %v8599
      %v8627 = vmul.f32 %v280, %v8599
      %v8628 = vmul.f32 %v281, %v8599
      %v8629 = vmul.f32 %v282, %v8599
      %v8630 = vmul.f32 %v283, %v8599
      %v8631 = vmul.f32 %v284, %v8599
      %v8632 = vmul.f32 %v285, %v8599
      %v8633 = vmul.f32 %v286, %v8599
      %v8634 = vmul.f32 %v287, %v8599
      %v8635 = vmul.f32 %v288, %v8599
      %v8636 = vmul.f32 %v289, %v8599
      %v8637 = vmul.f32 %v290, %v8599
      %v8638 = vmul.f32 %v291, %v8599
      %v8639 = vmul.f32 %v292, %v8599
      %v8640 = vmul.f32 %v293, %v8599
      %v8641 = vmul.f32 %v294, %v8599
      %v8642 = vmul.f32 %v295, %v8599
      %v8643 = vmul.f32 %v296, %v8599
      %v8644 = vmul.f32 %v297, %v8599
      %v8645 = vmul.f32 %v298, %v8599
      %v8646 = vmul.f32 %v299, %v8599
      %v8647 = vmul.f32 %v300, %v8599
      %v8696 = vrot.slane %v8600, 5
      %v8697 = vrot.slane %v8601, 5
      %v8698 = vsel %vm7719, %v8696, %v8697
      %v8699 = vrot.slane %v8602, 5
      %v8700 = vsel %vm7719, %v8697, %v8699
      %v8701 = vrot.slane %v8603, 5
      %v8702 = vrot.slane %v8604, 5
      %v8703 = vsel %vm7719, %v8701, %v8702
      %v8704 = vrot.slane %v8605, 5
      %v8705 = vsel %vm7719, %v8702, %v8704
      %v8706 = vrot.slane %v8606, 5
      %v8707 = vrot.slane %v8607, 5
      %v8708 = vsel %vm7719, %v8706, %v8707
      %v8709 = vrot.slane %v8608, 5
      %v8710 = vsel %vm7719, %v8707, %v8709
      %v8711 = vrot.slane %v8609, 5
      %v8712 = vrot.slane %v8610, 5
      %v8713 = vsel %vm7719, %v8711, %v8712
      %v8714 = vrot.slane %v8611, 5
      %v8715 = vsel %vm7719, %v8712, %v8714
      %v8716 = vrot.slane %v8612, 5
      %v8717 = vrot.slane %v8613, 5
      %v8718 = vsel %vm7719, %v8716, %v8717
      %v8719 = vrot.slane %v8614, 5
      %v8720 = vsel %vm7719, %v8717, %v8719
      %v8721 = vrot.slane %v8615, 5
      %v8722 = vrot.slane %v8616, 5
      %v8723 = vsel %vm7719, %v8721, %v8722
      %v8724 = vrot.slane %v8617, 5
      %v8725 = vsel %vm7719, %v8722, %v8724
      %v8726 = vrot.slane %v8618, 5
      %v8727 = vrot.slane %v8619, 5
      %v8728 = vsel %vm7719, %v8726, %v8727
      %v8729 = vrot.slane %v8620, 5
      %v8730 = vsel %vm7719, %v8727, %v8729
      %v8731 = vrot.slane %v8621, 5
      %v8732 = vrot.slane %v8622, 5
      %v8733 = vsel %vm7719, %v8731, %v8732
      %v8734 = vrot.slane %v8623, 5
      %v8735 = vsel %vm7719, %v8732, %v8734
      %v8736 = vrot.slane %v8624, 5
      %v8737 = vrot.slane %v8625, 5
      %v8738 = vsel %vm7719, %v8736, %v8737
      %v8739 = vrot.slane %v8626, 5
      %v8740 = vsel %vm7719, %v8737, %v8739
      %v8741 = vrot.slane %v8627, 5
      %v8742 = vrot.slane %v8628, 5
      %v8743 = vsel %vm7719, %v8741, %v8742
      %v8744 = vrot.slane %v8629, 5
      %v8745 = vsel %vm7719, %v8742, %v8744
      %v8746 = vrot.slane %v8630, 5
      %v8747 = vrot.slane %v8631, 5
      %v8748 = vsel %vm7719, %v8746, %v8747
      %v8749 = vrot.slane %v8632, 5
      %v8750 = vsel %vm7719, %v8747, %v8749
      %v8751 = vrot.slane %v8633, 5
      %v8752 = vrot.slane %v8634, 5
      %v8753 = vsel %vm7719, %v8751, %v8752
      %v8754 = vrot.slane %v8635, 5
      %v8755 = vsel %vm7719, %v8752, %v8754
      %v8756 = vrot.slane %v8636, 5
      %v8757 = vrot.slane %v8637, 5
      %v8758 = vsel %vm7719, %v8756, %v8757
      %v8759 = vrot.slane %v8638, 5
      %v8760 = vsel %vm7719, %v8757, %v8759
      %v8761 = vrot.slane %v8639, 5
      %v8762 = vrot.slane %v8640, 5
      %v8763 = vsel %vm7719, %v8761, %v8762
      %v8764 = vrot.slane %v8641, 5
      %v8765 = vsel %vm7719, %v8762, %v8764
      %v8766 = vrot.slane %v8642, 5
      %v8767 = vrot.slane %v8643, 5
      %v8768 = vsel %vm7719, %v8766, %v8767
      %v8769 = vrot.slane %v8644, 5
      %v8770 = vsel %vm7719, %v8767, %v8769
      %v8771 = vrot.slane %v8645, 5
      %v8772 = vrot.slane %v8646, 5
      %v8773 = vsel %vm7719, %v8771, %v8772
      %v8774 = vrot.slane %v8647, 5
      %v8775 = vsel %vm7719, %v8772, %v8774
      %v8808 = vadd.f32 %v8320, %v8698
      %v8809 = vadd.f32 %v8321, %v8700
      %v8810 = vadd.f32 %v8322, %v8703
      %v8811 = vadd.f32 %v8323, %v8705
      %v8812 = vadd.f32 %v8324, %v8708
      %v8813 = vadd.f32 %v8325, %v8710
      %v8814 = vadd.f32 %v8326, %v8713
      %v8815 = vadd.f32 %v8327, %v8715
      %v8816 = vadd.f32 %v8328, %v8718
      %v8817 = vadd.f32 %v8329, %v8720
      %v8818 = vadd.f32 %v8330, %v8723
      %v8819 = vadd.f32 %v8331, %v8725
      %v8820 = vadd.f32 %v8332, %v8728
      %v8821 = vadd.f32 %v8333, %v8730
      %v8822 = vadd.f32 %v8334, %v8733
      %v8823 = vadd.f32 %v8335, %v8735
      %v8824 = vadd.f32 %v8336, %v8738
      %v8825 = vadd.f32 %v8337, %v8740
      %v8826 = vadd.f32 %v8338, %v8743
      %v8827 = vadd.f32 %v8339, %v8745
      %v8828 = vadd.f32 %v8340, %v8748
      %v8829 = vadd.f32 %v8341, %v8750
      %v8830 = vadd.f32 %v8342, %v8753
      %v8831 = vadd.f32 %v8343, %v8755
      %v8832 = vadd.f32 %v8344, %v8758
      %v8833 = vadd.f32 %v8345, %v8760
      %v8834 = vadd.f32 %v8346, %v8763
      %v8835 = vadd.f32 %v8347, %v8765
      %v8836 = vadd.f32 %v8348, %v8768
      %v8837 = vadd.f32 %v8349, %v8770
      %v8838 = vadd.f32 %v8350, %v8773
      %v8839 = vadd.f32 %v8351, %v8775
      %v8840 = vlaneseq
      %v8841 = vshrl.u32 %v8840, 7
      %v8842 = vsub.s32 0, %v8841
      %v8843 = vrot.slane %v238, %v8842
      %v8844 = vmul.f32 %v256, %v8843
      %v8845 = vmul.f32 %v257, %v8843
      %v8846 = vmul.f32 %v258, %v8843
      %v8847 = vmul.f32 %v259, %v8843
      %v8848 = vmul.f32 %v260, %v8843
      %v8849 = vmul.f32 %v261, %v8843
      %v8850 = vmul.f32 %v262, %v8843
      %v8851 = vmul.f32 %v263, %v8843
      %v8852 = vmul.f32 %v264, %v8843
      %v8853 = vmul.f32 %v265, %v8843
      %v8854 = vmul.f32 %v266, %v8843
      %v8855 = vmul.f32 %v267, %v8843
      %v8856 = vmul.f32 %v268, %v8843
      %v8857 = vmul.f32 %v269, %v8843
      %v8858 = vmul.f32 %v270, %v8843
      %v8859 = vmul.f32 %v271, %v8843
      %v8860 = vmul.f32 %v272, %v8843
      %v8861 = vmul.f32 %v273, %v8843
      %v8862 = vmul.f32 %v274, %v8843
      %v8863 = vmul.f32 %v275, %v8843
      %v8864 = vmul.f32 %v276, %v8843
      %v8865 = vmul.f32 %v277, %v8843
      %v8866 = vmul.f32 %v278, %v8843
      %v8867 = vmul.f32 %v279, %v8843
      %v8868 = vmul.f32 %v280, %v8843
      %v8869 = vmul.f32 %v281, %v8843
      %v8870 = vmul.f32 %v282, %v8843
      %v8871 = vmul.f32 %v283, %v8843
      %v8872 = vmul.f32 %v284, %v8843
      %v8873 = vmul.f32 %v285, %v8843
      %v8874 = vmul.f32 %v286, %v8843
      %v8875 = vmul.f32 %v287, %v8843
      %v8876 = vmul.f32 %v288, %v8843
      %v8877 = vmul.f32 %v289, %v8843
      %v8878 = vmul.f32 %v290, %v8843
      %v8879 = vmul.f32 %v291, %v8843
      %v8880 = vmul.f32 %v292, %v8843
      %v8881 = vmul.f32 %v293, %v8843
      %v8882 = vmul.f32 %v294, %v8843
      %v8883 = vmul.f32 %v295, %v8843
      %v8884 = vmul.f32 %v296, %v8843
      %v8885 = vmul.f32 %v297, %v8843
      %v8886 = vmul.f32 %v298, %v8843
      %v8887 = vmul.f32 %v299, %v8843
      %v8888 = vmul.f32 %v300, %v8843
      %v8889 = vmul.f32 %v301, %v8843
      %v8890 = vmul.f32 %v302, %v8843
      %v8891 = vmul.f32 %v303, %v8843
      %v8940 = vrot.slane %v8844, 5
      %v8941 = vrot.slane %v8845, 5
      %v8942 = vsel %vm7719, %v8940, %v8941
      %v8943 = vrot.slane %v8846, 5
      %v8944 = vsel %vm7719, %v8941, %v8943
      %v8945 = vrot.slane %v8847, 5
      %v8946 = vrot.slane %v8848, 5
      %v8947 = vsel %vm7719, %v8945, %v8946
      %v8948 = vrot.slane %v8849, 5
      %v8949 = vsel %vm7719, %v8946, %v8948
      %v8950 = vrot.slane %v8850, 5
      %v8951 = vrot.slane %v8851, 5
      %v8952 = vsel %vm7719, %v8950, %v8951
      %v8953 = vrot.slane %v8852, 5
      %v8954 = vsel %vm7719, %v8951, %v8953
      %v8955 = vrot.slane %v8853, 5
      %v8956 = vrot.slane %v8854, 5
      %v8957 = vsel %vm7719, %v8955, %v8956
      %v8958 = vrot.slane %v8855, 5
      %v8959 = vsel %vm7719, %v8956, %v8958
      %v8960 = vrot.slane %v8856, 5
      %v8961 = vrot.slane %v8857, 5
      %v8962 = vsel %vm7719, %v8960, %v8961
      %v8963 = vrot.slane %v8858, 5
      %v8964 = vsel %vm7719, %v8961, %v8963
      %v8965 = vrot.slane %v8859, 5
      %v8966 = vrot.slane %v8860, 5
      %v8967 = vsel %vm7719, %v8965, %v8966
      %v8968 = vrot.slane %v8861, 5
      %v8969 = vsel %vm7719, %v8966, %v8968
      %v8970 = vrot.slane %v8862, 5
      %v8971 = vrot.slane %v8863, 5
      %v8972 = vsel %vm7719, %v8970, %v8971
      %v8973 = vrot.slane %v8864, 5
      %v8974 = vsel %vm7719, %v8971, %v8973
      %v8975 = vrot.slane %v8865, 5
      %v8976 = vrot.slane %v8866, 5
      %v8977 = vsel %vm7719, %v8975, %v8976
      %v8978 = vrot.slane %v8867, 5
      %v8979 = vsel %vm7719, %v8976, %v8978
      %v8980 = vrot.slane %v8868, 5
      %v8981 = vrot.slane %v8869, 5
      %v8982 = vsel %vm7719, %v8980, %v8981
      %v8983 = vrot.slane %v8870, 5
      %v8984 = vsel %vm7719, %v8981, %v8983
      %v8985 = vrot.slane %v8871, 5
      %v8986 = vrot.slane %v8872, 5
      %v8987 = vsel %vm7719, %v8985, %v8986
      %v8988 = vrot.slane %v8873, 5
      %v8989 = vsel %vm7719, %v8986, %v8988
      %v8990 = vrot.slane %v8874, 5
      %v8991 = vrot.slane %v8875, 5
      %v8992 = vsel %vm7719, %v8990, %v8991
      %v8993 = vrot.slane %v8876, 5
      %v8994 = vsel %vm7719, %v8991, %v8993
      %v8995 = vrot.slane %v8877, 5
      %v8996 = vrot.slane %v8878, 5
      %v8997 = vsel %vm7719, %v8995, %v8996
      %v8998 = vrot.slane %v8879, 5
      %v8999 = vsel %vm7719, %v8996, %v8998
      %v9000 = vrot.slane %v8880, 5
      %v9001 = vrot.slane %v8881, 5
      %v9002 = vsel %vm7719, %v9000, %v9001
      %v9003 = vrot.slane %v8882, 5
      %v9004 = vsel %vm7719, %v9001, %v9003
      %v9005 = vrot.slane %v8883, 5
      %v9006 = vrot.slane %v8884, 5
      %v9007 = vsel %vm7719, %v9005, %v9006
      %v9008 = vrot.slane %v8885, 5
      %v9009 = vsel %vm7719, %v9006, %v9008
      %v9010 = vrot.slane %v8886, 5
      %v9011 = vrot.slane %v8887, 5
      %v9012 = vsel %vm7719, %v9010, %v9011
      %v9013 = vrot.slane %v8888, 5
      %v9014 = vsel %vm7719, %v9011, %v9013
      %v9015 = vrot.slane %v8889, 5
      %v9016 = vrot.slane %v8890, 5
      %v9017 = vsel %vm7719, %v9015, %v9016
      %v9018 = vrot.slane %v8891, 5
      %v9019 = vsel %vm7719, %v9016, %v9018
      %v9052 = vadd.f32 %v8564, %v8942
      %v9053 = vadd.f32 %v8565, %v8944
      %v9054 = vadd.f32 %v8566, %v8947
      %v9055 = vadd.f32 %v8567, %v8949
      %v9056 = vadd.f32 %v8568, %v8952
      %v9057 = vadd.f32 %v8569, %v8954
      %v9058 = vadd.f32 %v8570, %v8957
      %v9059 = vadd.f32 %v8571, %v8959
      %v9060 = vadd.f32 %v8572, %v8962
      %v9061 = vadd.f32 %v8573, %v8964
      %v9062 = vadd.f32 %v8574, %v8967
      %v9063 = vadd.f32 %v8575, %v8969
      %v9064 = vadd.f32 %v8576, %v8972
      %v9065 = vadd.f32 %v8577, %v8974
      %v9066 = vadd.f32 %v8578, %v8977
      %v9067 = vadd.f32 %v8579, %v8979
      %v9068 = vadd.f32 %v8580, %v8982
      %v9069 = vadd.f32 %v8581, %v8984
      %v9070 = vadd.f32 %v8582, %v8987
      %v9071 = vadd.f32 %v8583, %v8989
      %v9072 = vadd.f32 %v8584, %v8992
      %v9073 = vadd.f32 %v8585, %v8994
      %v9074 = vadd.f32 %v8586, %v8997
      %v9075 = vadd.f32 %v8587, %v8999
      %v9076 = vadd.f32 %v8588, %v9002
      %v9077 = vadd.f32 %v8589, %v9004
      %v9078 = vadd.f32 %v8590, %v9007
      %v9079 = vadd.f32 %v8591, %v9009
      %v9080 = vadd.f32 %v8592, %v9012
      %v9081 = vadd.f32 %v8593, %v9014
      %v9082 = vadd.f32 %v8594, %v9017
      %v9083 = vadd.f32 %v8595, %v9019
      %v9084 = vlaneseq
      %v9085 = vshrl.u32 %v9084, 7
      %v9086 = vsub.s32 7, %v9085
      %v9087 = vrot.slane %v238, %v9086
      %v9088 = vmul.f32 %v259, %v9087
      %v9089 = vmul.f32 %v260, %v9087
      %v9090 = vmul.f32 %v261, %v9087
      %v9091 = vmul.f32 %v262, %v9087
      %v9092 = vmul.f32 %v263, %v9087
      %v9093 = vmul.f32 %v264, %v9087
      %v9094 = vmul.f32 %v265, %v9087
      %v9095 = vmul.f32 %v266, %v9087
      %v9096 = vmul.f32 %v267, %v9087
      %v9097 = vmul.f32 %v268, %v9087
      %v9098 = vmul.f32 %v269, %v9087
      %v9099 = vmul.f32 %v270, %v9087
      %v9100 = vmul.f32 %v271, %v9087
      %v9101 = vmul.f32 %v272, %v9087
      %v9102 = vmul.f32 %v273, %v9087
      %v9103 = vmul.f32 %v274, %v9087
      %v9104 = vmul.f32 %v275, %v9087
      %v9105 = vmul.f32 %v276, %v9087
      %v9106 = vmul.f32 %v277, %v9087
      %v9107 = vmul.f32 %v278, %v9087
      %v9108 = vmul.f32 %v279, %v9087
      %v9109 = vmul.f32 %v280, %v9087
      %v9110 = vmul.f32 %v281, %v9087
      %v9111 = vmul.f32 %v282, %v9087
      %v9112 = vmul.f32 %v283, %v9087
      %v9113 = vmul.f32 %v284, %v9087
      %v9114 = vmul.f32 %v285, %v9087
      %v9115 = vmul.f32 %v286, %v9087
      %v9116 = vmul.f32 %v287, %v9087
      %v9117 = vmul.f32 %v288, %v9087
      %v9118 = vmul.f32 %v289, %v9087
      %v9119 = vmul.f32 %v290, %v9087
      %v9120 = vmul.f32 %v291, %v9087
      %v9121 = vmul.f32 %v292, %v9087
      %v9122 = vmul.f32 %v293, %v9087
      %v9123 = vmul.f32 %v294, %v9087
      %v9124 = vmul.f32 %v295, %v9087
      %v9125 = vmul.f32 %v296, %v9087
      %v9126 = vmul.f32 %v297, %v9087
      %v9127 = vmul.f32 %v298, %v9087
      %v9128 = vmul.f32 %v299, %v9087
      %v9129 = vmul.f32 %v300, %v9087
      %v9130 = vmul.f32 %v301, %v9087
      %v9131 = vmul.f32 %v302, %v9087
      %v9132 = vmul.f32 %v303, %v9087
      %v9133 = vmul.f32 %v304, %v9087
      %v9134 = vmul.f32 %v305, %v9087
      %v9135 = vmul.f32 %v306, %v9087
      %v9184 = vrot.slane %v9088, 5
      %v9185 = vrot.slane %v9089, 5
      %v9186 = vsel %vm7719, %v9184, %v9185
      %v9187 = vrot.slane %v9090, 5
      %v9188 = vsel %vm7719, %v9185, %v9187
      %v9189 = vrot.slane %v9091, 5
      %v9190 = vrot.slane %v9092, 5
      %v9191 = vsel %vm7719, %v9189, %v9190
      %v9192 = vrot.slane %v9093, 5
      %v9193 = vsel %vm7719, %v9190, %v9192
      %v9194 = vrot.slane %v9094, 5
      %v9195 = vrot.slane %v9095, 5
      %v9196 = vsel %vm7719, %v9194, %v9195
      %v9197 = vrot.slane %v9096, 5
      %v9198 = vsel %vm7719, %v9195, %v9197
      %v9199 = vrot.slane %v9097, 5
      %v9200 = vrot.slane %v9098, 5
      %v9201 = vsel %vm7719, %v9199, %v9200
      %v9202 = vrot.slane %v9099, 5
      %v9203 = vsel %vm7719, %v9200, %v9202
      %v9204 = vrot.slane %v9100, 5
      %v9205 = vrot.slane %v9101, 5
      %v9206 = vsel %vm7719, %v9204, %v9205
      %v9207 = vrot.slane %v9102, 5
      %v9208 = vsel %vm7719, %v9205, %v9207
      %v9209 = vrot.slane %v9103, 5
      %v9210 = vrot.slane %v9104, 5
      %v9211 = vsel %vm7719, %v9209, %v9210
      %v9212 = vrot.slane %v9105, 5
      %v9213 = vsel %vm7719, %v9210, %v9212
      %v9214 = vrot.slane %v9106, 5
      %v9215 = vrot.slane %v9107, 5
      %v9216 = vsel %vm7719, %v9214, %v9215
      %v9217 = vrot.slane %v9108, 5
      %v9218 = vsel %vm7719, %v9215, %v9217
      %v9219 = vrot.slane %v9109, 5
      %v9220 = vrot.slane %v9110, 5
      %v9221 = vsel %vm7719, %v9219, %v9220
      %v9222 = vrot.slane %v9111, 5
      %v9223 = vsel %vm7719, %v9220, %v9222
      %v9224 = vrot.slane %v9112, 5
      %v9225 = vrot.slane %v9113, 5
      %v9226 = vsel %vm7719, %v9224, %v9225
      %v9227 = vrot.slane %v9114, 5
      %v9228 = vsel %vm7719, %v9225, %v9227
      %v9229 = vrot.slane %v9115, 5
      %v9230 = vrot.slane %v9116, 5
      %v9231 = vsel %vm7719, %v9229, %v9230
      %v9232 = vrot.slane %v9117, 5
      %v9233 = vsel %vm7719, %v9230, %v9232
      %v9234 = vrot.slane %v9118, 5
      %v9235 = vrot.slane %v9119, 5
      %v9236 = vsel %vm7719, %v9234, %v9235
      %v9237 = vrot.slane %v9120, 5
      %v9238 = vsel %vm7719, %v9235, %v9237
      %v9239 = vrot.slane %v9121, 5
      %v9240 = vrot.slane %v9122, 5
      %v9241 = vsel %vm7719, %v9239, %v9240
      %v9242 = vrot.slane %v9123, 5
      %v9243 = vsel %vm7719, %v9240, %v9242
      %v9244 = vrot.slane %v9124, 5
      %v9245 = vrot.slane %v9125, 5
      %v9246 = vsel %vm7719, %v9244, %v9245
      %v9247 = vrot.slane %v9126, 5
      %v9248 = vsel %vm7719, %v9245, %v9247
      %v9249 = vrot.slane %v9127, 5
      %v9250 = vrot.slane %v9128, 5
      %v9251 = vsel %vm7719, %v9249, %v9250
      %v9252 = vrot.slane %v9129, 5
      %v9253 = vsel %vm7719, %v9250, %v9252
      %v9254 = vrot.slane %v9130, 5
      %v9255 = vrot.slane %v9131, 5
      %v9256 = vsel %vm7719, %v9254, %v9255
      %v9257 = vrot.slane %v9132, 5
      %v9258 = vsel %vm7719, %v9255, %v9257
      %v9259 = vrot.slane %v9133, 5
      %v9260 = vrot.slane %v9134, 5
      %v9261 = vsel %vm7719, %v9259, %v9260
      %v9262 = vrot.slane %v9135, 5
      %v9263 = vsel %vm7719, %v9260, %v9262
      %v9296 = vadd.f32 %v8808, %v9186
      %v9297 = vadd.f32 %v8809, %v9188
      %v9298 = vadd.f32 %v8810, %v9191
      %v9299 = vadd.f32 %v8811, %v9193
      %v9300 = vadd.f32 %v8812, %v9196
      %v9301 = vadd.f32 %v8813, %v9198
      %v9302 = vadd.f32 %v8814, %v9201
      %v9303 = vadd.f32 %v8815, %v9203
      %v9304 = vadd.f32 %v8816, %v9206
      %v9305 = vadd.f32 %v8817, %v9208
      %v9306 = vadd.f32 %v8818, %v9211
      %v9307 = vadd.f32 %v8819, %v9213
      %v9308 = vadd.f32 %v8820, %v9216
      %v9309 = vadd.f32 %v8821, %v9218
      %v9310 = vadd.f32 %v8822, %v9221
      %v9311 = vadd.f32 %v8823, %v9223
      %v9312 = vadd.f32 %v8824, %v9226
      %v9313 = vadd.f32 %v8825, %v9228
      %v9314 = vadd.f32 %v8826, %v9231
      %v9315 = vadd.f32 %v8827, %v9233
      %v9316 = vadd.f32 %v8828, %v9236
      %v9317 = vadd.f32 %v8829, %v9238
      %v9318 = vadd.f32 %v8830, %v9241
      %v9319 = vadd.f32 %v8831, %v9243
      %v9320 = vadd.f32 %v8832, %v9246
      %v9321 = vadd.f32 %v8833, %v9248
      %v9322 = vadd.f32 %v8834, %v9251
      %v9323 = vadd.f32 %v8835, %v9253
      %v9324 = vadd.f32 %v8836, %v9256
      %v9325 = vadd.f32 %v8837, %v9258
      %v9326 = vadd.f32 %v8838, %v9261
      %v9327 = vadd.f32 %v8839, %v9263
      %v9328 = vlaneseq
      %v9329 = vshrl.u32 %v9328, 7
      %v9330 = vsub.s32 6, %v9329
      %v9331 = vrot.slane %v233, %v9330
      %v9332 = vmul.f32 %v241, %v9331
      %v9333 = vmul.f32 %v242, %v9331
      %v9334 = vmul.f32 %v243, %v9331
      %v9335 = vmul.f32 %v244, %v9331
      %v9336 = vmul.f32 %v245, %v9331
      %v9337 = vmul.f32 %v246, %v9331
      %v9338 = vmul.f32 %v247, %v9331
      %v9339 = vmul.f32 %v248, %v9331
      %v9340 = vmul.f32 %v249, %v9331
      %v9341 = vmul.f32 %v250, %v9331
      %v9342 = vmul.f32 %v251, %v9331
      %v9343 = vmul.f32 %v252, %v9331
      %v9344 = vmul.f32 %v253, %v9331
      %v9345 = vmul.f32 %v254, %v9331
      %v9346 = vmul.f32 %v255, %v9331
      %v9347 = vmul.f32 %v256, %v9331
      %v9348 = vmul.f32 %v257, %v9331
      %v9349 = vmul.f32 %v258, %v9331
      %v9350 = vmul.f32 %v259, %v9331
      %v9351 = vmul.f32 %v260, %v9331
      %v9352 = vmul.f32 %v261, %v9331
      %v9353 = vmul.f32 %v262, %v9331
      %v9354 = vmul.f32 %v263, %v9331
      %v9355 = vmul.f32 %v264, %v9331
      %v9356 = vmul.f32 %v265, %v9331
      %v9357 = vmul.f32 %v266, %v9331
      %v9358 = vmul.f32 %v267, %v9331
      %v9359 = vmul.f32 %v268, %v9331
      %v9360 = vmul.f32 %v269, %v9331
      %v9361 = vmul.f32 %v270, %v9331
      %v9362 = vmul.f32 %v271, %v9331
      %v9363 = vmul.f32 %v272, %v9331
      %v9364 = vmul.f32 %v273, %v9331
      %v9365 = vmul.f32 %v274, %v9331
      %v9366 = vmul.f32 %v275, %v9331
      %v9367 = vmul.f32 %v276, %v9331
      %v9368 = vmul.f32 %v277, %v9331
      %v9369 = vmul.f32 %v278, %v9331
      %v9370 = vmul.f32 %v279, %v9331
      %v9371 = vmul.f32 %v280, %v9331
      %v9372 = vmul.f32 %v281, %v9331
      %v9373 = vmul.f32 %v282, %v9331
      %v9374 = vmul.f32 %v283, %v9331
      %v9375 = vmul.f32 %v284, %v9331
      %v9376 = vmul.f32 %v285, %v9331
      %v9377 = vmul.f32 %v286, %v9331
      %v9378 = vmul.f32 %v287, %v9331
      %v9379 = vmul.f32 %v288, %v9331
      %vm9428 = vcmask 1041408
      %v9429 = vrot.slane %v9332, 6
      %v9430 = vrot.slane %v9333, 6
      %v9431 = vsel %vm9428, %v9429, %v9430
      %v9432 = vrot.slane %v9334, 6
      %v9433 = vsel %vm9428, %v9430, %v9432
      %v9434 = vrot.slane %v9335, 6
      %v9435 = vrot.slane %v9336, 6
      %v9436 = vsel %vm9428, %v9434, %v9435
      %v9437 = vrot.slane %v9337, 6
      %v9438 = vsel %vm9428, %v9435, %v9437
      %v9439 = vrot.slane %v9338, 6
      %v9440 = vrot.slane %v9339, 6
      %v9441 = vsel %vm9428, %v9439, %v9440
      %v9442 = vrot.slane %v9340, 6
      %v9443 = vsel %vm9428, %v9440, %v9442
      %v9444 = vrot.slane %v9341, 6
      %v9445 = vrot.slane %v9342, 6
      %v9446 = vsel %vm9428, %v9444, %v9445
      %v9447 = vrot.slane %v9343, 6
      %v9448 = vsel %vm9428, %v9445, %v9447
      %v9449 = vrot.slane %v9344, 6
      %v9450 = vrot.slane %v9345, 6
      %v9451 = vsel %vm9428, %v9449, %v9450
      %v9452 = vrot.slane %v9346, 6
      %v9453 = vsel %vm9428, %v9450, %v9452
      %v9454 = vrot.slane %v9347, 6
      %v9455 = vrot.slane %v9348, 6
      %v9456 = vsel %vm9428, %v9454, %v9455
      %v9457 = vrot.slane %v9349, 6
      %v9458 = vsel %vm9428, %v9455, %v9457
      %v9459 = vrot.slane %v9350, 6
      %v9460 = vrot.slane %v9351, 6
      %v9461 = vsel %vm9428, %v9459, %v9460
      %v9462 = vrot.slane %v9352, 6
      %v9463 = vsel %vm9428, %v9460, %v9462
      %v9464 = vrot.slane %v9353, 6
      %v9465 = vrot.slane %v9354, 6
      %v9466 = vsel %vm9428, %v9464, %v9465
      %v9467 = vrot.slane %v9355, 6
      %v9468 = vsel %vm9428, %v9465, %v9467
      %v9469 = vrot.slane %v9356, 6
      %v9470 = vrot.slane %v9357, 6
      %v9471 = vsel %vm9428, %v9469, %v9470
      %v9472 = vrot.slane %v9358, 6
      %v9473 = vsel %vm9428, %v9470, %v9472
      %v9474 = vrot.slane %v9359, 6
      %v9475 = vrot.slane %v9360, 6
      %v9476 = vsel %vm9428, %v9474, %v9475
      %v9477 = vrot.slane %v9361, 6
      %v9478 = vsel %vm9428, %v9475, %v9477
      %v9479 = vrot.slane %v9362, 6
      %v9480 = vrot.slane %v9363, 6
      %v9481 = vsel %vm9428, %v9479, %v9480
      %v9482 = vrot.slane %v9364, 6
      %v9483 = vsel %vm9428, %v9480, %v9482
      %v9484 = vrot.slane %v9365, 6
      %v9485 = vrot.slane %v9366, 6
      %v9486 = vsel %vm9428, %v9484, %v9485
      %v9487 = vrot.slane %v9367, 6
      %v9488 = vsel %vm9428, %v9485, %v9487
      %v9489 = vrot.slane %v9368, 6
      %v9490 = vrot.slane %v9369, 6
      %v9491 = vsel %vm9428, %v9489, %v9490
      %v9492 = vrot.slane %v9370, 6
      %v9493 = vsel %vm9428, %v9490, %v9492
      %v9494 = vrot.slane %v9371, 6
      %v9495 = vrot.slane %v9372, 6
      %v9496 = vsel %vm9428, %v9494, %v9495
      %v9497 = vrot.slane %v9373, 6
      %v9498 = vsel %vm9428, %v9495, %v9497
      %v9499 = vrot.slane %v9374, 6
      %v9500 = vrot.slane %v9375, 6
      %v9501 = vsel %vm9428, %v9499, %v9500
      %v9502 = vrot.slane %v9376, 6
      %v9503 = vsel %vm9428, %v9500, %v9502
      %v9504 = vrot.slane %v9377, 6
      %v9505 = vrot.slane %v9378, 6
      %v9506 = vsel %vm9428, %v9504, %v9505
      %v9507 = vrot.slane %v9379, 6
      %v9508 = vsel %vm9428, %v9505, %v9507
      %v9541 = vadd.f32 %v9052, %v9431
      %v9542 = vadd.f32 %v9053, %v9433
      %v9543 = vadd.f32 %v9054, %v9436
      %v9544 = vadd.f32 %v9055, %v9438
      %v9545 = vadd.f32 %v9056, %v9441
      %v9546 = vadd.f32 %v9057, %v9443
      %v9547 = vadd.f32 %v9058, %v9446
      %v9548 = vadd.f32 %v9059, %v9448
      %v9549 = vadd.f32 %v9060, %v9451
      %v9550 = vadd.f32 %v9061, %v9453
      %v9551 = vadd.f32 %v9062, %v9456
      %v9552 = vadd.f32 %v9063, %v9458
      %v9553 = vadd.f32 %v9064, %v9461
      %v9554 = vadd.f32 %v9065, %v9463
      %v9555 = vadd.f32 %v9066, %v9466
      %v9556 = vadd.f32 %v9067, %v9468
      %v9557 = vadd.f32 %v9068, %v9471
      %v9558 = vadd.f32 %v9069, %v9473
      %v9559 = vadd.f32 %v9070, %v9476
      %v9560 = vadd.f32 %v9071, %v9478
      %v9561 = vadd.f32 %v9072, %v9481
      %v9562 = vadd.f32 %v9073, %v9483
      %v9563 = vadd.f32 %v9074, %v9486
      %v9564 = vadd.f32 %v9075, %v9488
      %v9565 = vadd.f32 %v9076, %v9491
      %v9566 = vadd.f32 %v9077, %v9493
      %v9567 = vadd.f32 %v9078, %v9496
      %v9568 = vadd.f32 %v9079, %v9498
      %v9569 = vadd.f32 %v9080, %v9501
      %v9570 = vadd.f32 %v9081, %v9503
      %v9571 = vadd.f32 %v9082, %v9506
      %v9572 = vadd.f32 %v9083, %v9508
      %v9573 = vlaneseq
      %v9574 = vshrl.u32 %v9573, 7
      %v9575 = vsub.s32 5, %v9574
      %v9576 = vrot.slane %v234, %v9575
      %v9577 = vmul.f32 %v244, %v9576
      %v9578 = vmul.f32 %v245, %v9576
      %v9579 = vmul.f32 %v246, %v9576
      %v9580 = vmul.f32 %v247, %v9576
      %v9581 = vmul.f32 %v248, %v9576
      %v9582 = vmul.f32 %v249, %v9576
      %v9583 = vmul.f32 %v250, %v9576
      %v9584 = vmul.f32 %v251, %v9576
      %v9585 = vmul.f32 %v252, %v9576
      %v9586 = vmul.f32 %v253, %v9576
      %v9587 = vmul.f32 %v254, %v9576
      %v9588 = vmul.f32 %v255, %v9576
      %v9589 = vmul.f32 %v256, %v9576
      %v9590 = vmul.f32 %v257, %v9576
      %v9591 = vmul.f32 %v258, %v9576
      %v9592 = vmul.f32 %v259, %v9576
      %v9593 = vmul.f32 %v260, %v9576
      %v9594 = vmul.f32 %v261, %v9576
      %v9595 = vmul.f32 %v262, %v9576
      %v9596 = vmul.f32 %v263, %v9576
      %v9597 = vmul.f32 %v264, %v9576
      %v9598 = vmul.f32 %v265, %v9576
      %v9599 = vmul.f32 %v266, %v9576
      %v9600 = vmul.f32 %v267, %v9576
      %v9601 = vmul.f32 %v268, %v9576
      %v9602 = vmul.f32 %v269, %v9576
      %v9603 = vmul.f32 %v270, %v9576
      %v9604 = vmul.f32 %v271, %v9576
      %v9605 = vmul.f32 %v272, %v9576
      %v9606 = vmul.f32 %v273, %v9576
      %v9607 = vmul.f32 %v274, %v9576
      %v9608 = vmul.f32 %v275, %v9576
      %v9609 = vmul.f32 %v276, %v9576
      %v9610 = vmul.f32 %v277, %v9576
      %v9611 = vmul.f32 %v278, %v9576
      %v9612 = vmul.f32 %v279, %v9576
      %v9613 = vmul.f32 %v280, %v9576
      %v9614 = vmul.f32 %v281, %v9576
      %v9615 = vmul.f32 %v282, %v9576
      %v9616 = vmul.f32 %v283, %v9576
      %v9617 = vmul.f32 %v284, %v9576
      %v9618 = vmul.f32 %v285, %v9576
      %v9619 = vmul.f32 %v286, %v9576
      %v9620 = vmul.f32 %v287, %v9576
      %v9621 = vmul.f32 %v288, %v9576
      %v9622 = vmul.f32 %v289, %v9576
      %v9623 = vmul.f32 %v290, %v9576
      %v9624 = vmul.f32 %v291, %v9576
      %v9673 = vrot.slane %v9577, 6
      %v9674 = vrot.slane %v9578, 6
      %v9675 = vsel %vm9428, %v9673, %v9674
      %v9676 = vrot.slane %v9579, 6
      %v9677 = vsel %vm9428, %v9674, %v9676
      %v9678 = vrot.slane %v9580, 6
      %v9679 = vrot.slane %v9581, 6
      %v9680 = vsel %vm9428, %v9678, %v9679
      %v9681 = vrot.slane %v9582, 6
      %v9682 = vsel %vm9428, %v9679, %v9681
      %v9683 = vrot.slane %v9583, 6
      %v9684 = vrot.slane %v9584, 6
      %v9685 = vsel %vm9428, %v9683, %v9684
      %v9686 = vrot.slane %v9585, 6
      %v9687 = vsel %vm9428, %v9684, %v9686
      %v9688 = vrot.slane %v9586, 6
      %v9689 = vrot.slane %v9587, 6
      %v9690 = vsel %vm9428, %v9688, %v9689
      %v9691 = vrot.slane %v9588, 6
      %v9692 = vsel %vm9428, %v9689, %v9691
      %v9693 = vrot.slane %v9589, 6
      %v9694 = vrot.slane %v9590, 6
      %v9695 = vsel %vm9428, %v9693, %v9694
      %v9696 = vrot.slane %v9591, 6
      %v9697 = vsel %vm9428, %v9694, %v9696
      %v9698 = vrot.slane %v9592, 6
      %v9699 = vrot.slane %v9593, 6
      %v9700 = vsel %vm9428, %v9698, %v9699
      %v9701 = vrot.slane %v9594, 6
      %v9702 = vsel %vm9428, %v9699, %v9701
      %v9703 = vrot.slane %v9595, 6
      %v9704 = vrot.slane %v9596, 6
      %v9705 = vsel %vm9428, %v9703, %v9704
      %v9706 = vrot.slane %v9597, 6
      %v9707 = vsel %vm9428, %v9704, %v9706
      %v9708 = vrot.slane %v9598, 6
      %v9709 = vrot.slane %v9599, 6
      %v9710 = vsel %vm9428, %v9708, %v9709
      %v9711 = vrot.slane %v9600, 6
      %v9712 = vsel %vm9428, %v9709, %v9711
      %v9713 = vrot.slane %v9601, 6
      %v9714 = vrot.slane %v9602, 6
      %v9715 = vsel %vm9428, %v9713, %v9714
      %v9716 = vrot.slane %v9603, 6
      %v9717 = vsel %vm9428, %v9714, %v9716
      %v9718 = vrot.slane %v9604, 6
      %v9719 = vrot.slane %v9605, 6
      %v9720 = vsel %vm9428, %v9718, %v9719
      %v9721 = vrot.slane %v9606, 6
      %v9722 = vsel %vm9428, %v9719, %v9721
      %v9723 = vrot.slane %v9607, 6
      %v9724 = vrot.slane %v9608, 6
      %v9725 = vsel %vm9428, %v9723, %v9724
      %v9726 = vrot.slane %v9609, 6
      %v9727 = vsel %vm9428, %v9724, %v9726
      %v9728 = vrot.slane %v9610, 6
      %v9729 = vrot.slane %v9611, 6
      %v9730 = vsel %vm9428, %v9728, %v9729
      %v9731 = vrot.slane %v9612, 6
      %v9732 = vsel %vm9428, %v9729, %v9731
      %v9733 = vrot.slane %v9613, 6
      %v9734 = vrot.slane %v9614, 6
      %v9735 = vsel %vm9428, %v9733, %v9734
      %v9736 = vrot.slane %v9615, 6
      %v9737 = vsel %vm9428, %v9734, %v9736
      %v9738 = vrot.slane %v9616, 6
      %v9739 = vrot.slane %v9617, 6
      %v9740 = vsel %vm9428, %v9738, %v9739
      %v9741 = vrot.slane %v9618, 6
      %v9742 = vsel %vm9428, %v9739, %v9741
      %v9743 = vrot.slane %v9619, 6
      %v9744 = vrot.slane %v9620, 6
      %v9745 = vsel %vm9428, %v9743, %v9744
      %v9746 = vrot.slane %v9621, 6
      %v9747 = vsel %vm9428, %v9744, %v9746
      %v9748 = vrot.slane %v9622, 6
      %v9749 = vrot.slane %v9623, 6
      %v9750 = vsel %vm9428, %v9748, %v9749
      %v9751 = vrot.slane %v9624, 6
      %v9752 = vsel %vm9428, %v9749, %v9751
      %v9785 = vadd.f32 %v9296, %v9675
      %v9786 = vadd.f32 %v9297, %v9677
      %v9787 = vadd.f32 %v9298, %v9680
      %v9788 = vadd.f32 %v9299, %v9682
      %v9789 = vadd.f32 %v9300, %v9685
      %v9790 = vadd.f32 %v9301, %v9687
      %v9791 = vadd.f32 %v9302, %v9690
      %v9792 = vadd.f32 %v9303, %v9692
      %v9793 = vadd.f32 %v9304, %v9695
      %v9794 = vadd.f32 %v9305, %v9697
      %v9795 = vadd.f32 %v9306, %v9700
      %v9796 = vadd.f32 %v9307, %v9702
      %v9797 = vadd.f32 %v9308, %v9705
      %v9798 = vadd.f32 %v9309, %v9707
      %v9799 = vadd.f32 %v9310, %v9710
      %v9800 = vadd.f32 %v9311, %v9712
      %v9801 = vadd.f32 %v9312, %v9715
      %v9802 = vadd.f32 %v9313, %v9717
      %v9803 = vadd.f32 %v9314, %v9720
      %v9804 = vadd.f32 %v9315, %v9722
      %v9805 = vadd.f32 %v9316, %v9725
      %v9806 = vadd.f32 %v9317, %v9727
      %v9807 = vadd.f32 %v9318, %v9730
      %v9808 = vadd.f32 %v9319, %v9732
      %v9809 = vadd.f32 %v9320, %v9735
      %v9810 = vadd.f32 %v9321, %v9737
      %v9811 = vadd.f32 %v9322, %v9740
      %v9812 = vadd.f32 %v9323, %v9742
      %v9813 = vadd.f32 %v9324, %v9745
      %v9814 = vadd.f32 %v9325, %v9747
      %v9815 = vadd.f32 %v9326, %v9750
      %v9816 = vadd.f32 %v9327, %v9752
      %v9817 = vlaneseq
      %v9818 = vshrl.u32 %v9817, 7
      %v9819 = vsub.s32 4, %v9818
      %v9820 = vrot.slane %v235, %v9819
      %v9821 = vmul.f32 %v247, %v9820
      %v9822 = vmul.f32 %v248, %v9820
      %v9823 = vmul.f32 %v249, %v9820
      %v9824 = vmul.f32 %v250, %v9820
      %v9825 = vmul.f32 %v251, %v9820
      %v9826 = vmul.f32 %v252, %v9820
      %v9827 = vmul.f32 %v253, %v9820
      %v9828 = vmul.f32 %v254, %v9820
      %v9829 = vmul.f32 %v255, %v9820
      %v9830 = vmul.f32 %v256, %v9820
      %v9831 = vmul.f32 %v257, %v9820
      %v9832 = vmul.f32 %v258, %v9820
      %v9833 = vmul.f32 %v259, %v9820
      %v9834 = vmul.f32 %v260, %v9820
      %v9835 = vmul.f32 %v261, %v9820
      %v9836 = vmul.f32 %v262, %v9820
      %v9837 = vmul.f32 %v263, %v9820
      %v9838 = vmul.f32 %v264, %v9820
      %v9839 = vmul.f32 %v265, %v9820
      %v9840 = vmul.f32 %v266, %v9820
      %v9841 = vmul.f32 %v267, %v9820
      %v9842 = vmul.f32 %v268, %v9820
      %v9843 = vmul.f32 %v269, %v9820
      %v9844 = vmul.f32 %v270, %v9820
      %v9845 = vmul.f32 %v271, %v9820
      %v9846 = vmul.f32 %v272, %v9820
      %v9847 = vmul.f32 %v273, %v9820
      %v9848 = vmul.f32 %v274, %v9820
      %v9849 = vmul.f32 %v275, %v9820
      %v9850 = vmul.f32 %v276, %v9820
      %v9851 = vmul.f32 %v277, %v9820
      %v9852 = vmul.f32 %v278, %v9820
      %v9853 = vmul.f32 %v279, %v9820
      %v9854 = vmul.f32 %v280, %v9820
      %v9855 = vmul.f32 %v281, %v9820
      %v9856 = vmul.f32 %v282, %v9820
      %v9857 = vmul.f32 %v283, %v9820
      %v9858 = vmul.f32 %v284, %v9820
      %v9859 = vmul.f32 %v285, %v9820
      %v9860 = vmul.f32 %v286, %v9820
      %v9861 = vmul.f32 %v287, %v9820
      %v9862 = vmul.f32 %v288, %v9820
      %v9863 = vmul.f32 %v289, %v9820
      %v9864 = vmul.f32 %v290, %v9820
      %v9865 = vmul.f32 %v291, %v9820
      %v9866 = vmul.f32 %v292, %v9820
      %v9867 = vmul.f32 %v293, %v9820
      %v9868 = vmul.f32 %v294, %v9820
      %v9917 = vrot.slane %v9821, 6
      %v9918 = vrot.slane %v9822, 6
      %v9919 = vsel %vm9428, %v9917, %v9918
      %v9920 = vrot.slane %v9823, 6
      %v9921 = vsel %vm9428, %v9918, %v9920
      %v9922 = vrot.slane %v9824, 6
      %v9923 = vrot.slane %v9825, 6
      %v9924 = vsel %vm9428, %v9922, %v9923
      %v9925 = vrot.slane %v9826, 6
      %v9926 = vsel %vm9428, %v9923, %v9925
      %v9927 = vrot.slane %v9827, 6
      %v9928 = vrot.slane %v9828, 6
      %v9929 = vsel %vm9428, %v9927, %v9928
      %v9930 = vrot.slane %v9829, 6
      %v9931 = vsel %vm9428, %v9928, %v9930
      %v9932 = vrot.slane %v9830, 6
      %v9933 = vrot.slane %v9831, 6
      %v9934 = vsel %vm9428, %v9932, %v9933
      %v9935 = vrot.slane %v9832, 6
      %v9936 = vsel %vm9428, %v9933, %v9935
      %v9937 = vrot.slane %v9833, 6
      %v9938 = vrot.slane %v9834, 6
      %v9939 = vsel %vm9428, %v9937, %v9938
      %v9940 = vrot.slane %v9835, 6
      %v9941 = vsel %vm9428, %v9938, %v9940
      %v9942 = vrot.slane %v9836, 6
      %v9943 = vrot.slane %v9837, 6
      %v9944 = vsel %vm9428, %v9942, %v9943
      %v9945 = vrot.slane %v9838, 6
      %v9946 = vsel %vm9428, %v9943, %v9945
      %v9947 = vrot.slane %v9839, 6
      %v9948 = vrot.slane %v9840, 6
      %v9949 = vsel %vm9428, %v9947, %v9948
      %v9950 = vrot.slane %v9841, 6
      %v9951 = vsel %vm9428, %v9948, %v9950
      %v9952 = vrot.slane %v9842, 6
      %v9953 = vrot.slane %v9843, 6
      %v9954 = vsel %vm9428, %v9952, %v9953
      %v9955 = vrot.slane %v9844, 6
      %v9956 = vsel %vm9428, %v9953, %v9955
      %v9957 = vrot.slane %v9845, 6
      %v9958 = vrot.slane %v9846, 6
      %v9959 = vsel %vm9428, %v9957, %v9958
      %v9960 = vrot.slane %v9847, 6
      %v9961 = vsel %vm9428, %v9958, %v9960
      %v9962 = vrot.slane %v9848, 6
      %v9963 = vrot.slane %v9849, 6
      %v9964 = vsel %vm9428, %v9962, %v9963
      %v9965 = vrot.slane %v9850, 6
      %v9966 = vsel %vm9428, %v9963, %v9965
      %v9967 = vrot.slane %v9851, 6
      %v9968 = vrot.slane %v9852, 6
      %v9969 = vsel %vm9428, %v9967, %v9968
      %v9970 = vrot.slane %v9853, 6
      %v9971 = vsel %vm9428, %v9968, %v9970
      %v9972 = vrot.slane %v9854, 6
      %v9973 = vrot.slane %v9855, 6
      %v9974 = vsel %vm9428, %v9972, %v9973
      %v9975 = vrot.slane %v9856, 6
      %v9976 = vsel %vm9428, %v9973, %v9975
      %v9977 = vrot.slane %v9857, 6
      %v9978 = vrot.slane %v9858, 6
      %v9979 = vsel %vm9428, %v9977, %v9978
      %v9980 = vrot.slane %v9859, 6
      %v9981 = vsel %vm9428, %v9978, %v9980
      %v9982 = vrot.slane %v9860, 6
      %v9983 = vrot.slane %v9861, 6
      %v9984 = vsel %vm9428, %v9982, %v9983
      %v9985 = vrot.slane %v9862, 6
      %v9986 = vsel %vm9428, %v9983, %v9985
      %v9987 = vrot.slane %v9863, 6
      %v9988 = vrot.slane %v9864, 6
      %v9989 = vsel %vm9428, %v9987, %v9988
      %v9990 = vrot.slane %v9865, 6
      %v9991 = vsel %vm9428, %v9988, %v9990
      %v9992 = vrot.slane %v9866, 6
      %v9993 = vrot.slane %v9867, 6
      %v9994 = vsel %vm9428, %v9992, %v9993
      %v9995 = vrot.slane %v9868, 6
      %v9996 = vsel %vm9428, %v9993, %v9995
      %v10029 = vadd.f32 %v9541, %v9919
      %v10030 = vadd.f32 %v9542, %v9921
      %v10031 = vadd.f32 %v9543, %v9924
      %v10032 = vadd.f32 %v9544, %v9926
      %v10033 = vadd.f32 %v9545, %v9929
      %v10034 = vadd.f32 %v9546, %v9931
      %v10035 = vadd.f32 %v9547, %v9934
      %v10036 = vadd.f32 %v9548, %v9936
      %v10037 = vadd.f32 %v9549, %v9939
      %v10038 = vadd.f32 %v9550, %v9941
      %v10039 = vadd.f32 %v9551, %v9944
      %v10040 = vadd.f32 %v9552, %v9946
      %v10041 = vadd.f32 %v9553, %v9949
      %v10042 = vadd.f32 %v9554, %v9951
      %v10043 = vadd.f32 %v9555, %v9954
      %v10044 = vadd.f32 %v9556, %v9956
      %v10045 = vadd.f32 %v9557, %v9959
      %v10046 = vadd.f32 %v9558, %v9961
      %v10047 = vadd.f32 %v9559, %v9964
      %v10048 = vadd.f32 %v9560, %v9966
      %v10049 = vadd.f32 %v9561, %v9969
      %v10050 = vadd.f32 %v9562, %v9971
      %v10051 = vadd.f32 %v9563, %v9974
      %v10052 = vadd.f32 %v9564, %v9976
      %v10053 = vadd.f32 %v9565, %v9979
      %v10054 = vadd.f32 %v9566, %v9981
      %v10055 = vadd.f32 %v9567, %v9984
      %v10056 = vadd.f32 %v9568, %v9986
      %v10057 = vadd.f32 %v9569, %v9989
      %v10058 = vadd.f32 %v9570, %v9991
      %v10059 = vadd.f32 %v9571, %v9994
      %v10060 = vadd.f32 %v9572, %v9996
      %v10061 = vlaneseq
      %v10062 = vshrl.u32 %v10061, 7
      %v10063 = vsub.s32 3, %v10062
      %v10064 = vrot.slane %v236, %v10063
      %v10065 = vmul.f32 %v250, %v10064
      %v10066 = vmul.f32 %v251, %v10064
      %v10067 = vmul.f32 %v252, %v10064
      %v10068 = vmul.f32 %v253, %v10064
      %v10069 = vmul.f32 %v254, %v10064
      %v10070 = vmul.f32 %v255, %v10064
      %v10071 = vmul.f32 %v256, %v10064
      %v10072 = vmul.f32 %v257, %v10064
      %v10073 = vmul.f32 %v258, %v10064
      %v10074 = vmul.f32 %v259, %v10064
      %v10075 = vmul.f32 %v260, %v10064
      %v10076 = vmul.f32 %v261, %v10064
      %v10077 = vmul.f32 %v262, %v10064
      %v10078 = vmul.f32 %v263, %v10064
      %v10079 = vmul.f32 %v264, %v10064
      %v10080 = vmul.f32 %v265, %v10064
      %v10081 = vmul.f32 %v266, %v10064
      %v10082 = vmul.f32 %v267, %v10064
      %v10083 = vmul.f32 %v268, %v10064
      %v10084 = vmul.f32 %v269, %v10064
      %v10085 = vmul.f32 %v270, %v10064
      %v10086 = vmul.f32 %v271, %v10064
      %v10087 = vmul.f32 %v272, %v10064
      %v10088 = vmul.f32 %v273, %v10064
      %v10089 = vmul.f32 %v274, %v10064
      %v10090 = vmul.f32 %v275, %v10064
      %v10091 = vmul.f32 %v276, %v10064
      %v10092 = vmul.f32 %v277, %v10064
      %v10093 = vmul.f32 %v278, %v10064
      %v10094 = vmul.f32 %v279, %v10064
      %v10095 = vmul.f32 %v280, %v10064
      %v10096 = vmul.f32 %v281, %v10064
      %v10097 = vmul.f32 %v282, %v10064
      %v10098 = vmul.f32 %v283, %v10064
      %v10099 = vmul.f32 %v284, %v10064
      %v10100 = vmul.f32 %v285, %v10064
      %v10101 = vmul.f32 %v286, %v10064
      %v10102 = vmul.f32 %v287, %v10064
      %v10103 = vmul.f32 %v288, %v10064
      %v10104 = vmul.f32 %v289, %v10064
      %v10105 = vmul.f32 %v290, %v10064
      %v10106 = vmul.f32 %v291, %v10064
      %v10107 = vmul.f32 %v292, %v10064
      %v10108 = vmul.f32 %v293, %v10064
      %v10109 = vmul.f32 %v294, %v10064
      %v10110 = vmul.f32 %v295, %v10064
      %v10111 = vmul.f32 %v296, %v10064
      %v10112 = vmul.f32 %v297, %v10064
      %v10161 = vrot.slane %v10065, 6
      %v10162 = vrot.slane %v10066, 6
      %v10163 = vsel %vm9428, %v10161, %v10162
      %v10164 = vrot.slane %v10067, 6
      %v10165 = vsel %vm9428, %v10162, %v10164
      %v10166 = vrot.slane %v10068, 6
      %v10167 = vrot.slane %v10069, 6
      %v10168 = vsel %vm9428, %v10166, %v10167
      %v10169 = vrot.slane %v10070, 6
      %v10170 = vsel %vm9428, %v10167, %v10169
      %v10171 = vrot.slane %v10071, 6
      %v10172 = vrot.slane %v10072, 6
      %v10173 = vsel %vm9428, %v10171, %v10172
      %v10174 = vrot.slane %v10073, 6
      %v10175 = vsel %vm9428, %v10172, %v10174
      %v10176 = vrot.slane %v10074, 6
      %v10177 = vrot.slane %v10075, 6
      %v10178 = vsel %vm9428, %v10176, %v10177
      %v10179 = vrot.slane %v10076, 6
      %v10180 = vsel %vm9428, %v10177, %v10179
      %v10181 = vrot.slane %v10077, 6
      %v10182 = vrot.slane %v10078, 6
      %v10183 = vsel %vm9428, %v10181, %v10182
      %v10184 = vrot.slane %v10079, 6
      %v10185 = vsel %vm9428, %v10182, %v10184
      %v10186 = vrot.slane %v10080, 6
      %v10187 = vrot.slane %v10081, 6
      %v10188 = vsel %vm9428, %v10186, %v10187
      %v10189 = vrot.slane %v10082, 6
      %v10190 = vsel %vm9428, %v10187, %v10189
      %v10191 = vrot.slane %v10083, 6
      %v10192 = vrot.slane %v10084, 6
      %v10193 = vsel %vm9428, %v10191, %v10192
      %v10194 = vrot.slane %v10085, 6
      %v10195 = vsel %vm9428, %v10192, %v10194
      %v10196 = vrot.slane %v10086, 6
      %v10197 = vrot.slane %v10087, 6
      %v10198 = vsel %vm9428, %v10196, %v10197
      %v10199 = vrot.slane %v10088, 6
      %v10200 = vsel %vm9428, %v10197, %v10199
      %v10201 = vrot.slane %v10089, 6
      %v10202 = vrot.slane %v10090, 6
      %v10203 = vsel %vm9428, %v10201, %v10202
      %v10204 = vrot.slane %v10091, 6
      %v10205 = vsel %vm9428, %v10202, %v10204
      %v10206 = vrot.slane %v10092, 6
      %v10207 = vrot.slane %v10093, 6
      %v10208 = vsel %vm9428, %v10206, %v10207
      %v10209 = vrot.slane %v10094, 6
      %v10210 = vsel %vm9428, %v10207, %v10209
      %v10211 = vrot.slane %v10095, 6
      %v10212 = vrot.slane %v10096, 6
      %v10213 = vsel %vm9428, %v10211, %v10212
      %v10214 = vrot.slane %v10097, 6
      %v10215 = vsel %vm9428, %v10212, %v10214
      %v10216 = vrot.slane %v10098, 6
      %v10217 = vrot.slane %v10099, 6
      %v10218 = vsel %vm9428, %v10216, %v10217
      %v10219 = vrot.slane %v10100, 6
      %v10220 = vsel %vm9428, %v10217, %v10219
      %v10221 = vrot.slane %v10101, 6
      %v10222 = vrot.slane %v10102, 6
      %v10223 = vsel %vm9428, %v10221, %v10222
      %v10224 = vrot.slane %v10103, 6
      %v10225 = vsel %vm9428, %v10222, %v10224
      %v10226 = vrot.slane %v10104, 6
      %v10227 = vrot.slane %v10105, 6
      %v10228 = vsel %vm9428, %v10226, %v10227
      %v10229 = vrot.slane %v10106, 6
      %v10230 = vsel %vm9428, %v10227, %v10229
      %v10231 = vrot.slane %v10107, 6
      %v10232 = vrot.slane %v10108, 6
      %v10233 = vsel %vm9428, %v10231, %v10232
      %v10234 = vrot.slane %v10109, 6
      %v10235 = vsel %vm9428, %v10232, %v10234
      %v10236 = vrot.slane %v10110, 6
      %v10237 = vrot.slane %v10111, 6
      %v10238 = vsel %vm9428, %v10236, %v10237
      %v10239 = vrot.slane %v10112, 6
      %v10240 = vsel %vm9428, %v10237, %v10239
      %v10273 = vadd.f32 %v9785, %v10163
      %v10274 = vadd.f32 %v9786, %v10165
      %v10275 = vadd.f32 %v9787, %v10168
      %v10276 = vadd.f32 %v9788, %v10170
      %v10277 = vadd.f32 %v9789, %v10173
      %v10278 = vadd.f32 %v9790, %v10175
      %v10279 = vadd.f32 %v9791, %v10178
      %v10280 = vadd.f32 %v9792, %v10180
      %v10281 = vadd.f32 %v9793, %v10183
      %v10282 = vadd.f32 %v9794, %v10185
      %v10283 = vadd.f32 %v9795, %v10188
      %v10284 = vadd.f32 %v9796, %v10190
      %v10285 = vadd.f32 %v9797, %v10193
      %v10286 = vadd.f32 %v9798, %v10195
      %v10287 = vadd.f32 %v9799, %v10198
      %v10288 = vadd.f32 %v9800, %v10200
      %v10289 = vadd.f32 %v9801, %v10203
      %v10290 = vadd.f32 %v9802, %v10205
      %v10291 = vadd.f32 %v9803, %v10208
      %v10292 = vadd.f32 %v9804, %v10210
      %v10293 = vadd.f32 %v9805, %v10213
      %v10294 = vadd.f32 %v9806, %v10215
      %v10295 = vadd.f32 %v9807, %v10218
      %v10296 = vadd.f32 %v9808, %v10220
      %v10297 = vadd.f32 %v9809, %v10223
      %v10298 = vadd.f32 %v9810, %v10225
      %v10299 = vadd.f32 %v9811, %v10228
      %v10300 = vadd.f32 %v9812, %v10230
      %v10301 = vadd.f32 %v9813, %v10233
      %v10302 = vadd.f32 %v9814, %v10235
      %v10303 = vadd.f32 %v9815, %v10238
      %v10304 = vadd.f32 %v9816, %v10240
      %v10305 = vlaneseq
      %v10306 = vshrl.u32 %v10305, 7
      %v10307 = vsub.s32 2, %v10306
      %v10308 = vrot.slane %v237, %v10307
      %v10309 = vmul.f32 %v253, %v10308
      %v10310 = vmul.f32 %v254, %v10308
      %v10311 = vmul.f32 %v255, %v10308
      %v10312 = vmul.f32 %v256, %v10308
      %v10313 = vmul.f32 %v257, %v10308
      %v10314 = vmul.f32 %v258, %v10308
      %v10315 = vmul.f32 %v259, %v10308
      %v10316 = vmul.f32 %v260, %v10308
      %v10317 = vmul.f32 %v261, %v10308
      %v10318 = vmul.f32 %v262, %v10308
      %v10319 = vmul.f32 %v263, %v10308
      %v10320 = vmul.f32 %v264, %v10308
      %v10321 = vmul.f32 %v265, %v10308
      %v10322 = vmul.f32 %v266, %v10308
      %v10323 = vmul.f32 %v267, %v10308
      %v10324 = vmul.f32 %v268, %v10308
      %v10325 = vmul.f32 %v269, %v10308
      %v10326 = vmul.f32 %v270, %v10308
      %v10327 = vmul.f32 %v271, %v10308
      %v10328 = vmul.f32 %v272, %v10308
      %v10329 = vmul.f32 %v273, %v10308
      %v10330 = vmul.f32 %v274, %v10308
      %v10331 = vmul.f32 %v275, %v10308
      %v10332 = vmul.f32 %v276, %v10308
      %v10333 = vmul.f32 %v277, %v10308
      %v10334 = vmul.f32 %v278, %v10308
      %v10335 = vmul.f32 %v279, %v10308
      %v10336 = vmul.f32 %v280, %v10308
      %v10337 = vmul.f32 %v281, %v10308
      %v10338 = vmul.f32 %v282, %v10308
      %v10339 = vmul.f32 %v283, %v10308
      %v10340 = vmul.f32 %v284, %v10308
      %v10341 = vmul.f32 %v285, %v10308
      %v10342 = vmul.f32 %v286, %v10308
      %v10343 = vmul.f32 %v287, %v10308
      %v10344 = vmul.f32 %v288, %v10308
      %v10345 = vmul.f32 %v289, %v10308
      %v10346 = vmul.f32 %v290, %v10308
      %v10347 = vmul.f32 %v291, %v10308
      %v10348 = vmul.f32 %v292, %v10308
      %v10349 = vmul.f32 %v293, %v10308
      %v10350 = vmul.f32 %v294, %v10308
      %v10351 = vmul.f32 %v295, %v10308
      %v10352 = vmul.f32 %v296, %v10308
      %v10353 = vmul.f32 %v297, %v10308
      %v10354 = vmul.f32 %v298, %v10308
      %v10355 = vmul.f32 %v299, %v10308
      %v10356 = vmul.f32 %v300, %v10308
      %v10405 = vrot.slane %v10309, 6
      %v10406 = vrot.slane %v10310, 6
      %v10407 = vsel %vm9428, %v10405, %v10406
      %v10408 = vrot.slane %v10311, 6
      %v10409 = vsel %vm9428, %v10406, %v10408
      %v10410 = vrot.slane %v10312, 6
      %v10411 = vrot.slane %v10313, 6
      %v10412 = vsel %vm9428, %v10410, %v10411
      %v10413 = vrot.slane %v10314, 6
      %v10414 = vsel %vm9428, %v10411, %v10413
      %v10415 = vrot.slane %v10315, 6
      %v10416 = vrot.slane %v10316, 6
      %v10417 = vsel %vm9428, %v10415, %v10416
      %v10418 = vrot.slane %v10317, 6
      %v10419 = vsel %vm9428, %v10416, %v10418
      %v10420 = vrot.slane %v10318, 6
      %v10421 = vrot.slane %v10319, 6
      %v10422 = vsel %vm9428, %v10420, %v10421
      %v10423 = vrot.slane %v10320, 6
      %v10424 = vsel %vm9428, %v10421, %v10423
      %v10425 = vrot.slane %v10321, 6
      %v10426 = vrot.slane %v10322, 6
      %v10427 = vsel %vm9428, %v10425, %v10426
      %v10428 = vrot.slane %v10323, 6
      %v10429 = vsel %vm9428, %v10426, %v10428
      %v10430 = vrot.slane %v10324, 6
      %v10431 = vrot.slane %v10325, 6
      %v10432 = vsel %vm9428, %v10430, %v10431
      %v10433 = vrot.slane %v10326, 6
      %v10434 = vsel %vm9428, %v10431, %v10433
      %v10435 = vrot.slane %v10327, 6
      %v10436 = vrot.slane %v10328, 6
      %v10437 = vsel %vm9428, %v10435, %v10436
      %v10438 = vrot.slane %v10329, 6
      %v10439 = vsel %vm9428, %v10436, %v10438
      %v10440 = vrot.slane %v10330, 6
      %v10441 = vrot.slane %v10331, 6
      %v10442 = vsel %vm9428, %v10440, %v10441
      %v10443 = vrot.slane %v10332, 6
      %v10444 = vsel %vm9428, %v10441, %v10443
      %v10445 = vrot.slane %v10333, 6
      %v10446 = vrot.slane %v10334, 6
      %v10447 = vsel %vm9428, %v10445, %v10446
      %v10448 = vrot.slane %v10335, 6
      %v10449 = vsel %vm9428, %v10446, %v10448
      %v10450 = vrot.slane %v10336, 6
      %v10451 = vrot.slane %v10337, 6
      %v10452 = vsel %vm9428, %v10450, %v10451
      %v10453 = vrot.slane %v10338, 6
      %v10454 = vsel %vm9428, %v10451, %v10453
      %v10455 = vrot.slane %v10339, 6
      %v10456 = vrot.slane %v10340, 6
      %v10457 = vsel %vm9428, %v10455, %v10456
      %v10458 = vrot.slane %v10341, 6
      %v10459 = vsel %vm9428, %v10456, %v10458
      %v10460 = vrot.slane %v10342, 6
      %v10461 = vrot.slane %v10343, 6
      %v10462 = vsel %vm9428, %v10460, %v10461
      %v10463 = vrot.slane %v10344, 6
      %v10464 = vsel %vm9428, %v10461, %v10463
      %v10465 = vrot.slane %v10345, 6
      %v10466 = vrot.slane %v10346, 6
      %v10467 = vsel %vm9428, %v10465, %v10466
      %v10468 = vrot.slane %v10347, 6
      %v10469 = vsel %vm9428, %v10466, %v10468
      %v10470 = vrot.slane %v10348, 6
      %v10471 = vrot.slane %v10349, 6
      %v10472 = vsel %vm9428, %v10470, %v10471
      %v10473 = vrot.slane %v10350, 6
      %v10474 = vsel %vm9428, %v10471, %v10473
      %v10475 = vrot.slane %v10351, 6
      %v10476 = vrot.slane %v10352, 6
      %v10477 = vsel %vm9428, %v10475, %v10476
      %v10478 = vrot.slane %v10353, 6
      %v10479 = vsel %vm9428, %v10476, %v10478
      %v10480 = vrot.slane %v10354, 6
      %v10481 = vrot.slane %v10355, 6
      %v10482 = vsel %vm9428, %v10480, %v10481
      %v10483 = vrot.slane %v10356, 6
      %v10484 = vsel %vm9428, %v10481, %v10483
      %v10517 = vadd.f32 %v10029, %v10407
      %v10518 = vadd.f32 %v10030, %v10409
      %v10519 = vadd.f32 %v10031, %v10412
      %v10520 = vadd.f32 %v10032, %v10414
      %v10521 = vadd.f32 %v10033, %v10417
      %v10522 = vadd.f32 %v10034, %v10419
      %v10523 = vadd.f32 %v10035, %v10422
      %v10524 = vadd.f32 %v10036, %v10424
      %v10525 = vadd.f32 %v10037, %v10427
      %v10526 = vadd.f32 %v10038, %v10429
      %v10527 = vadd.f32 %v10039, %v10432
      %v10528 = vadd.f32 %v10040, %v10434
      %v10529 = vadd.f32 %v10041, %v10437
      %v10530 = vadd.f32 %v10042, %v10439
      %v10531 = vadd.f32 %v10043, %v10442
      %v10532 = vadd.f32 %v10044, %v10444
      %v10533 = vadd.f32 %v10045, %v10447
      %v10534 = vadd.f32 %v10046, %v10449
      %v10535 = vadd.f32 %v10047, %v10452
      %v10536 = vadd.f32 %v10048, %v10454
      %v10537 = vadd.f32 %v10049, %v10457
      %v10538 = vadd.f32 %v10050, %v10459
      %v10539 = vadd.f32 %v10051, %v10462
      %v10540 = vadd.f32 %v10052, %v10464
      %v10541 = vadd.f32 %v10053, %v10467
      %v10542 = vadd.f32 %v10054, %v10469
      %v10543 = vadd.f32 %v10055, %v10472
      %v10544 = vadd.f32 %v10056, %v10474
      %v10545 = vadd.f32 %v10057, %v10477
      %v10546 = vadd.f32 %v10058, %v10479
      %v10547 = vadd.f32 %v10059, %v10482
      %v10548 = vadd.f32 %v10060, %v10484
      %v10549 = vlaneseq
      %v10550 = vshrl.u32 %v10549, 7
      %v10551 = vsub.s32 1, %v10550
      %v10552 = vrot.slane %v238, %v10551
      %v10553 = vmul.f32 %v256, %v10552
      %v10554 = vmul.f32 %v257, %v10552
      %v10555 = vmul.f32 %v258, %v10552
      %v10556 = vmul.f32 %v259, %v10552
      %v10557 = vmul.f32 %v260, %v10552
      %v10558 = vmul.f32 %v261, %v10552
      %v10559 = vmul.f32 %v262, %v10552
      %v10560 = vmul.f32 %v263, %v10552
      %v10561 = vmul.f32 %v264, %v10552
      %v10562 = vmul.f32 %v265, %v10552
      %v10563 = vmul.f32 %v266, %v10552
      %v10564 = vmul.f32 %v267, %v10552
      %v10565 = vmul.f32 %v268, %v10552
      %v10566 = vmul.f32 %v269, %v10552
      %v10567 = vmul.f32 %v270, %v10552
      %v10568 = vmul.f32 %v271, %v10552
      %v10569 = vmul.f32 %v272, %v10552
      %v10570 = vmul.f32 %v273, %v10552
      %v10571 = vmul.f32 %v274, %v10552
      %v10572 = vmul.f32 %v275, %v10552
      %v10573 = vmul.f32 %v276, %v10552
      %v10574 = vmul.f32 %v277, %v10552
      %v10575 = vmul.f32 %v278, %v10552
      %v10576 = vmul.f32 %v279, %v10552
      %v10577 = vmul.f32 %v280, %v10552
      %v10578 = vmul.f32 %v281, %v10552
      %v10579 = vmul.f32 %v282, %v10552
      %v10580 = vmul.f32 %v283, %v10552
      %v10581 = vmul.f32 %v284, %v10552
      %v10582 = vmul.f32 %v285, %v10552
      %v10583 = vmul.f32 %v286, %v10552
      %v10584 = vmul.f32 %v287, %v10552
      %v10585 = vmul.f32 %v288, %v10552
      %v10586 = vmul.f32 %v289, %v10552
      %v10587 = vmul.f32 %v290, %v10552
      %v10588 = vmul.f32 %v291, %v10552
      %v10589 = vmul.f32 %v292, %v10552
      %v10590 = vmul.f32 %v293, %v10552
      %v10591 = vmul.f32 %v294, %v10552
      %v10592 = vmul.f32 %v295, %v10552
      %v10593 = vmul.f32 %v296, %v10552
      %v10594 = vmul.f32 %v297, %v10552
      %v10595 = vmul.f32 %v298, %v10552
      %v10596 = vmul.f32 %v299, %v10552
      %v10597 = vmul.f32 %v300, %v10552
      %v10598 = vmul.f32 %v301, %v10552
      %v10599 = vmul.f32 %v302, %v10552
      %v10600 = vmul.f32 %v303, %v10552
      %v10649 = vrot.slane %v10553, 6
      %v10650 = vrot.slane %v10554, 6
      %v10651 = vsel %vm9428, %v10649, %v10650
      %v10652 = vrot.slane %v10555, 6
      %v10653 = vsel %vm9428, %v10650, %v10652
      %v10654 = vrot.slane %v10556, 6
      %v10655 = vrot.slane %v10557, 6
      %v10656 = vsel %vm9428, %v10654, %v10655
      %v10657 = vrot.slane %v10558, 6
      %v10658 = vsel %vm9428, %v10655, %v10657
      %v10659 = vrot.slane %v10559, 6
      %v10660 = vrot.slane %v10560, 6
      %v10661 = vsel %vm9428, %v10659, %v10660
      %v10662 = vrot.slane %v10561, 6
      %v10663 = vsel %vm9428, %v10660, %v10662
      %v10664 = vrot.slane %v10562, 6
      %v10665 = vrot.slane %v10563, 6
      %v10666 = vsel %vm9428, %v10664, %v10665
      %v10667 = vrot.slane %v10564, 6
      %v10668 = vsel %vm9428, %v10665, %v10667
      %v10669 = vrot.slane %v10565, 6
      %v10670 = vrot.slane %v10566, 6
      %v10671 = vsel %vm9428, %v10669, %v10670
      %v10672 = vrot.slane %v10567, 6
      %v10673 = vsel %vm9428, %v10670, %v10672
      %v10674 = vrot.slane %v10568, 6
      %v10675 = vrot.slane %v10569, 6
      %v10676 = vsel %vm9428, %v10674, %v10675
      %v10677 = vrot.slane %v10570, 6
      %v10678 = vsel %vm9428, %v10675, %v10677
      %v10679 = vrot.slane %v10571, 6
      %v10680 = vrot.slane %v10572, 6
      %v10681 = vsel %vm9428, %v10679, %v10680
      %v10682 = vrot.slane %v10573, 6
      %v10683 = vsel %vm9428, %v10680, %v10682
      %v10684 = vrot.slane %v10574, 6
      %v10685 = vrot.slane %v10575, 6
      %v10686 = vsel %vm9428, %v10684, %v10685
      %v10687 = vrot.slane %v10576, 6
      %v10688 = vsel %vm9428, %v10685, %v10687
      %v10689 = vrot.slane %v10577, 6
      %v10690 = vrot.slane %v10578, 6
      %v10691 = vsel %vm9428, %v10689, %v10690
      %v10692 = vrot.slane %v10579, 6
      %v10693 = vsel %vm9428, %v10690, %v10692
      %v10694 = vrot.slane %v10580, 6
      %v10695 = vrot.slane %v10581, 6
      %v10696 = vsel %vm9428, %v10694, %v10695
      %v10697 = vrot.slane %v10582, 6
      %v10698 = vsel %vm9428, %v10695, %v10697
      %v10699 = vrot.slane %v10583, 6
      %v10700 = vrot.slane %v10584, 6
      %v10701 = vsel %vm9428, %v10699, %v10700
      %v10702 = vrot.slane %v10585, 6
      %v10703 = vsel %vm9428, %v10700, %v10702
      %v10704 = vrot.slane %v10586, 6
      %v10705 = vrot.slane %v10587, 6
      %v10706 = vsel %vm9428, %v10704, %v10705
      %v10707 = vrot.slane %v10588, 6
      %v10708 = vsel %vm9428, %v10705, %v10707
      %v10709 = vrot.slane %v10589, 6
      %v10710 = vrot.slane %v10590, 6
      %v10711 = vsel %vm9428, %v10709, %v10710
      %v10712 = vrot.slane %v10591, 6
      %v10713 = vsel %vm9428, %v10710, %v10712
      %v10714 = vrot.slane %v10592, 6
      %v10715 = vrot.slane %v10593, 6
      %v10716 = vsel %vm9428, %v10714, %v10715
      %v10717 = vrot.slane %v10594, 6
      %v10718 = vsel %vm9428, %v10715, %v10717
      %v10719 = vrot.slane %v10595, 6
      %v10720 = vrot.slane %v10596, 6
      %v10721 = vsel %vm9428, %v10719, %v10720
      %v10722 = vrot.slane %v10597, 6
      %v10723 = vsel %vm9428, %v10720, %v10722
      %v10724 = vrot.slane %v10598, 6
      %v10725 = vrot.slane %v10599, 6
      %v10726 = vsel %vm9428, %v10724, %v10725
      %v10727 = vrot.slane %v10600, 6
      %v10728 = vsel %vm9428, %v10725, %v10727
      %v10761 = vadd.f32 %v10273, %v10651
      %v10762 = vadd.f32 %v10274, %v10653
      %v10763 = vadd.f32 %v10275, %v10656
      %v10764 = vadd.f32 %v10276, %v10658
      %v10765 = vadd.f32 %v10277, %v10661
      %v10766 = vadd.f32 %v10278, %v10663
      %v10767 = vadd.f32 %v10279, %v10666
      %v10768 = vadd.f32 %v10280, %v10668
      %v10769 = vadd.f32 %v10281, %v10671
      %v10770 = vadd.f32 %v10282, %v10673
      %v10771 = vadd.f32 %v10283, %v10676
      %v10772 = vadd.f32 %v10284, %v10678
      %v10773 = vadd.f32 %v10285, %v10681
      %v10774 = vadd.f32 %v10286, %v10683
      %v10775 = vadd.f32 %v10287, %v10686
      %v10776 = vadd.f32 %v10288, %v10688
      %v10777 = vadd.f32 %v10289, %v10691
      %v10778 = vadd.f32 %v10290, %v10693
      %v10779 = vadd.f32 %v10291, %v10696
      %v10780 = vadd.f32 %v10292, %v10698
      %v10781 = vadd.f32 %v10293, %v10701
      %v10782 = vadd.f32 %v10294, %v10703
      %v10783 = vadd.f32 %v10295, %v10706
      %v10784 = vadd.f32 %v10296, %v10708
      %v10785 = vadd.f32 %v10297, %v10711
      %v10786 = vadd.f32 %v10298, %v10713
      %v10787 = vadd.f32 %v10299, %v10716
      %v10788 = vadd.f32 %v10300, %v10718
      %v10789 = vadd.f32 %v10301, %v10721
      %v10790 = vadd.f32 %v10302, %v10723
      %v10791 = vadd.f32 %v10303, %v10726
      %v10792 = vadd.f32 %v10304, %v10728
      %v10793 = vlaneseq
      %v10794 = vshrl.u32 %v10793, 7
      %v10795 = vsub.s32 0, %v10794
      %v10796 = vrot.slane %v239, %v10795
      %v10797 = vmul.f32 %v259, %v10796
      %v10798 = vmul.f32 %v260, %v10796
      %v10799 = vmul.f32 %v261, %v10796
      %v10800 = vmul.f32 %v262, %v10796
      %v10801 = vmul.f32 %v263, %v10796
      %v10802 = vmul.f32 %v264, %v10796
      %v10803 = vmul.f32 %v265, %v10796
      %v10804 = vmul.f32 %v266, %v10796
      %v10805 = vmul.f32 %v267, %v10796
      %v10806 = vmul.f32 %v268, %v10796
      %v10807 = vmul.f32 %v269, %v10796
      %v10808 = vmul.f32 %v270, %v10796
      %v10809 = vmul.f32 %v271, %v10796
      %v10810 = vmul.f32 %v272, %v10796
      %v10811 = vmul.f32 %v273, %v10796
      %v10812 = vmul.f32 %v274, %v10796
      %v10813 = vmul.f32 %v275, %v10796
      %v10814 = vmul.f32 %v276, %v10796
      %v10815 = vmul.f32 %v277, %v10796
      %v10816 = vmul.f32 %v278, %v10796
      %v10817 = vmul.f32 %v279, %v10796
      %v10818 = vmul.f32 %v280, %v10796
      %v10819 = vmul.f32 %v281, %v10796
      %v10820 = vmul.f32 %v282, %v10796
      %v10821 = vmul.f32 %v283, %v10796
      %v10822 = vmul.f32 %v284, %v10796
      %v10823 = vmul.f32 %v285, %v10796
      %v10824 = vmul.f32 %v286, %v10796
      %v10825 = vmul.f32 %v287, %v10796
      %v10826 = vmul.f32 %v288, %v10796
      %v10827 = vmul.f32 %v289, %v10796
      %v10828 = vmul.f32 %v290, %v10796
      %v10829 = vmul.f32 %v291, %v10796
      %v10830 = vmul.f32 %v292, %v10796
      %v10831 = vmul.f32 %v293, %v10796
      %v10832 = vmul.f32 %v294, %v10796
      %v10833 = vmul.f32 %v295, %v10796
      %v10834 = vmul.f32 %v296, %v10796
      %v10835 = vmul.f32 %v297, %v10796
      %v10836 = vmul.f32 %v298, %v10796
      %v10837 = vmul.f32 %v299, %v10796
      %v10838 = vmul.f32 %v300, %v10796
      %v10839 = vmul.f32 %v301, %v10796
      %v10840 = vmul.f32 %v302, %v10796
      %v10841 = vmul.f32 %v303, %v10796
      %v10842 = vmul.f32 %v304, %v10796
      %v10843 = vmul.f32 %v305, %v10796
      %v10844 = vmul.f32 %v306, %v10796
      %v10893 = vrot.slane %v10797, 6
      %v10894 = vrot.slane %v10798, 6
      %v10895 = vsel %vm9428, %v10893, %v10894
      %v10896 = vrot.slane %v10799, 6
      %v10897 = vsel %vm9428, %v10894, %v10896
      %v10898 = vrot.slane %v10800, 6
      %v10899 = vrot.slane %v10801, 6
      %v10900 = vsel %vm9428, %v10898, %v10899
      %v10901 = vrot.slane %v10802, 6
      %v10902 = vsel %vm9428, %v10899, %v10901
      %v10903 = vrot.slane %v10803, 6
      %v10904 = vrot.slane %v10804, 6
      %v10905 = vsel %vm9428, %v10903, %v10904
      %v10906 = vrot.slane %v10805, 6
      %v10907 = vsel %vm9428, %v10904, %v10906
      %v10908 = vrot.slane %v10806, 6
      %v10909 = vrot.slane %v10807, 6
      %v10910 = vsel %vm9428, %v10908, %v10909
      %v10911 = vrot.slane %v10808, 6
      %v10912 = vsel %vm9428, %v10909, %v10911
      %v10913 = vrot.slane %v10809, 6
      %v10914 = vrot.slane %v10810, 6
      %v10915 = vsel %vm9428, %v10913, %v10914
      %v10916 = vrot.slane %v10811, 6
      %v10917 = vsel %vm9428, %v10914, %v10916
      %v10918 = vrot.slane %v10812, 6
      %v10919 = vrot.slane %v10813, 6
      %v10920 = vsel %vm9428, %v10918, %v10919
      %v10921 = vrot.slane %v10814, 6
      %v10922 = vsel %vm9428, %v10919, %v10921
      %v10923 = vrot.slane %v10815, 6
      %v10924 = vrot.slane %v10816, 6
      %v10925 = vsel %vm9428, %v10923, %v10924
      %v10926 = vrot.slane %v10817, 6
      %v10927 = vsel %vm9428, %v10924, %v10926
      %v10928 = vrot.slane %v10818, 6
      %v10929 = vrot.slane %v10819, 6
      %v10930 = vsel %vm9428, %v10928, %v10929
      %v10931 = vrot.slane %v10820, 6
      %v10932 = vsel %vm9428, %v10929, %v10931
      %v10933 = vrot.slane %v10821, 6
      %v10934 = vrot.slane %v10822, 6
      %v10935 = vsel %vm9428, %v10933, %v10934
      %v10936 = vrot.slane %v10823, 6
      %v10937 = vsel %vm9428, %v10934, %v10936
      %v10938 = vrot.slane %v10824, 6
      %v10939 = vrot.slane %v10825, 6
      %v10940 = vsel %vm9428, %v10938, %v10939
      %v10941 = vrot.slane %v10826, 6
      %v10942 = vsel %vm9428, %v10939, %v10941
      %v10943 = vrot.slane %v10827, 6
      %v10944 = vrot.slane %v10828, 6
      %v10945 = vsel %vm9428, %v10943, %v10944
      %v10946 = vrot.slane %v10829, 6
      %v10947 = vsel %vm9428, %v10944, %v10946
      %v10948 = vrot.slane %v10830, 6
      %v10949 = vrot.slane %v10831, 6
      %v10950 = vsel %vm9428, %v10948, %v10949
      %v10951 = vrot.slane %v10832, 6
      %v10952 = vsel %vm9428, %v10949, %v10951
      %v10953 = vrot.slane %v10833, 6
      %v10954 = vrot.slane %v10834, 6
      %v10955 = vsel %vm9428, %v10953, %v10954
      %v10956 = vrot.slane %v10835, 6
      %v10957 = vsel %vm9428, %v10954, %v10956
      %v10958 = vrot.slane %v10836, 6
      %v10959 = vrot.slane %v10837, 6
      %v10960 = vsel %vm9428, %v10958, %v10959
      %v10961 = vrot.slane %v10838, 6
      %v10962 = vsel %vm9428, %v10959, %v10961
      %v10963 = vrot.slane %v10839, 6
      %v10964 = vrot.slane %v10840, 6
      %v10965 = vsel %vm9428, %v10963, %v10964
      %v10966 = vrot.slane %v10841, 6
      %v10967 = vsel %vm9428, %v10964, %v10966
      %v10968 = vrot.slane %v10842, 6
      %v10969 = vrot.slane %v10843, 6
      %v10970 = vsel %vm9428, %v10968, %v10969
      %v10971 = vrot.slane %v10844, 6
      %v10972 = vsel %vm9428, %v10969, %v10971
      %v11005 = vadd.f32 %v10517, %v10895
      %v11006 = vadd.f32 %v10518, %v10897
      %v11007 = vadd.f32 %v10519, %v10900
      %v11008 = vadd.f32 %v10520, %v10902
      %v11009 = vadd.f32 %v10521, %v10905
      %v11010 = vadd.f32 %v10522, %v10907
      %v11011 = vadd.f32 %v10523, %v10910
      %v11012 = vadd.f32 %v10524, %v10912
      %v11013 = vadd.f32 %v10525, %v10915
      %v11014 = vadd.f32 %v10526, %v10917
      %v11015 = vadd.f32 %v10527, %v10920
      %v11016 = vadd.f32 %v10528, %v10922
      %v11017 = vadd.f32 %v10529, %v10925
      %v11018 = vadd.f32 %v10530, %v10927
      %v11019 = vadd.f32 %v10531, %v10930
      %v11020 = vadd.f32 %v10532, %v10932
      %v11021 = vadd.f32 %v10533, %v10935
      %v11022 = vadd.f32 %v10534, %v10937
      %v11023 = vadd.f32 %v10535, %v10940
      %v11024 = vadd.f32 %v10536, %v10942
      %v11025 = vadd.f32 %v10537, %v10945
      %v11026 = vadd.f32 %v10538, %v10947
      %v11027 = vadd.f32 %v10539, %v10950
      %v11028 = vadd.f32 %v10540, %v10952
      %v11029 = vadd.f32 %v10541, %v10955
      %v11030 = vadd.f32 %v10542, %v10957
      %v11031 = vadd.f32 %v10543, %v10960
      %v11032 = vadd.f32 %v10544, %v10962
      %v11033 = vadd.f32 %v10545, %v10965
      %v11034 = vadd.f32 %v10546, %v10967
      %v11035 = vadd.f32 %v10547, %v10970
      %v11036 = vadd.f32 %v10548, %v10972
      %v11037 = vadd.f32 %v11005, %v10761
      %v11038 = vadd.f32 %v11006, %v10762
      %v11039 = vadd.f32 %v11007, %v10763
      %v11040 = vadd.f32 %v11008, %v10764
      %v11041 = vadd.f32 %v11009, %v10765
      %v11042 = vadd.f32 %v11010, %v10766
      %v11043 = vadd.f32 %v11011, %v10767
      %v11044 = vadd.f32 %v11012, %v10768
      %v11045 = vadd.f32 %v11013, %v10769
      %v11046 = vadd.f32 %v11014, %v10770
      %v11047 = vadd.f32 %v11015, %v10771
      %v11048 = vadd.f32 %v11016, %v10772
      %v11049 = vadd.f32 %v11017, %v10773
      %v11050 = vadd.f32 %v11018, %v10774
      %v11051 = vadd.f32 %v11019, %v10775
      %v11052 = vadd.f32 %v11020, %v10776
      %v11053 = vadd.f32 %v11021, %v10777
      %v11054 = vadd.f32 %v11022, %v10778
      %v11055 = vadd.f32 %v11023, %v10779
      %v11056 = vadd.f32 %v11024, %v10780
      %v11057 = vadd.f32 %v11025, %v10781
      %v11058 = vadd.f32 %v11026, %v10782
      %v11059 = vadd.f32 %v11027, %v10783
      %v11060 = vadd.f32 %v11028, %v10784
      %v11061 = vadd.f32 %v11029, %v10785
      %v11062 = vadd.f32 %v11030, %v10786
      %v11063 = vadd.f32 %v11031, %v10787
      %v11064 = vadd.f32 %v11032, %v10788
      %v11065 = vadd.f32 %v11033, %v10789
      %v11066 = vadd.f32 %v11034, %v10790
      %v11067 = vadd.f32 %v11035, %v10791
      %v11068 = vadd.f32 %v11036, %v10792
      %v11070 = vlaneseq
      %v11071 = vshrl.u32 %v11070, 7
      %v11072 = vsub.s32 0, %v11071
      %v11073 = vrot.slane %v240, %v11072
      %v11075 = vadd.f32 %v11037, %v11073
      %v11076 = vadd.f32 %v11038, %v11073
      %v11077 = vadd.f32 %v11039, %v11073
      %v11078 = vadd.f32 %v11040, %v11073
      %v11079 = vadd.f32 %v11041, %v11073
      %v11080 = vadd.f32 %v11042, %v11073
      %v11081 = vadd.f32 %v11043, %v11073
      %v11082 = vadd.f32 %v11044, %v11073
      %v11083 = vadd.f32 %v11045, %v11073
      %v11084 = vadd.f32 %v11046, %v11073
      %v11085 = vadd.f32 %v11047, %v11073
      %v11086 = vadd.f32 %v11048, %v11073
      %v11087 = vadd.f32 %v11049, %v11073
      %v11088 = vadd.f32 %v11050, %v11073
      %v11089 = vadd.f32 %v11051, %v11073
      %v11090 = vadd.f32 %v11052, %v11073
      %v11091 = vadd.f32 %v11053, %v11073
      %v11092 = vadd.f32 %v11054, %v11073
      %v11093 = vadd.f32 %v11055, %v11073
      %v11094 = vadd.f32 %v11056, %v11073
      %v11095 = vadd.f32 %v11057, %v11073
      %v11096 = vadd.f32 %v11058, %v11073
      %v11097 = vadd.f32 %v11059, %v11073
      %v11098 = vadd.f32 %v11060, %v11073
      %v11099 = vadd.f32 %v11061, %v11073
      %v11100 = vadd.f32 %v11062, %v11073
      %v11101 = vadd.f32 %v11063, %v11073
      %v11102 = vadd.f32 %v11064, %v11073
      %v11103 = vadd.f32 %v11065, %v11073
      %v11104 = vadd.f32 %v11066, %v11073
      %v11105 = vadd.f32 %v11067, %v11073
      %v11106 = vadd.f32 %v11068, %v11073
      %v11107 = vsub.f32 0.0, %v11075
      %v11108 = vsub.f32 0.0, %v11076
      %v11109 = vsub.f32 0.0, %v11077
      %v11110 = vsub.f32 0.0, %v11078
      %v11111 = vsub.f32 0.0, %v11079
      %v11112 = vsub.f32 0.0, %v11080
      %v11113 = vsub.f32 0.0, %v11081
      %v11114 = vsub.f32 0.0, %v11082
      %v11115 = vsub.f32 0.0, %v11083
      %v11116 = vsub.f32 0.0, %v11084
      %v11117 = vsub.f32 0.0, %v11085
      %v11118 = vsub.f32 0.0, %v11086
      %v11119 = vsub.f32 0.0, %v11087
      %v11120 = vsub.f32 0.0, %v11088
      %v11121 = vsub.f32 0.0, %v11089
      %v11122 = vsub.f32 0.0, %v11090
      %v11123 = vsub.f32 0.0, %v11091
      %v11124 = vsub.f32 0.0, %v11092
      %v11125 = vsub.f32 0.0, %v11093
      %v11126 = vsub.f32 0.0, %v11094
      %v11127 = vsub.f32 0.0, %v11095
      %v11128 = vsub.f32 0.0, %v11096
      %v11129 = vsub.f32 0.0, %v11097
      %v11130 = vsub.f32 0.0, %v11098
      %v11131 = vsub.f32 0.0, %v11099
      %v11132 = vsub.f32 0.0, %v11100
      %v11133 = vsub.f32 0.0, %v11101
      %v11134 = vsub.f32 0.0, %v11102
      %v11135 = vsub.f32 0.0, %v11103
      %v11136 = vsub.f32 0.0, %v11104
      %v11137 = vsub.f32 0.0, %v11105
      %v11138 = vsub.f32 0.0, %v11106
      %v11139 = vmul.f32 %v11107, 1.442695
      %v11140 = vpow.pop %v11139
      %v11141 = vmul.f32 %v11108, 1.442695
      %v11142 = vpow.pop %v11141
      %v11143 = vmul.f32 %v11109, 1.442695
      %v11144 = vpow.pop %v11143
      %v11145 = vmul.f32 %v11110, 1.442695
      %v11146 = vpow.pop %v11145
      %v11147 = vmul.f32 %v11111, 1.442695
      %v11148 = vpow.pop %v11147
      %v11149 = vmul.f32 %v11112, 1.442695
      %v11150 = vpow.pop %v11149
      %v11151 = vmul.f32 %v11113, 1.442695
      %v11152 = vpow.pop %v11151
      %v11153 = vmul.f32 %v11114, 1.442695
      %v11154 = vpow.pop %v11153
      %v11155 = vmul.f32 %v11115, 1.442695
      %v11156 = vpow.pop %v11155
      %v11157 = vmul.f32 %v11116, 1.442695
      %v11158 = vpow.pop %v11157
      %v11159 = vmul.f32 %v11117, 1.442695
      %v11160 = vpow.pop %v11159
      %v11161 = vmul.f32 %v11118, 1.442695
      %v11162 = vpow.pop %v11161
      %v11163 = vmul.f32 %v11119, 1.442695
      %v11164 = vpow.pop %v11163
      %v11165 = vmul.f32 %v11120, 1.442695
      %v11166 = vpow.pop %v11165
      %v11167 = vmul.f32 %v11121, 1.442695
      %v11168 = vpow.pop %v11167
      %v11169 = vmul.f32 %v11122, 1.442695
      %v11170 = vpow.pop %v11169
      %v11171 = vmul.f32 %v11123, 1.442695
      %v11172 = vpow.pop %v11171
      %v11173 = vmul.f32 %v11124, 1.442695
      %v11174 = vpow.pop %v11173
      %v11175 = vmul.f32 %v11125, 1.442695
      %v11176 = vpow.pop %v11175
      %v11177 = vmul.f32 %v11126, 1.442695
      %v11178 = vpow.pop %v11177
      %v11179 = vmul.f32 %v11127, 1.442695
      %v11180 = vpow.pop %v11179
      %v11181 = vmul.f32 %v11128, 1.442695
      %v11182 = vpow.pop %v11181
      %v11183 = vmul.f32 %v11129, 1.442695
      %v11184 = vpow.pop %v11183
      %v11185 = vmul.f32 %v11130, 1.442695
      %v11186 = vpow.pop %v11185
      %v11187 = vmul.f32 %v11131, 1.442695
      %v11188 = vpow.pop %v11187
      %v11189 = vmul.f32 %v11132, 1.442695
      %v11190 = vpow.pop %v11189
      %v11191 = vmul.f32 %v11133, 1.442695
      %v11192 = vpow.pop %v11191
      %v11193 = vmul.f32 %v11134, 1.442695
      %v11194 = vpow.pop %v11193
      %v11195 = vmul.f32 %v11135, 1.442695
      %v11196 = vpow.pop %v11195
      %v11197 = vmul.f32 %v11136, 1.442695
      %v11198 = vpow.pop %v11197
      %v11199 = vmul.f32 %v11137, 1.442695
      %v11200 = vpow.pop %v11199
      %v11201 = vmul.f32 %v11138, 1.442695
      %v11202 = vpow.pop %v11201
      %v11203 = vadd.f32 %v11140, 1.0
      %v11204 = vadd.f32 %v11142, 1.0
      %v11205 = vadd.f32 %v11144, 1.0
      %v11206 = vadd.f32 %v11146, 1.0
      %v11207 = vadd.f32 %v11148, 1.0
      %v11208 = vadd.f32 %v11150, 1.0
      %v11209 = vadd.f32 %v11152, 1.0
      %v11210 = vadd.f32 %v11154, 1.0
      %v11211 = vadd.f32 %v11156, 1.0
      %v11212 = vadd.f32 %v11158, 1.0
      %v11213 = vadd.f32 %v11160, 1.0
      %v11214 = vadd.f32 %v11162, 1.0
      %v11215 = vadd.f32 %v11164, 1.0
      %v11216 = vadd.f32 %v11166, 1.0
      %v11217 = vadd.f32 %v11168, 1.0
      %v11218 = vadd.f32 %v11170, 1.0
      %v11219 = vadd.f32 %v11172, 1.0
      %v11220 = vadd.f32 %v11174, 1.0
      %v11221 = vadd.f32 %v11176, 1.0
      %v11222 = vadd.f32 %v11178, 1.0
      %v11223 = vadd.f32 %v11180, 1.0
      %v11224 = vadd.f32 %v11182, 1.0
      %v11225 = vadd.f32 %v11184, 1.0
      %v11226 = vadd.f32 %v11186, 1.0
      %v11227 = vadd.f32 %v11188, 1.0
      %v11228 = vadd.f32 %v11190, 1.0
      %v11229 = vadd.f32 %v11192, 1.0
      %v11230 = vadd.f32 %v11194, 1.0
      %v11231 = vadd.f32 %v11196, 1.0
      %v11232 = vadd.f32 %v11198, 1.0
      %v11233 = vadd.f32 %v11200, 1.0
      %v11234 = vadd.f32 %v11202, 1.0
      %v11235 = vrcp.pop %v11203
      %v11236 = vrcp.pop %v11204
      %v11237 = vrcp.pop %v11205
      %v11238 = vrcp.pop %v11206
      %v11239 = vrcp.pop %v11207
      %v11240 = vrcp.pop %v11208
      %v11241 = vrcp.pop %v11209
      %v11242 = vrcp.pop %v11210
      %v11243 = vrcp.pop %v11211
      %v11244 = vrcp.pop %v11212
      %v11245 = vrcp.pop %v11213
      %v11246 = vrcp.pop %v11214
      %v11247 = vrcp.pop %v11215
      %v11248 = vrcp.pop %v11216
      %v11249 = vrcp.pop %v11217
      %v11250 = vrcp.pop %v11218
      %v11251 = vrcp.pop %v11219
      %v11252 = vrcp.pop %v11220
      %v11253 = vrcp.pop %v11221
      %v11254 = vrcp.pop %v11222
      %v11255 = vrcp.pop %v11223
      %v11256 = vrcp.pop %v11224
      %v11257 = vrcp.pop %v11225
      %v11258 = vrcp.pop %v11226
      %v11259 = vrcp.pop %v11227
      %v11260 = vrcp.pop %v11228
      %v11261 = vrcp.pop %v11229
      %v11262 = vrcp.pop %v11230
      %v11263 = vrcp.pop %v11231
      %v11264 = vrcp.pop %v11232
      %v11265 = vrcp.pop %v11233
      %v11266 = vrcp.pop %v11234
      %v11267 = vmul.f32 %v11075, %v11235
      %v11268 = vmul.f32 %v11076, %v11236
      %v11269 = vmul.f32 %v11077, %v11237
      %v11270 = vmul.f32 %v11078, %v11238
      %v11271 = vmul.f32 %v11079, %v11239
      %v11272 = vmul.f32 %v11080, %v11240
      %v11273 = vmul.f32 %v11081, %v11241
      %v11274 = vmul.f32 %v11082, %v11242
      %v11275 = vmul.f32 %v11083, %v11243
      %v11276 = vmul.f32 %v11084, %v11244
      %v11277 = vmul.f32 %v11085, %v11245
      %v11278 = vmul.f32 %v11086, %v11246
      %v11279 = vmul.f32 %v11087, %v11247
      %v11280 = vmul.f32 %v11088, %v11248
      %v11281 = vmul.f32 %v11089, %v11249
      %v11282 = vmul.f32 %v11090, %v11250
      %v11283 = vmul.f32 %v11091, %v11251
      %v11284 = vmul.f32 %v11092, %v11252
      %v11285 = vmul.f32 %v11093, %v11253
      %v11286 = vmul.f32 %v11094, %v11254
      %v11287 = vmul.f32 %v11095, %v11255
      %v11288 = vmul.f32 %v11096, %v11256
      %v11289 = vmul.f32 %v11097, %v11257
      %v11290 = vmul.f32 %v11098, %v11258
      %v11291 = vmul.f32 %v11099, %v11259
      %v11292 = vmul.f32 %v11100, %v11260
      %v11293 = vmul.f32 %v11101, %v11261
      %v11294 = vmul.f32 %v11102, %v11262
      %v11295 = vmul.f32 %v11103, %v11263
      %v11296 = vmul.f32 %v11104, %v11264
      %v11297 = vmul.f32 %v11105, %v11265
      %v11298 = vmul.f32 %v11106, %v11266
      %vm11299 = vcmask 31744
      %11300 = vst.msk [vmem:[%s232] sm:$0xff] %vm11299, %v11267
      %11301 = vst.msk [vmem:[%s232 + $0x8] sm:$0xff] %vm11299, %v11268
      %11302 = vst.msk [vmem:[%s232 + $0x10] sm:$0xff] %vm11299, %v11269
      %11303 = vst.msk [vmem:[%s232 + $0x18] sm:$0xff] %vm11299, %v11270
      %11304 = vst.msk [vmem:[%s232 + $0x20] sm:$0xff] %vm11299, %v11271
      %11305 = vst.msk [vmem:[%s232 + $0x28] sm:$0xff] %vm11299, %v11272
      %11306 = vst.msk [vmem:[%s232 + $0x30] sm:$0xff] %vm11299, %v11273
      %11307 = vst.msk [vmem:[%s232 + $0x38] sm:$0xff] %vm11299, %v11274
      %11308 = vst.msk [vmem:[%s232 + $0x40] sm:$0xff] %vm11299, %v11275
      %11309 = vst.msk [vmem:[%s232 + $0x48] sm:$0xff] %vm11299, %v11276
      %11310 = vst.msk [vmem:[%s232 + $0x50] sm:$0xff] %vm11299, %v11277
      %11311 = vst.msk [vmem:[%s232 + $0x58] sm:$0xff] %vm11299, %v11278
      %11312 = vst.msk [vmem:[%s232 + $0x60] sm:$0xff] %vm11299, %v11279
      %11313 = vst.msk [vmem:[%s232 + $0x68] sm:$0xff] %vm11299, %v11280
      %11314 = vst.msk [vmem:[%s232 + $0x70] sm:$0xff] %vm11299, %v11281
      %11315 = vst.msk [vmem:[%s232 + $0x78] sm:$0xff] %vm11299, %v11282
      %11316 = vst.msk [vmem:[%s232 + $0x80] sm:$0xff] %vm11299, %v11283
      %11317 = vst.msk [vmem:[%s232 + $0x88] sm:$0xff] %vm11299, %v11284
      %11318 = vst.msk [vmem:[%s232 + $0x90] sm:$0xff] %vm11299, %v11285
      %11319 = vst.msk [vmem:[%s232 + $0x98] sm:$0xff] %vm11299, %v11286
      %11320 = vst.msk [vmem:[%s232 + $0xa0] sm:$0xff] %vm11299, %v11287
      %11321 = vst.msk [vmem:[%s232 + $0xa8] sm:$0xff] %vm11299, %v11288
      %11322 = vst.msk [vmem:[%s232 + $0xb0] sm:$0xff] %vm11299, %v11289
      %11323 = vst.msk [vmem:[%s232 + $0xb8] sm:$0xff] %vm11299, %v11290
      %11324 = vst.msk [vmem:[%s232 + $0xc0] sm:$0xff] %vm11299, %v11291
      %11325 = vst.msk [vmem:[%s232 + $0xc8] sm:$0xff] %vm11299, %v11292
      %11326 = vst.msk [vmem:[%s232 + $0xd0] sm:$0xff] %vm11299, %v11293
      %11327 = vst.msk [vmem:[%s232 + $0xd8] sm:$0xff] %vm11299, %v11294
      %11328 = vst.msk [vmem:[%s232 + $0xe0] sm:$0xff] %vm11299, %v11295
      %11329 = vst.msk [vmem:[%s232 + $0xe8] sm:$0xff] %vm11299, %v11296
      %11330 = vst.msk [vmem:[%s232 + $0xf0] sm:$0xff] %vm11299, %v11297
      %11331 = vst.msk [vmem:[%s232 + $0xf8] sm:$0xff] %vm11299, %v11298
      %p11332 = scmp.lt.s32.totalorder %s18, 1
      %s11333 = scalar_select %p11332, %s18, 1
      %p11334 = scmp.lt.s32.totalorder %s19, 0
      %s11335 = scalar_select %p11334, %s19, 0
      %s11336 = smul.addr %s11333, 32
      %s11337 = sadd.s32 %s11335, %s11336
      %s11338 = smul.addr %s11337, 8
      %s11339 = scalar_lea.vmem %s3, %s11338
      // Predicated region
      $region33: #{tpu_custom_call.1} parent=31 // pred_check
        %p11340 = pneg %p126
      $region34: #{tpu_custom_call.1} parent=31 // pred_check_branch
        %11342 = sbr.rel (%p11340) target = $region36
      $region35: #{tpu_custom_call.1} parent=31 // pred_region
        _
      $region36: #{tpu_custom_call.1} parent=31 // pred_fallthru
        _
    $region32: #{tpu_custom_call.1} parent=5 // pred_fallthru
      _
    %p11343 = scmp.le.s32.totalorder 2, %s9
    // Predicated region
    $region37: #{tpu_custom_call.1} parent=5 // pred_check
      %p11344 = pneg %p11343
    $region38: #{tpu_custom_call.1} parent=5 // pred_check_branch
      %11346 = sbr.rel (%p11344) target = $region40
    $region39: #{tpu_custom_call.1} parent=5 // pred_region
      %s11347 = ssub.s32 %s9, 2
      // Predicated region
      $region41: #{tpu_custom_call.1} parent=39 // pred_check
        %p11348 = pneg %p132
      $region42: #{tpu_custom_call.1} parent=39 // pred_check_branch
        %11350 = sbr.rel (%p11348) target = $region44
      $region43: #{tpu_custom_call.1} parent=39 // pred_region
        %p11351 = scmp.lt.s32.totalorder %s20, 1
        %s11352 = scalar_select %p11351, %s20, 1
        %p11353 = scmp.lt.s32.totalorder %s21, 0
        %s11354 = scalar_select %p11353, %s21, 0
        %s11355 = smul.addr %s11352, 32
        %s11356 = sadd.s32 %s11354, %s11355
        %s11357 = smul.addr %s11356, 8
        %s11358 = scalar_lea.vmem %s3, %s11357
      $region44: #{tpu_custom_call.1} parent=39 // pred_fallthru
        _
    $region40: #{tpu_custom_call.1} parent=5 // pred_fallthru
      _
  $region6: #{tpu_custom_call.1} parent=0 // loop_footer
    %s13 = sadd.s32 1, %s9
  $region7: #{tpu_custom_call.1} parent=0 // loop_footer_branch
    %8 = sbr.rel target = $region3
  $region8: #{tpu_custom_call.1} parent=0 // loop_exit
    _

</llo_original>
